<compile_context>
chip_gen: v7x
topology: tpu7x:2x2x1
jax: 0.10.0
libtpu: 0.0.40
codegen_flags: <defaults>
</compile_context>

<pallas_src>
import numpy as np
import jax
import jax.numpy as jnp
from jax.experimental import pallas as pl
from jax.experimental.pallas import tpu as pltpu


def _round_up(v, m):
    return ((v + m - 1) // m) * m


def _pair_taps(taps):
    """Pair consecutive taps for K=128 packing.  An odd trailing tap is
    duplicated; its second weight half is zeroed at prep time so it
    contributes exactly once."""
    pairs = []
    for k in range(0, len(taps), 2):
        if k + 1 < len(taps):
            pairs.append((taps[k], taps[k + 1], True))
        else:
            pairs.append((taps[k], taps[k], False))
    return pairs


# ---------------------------------------------------------------------------
# Static shape plan (no width padding needed anymore).
# ---------------------------------------------------------------------------
def _plan(h, w):
    assert h % 4 == 0 and w % 4 == 0, "input spatial dims must be multiples of 4"
    oh1, ow1 = (h - 8) // 4 + 1, (w - 8) // 4 + 1
    assert oh1 % 2 == 0 and ow1 % 2 == 0, "conv1 output must be even for phase split"
    oh2, ow2 = (oh1 - 4) // 2 + 1, (ow1 - 4) // 2 + 1
    oh3, ow3 = oh2 - 2, ow2 - 2
    assert oh3 >= 1 and ow3 >= 1
    return dict(oh1=oh1, ow1=ow1, u1=oh1 // 2, v1=ow1 // 2,
                oh2=oh2, ow2=ow2, oh3=oh3, ow3=ow3)


# ---------------------------------------------------------------------------
# One-time weight re-layouts (hoisted out of the forward pass).
# ---------------------------------------------------------------------------
def prepare_kernel_params(params, h, w):
    pp = _plan(h, w)
    w1, w2, w3, wfc = params["w1"], params["w2"], params["w3"], params["w_fc"]
    cin = w1.shape[1]
    hidden = wfc.shape[0]
    assert w1.shape == (32, cin, 8, 8)
    assert w2.shape == (64, 32, 4, 4)
    assert w3.shape == (64, 64, 3, 3)
    assert wfc.shape == (hidden, 64 * pp["oh3"] * pp["ow3"])
    hp = _round_up(hidden, 128)
    bf16 = jnp.bfloat16

    # conv1: rows k = (i*8 + j)*cin + c; the 32 output channels are replicated
    # into 4 lane groups (consumed by conv2's K-packing).  MXU cost unchanged.
    w1m = jnp.transpose(w1, (2, 3, 1, 0)).reshape(64 * cin, 32)
    w1m = jnp.tile(w1m, (1, 4))                                   # [64*cin, 128]
    b1 = jnp.tile(params["b1"], 4).reshape(1, 128)

    # conv2 (stride 2, phase decomposition): one dense-K [128,128] block per
    # conv1 phase (p,q).  Row group g=2a+b holds the 32 cin channels of kernel
    # offset (i,j)=(2a+p, 2b+q); the 64 output channels are replicated into
    # two lane groups (consumed by conv3's K-packing).
    w2t = jnp.transpose(w2, (1, 2, 3, 0))                         # [32, 4, 4, 64]
    w2_blocks = []
    for p in range(2):
        for q in range(2):
            rows = [w2t[:, 2 * a + p, 2 * b + q, :]
                    for a in range(2) for b in range(2)]
            blk = jnp.concatenate(rows, axis=0)                   # [128, 64]
            w2_blocks.append(jnp.tile(blk, (1, 2)))               # [128, 128]
    w2s = jnp.stack(w2_blocks)                                    # [4, 128, 128]
    b2 = jnp.tile(params["b2"], 2).reshape(1, 128)

    # conv3 (3x3, stride 1): taps paired along K (rows = [tap1 ch | tap2 ch]);
    # output channels replicated into two lane groups (consumed by the FC).
    w3t = jnp.transpose(w3, (1, 2, 3, 0))                         # [64, 3, 3, 64]
    taps3 = [(i, j) for i in range(3) for j in range(3)]
    w3_blocks = []
    for t1, t2, second_valid in _pair_taps(taps3):
        r1 = w3t[:, t1[0], t1[1], :]
        r2 = w3t[:, t2[0], t2[1], :] if second_valid else jnp.zeros_like(r1)
        blk = jnp.concatenate([r1, r2], axis=0)                   # [128, 64]
        w3_blocks.append(jnp.tile(blk, (1, 2)))                   # [128, 128]
    w3s = jnp.stack(w3_blocks)                                    # [5, 128, 128]
    b3 = jnp.tile(params["b3"], 2).reshape(1, 128)

    # FC: the PyTorch NCHW flatten order (c*oh3*ow3 + y*ow3 + x) is folded into
    # the weight layout; spatial positions are paired along K.
    wfc_r = jnp.transpose(wfc.reshape(hidden, 64, pp["oh3"], pp["ow3"]),
                          (2, 3, 1, 0))                           # [oh3, ow3, 64, hidden]
    spots = [(y, x) for y in range(pp["oh3"]) for x in range(pp["ow3"])]
    fc_blocks = []
    for s1, s2, second_valid in _pair_taps(spots):
        r1 = wfc_r[s1[0], s1[1]]
        r2 = wfc_r[s2[0], s2[1]] if second_valid else jnp.zeros_like(r1)
        blk = jnp.concatenate([r1, r2], axis=0)                   # [128, hidden]
        fc_blocks.append(jnp.pad(blk, ((0, 0), (0, hp - hidden))))
    wfcs = jnp.stack(fc_blocks)                                   # [npairs, 128, hp]
    bfc = jnp.pad(params["b_fc"], (0, hp - hidden)).reshape(1, hp)

    return dict(w1=w1m.astype(bf16), b1=b1.astype(jnp.float32),
                w2=w2s.astype(bf16), b2=b2.astype(jnp.float32),
                w3=w3s.astype(bf16), b3=b3.astype(jnp.float32),
                wfc=wfcs.astype(bf16), bfc=bfc.astype(jnp.float32))


# ---------------------------------------------------------------------------
# JAX glue: phase-split im2col for conv1 on the raw input.
# Output layout (4, u1, v1, N, 64*cin): phase = p*2+q with conv1 output
# (oh, ow) = (2u+p, 2v+q); batch sits in the sublane slot so a batch block is
# a rectangular tile and all in-kernel reshapes stay vreg-dense.
# K order: k = (i*8 + j)*cin + c, matching prepare_kernel_params.
# ---------------------------------------------------------------------------
def _build_conv1_patches(x_nhwc, pp):
    n, h, w, c = x_nhwc.shape
    oh1, ow1, u1, v1 = pp["oh1"], pp["ow1"], pp["u1"], pp["v1"]
    xr = x_nhwc.reshape(n, h // 4, 4, w // 4, 4, c)
    parts = [xr[:, a:a + oh1, :, b:b + ow1, :, :] for a in range(2) for b in range(2)]
    pat = jnp.stack(parts, axis=0).reshape(2, 2, n, oh1, 4, ow1, 4, c)
    pat = jnp.transpose(pat, (2, 3, 5, 0, 4, 1, 6, 7))   # (n, oh, ow, a, r, b, s, c)
    pat = pat.reshape(n, oh1, ow1, 64 * c)                # k = (i*8 + j)*cin + c
    pat = pat.reshape(n, u1, 2, v1, 2, 64 * c)            # (n, u, p, v, q, k)
    pat = jnp.transpose(pat, (2, 4, 1, 3, 0, 5))          # (p, q, u, v, n, k)
    return pat.reshape(4, u1, v1, n, 64 * c)


# ---------------------------------------------------------------------------
# Fused forward: one pallas_call, batch-tiled grid.
# batch_tile is the per-core VMEM knob: 16 here; ~64-128 still fits v7x's
# 64 MiB VMEM, larger on v5e/v6e (128 MiB).
# ---------------------------------------------------------------------------
def conv_body_forward(x_nchw, kp, *, hidden_size, batch_tile=16):
    n, cin, h, w = x_nchw.shape
    pp = _plan(h, w)
    u1, v1 = pp["u1"], pp["v1"]
    oh2, ow2 = pp["oh2"], pp["ow2"]
    oh3, ow3 = pp["oh3"], pp["ow3"]
    k1 = 64 * cin
    hp = kp["wfc"].shape[-1]
    assert hp == _round_up(hidden_size, 128)
    bt = batch_tile
    assert bt % 16 == 0, "batch tile must be a multiple of 16 (bf16 sublane tile)"
    nbp = _round_up(n, bt)
    nblk = nbp // bt

    pairs3 = _pair_taps([(i, j) for i in range(3) for j in range(3)])
    pairsf = _pair_taps([(y, x) for y in range(oh3) for x in range(ow3)])
    assert kp["w3"].shape[0] == len(pairs3)
    assert kp["wfc"].shape[0] == len(pairsf)

    # Wrapper glue: NCHW -> NHWC, phase-split im2col, batch pad, bf16 cast.
    x = jnp.transpose(x_nchw, (0, 2, 3, 1)).astype(jnp.float32)
    p1 = _build_conv1_patches(x, pp)                      # (4, u1, v1, n, k1)
    if nbp != n:
        p1 = jnp.pad(p1, ((0, 0),) * 3 + ((0, nbp - n), (0, 0)))
    p1 = p1.astype(jnp.bfloat16)

    m1 = 4 * u1 * v1 * bt
    m2 = oh2 * ow2 * bt
    m3 = oh3 * ow3 * bt
    f32, bf16 = jnp.float32, jnp.bfloat16

    def kernel(p1_ref, w1_ref, b1_ref, w2_ref, b2_ref, w3_ref, b3_ref,
               wfc_ref, bfc_ref, o_ref, a1_ref, a2_ref, a3_ref):
        # ---- conv1 + ReLU: one MXU matmul; 32 channels replicated x4 in lanes.
        y1 = jnp.dot(p1_ref[...].reshape(m1, k1), w1_ref[...],
                     preferred_element_type=f32)
        y1 = jnp.maximum(y1 + b1_ref[...], 0.0)
        a1_ref[...] = y1.astype(bf16).reshape(a1_ref.shape)

        # ---- conv2 + ReLU (stride 2): 4 dense-K matmuls, one per conv1 phase.
        # Tap (a,b) of phase (p,q) is kernel offset (2a+p, 2b+q); the four taps
        # are packed into lane quarters via selects (a1 holds 4 lane replicas).
        lane2 = jax.lax.broadcasted_iota(jnp.int32, (oh2, ow2, bt, 128), 3)
        g0, g1, g2 = lane2 < 32, lane2 < 64, lane2 < 96
        for ph in range(4):
            taps = [a1_ref[ph, a:a + oh2, b:b + ow2, :, :]
                    for a in range(2) for b in range(2)]
            packed = jnp.where(g0, taps[0],
                               jnp.where(g1, taps[1],
                                         jnp.where(g2, taps[2], taps[3])))
            y = jnp.dot(packed.reshape(m2, 128), w2_ref[ph],
                        preferred_element_type=f32)
            if ph == 0:
                a2_ref[...] = (y + b2_ref[...]).reshape(a2_ref.shape)
            else:
                a2_ref[...] += y.reshape(a2_ref.shape)
        a2_ref[...] = jnp.maximum(a2_ref[...], 0.0)

        # ---- conv3 + ReLU (3x3, stride 1): taps paired along K -> 5 matmuls.
        lo3 = jax.lax.broadcasted_iota(jnp.int32, (oh3, ow3, bt, 128), 3) < 64
        for idx, (t1, t2, _) in enumerate(pairs3):
            xa = a2_ref[t1[0]:t1[0] + oh3, t1[1]:t1[1] + ow3, :, :]
            xb = a2_ref[t2[0]:t2[0] + oh3, t2[1]:t2[1] + ow3, :, :]
            packed = jnp.where(lo3, xa, xb).astype(bf16)
            y = jnp.dot(packed.reshape(m3, 128), w3_ref[idx],
                        preferred_element_type=f32)
            if idx == 0:
                a3_ref[...] = (y + b3_ref[...]).reshape(a3_ref.shape)
            else:
                a3_ref[...] += y.reshape(a3_ref.shape)
        a3_ref[...] = jnp.maximum(a3_ref[...], 0.0)

        # ---- Flatten (NCHW order folded into wfc) + Linear + ReLU.
        lof = jax.lax.broadcasted_iota(jnp.int32, (bt, 128), 1) < 64
        acc = None
        for idx, (s1, s2, _) in enumerate(pairsf):
            xa = a3_ref[s1[0], s1[1], :, :]
            xb = a3_ref[s2[0], s2[1], :, :]
            packed = jnp.where(lof, xa, xb).astype(bf16)
            y = jnp.dot(packed, wfc_ref[idx], preferred_element_type=f32)
            acc = y if acc is None else acc + y
        o_ref[...] = jnp.maximum(acc + bfc_ref[...], 0.0)

    def resident(shape):
        zeros = (0,) * len(shape)
        return pl.BlockSpec(shape, lambda i: zeros)   # VMEM-resident across grid

    in_specs = [
        pl.BlockSpec((4, u1, v1, bt, k1), lambda i: (0, 0, 0, i, 0)),  # p1 batch block
        resident(kp["w1"].shape), resident(kp["b1"].shape),
        resident(kp["w2"].shape), resident(kp["b2"].shape),
        resident(kp["w3"].shape), resident(kp["b3"].shape),
        resident(kp["wfc"].shape), resident(kp["bfc"].shape),
    ]

    out = pl.pallas_call(
        kernel,
        out_shape=jax.ShapeDtypeStruct((nbp, hp), jnp.float32),
        grid=(nblk,),
        in_specs=in_specs,
        out_specs=pl.BlockSpec((bt, hp), lambda i: (i, 0)),
        scratch_shapes=[
            pltpu.VMEM((4, u1, v1, bt, 128), bf16),    # conv1 act (phase-split, x4 lane replicas)
            pltpu.VMEM((oh2, ow2, bt, 128), f32),      # conv2 acc/act (x2 lane replicas)
            pltpu.VMEM((oh3, ow3, bt, 128), f32),      # conv3 acc/act (x2 lane replicas)
        ],
        compiler_params=pltpu.CompilerParams(
            dimension_semantics=("parallel",),          # batch blocks -> both TCs on v7x
            vmem_limit_bytes=32 * 1024 * 1024,
        ),
    )(p1, kp["w1"], kp["b1"], kp["w2"], kp["b2"], kp["w3"], kp["b3"],
      kp["wfc"], kp["bfc"])
    return out[:n, :hidden_size]


# ---------------------------------------------------------------------------
# Deterministic orthogonal init (same semantics as torch.nn.init.orthogonal_).
# ---------------------------------------------------------------------------
def orthogonal_init(key, shape, gain):
    rows = shape[0]
    cols = int(np.prod(shape[1:]))
    a = jax.random.normal(key, (max(rows, cols), min(rows, cols)), dtype=jnp.float32)
    q, r = jnp.linalg.qr(a)
    q = q * jnp.sign(jnp.diagonal(r))
    if rows < cols:
        q = q.T
    return (gain * q).reshape(shape).astype(jnp.float32)


# ---------------------------------------------------------------------------
# Pure-JAX f32 reference (validates the fused Pallas path).
# ---------------------------------------------------------------------------
def conv_body_reference(x_nchw, params):
    x = jnp.transpose(x_nchw, (0, 2, 3, 1))
    for wgt, b, s in ((params["w1"], params["b1"], 4),
                      (params["w2"], params["b2"], 2),
                      (params["w3"], params["b3"], 1)):
        w_hwio = jnp.transpose(wgt, (2, 3, 1, 0))
        x = jax.lax.conv_general_dilated(
            x, w_hwio, window_strides=(s, s), padding="VALID",
            dimension_numbers=("NHWC", "HWIO", "NHWC"))
        x = jnp.maximum(x + b.reshape(1, 1, 1, -1), 0.0)
    x = jnp.transpose(x, (0, 3, 1, 2)).reshape(x.shape[0], -1)
    return jnp.maximum(x @ params["w_fc"].T + params["b_fc"], 0.0)


if __name__ == "__main__":
    # Small shapes: 52x52 -> 12x12 -> 5x5 -> 3x3, flatten_size = 64*3*3.
    # N=24 exercises batch padding (two batch blocks of 16 -> grid=(2,)).
    N, CIN, H, W = 24, 1, 52, 52
    HIDDEN = 128
    FLATTEN = 64 * 3 * 3

    key = jax.random.PRNGKey(0)
    k_x, k1, k2, k3, k4 = jax.random.split(key, 5)
    gain = float(np.sqrt(2.0))  # nn.init.calculate_gain('relu')

    params = {
        "w1": orthogonal_init(k1, (32, CIN, 8, 8), gain),
        "b1": jnp.zeros((32,), jnp.float32),
        "w2": orthogonal_init(k2, (64, 32, 4, 4), gain),
        "b2": jnp.zeros((64,), jnp.float32),
        "w3": orthogonal_init(k3, (64, 64, 3, 3), gain),
        "b3": jnp.zeros((64,), jnp.float32),
        "w_fc": orthogonal_init(k4, (HIDDEN, FLATTEN), gain),
        "b_fc": jnp.zeros((HIDDEN,), jnp.float32),
    }

    # Hoisted, one-time weight re-layouts (not part of the per-call forward).
    kp = prepare_kernel_params(params, H, W)

    x = jax.random.normal(k_x, (N, CIN, H, W), dtype=jnp.float32)

    fwd = jax.jit(conv_body_forward, static_argnames=("hidden_size", "batch_tile"))
    out = jax.block_until_ready(fwd(x, kp, hidden_size=HIDDEN, batch_tile=16))
    ref = jax.block_until_ready(jax.jit(conv_body_reference)(x, params))

    assert out.shape == (N, HIDDEN), out.shape
    # bf16 operands with f32 accumulation: allow small mixed-precision error.
    np.testing.assert_allclose(np.asarray(out), np.asarray(ref), rtol=5e-2, atol=1.5e-1)

    print("KERNEL_OK")
</pallas_src>

<mosaic_0001>
module attributes {stable_mosaic.version = 11 : i64} {
  func.func @kernel(%arg0: i32, %arg1: memref<4x6x6x16x64xbf16, #tpu.memory_space<vmem>>, %arg2: memref<64x128xbf16, #tpu.memory_space<vmem>>, %arg3: memref<1x128xf32, #tpu.memory_space<vmem>>, %arg4: memref<4x128x128xbf16, #tpu.memory_space<vmem>>, %arg5: memref<1x128xf32, #tpu.memory_space<vmem>>, %arg6: memref<5x128x128xbf16, #tpu.memory_space<vmem>>, %arg7: memref<1x128xf32, #tpu.memory_space<vmem>>, %arg8: memref<5x128x128xbf16, #tpu.memory_space<vmem>>, %arg9: memref<1x128xf32, #tpu.memory_space<vmem>>, %arg10: memref<16x128xf32, #tpu.memory_space<vmem>>, %arg11: memref<4x6x6x16x128xbf16, #tpu.memory_space<vmem>>, %arg12: memref<5x5x16x128xf32, #tpu.memory_space<vmem>>, %arg13: memref<3x3x16x128xf32, #tpu.memory_space<vmem>>) attributes {dimension_semantics = [#tpu.dimension_semantics<parallel>], iteration_bounds = array<i64: 2>, scalar_prefetch = 0 : i64, scratch_operands = 3 : i64, tpu.core_type = #tpu.core_type<tc>, window_params = [{transform_indices = @transform_0, window_bounds = array<i64: 4, 6, 6, 16, 64>}, {pipeline_mode = #tpu.pipeline_mode<synchronous>, transform_indices = @transform_1, window_bounds = array<i64: 64, 128>}, {pipeline_mode = #tpu.pipeline_mode<synchronous>, transform_indices = @transform_2, window_bounds = array<i64: 1, 128>}, {pipeline_mode = #tpu.pipeline_mode<synchronous>, transform_indices = @transform_3, window_bounds = array<i64: 4, 128, 128>}, {pipeline_mode = #tpu.pipeline_mode<synchronous>, transform_indices = @transform_4, window_bounds = array<i64: 1, 128>}, {pipeline_mode = #tpu.pipeline_mode<synchronous>, transform_indices = @transform_5, window_bounds = array<i64: 5, 128, 128>}, {pipeline_mode = #tpu.pipeline_mode<synchronous>, transform_indices = @transform_6, window_bounds = array<i64: 1, 128>}, {pipeline_mode = #tpu.pipeline_mode<synchronous>, transform_indices = @transform_7, window_bounds = array<i64: 5, 128, 128>}, {pipeline_mode = #tpu.pipeline_mode<synchronous>, transform_indices = @transform_8, window_bounds = array<i64: 1, 128>}, {transform_indices = @transform_9, window_bounds = array<i64: 16, 128>}]} {
    %c0 = arith.constant 0 : index
    %c0_0 = arith.constant 0 : index
    %c0_1 = arith.constant 0 : index
    %c0_2 = arith.constant 0 : index
    %c0_3 = arith.constant 0 : index
    %0 = vector.load %arg1[%c0, %c0_0, %c0_1, %c0_2, %c0_3] : memref<4x6x6x16x64xbf16, #tpu.memory_space<vmem>>, vector<4x6x6x16x64xbf16>
    %1 = vector.shape_cast %0 : vector<4x6x6x16x64xbf16> to vector<2304x64xbf16>
    %c0_4 = arith.constant 0 : index
    %c0_5 = arith.constant 0 : index
    %2 = vector.load %arg2[%c0_4, %c0_5] : memref<64x128xbf16, #tpu.memory_space<vmem>>, vector<64x128xbf16>
    %cst = arith.constant dense<0.000000e+00> : vector<2304x128xf32>
    %3 = tpu.matmul %1, %2, %cst {dimension_numbers = #tpu.dot_dimension_numbers<[1], [0], [0], [1], [0, 0, 1, 1], [], []>} : vector<2304x64xbf16>, vector<64x128xbf16>, vector<2304x128xf32> -> vector<2304x128xf32>
    %c0_6 = arith.constant 0 : index
    %c0_7 = arith.constant 0 : index
    %4 = vector.load %arg3[%c0_6, %c0_7] : memref<1x128xf32, #tpu.memory_space<vmem>>, vector<1x128xf32>
    %5 = vector.broadcast %4 : vector<1x128xf32> to vector<2304x128xf32>
    %6 = arith.addf %3, %5 : vector<2304x128xf32>
    %cst_8 = arith.constant 0.000000e+00 : f32
    %7 = vector.broadcast %cst_8 : f32 to vector<2304x128xf32>
    %8 = arith.maximumf %6, %7 : vector<2304x128xf32>
    %9 = arith.truncf %8 : vector<2304x128xf32> to vector<2304x128xbf16>
    %10 = vector.shape_cast %9 : vector<2304x128xbf16> to vector<4x6x6x16x128xbf16>
    %c0_9 = arith.constant 0 : index
    %c0_10 = arith.constant 0 : index
    %c0_11 = arith.constant 0 : index
    %c0_12 = arith.constant 0 : index
    %c0_13 = arith.constant 0 : index
    %11 = vector.load %arg11[%c0_9, %c0_10, %c0_11, %c0_12, %c0_13] : memref<4x6x6x16x128xbf16, #tpu.memory_space<vmem>>, vector<4x6x6x16x128xbf16>
    tpu.vector_store %arg11[%c0_9, %c0_10, %c0_11, %c0_12, %c0_13], %10 {strides = array<i32>} : memref<4x6x6x16x128xbf16, #tpu.memory_space<vmem>>, vector<4x6x6x16x128xbf16>,
    %12 = tpu.iota {dimensions = array<i32: 3>} : vector<5x5x16x128xi32>
    %c32_i32 = arith.constant 32 : i32
    %13 = vector.broadcast %c32_i32 : i32 to vector<5x5x16x128xi32>
    %14 = arith.cmpi slt, %12, %13 : vector<5x5x16x128xi32>
    %c64_i32 = arith.constant 64 : i32
    %15 = vector.broadcast %c64_i32 : i32 to vector<5x5x16x128xi32>
    %16 = arith.cmpi slt, %12, %15 : vector<5x5x16x128xi32>
    %c96_i32 = arith.constant 96 : i32
    %17 = vector.broadcast %c96_i32 : i32 to vector<5x5x16x128xi32>
    %18 = arith.cmpi slt, %12, %17 : vector<5x5x16x128xi32>
    %c0_14 = arith.constant 0 : index
    %c0_15 = arith.constant 0 : index
    %c0_16 = arith.constant 0 : index
    %c0_17 = arith.constant 0 : index
    %c0_18 = arith.constant 0 : index
    %19 = vector.load %arg11[%c0_14, %c0_15, %c0_16, %c0_17, %c0_18] : memref<4x6x6x16x128xbf16, #tpu.memory_space<vmem>>, vector<1x5x5x16x128xbf16>
    %20 = vector.shape_cast %19 : vector<1x5x5x16x128xbf16> to vector<5x5x16x128xbf16>
    %c0_19 = arith.constant 0 : index
    %c0_20 = arith.constant 0 : index
    %c1 = arith.constant 1 : index
    %c0_21 = arith.constant 0 : index
    %c0_22 = arith.constant 0 : index
    %21 = vector.load %arg11[%c0_19, %c0_20, %c1, %c0_21, %c0_22] : memref<4x6x6x16x128xbf16, #tpu.memory_space<vmem>>, vector<1x5x5x16x128xbf16>
    %22 = vector.shape_cast %21 : vector<1x5x5x16x128xbf16> to vector<5x5x16x128xbf16>
    %c0_23 = arith.constant 0 : index
    %c1_24 = arith.constant 1 : index
    %c0_25 = arith.constant 0 : index
    %c0_26 = arith.constant 0 : index
    %c0_27 = arith.constant 0 : index
    %23 = vector.load %arg11[%c0_23, %c1_24, %c0_25, %c0_26, %c0_27] : memref<4x6x6x16x128xbf16, #tpu.memory_space<vmem>>, vector<1x5x5x16x128xbf16>
    %24 = vector.shape_cast %23 : vector<1x5x5x16x128xbf16> to vector<5x5x16x128xbf16>
    %c0_28 = arith.constant 0 : index
    %c1_29 = arith.constant 1 : index
    %c1_30 = arith.constant 1 : index
    %c0_31 = arith.constant 0 : index
    %c0_32 = arith.constant 0 : index
    %25 = vector.load %arg11[%c0_28, %c1_29, %c1_30, %c0_31, %c0_32] : memref<4x6x6x16x128xbf16, #tpu.memory_space<vmem>>, vector<1x5x5x16x128xbf16>
    %26 = vector.shape_cast %25 : vector<1x5x5x16x128xbf16> to vector<5x5x16x128xbf16>
    %27 = arith.select %18, %24, %26 : vector<5x5x16x128xi1>, vector<5x5x16x128xbf16>
    %28 = arith.select %16, %22, %27 : vector<5x5x16x128xi1>, vector<5x5x16x128xbf16>
    %29 = arith.select %14, %20, %28 : vector<5x5x16x128xi1>, vector<5x5x16x128xbf16>
    %30 = vector.shape_cast %29 : vector<5x5x16x128xbf16> to vector<400x128xbf16>
    %c0_33 = arith.constant 0 : index
    %c0_34 = arith.constant 0 : index
    %c0_35 = arith.constant 0 : index
    %31 = vector.load %arg4[%c0_33, %c0_34, %c0_35] : memref<4x128x128xbf16, #tpu.memory_space<vmem>>, vector<1x128x128xbf16>
    %32 = vector.shape_cast %31 : vector<1x128x128xbf16> to vector<128x128xbf16>
    %cst_36 = arith.constant dense<0.000000e+00> : vector<400x128xf32>
    %33 = tpu.matmul %30, %32, %cst_36 {dimension_numbers = #tpu.dot_dimension_numbers<[1], [0], [0], [1], [0, 0, 1, 1], [], []>} : vector<400x128xbf16>, vector<128x128xbf16>, vector<400x128xf32> -> vector<400x128xf32>
    %c0_37 = arith.constant 0 : index
    %c0_38 = arith.constant 0 : index
    %34 = vector.load %arg5[%c0_37, %c0_38] : memref<1x128xf32, #tpu.memory_space<vmem>>, vector<1x128xf32>
    %35 = vector.broadcast %34 : vector<1x128xf32> to vector<400x128xf32>
    %36 = arith.addf %33, %35 : vector<400x128xf32>
    %37 = vector.shape_cast %36 : vector<400x128xf32> to vector<5x5x16x128xf32>
    %c0_39 = arith.constant 0 : index
    %c0_40 = arith.constant 0 : index
    %c0_41 = arith.constant 0 : index
    %c0_42 = arith.constant 0 : index
    %38 = vector.load %arg12[%c0_39, %c0_40, %c0_41, %c0_42] : memref<5x5x16x128xf32, #tpu.memory_space<vmem>>, vector<5x5x16x128xf32>
    tpu.vector_store %arg12[%c0_39, %c0_40, %c0_41, %c0_42], %37 {strides = array<i32>} : memref<5x5x16x128xf32, #tpu.memory_space<vmem>>, vector<5x5x16x128xf32>,
    %c1_43 = arith.constant 1 : index
    %c0_44 = arith.constant 0 : index
    %c0_45 = arith.constant 0 : index
    %c0_46 = arith.constant 0 : index
    %c0_47 = arith.constant 0 : index
    %39 = vector.load %arg11[%c1_43, %c0_44, %c0_45, %c0_46, %c0_47] : memref<4x6x6x16x128xbf16, #tpu.memory_space<vmem>>, vector<1x5x5x16x128xbf16>
    %40 = vector.shape_cast %39 : vector<1x5x5x16x128xbf16> to vector<5x5x16x128xbf16>
    %c1_48 = arith.constant 1 : index
    %c0_49 = arith.constant 0 : index
    %c1_50 = arith.constant 1 : index
    %c0_51 = arith.constant 0 : index
    %c0_52 = arith.constant 0 : index
    %41 = vector.load %arg11[%c1_48, %c0_49, %c1_50, %c0_51, %c0_52] : memref<4x6x6x16x128xbf16, #tpu.memory_space<vmem>>, vector<1x5x5x16x128xbf16>
    %42 = vector.shape_cast %41 : vector<1x5x5x16x128xbf16> to vector<5x5x16x128xbf16>
    %c1_53 = arith.constant 1 : index
    %c1_54 = arith.constant 1 : index
    %c0_55 = arith.constant 0 : index
    %c0_56 = arith.constant 0 : index
    %c0_57 = arith.constant 0 : index
    %43 = vector.load %arg11[%c1_53, %c1_54, %c0_55, %c0_56, %c0_57] : memref<4x6x6x16x128xbf16, #tpu.memory_space<vmem>>, vector<1x5x5x16x128xbf16>
    %44 = vector.shape_cast %43 : vector<1x5x5x16x128xbf16> to vector<5x5x16x128xbf16>
    %c1_58 = arith.constant 1 : index
    %c1_59 = arith.constant 1 : index
    %c1_60 = arith.constant 1 : index
    %c0_61 = arith.constant 0 : index
    %c0_62 = arith.constant 0 : index
    %45 = vector.load %arg11[%c1_58, %c1_59, %c1_60, %c0_61, %c0_62] : memref<4x6x6x16x128xbf16, #tpu.memory_space<vmem>>, vector<1x5x5x16x128xbf16>
    %46 = vector.shape_cast %45 : vector<1x5x5x16x128xbf16> to vector<5x5x16x128xbf16>
    %47 = arith.select %18, %44, %46 : vector<5x5x16x128xi1>, vector<5x5x16x128xbf16>
    %48 = arith.select %16, %42, %47 : vector<5x5x16x128xi1>, vector<5x5x16x128xbf16>
    %49 = arith.select %14, %40, %48 : vector<5x5x16x128xi1>, vector<5x5x16x128xbf16>
    %50 = vector.shape_cast %49 : vector<5x5x16x128xbf16> to vector<400x128xbf16>
    %c1_63 = arith.constant 1 : index
    %c0_64 = arith.constant 0 : index
    %c0_65 = arith.constant 0 : index
    %51 = vector.load %arg4[%c1_63, %c0_64, %c0_65] : memref<4x128x128xbf16, #tpu.memory_space<vmem>>, vector<1x128x128xbf16>
    %52 = vector.shape_cast %51 : vector<1x128x128xbf16> to vector<128x128xbf16>
    %cst_66 = arith.constant dense<0.000000e+00> : vector<400x128xf32>
    %53 = tpu.matmul %50, %52, %cst_66 {dimension_numbers = #tpu.dot_dimension_numbers<[1], [0], [0], [1], [0, 0, 1, 1], [], []>} : vector<400x128xbf16>, vector<128x128xbf16>, vector<400x128xf32> -> vector<400x128xf32>
    %c0_67 = arith.constant 0 : index
    %c0_68 = arith.constant 0 : index
    %c0_69 = arith.constant 0 : index
    %c0_70 = arith.constant 0 : index
    %54 = vector.load %arg12[%c0_67, %c0_68, %c0_69, %c0_70] : memref<5x5x16x128xf32, #tpu.memory_space<vmem>>, vector<5x5x16x128xf32>
    %55 = vector.shape_cast %53 : vector<400x128xf32> to vector<5x5x16x128xf32>
    %56 = arith.addf %54, %55 : vector<5x5x16x128xf32>
    %c0_71 = arith.constant 0 : index
    %c0_72 = arith.constant 0 : index
    %c0_73 = arith.constant 0 : index
    %c0_74 = arith.constant 0 : index
    %57 = vector.load %arg12[%c0_71, %c0_72, %c0_73, %c0_74] : memref<5x5x16x128xf32, #tpu.memory_space<vmem>>, vector<5x5x16x128xf32>
    tpu.vector_store %arg12[%c0_71, %c0_72, %c0_73, %c0_74], %56 {strides = array<i32>} : memref<5x5x16x128xf32, #tpu.memory_space<vmem>>, vector<5x5x16x128xf32>,
    %c2 = arith.constant 2 : index
    %c0_75 = arith.constant 0 : index
    %c0_76 = arith.constant 0 : index
    %c0_77 = arith.constant 0 : index
    %c0_78 = arith.constant 0 : index
    %58 = vector.load %arg11[%c2, %c0_75, %c0_76, %c0_77, %c0_78] : memref<4x6x6x16x128xbf16, #tpu.memory_space<vmem>>, vector<1x5x5x16x128xbf16>
    %59 = vector.shape_cast %58 : vector<1x5x5x16x128xbf16> to vector<5x5x16x128xbf16>
    %c2_79 = arith.constant 2 : index
    %c0_80 = arith.constant 0 : index
    %c1_81 = arith.constant 1 : index
    %c0_82 = arith.constant 0 : index
    %c0_83 = arith.constant 0 : index
    %60 = vector.load %arg11[%c2_79, %c0_80, %c1_81, %c0_82, %c0_83] : memref<4x6x6x16x128xbf16, #tpu.memory_space<vmem>>, vector<1x5x5x16x128xbf16>
    %61 = vector.shape_cast %60 : vector<1x5x5x16x128xbf16> to vector<5x5x16x128xbf16>
    %c2_84 = arith.constant 2 : index
    %c1_85 = arith.constant 1 : index
    %c0_86 = arith.constant 0 : index
    %c0_87 = arith.constant 0 : index
    %c0_88 = arith.constant 0 : index
    %62 = vector.load %arg11[%c2_84, %c1_85, %c0_86, %c0_87, %c0_88] : memref<4x6x6x16x128xbf16, #tpu.memory_space<vmem>>, vector<1x5x5x16x128xbf16>
    %63 = vector.shape_cast %62 : vector<1x5x5x16x128xbf16> to vector<5x5x16x128xbf16>
    %c2_89 = arith.constant 2 : index
    %c1_90 = arith.constant 1 : index
    %c1_91 = arith.constant 1 : index
    %c0_92 = arith.constant 0 : index
    %c0_93 = arith.constant 0 : index
    %64 = vector.load %arg11[%c2_89, %c1_90, %c1_91, %c0_92, %c0_93] : memref<4x6x6x16x128xbf16, #tpu.memory_space<vmem>>, vector<1x5x5x16x128xbf16>
    %65 = vector.shape_cast %64 : vector<1x5x5x16x128xbf16> to vector<5x5x16x128xbf16>
    %66 = arith.select %18, %63, %65 : vector<5x5x16x128xi1>, vector<5x5x16x128xbf16>
    %67 = arith.select %16, %61, %66 : vector<5x5x16x128xi1>, vector<5x5x16x128xbf16>
    %68 = arith.select %14, %59, %67 : vector<5x5x16x128xi1>, vector<5x5x16x128xbf16>
    %69 = vector.shape_cast %68 : vector<5x5x16x128xbf16> to vector<400x128xbf16>
    %c2_94 = arith.constant 2 : index
    %c0_95 = arith.constant 0 : index
    %c0_96 = arith.constant 0 : index
    %70 = vector.load %arg4[%c2_94, %c0_95, %c0_96] : memref<4x128x128xbf16, #tpu.memory_space<vmem>>, vector<1x128x128xbf16>
    %71 = vector.shape_cast %70 : vector<1x128x128xbf16> to vector<128x128xbf16>
    %cst_97 = arith.constant dense<0.000000e+00> : vector<400x128xf32>
    %72 = tpu.matmul %69, %71, %cst_97 {dimension_numbers = #tpu.dot_dimension_numbers<[1], [0], [0], [1], [0, 0, 1, 1], [], []>} : vector<400x128xbf16>, vector<128x128xbf16>, vector<400x128xf32> -> vector<400x128xf32>
    %c0_98 = arith.constant 0 : index
    %c0_99 = arith.constant 0 : index
    %c0_100 = arith.constant 0 : index
    %c0_101 = arith.constant 0 : index
    %73 = vector.load %arg12[%c0_98, %c0_99, %c0_100, %c0_101] : memref<5x5x16x128xf32, #tpu.memory_space<vmem>>, vector<5x5x16x128xf32>
    %74 = vector.shape_cast %72 : vector<400x128xf32> to vector<5x5x16x128xf32>
    %75 = arith.addf %73, %74 : vector<5x5x16x128xf32>
    %c0_102 = arith.constant 0 : index
    %c0_103 = arith.constant 0 : index
    %c0_104 = arith.constant 0 : index
    %c0_105 = arith.constant 0 : index
    %76 = vector.load %arg12[%c0_102, %c0_103, %c0_104, %c0_105] : memref<5x5x16x128xf32, #tpu.memory_space<vmem>>, vector<5x5x16x128xf32>
    tpu.vector_store %arg12[%c0_102, %c0_103, %c0_104, %c0_105], %75 {strides = array<i32>} : memref<5x5x16x128xf32, #tpu.memory_space<vmem>>, vector<5x5x16x128xf32>,
    %c3 = arith.constant 3 : index
    %c0_106 = arith.constant 0 : index
    %c0_107 = arith.constant 0 : index
    %c0_108 = arith.constant 0 : index
    %c0_109 = arith.constant 0 : index
    %77 = vector.load %arg11[%c3, %c0_106, %c0_107, %c0_108, %c0_109] : memref<4x6x6x16x128xbf16, #tpu.memory_space<vmem>>, vector<1x5x5x16x128xbf16>
    %78 = vector.shape_cast %77 : vector<1x5x5x16x128xbf16> to vector<5x5x16x128xbf16>
    %c3_110 = arith.constant 3 : index
    %c0_111 = arith.constant 0 : index
    %c1_112 = arith.constant 1 : index
    %c0_113 = arith.constant 0 : index
    %c0_114 = arith.constant 0 : index
    %79 = vector.load %arg11[%c3_110, %c0_111, %c1_112, %c0_113, %c0_114] : memref<4x6x6x16x128xbf16, #tpu.memory_space<vmem>>, vector<1x5x5x16x128xbf16>
    %80 = vector.shape_cast %79 : vector<1x5x5x16x128xbf16> to vector<5x5x16x128xbf16>
    %c3_115 = arith.constant 3 : index
    %c1_116 = arith.constant 1 : index
    %c0_117 = arith.constant 0 : index
    %c0_118 = arith.constant 0 : index
    %c0_119 = arith.constant 0 : index
    %81 = vector.load %arg11[%c3_115, %c1_116, %c0_117, %c0_118, %c0_119] : memref<4x6x6x16x128xbf16, #tpu.memory_space<vmem>>, vector<1x5x5x16x128xbf16>
    %82 = vector.shape_cast %81 : vector<1x5x5x16x128xbf16> to vector<5x5x16x128xbf16>
    %c3_120 = arith.constant 3 : index
    %c1_121 = arith.constant 1 : index
    %c1_122 = arith.constant 1 : index
    %c0_123 = arith.constant 0 : index
    %c0_124 = arith.constant 0 : index
    %83 = vector.load %arg11[%c3_120, %c1_121, %c1_122, %c0_123, %c0_124] : memref<4x6x6x16x128xbf16, #tpu.memory_space<vmem>>, vector<1x5x5x16x128xbf16>
    %84 = vector.shape_cast %83 : vector<1x5x5x16x128xbf16> to vector<5x5x16x128xbf16>
    %85 = arith.select %18, %82, %84 : vector<5x5x16x128xi1>, vector<5x5x16x128xbf16>
    %86 = arith.select %16, %80, %85 : vector<5x5x16x128xi1>, vector<5x5x16x128xbf16>
    %87 = arith.select %14, %78, %86 : vector<5x5x16x128xi1>, vector<5x5x16x128xbf16>
    %88 = vector.shape_cast %87 : vector<5x5x16x128xbf16> to vector<400x128xbf16>
    %c3_125 = arith.constant 3 : index
    %c0_126 = arith.constant 0 : index
    %c0_127 = arith.constant 0 : index
    %89 = vector.load %arg4[%c3_125, %c0_126, %c0_127] : memref<4x128x128xbf16, #tpu.memory_space<vmem>>, vector<1x128x128xbf16>
    %90 = vector.shape_cast %89 : vector<1x128x128xbf16> to vector<128x128xbf16>
    %cst_128 = arith.constant dense<0.000000e+00> : vector<400x128xf32>
    %91 = tpu.matmul %88, %90, %cst_128 {dimension_numbers = #tpu.dot_dimension_numbers<[1], [0], [0], [1], [0, 0, 1, 1], [], []>} : vector<400x128xbf16>, vector<128x128xbf16>, vector<400x128xf32> -> vector<400x128xf32>
    %c0_129 = arith.constant 0 : index
    %c0_130 = arith.constant 0 : index
    %c0_131 = arith.constant 0 : index
    %c0_132 = arith.constant 0 : index
    %92 = vector.load %arg12[%c0_129, %c0_130, %c0_131, %c0_132] : memref<5x5x16x128xf32, #tpu.memory_space<vmem>>, vector<5x5x16x128xf32>
    %93 = vector.shape_cast %91 : vector<400x128xf32> to vector<5x5x16x128xf32>
    %94 = arith.addf %92, %93 : vector<5x5x16x128xf32>
    %c0_133 = arith.constant 0 : index
    %c0_134 = arith.constant 0 : index
    %c0_135 = arith.constant 0 : index
    %c0_136 = arith.constant 0 : index
    %95 = vector.load %arg12[%c0_133, %c0_134, %c0_135, %c0_136] : memref<5x5x16x128xf32, #tpu.memory_space<vmem>>, vector<5x5x16x128xf32>
    tpu.vector_store %arg12[%c0_133, %c0_134, %c0_135, %c0_136], %94 {strides = array<i32>} : memref<5x5x16x128xf32, #tpu.memory_space<vmem>>, vector<5x5x16x128xf32>,
    %c0_137 = arith.constant 0 : index
    %c0_138 = arith.constant 0 : index
    %c0_139 = arith.constant 0 : index
    %c0_140 = arith.constant 0 : index
    %96 = vector.load %arg12[%c0_137, %c0_138, %c0_139, %c0_140] : memref<5x5x16x128xf32, #tpu.memory_space<vmem>>, vector<5x5x16x128xf32>
    %cst_141 = arith.constant 0.000000e+00 : f32
    %97 = vector.broadcast %cst_141 : f32 to vector<5x5x16x128xf32>
    %98 = arith.maximumf %96, %97 : vector<5x5x16x128xf32>
    %c0_142 = arith.constant 0 : index
    %c0_143 = arith.constant 0 : index
    %c0_144 = arith.constant 0 : index
    %c0_145 = arith.constant 0 : index
    %99 = vector.load %arg12[%c0_142, %c0_143, %c0_144, %c0_145] : memref<5x5x16x128xf32, #tpu.memory_space<vmem>>, vector<5x5x16x128xf32>
    tpu.vector_store %arg12[%c0_142, %c0_143, %c0_144, %c0_145], %98 {strides = array<i32>} : memref<5x5x16x128xf32, #tpu.memory_space<vmem>>, vector<5x5x16x128xf32>,
    %100 = tpu.iota {dimensions = array<i32: 3>} : vector<3x3x16x128xi32>
    %c64_i32_146 = arith.constant 64 : i32
    %101 = vector.broadcast %c64_i32_146 : i32 to vector<3x3x16x128xi32>
    %102 = arith.cmpi slt, %100, %101 : vector<3x3x16x128xi32>
    %c0_147 = arith.constant 0 : index
    %c0_148 = arith.constant 0 : index
    %c0_149 = arith.constant 0 : index
    %c0_150 = arith.constant 0 : index
    %103 = vector.load %arg12[%c0_147, %c0_148, %c0_149, %c0_150] : memref<5x5x16x128xf32, #tpu.memory_space<vmem>>, vector<3x3x16x128xf32>
    %c0_151 = arith.constant 0 : index
    %c1_152 = arith.constant 1 : index
    %c0_153 = arith.constant 0 : index
    %c0_154 = arith.constant 0 : index
    %104 = vector.load %arg12[%c0_151, %c1_152, %c0_153, %c0_154] : memref<5x5x16x128xf32, #tpu.memory_space<vmem>>, vector<3x3x16x128xf32>
    %105 = arith.select %102, %103, %104 : vector<3x3x16x128xi1>, vector<3x3x16x128xf32>
    %106 = arith.truncf %105 : vector<3x3x16x128xf32> to vector<3x3x16x128xbf16>
    %107 = vector.shape_cast %106 : vector<3x3x16x128xbf16> to vector<144x128xbf16>
    %c0_155 = arith.constant 0 : index
    %c0_156 = arith.constant 0 : index
    %c0_157 = arith.constant 0 : index
    %108 = vector.load %arg6[%c0_155, %c0_156, %c0_157] : memref<5x128x128xbf16, #tpu.memory_space<vmem>>, vector<1x128x128xbf16>
    %109 = vector.shape_cast %108 : vector<1x128x128xbf16> to vector<128x128xbf16>
    %cst_158 = arith.constant dense<0.000000e+00> : vector<144x128xf32>
    %110 = tpu.matmul %107, %109, %cst_158 {dimension_numbers = #tpu.dot_dimension_numbers<[1], [0], [0], [1], [0, 0, 1, 1], [], []>} : vector<144x128xbf16>, vector<128x128xbf16>, vector<144x128xf32> -> vector<144x128xf32>
    %c0_159 = arith.constant 0 : index
    %c0_160 = arith.constant 0 : index
    %111 = vector.load %arg7[%c0_159, %c0_160] : memref<1x128xf32, #tpu.memory_space<vmem>>, vector<1x128xf32>
    %112 = vector.broadcast %111 : vector<1x128xf32> to vector<144x128xf32>
    %113 = arith.addf %110, %112 : vector<144x128xf32>
    %114 = vector.shape_cast %113 : vector<144x128xf32> to vector<3x3x16x128xf32>
    %c0_161 = arith.constant 0 : index
    %c0_162 = arith.constant 0 : index
    %c0_163 = arith.constant 0 : index
    %c0_164 = arith.constant 0 : index
    %115 = vector.load %arg13[%c0_161, %c0_162, %c0_163, %c0_164] : memref<3x3x16x128xf32, #tpu.memory_space<vmem>>, vector<3x3x16x128xf32>
    tpu.vector_store %arg13[%c0_161, %c0_162, %c0_163, %c0_164], %114 {strides = array<i32>} : memref<3x3x16x128xf32, #tpu.memory_space<vmem>>, vector<3x3x16x128xf32>,
    %c0_165 = arith.constant 0 : index
    %c2_166 = arith.constant 2 : index
    %c0_167 = arith.constant 0 : index
    %c0_168 = arith.constant 0 : index
    %116 = vector.load %arg12[%c0_165, %c2_166, %c0_167, %c0_168] : memref<5x5x16x128xf32, #tpu.memory_space<vmem>>, vector<3x3x16x128xf32>
    %c1_169 = arith.constant 1 : index
    %c0_170 = arith.constant 0 : index
    %c0_171 = arith.constant 0 : index
    %c0_172 = arith.constant 0 : index
    %117 = vector.load %arg12[%c1_169, %c0_170, %c0_171, %c0_172] : memref<5x5x16x128xf32, #tpu.memory_space<vmem>>, vector<3x3x16x128xf32>
    %118 = arith.select %102, %116, %117 : vector<3x3x16x128xi1>, vector<3x3x16x128xf32>
    %119 = arith.truncf %118 : vector<3x3x16x128xf32> to vector<3x3x16x128xbf16>
    %120 = vector.shape_cast %119 : vector<3x3x16x128xbf16> to vector<144x128xbf16>
    %c1_173 = arith.constant 1 : index
    %c0_174 = arith.constant 0 : index
    %c0_175 = arith.constant 0 : index
    %121 = vector.load %arg6[%c1_173, %c0_174, %c0_175] : memref<5x128x128xbf16, #tpu.memory_space<vmem>>, vector<1x128x128xbf16>
    %122 = vector.shape_cast %121 : vector<1x128x128xbf16> to vector<128x128xbf16>
    %cst_176 = arith.constant dense<0.000000e+00> : vector<144x128xf32>
    %123 = tpu.matmul %120, %122, %cst_176 {dimension_numbers = #tpu.dot_dimension_numbers<[1], [0], [0], [1], [0, 0, 1, 1], [], []>} : vector<144x128xbf16>, vector<128x128xbf16>, vector<144x128xf32> -> vector<144x128xf32>
    %c0_177 = arith.constant 0 : index
    %c0_178 = arith.constant 0 : index
    %c0_179 = arith.constant 0 : index
    %c0_180 = arith.constant 0 : index
    %124 = vector.load %arg13[%c0_177, %c0_178, %c0_179, %c0_180] : memref<3x3x16x128xf32, #tpu.memory_space<vmem>>, vector<3x3x16x128xf32>
    %125 = vector.shape_cast %123 : vector<144x128xf32> to vector<3x3x16x128xf32>
    %126 = arith.addf %124, %125 : vector<3x3x16x128xf32>
    %c0_181 = arith.constant 0 : index
    %c0_182 = arith.constant 0 : index
    %c0_183 = arith.constant 0 : index
    %c0_184 = arith.constant 0 : index
    %127 = vector.load %arg13[%c0_181, %c0_182, %c0_183, %c0_184] : memref<3x3x16x128xf32, #tpu.memory_space<vmem>>, vector<3x3x16x128xf32>
    tpu.vector_store %arg13[%c0_181, %c0_182, %c0_183, %c0_184], %126 {strides = array<i32>} : memref<3x3x16x128xf32, #tpu.memory_space<vmem>>, vector<3x3x16x128xf32>,
    %c1_185 = arith.constant 1 : index
    %c1_186 = arith.constant 1 : index
    %c0_187 = arith.constant 0 : index
    %c0_188 = arith.constant 0 : index
    %128 = vector.load %arg12[%c1_185, %c1_186, %c0_187, %c0_188] : memref<5x5x16x128xf32, #tpu.memory_space<vmem>>, vector<3x3x16x128xf32>
    %c1_189 = arith.constant 1 : index
    %c2_190 = arith.constant 2 : index
    %c0_191 = arith.constant 0 : index
    %c0_192 = arith.constant 0 : index
    %129 = vector.load %arg12[%c1_189, %c2_190, %c0_191, %c0_192] : memref<5x5x16x128xf32, #tpu.memory_space<vmem>>, vector<3x3x16x128xf32>
    %130 = arith.select %102, %128, %129 : vector<3x3x16x128xi1>, vector<3x3x16x128xf32>
    %131 = arith.truncf %130 : vector<3x3x16x128xf32> to vector<3x3x16x128xbf16>
    %132 = vector.shape_cast %131 : vector<3x3x16x128xbf16> to vector<144x128xbf16>
    %c2_193 = arith.constant 2 : index
    %c0_194 = arith.constant 0 : index
    %c0_195 = arith.constant 0 : index
    %133 = vector.load %arg6[%c2_193, %c0_194, %c0_195] : memref<5x128x128xbf16, #tpu.memory_space<vmem>>, vector<1x128x128xbf16>
    %134 = vector.shape_cast %133 : vector<1x128x128xbf16> to vector<128x128xbf16>
    %cst_196 = arith.constant dense<0.000000e+00> : vector<144x128xf32>
    %135 = tpu.matmul %132, %134, %cst_196 {dimension_numbers = #tpu.dot_dimension_numbers<[1], [0], [0], [1], [0, 0, 1, 1], [], []>} : vector<144x128xbf16>, vector<128x128xbf16>, vector<144x128xf32> -> vector<144x128xf32>
    %c0_197 = arith.constant 0 : index
    %c0_198 = arith.constant 0 : index
    %c0_199 = arith.constant 0 : index
    %c0_200 = arith.constant 0 : index
    %136 = vector.load %arg13[%c0_197, %c0_198, %c0_199, %c0_200] : memref<3x3x16x128xf32, #tpu.memory_space<vmem>>, vector<3x3x16x128xf32>
    %137 = vector.shape_cast %135 : vector<144x128xf32> to vector<3x3x16x128xf32>
    %138 = arith.addf %136, %137 : vector<3x3x16x128xf32>
    %c0_201 = arith.constant 0 : index
    %c0_202 = arith.constant 0 : index
    %c0_203 = arith.constant 0 : index
    %c0_204 = arith.constant 0 : index
    %139 = vector.load %arg13[%c0_201, %c0_202, %c0_203, %c0_204] : memref<3x3x16x128xf32, #tpu.memory_space<vmem>>, vector<3x3x16x128xf32>
    tpu.vector_store %arg13[%c0_201, %c0_202, %c0_203, %c0_204], %138 {strides = array<i32>} : memref<3x3x16x128xf32, #tpu.memory_space<vmem>>, vector<3x3x16x128xf32>,
    %c2_205 = arith.constant 2 : index
    %c0_206 = arith.constant 0 : index
    %c0_207 = arith.constant 0 : index
    %c0_208 = arith.constant 0 : index
    %140 = vector.load %arg12[%c2_205, %c0_206, %c0_207, %c0_208] : memref<5x5x16x128xf32, #tpu.memory_space<vmem>>, vector<3x3x16x128xf32>
    %c2_209 = arith.constant 2 : index
    %c1_210 = arith.constant 1 : index
    %c0_211 = arith.constant 0 : index
    %c0_212 = arith.constant 0 : index
    %141 = vector.load %arg12[%c2_209, %c1_210, %c0_211, %c0_212] : memref<5x5x16x128xf32, #tpu.memory_space<vmem>>, vector<3x3x16x128xf32>
    %142 = arith.select %102, %140, %141 : vector<3x3x16x128xi1>, vector<3x3x16x128xf32>
    %143 = arith.truncf %142 : vector<3x3x16x128xf32> to vector<3x3x16x128xbf16>
    %144 = vector.shape_cast %143 : vector<3x3x16x128xbf16> to vector<144x128xbf16>
    %c3_213 = arith.constant 3 : index
    %c0_214 = arith.constant 0 : index
    %c0_215 = arith.constant 0 : index
    %145 = vector.load %arg6[%c3_213, %c0_214, %c0_215] : memref<5x128x128xbf16, #tpu.memory_space<vmem>>, vector<1x128x128xbf16>
    %146 = vector.shape_cast %145 : vector<1x128x128xbf16> to vector<128x128xbf16>
    %cst_216 = arith.constant dense<0.000000e+00> : vector<144x128xf32>
    %147 = tpu.matmul %144, %146, %cst_216 {dimension_numbers = #tpu.dot_dimension_numbers<[1], [0], [0], [1], [0, 0, 1, 1], [], []>} : vector<144x128xbf16>, vector<128x128xbf16>, vector<144x128xf32> -> vector<144x128xf32>
    %c0_217 = arith.constant 0 : index
    %c0_218 = arith.constant 0 : index
    %c0_219 = arith.constant 0 : index
    %c0_220 = arith.constant 0 : index
    %148 = vector.load %arg13[%c0_217, %c0_218, %c0_219, %c0_220] : memref<3x3x16x128xf32, #tpu.memory_space<vmem>>, vector<3x3x16x128xf32>
    %149 = vector.shape_cast %147 : vector<144x128xf32> to vector<3x3x16x128xf32>
    %150 = arith.addf %148, %149 : vector<3x3x16x128xf32>
    %c0_221 = arith.constant 0 : index
    %c0_222 = arith.constant 0 : index
    %c0_223 = arith.constant 0 : index
    %c0_224 = arith.constant 0 : index
    %151 = vector.load %arg13[%c0_221, %c0_222, %c0_223, %c0_224] : memref<3x3x16x128xf32, #tpu.memory_space<vmem>>, vector<3x3x16x128xf32>
    tpu.vector_store %arg13[%c0_221, %c0_222, %c0_223, %c0_224], %150 {strides = array<i32>} : memref<3x3x16x128xf32, #tpu.memory_space<vmem>>, vector<3x3x16x128xf32>,
    %c2_225 = arith.constant 2 : index
    %c2_226 = arith.constant 2 : index
    %c0_227 = arith.constant 0 : index
    %c0_228 = arith.constant 0 : index
    %152 = vector.load %arg12[%c2_225, %c2_226, %c0_227, %c0_228] : memref<5x5x16x128xf32, #tpu.memory_space<vmem>>, vector<3x3x16x128xf32>
    %c2_229 = arith.constant 2 : index
    %c2_230 = arith.constant 2 : index
    %c0_231 = arith.constant 0 : index
    %c0_232 = arith.constant 0 : index
    %153 = vector.load %arg12[%c2_229, %c2_230, %c0_231, %c0_232] : memref<5x5x16x128xf32, #tpu.memory_space<vmem>>, vector<3x3x16x128xf32>
    %154 = arith.select %102, %152, %153 : vector<3x3x16x128xi1>, vector<3x3x16x128xf32>
    %155 = arith.truncf %154 : vector<3x3x16x128xf32> to vector<3x3x16x128xbf16>
    %156 = vector.shape_cast %155 : vector<3x3x16x128xbf16> to vector<144x128xbf16>
    %c4 = arith.constant 4 : index
    %c0_233 = arith.constant 0 : index
    %c0_234 = arith.constant 0 : index
    %157 = vector.load %arg6[%c4, %c0_233, %c0_234] : memref<5x128x128xbf16, #tpu.memory_space<vmem>>, vector<1x128x128xbf16>
    %158 = vector.shape_cast %157 : vector<1x128x128xbf16> to vector<128x128xbf16>
    %cst_235 = arith.constant dense<0.000000e+00> : vector<144x128xf32>
    %159 = tpu.matmul %156, %158, %cst_235 {dimension_numbers = #tpu.dot_dimension_numbers<[1], [0], [0], [1], [0, 0, 1, 1], [], []>} : vector<144x128xbf16>, vector<128x128xbf16>, vector<144x128xf32> -> vector<144x128xf32>
    %c0_236 = arith.constant 0 : index
    %c0_237 = arith.constant 0 : index
    %c0_238 = arith.constant 0 : index
    %c0_239 = arith.constant 0 : index
    %160 = vector.load %arg13[%c0_236, %c0_237, %c0_238, %c0_239] : memref<3x3x16x128xf32, #tpu.memory_space<vmem>>, vector<3x3x16x128xf32>
    %161 = vector.shape_cast %159 : vector<144x128xf32> to vector<3x3x16x128xf32>
    %162 = arith.addf %160, %161 : vector<3x3x16x128xf32>
    %c0_240 = arith.constant 0 : index
    %c0_241 = arith.constant 0 : index
    %c0_242 = arith.constant 0 : index
    %c0_243 = arith.constant 0 : index
    %163 = vector.load %arg13[%c0_240, %c0_241, %c0_242, %c0_243] : memref<3x3x16x128xf32, #tpu.memory_space<vmem>>, vector<3x3x16x128xf32>
    tpu.vector_store %arg13[%c0_240, %c0_241, %c0_242, %c0_243], %162 {strides = array<i32>} : memref<3x3x16x128xf32, #tpu.memory_space<vmem>>, vector<3x3x16x128xf32>,
    %c0_244 = arith.constant 0 : index
    %c0_245 = arith.constant 0 : index
    %c0_246 = arith.constant 0 : index
    %c0_247 = arith.constant 0 : index
    %164 = vector.load %arg13[%c0_244, %c0_245, %c0_246, %c0_247] : memref<3x3x16x128xf32, #tpu.memory_space<vmem>>, vector<3x3x16x128xf32>
    %cst_248 = arith.constant 0.000000e+00 : f32
    %165 = vector.broadcast %cst_248 : f32 to vector<3x3x16x128xf32>
    %166 = arith.maximumf %164, %165 : vector<3x3x16x128xf32>
    %c0_249 = arith.constant 0 : index
    %c0_250 = arith.constant 0 : index
    %c0_251 = arith.constant 0 : index
    %c0_252 = arith.constant 0 : index
    %167 = vector.load %arg13[%c0_249, %c0_250, %c0_251, %c0_252] : memref<3x3x16x128xf32, #tpu.memory_space<vmem>>, vector<3x3x16x128xf32>
    tpu.vector_store %arg13[%c0_249, %c0_250, %c0_251, %c0_252], %166 {strides = array<i32>} : memref<3x3x16x128xf32, #tpu.memory_space<vmem>>, vector<3x3x16x128xf32>,
    %168 = tpu.iota {dimensions = array<i32: 1>} : vector<16x128xi32>
    %c64_i32_253 = arith.constant 64 : i32
    %169 = vector.broadcast %c64_i32_253 : i32 to vector<16x128xi32>
    %170 = arith.cmpi slt, %168, %169 : vector<16x128xi32>
    %c0_254 = arith.constant 0 : index
    %c0_255 = arith.constant 0 : index
    %c0_256 = arith.constant 0 : index
    %c0_257 = arith.constant 0 : index
    %171 = vector.load %arg13[%c0_254, %c0_255, %c0_256, %c0_257] : memref<3x3x16x128xf32, #tpu.memory_space<vmem>>, vector<1x1x16x128xf32>
    %172 = vector.shape_cast %171 : vector<1x1x16x128xf32> to vector<16x128xf32>
    %c0_258 = arith.constant 0 : index
    %c1_259 = arith.constant 1 : index
    %c0_260 = arith.constant 0 : index
    %c0_261 = arith.constant 0 : index
    %173 = vector.load %arg13[%c0_258, %c1_259, %c0_260, %c0_261] : memref<3x3x16x128xf32, #tpu.memory_space<vmem>>, vector<1x1x16x128xf32>
    %174 = vector.shape_cast %173 : vector<1x1x16x128xf32> to vector<16x128xf32>
    %175 = arith.select %170, %172, %174 : vector<16x128xi1>, vector<16x128xf32>
    %176 = arith.truncf %175 : vector<16x128xf32> to vector<16x128xbf16>
    %c0_262 = arith.constant 0 : index
    %c0_263 = arith.constant 0 : index
    %c0_264 = arith.constant 0 : index
    %177 = vector.load %arg8[%c0_262, %c0_263, %c0_264] : memref<5x128x128xbf16, #tpu.memory_space<vmem>>, vector<1x128x128xbf16>
    %178 = vector.shape_cast %177 : vector<1x128x128xbf16> to vector<128x128xbf16>
    %cst_265 = arith.constant dense<0.000000e+00> : vector<16x128xf32>
    %179 = tpu.matmul %176, %178, %cst_265 {dimension_numbers = #tpu.dot_dimension_numbers<[1], [0], [0], [1], [0, 0, 1, 1], [], []>} : vector<16x128xbf16>, vector<128x128xbf16>, vector<16x128xf32> -> vector<16x128xf32>
    %c0_266 = arith.constant 0 : index
    %c2_267 = arith.constant 2 : index
    %c0_268 = arith.constant 0 : index
    %c0_269 = arith.constant 0 : index
    %180 = vector.load %arg13[%c0_266, %c2_267, %c0_268, %c0_269] : memref<3x3x16x128xf32, #tpu.memory_space<vmem>>, vector<1x1x16x128xf32>
    %181 = vector.shape_cast %180 : vector<1x1x16x128xf32> to vector<16x128xf32>
    %c1_270 = arith.constant 1 : index
    %c0_271 = arith.constant 0 : index
    %c0_272 = arith.constant 0 : index
    %c0_273 = arith.constant 0 : index
    %182 = vector.load %arg13[%c1_270, %c0_271, %c0_272, %c0_273] : memref<3x3x16x128xf32, #tpu.memory_space<vmem>>, vector<1x1x16x128xf32>
    %183 = vector.shape_cast %182 : vector<1x1x16x128xf32> to vector<16x128xf32>
    %184 = arith.select %170, %181, %183 : vector<16x128xi1>, vector<16x128xf32>
    %185 = arith.truncf %184 : vector<16x128xf32> to vector<16x128xbf16>
    %c1_274 = arith.constant 1 : index
    %c0_275 = arith.constant 0 : index
    %c0_276 = arith.constant 0 : index
    %186 = vector.load %arg8[%c1_274, %c0_275, %c0_276] : memref<5x128x128xbf16, #tpu.memory_space<vmem>>, vector<1x128x128xbf16>
    %187 = vector.shape_cast %186 : vector<1x128x128xbf16> to vector<128x128xbf16>
    %cst_277 = arith.constant dense<0.000000e+00> : vector<16x128xf32>
    %188 = tpu.matmul %185, %187, %cst_277 {dimension_numbers = #tpu.dot_dimension_numbers<[1], [0], [0], [1], [0, 0, 1, 1], [], []>} : vector<16x128xbf16>, vector<128x128xbf16>, vector<16x128xf32> -> vector<16x128xf32>
    %189 = arith.addf %179, %188 : vector<16x128xf32>
    %c1_278 = arith.constant 1 : index
    %c1_279 = arith.constant 1 : index
    %c0_280 = arith.constant 0 : index
    %c0_281 = arith.constant 0 : index
    %190 = vector.load %arg13[%c1_278, %c1_279, %c0_280, %c0_281] : memref<3x3x16x128xf32, #tpu.memory_space<vmem>>, vector<1x1x16x128xf32>
    %191 = vector.shape_cast %190 : vector<1x1x16x128xf32> to vector<16x128xf32>
    %c1_282 = arith.constant 1 : index
    %c2_283 = arith.constant 2 : index
    %c0_284 = arith.constant 0 : index
    %c0_285 = arith.constant 0 : index
    %192 = vector.load %arg13[%c1_282, %c2_283, %c0_284, %c0_285] : memref<3x3x16x128xf32, #tpu.memory_space<vmem>>, vector<1x1x16x128xf32>
    %193 = vector.shape_cast %192 : vector<1x1x16x128xf32> to vector<16x128xf32>
    %194 = arith.select %170, %191, %193 : vector<16x128xi1>, vector<16x128xf32>
    %195 = arith.truncf %194 : vector<16x128xf32> to vector<16x128xbf16>
    %c2_286 = arith.constant 2 : index
    %c0_287 = arith.constant 0 : index
    %c0_288 = arith.constant 0 : index
    %196 = vector.load %arg8[%c2_286, %c0_287, %c0_288] : memref<5x128x128xbf16, #tpu.memory_space<vmem>>, vector<1x128x128xbf16>
    %197 = vector.shape_cast %196 : vector<1x128x128xbf16> to vector<128x128xbf16>
    %cst_289 = arith.constant dense<0.000000e+00> : vector<16x128xf32>
    %198 = tpu.matmul %195, %197, %cst_289 {dimension_numbers = #tpu.dot_dimension_numbers<[1], [0], [0], [1], [0, 0, 1, 1], [], []>} : vector<16x128xbf16>, vector<128x128xbf16>, vector<16x128xf32> -> vector<16x128xf32>
    %199 = arith.addf %189, %198 : vector<16x128xf32>
    %c2_290 = arith.constant 2 : index
    %c0_291 = arith.constant 0 : index
    %c0_292 = arith.constant 0 : index
    %c0_293 = arith.constant 0 : index
    %200 = vector.load %arg13[%c2_290, %c0_291, %c0_292, %c0_293] : memref<3x3x16x128xf32, #tpu.memory_space<vmem>>, vector<1x1x16x128xf32>
    %201 = vector.shape_cast %200 : vector<1x1x16x128xf32> to vector<16x128xf32>
    %c2_294 = arith.constant 2 : index
    %c1_295 = arith.constant 1 : index
    %c0_296 = arith.constant 0 : index
    %c0_297 = arith.constant 0 : index
    %202 = vector.load %arg13[%c2_294, %c1_295, %c0_296, %c0_297] : memref<3x3x16x128xf32, #tpu.memory_space<vmem>>, vector<1x1x16x128xf32>
    %203 = vector.shape_cast %202 : vector<1x1x16x128xf32> to vector<16x128xf32>
    %204 = arith.select %170, %201, %203 : vector<16x128xi1>, vector<16x128xf32>
    %205 = arith.truncf %204 : vector<16x128xf32> to vector<16x128xbf16>
    %c3_298 = arith.constant 3 : index
    %c0_299 = arith.constant 0 : index
    %c0_300 = arith.constant 0 : index
    %206 = vector.load %arg8[%c3_298, %c0_299, %c0_300] : memref<5x128x128xbf16, #tpu.memory_space<vmem>>, vector<1x128x128xbf16>
    %207 = vector.shape_cast %206 : vector<1x128x128xbf16> to vector<128x128xbf16>
    %cst_301 = arith.constant dense<0.000000e+00> : vector<16x128xf32>
    %208 = tpu.matmul %205, %207, %cst_301 {dimension_numbers = #tpu.dot_dimension_numbers<[1], [0], [0], [1], [0, 0, 1, 1], [], []>} : vector<16x128xbf16>, vector<128x128xbf16>, vector<16x128xf32> -> vector<16x128xf32>
    %209 = arith.addf %199, %208 : vector<16x128xf32>
    %c2_302 = arith.constant 2 : index
    %c2_303 = arith.constant 2 : index
    %c0_304 = arith.constant 0 : index
    %c0_305 = arith.constant 0 : index
    %210 = vector.load %arg13[%c2_302, %c2_303, %c0_304, %c0_305] : memref<3x3x16x128xf32, #tpu.memory_space<vmem>>, vector<1x1x16x128xf32>
    %211 = vector.shape_cast %210 : vector<1x1x16x128xf32> to vector<16x128xf32>
    %c2_306 = arith.constant 2 : index
    %c2_307 = arith.constant 2 : index
    %c0_308 = arith.constant 0 : index
    %c0_309 = arith.constant 0 : index
    %212 = vector.load %arg13[%c2_306, %c2_307, %c0_308, %c0_309] : memref<3x3x16x128xf32, #tpu.memory_space<vmem>>, vector<1x1x16x128xf32>
    %213 = vector.shape_cast %212 : vector<1x1x16x128xf32> to vector<16x128xf32>
    %214 = arith.select %170, %211, %213 : vector<16x128xi1>, vector<16x128xf32>
    %215 = arith.truncf %214 : vector<16x128xf32> to vector<16x128xbf16>
    %c4_310 = arith.constant 4 : index
    %c0_311 = arith.constant 0 : index
    %c0_312 = arith.constant 0 : index
    %216 = vector.load %arg8[%c4_310, %c0_311, %c0_312] : memref<5x128x128xbf16, #tpu.memory_space<vmem>>, vector<1x128x128xbf16>
    %217 = vector.shape_cast %216 : vector<1x128x128xbf16> to vector<128x128xbf16>
    %cst_313 = arith.constant dense<0.000000e+00> : vector<16x128xf32>
    %218 = tpu.matmul %215, %217, %cst_313 {dimension_numbers = #tpu.dot_dimension_numbers<[1], [0], [0], [1], [0, 0, 1, 1], [], []>} : vector<16x128xbf16>, vector<128x128xbf16>, vector<16x128xf32> -> vector<16x128xf32>
    %219 = arith.addf %209, %218 : vector<16x128xf32>
    %c0_314 = arith.constant 0 : index
    %c0_315 = arith.constant 0 : index
    %220 = vector.load %arg9[%c0_314, %c0_315] : memref<1x128xf32, #tpu.memory_space<vmem>>, vector<1x128xf32>
    %221 = vector.broadcast %220 : vector<1x128xf32> to vector<16x128xf32>
    %222 = arith.addf %219, %221 : vector<16x128xf32>
    %cst_316 = arith.constant 0.000000e+00 : f32
    %223 = vector.broadcast %cst_316 : f32 to vector<16x128xf32>
    %224 = arith.maximumf %222, %223 : vector<16x128xf32>
    %c0_317 = arith.constant 0 : index
    %c0_318 = arith.constant 0 : index
    %225 = vector.load %arg10[%c0_317, %c0_318] : memref<16x128xf32, #tpu.memory_space<vmem>>, vector<16x128xf32>
    tpu.vector_store %arg10[%c0_317, %c0_318], %224 {strides = array<i32>} : memref<16x128xf32, #tpu.memory_space<vmem>>, vector<16x128xf32>,
    return
  }
  func.func @transform_0(%arg0: i32) -> (i32, i32, i32, i32, i32) {
    %c0_i32 = arith.constant 0 : i32
    %c0_i32_0 = arith.constant 0 : i32
    %c0_i32_1 = arith.constant 0 : i32
    %c0_i32_2 = arith.constant 0 : i32
    %c0_i32_3 = arith.constant 0 : i32
    return %c0_i32, %c0_i32_0, %c0_i32_1, %arg0, %c0_i32_2 : i32, i32, i32, i32, i32
  }
  func.func @transform_1(%arg0: i32) -> (i32, i32) {
    %c0_i32 = arith.constant 0 : i32
    %c0_i32_0 = arith.constant 0 : i32
    %c0_i32_1 = arith.constant 0 : i32
    return %c0_i32, %c0_i32_0 : i32, i32
  }
  func.func @transform_2(%arg0: i32) -> (i32, i32) {
    %c0_i32 = arith.constant 0 : i32
    %c0_i32_0 = arith.constant 0 : i32
    %c0_i32_1 = arith.constant 0 : i32
    return %c0_i32, %c0_i32_0 : i32, i32
  }
  func.func @transform_3(%arg0: i32) -> (i32, i32, i32) {
    %c0_i32 = arith.constant 0 : i32
    %c0_i32_0 = arith.constant 0 : i32
    %c0_i32_1 = arith.constant 0 : i32
    %c0_i32_2 = arith.constant 0 : i32
    return %c0_i32, %c0_i32_0, %c0_i32_1 : i32, i32, i32
  }
  func.func @transform_4(%arg0: i32) -> (i32, i32) {
    %c0_i32 = arith.constant 0 : i32
    %c0_i32_0 = arith.constant 0 : i32
    %c0_i32_1 = arith.constant 0 : i32
    return %c0_i32, %c0_i32_0 : i32, i32
  }
  func.func @transform_5(%arg0: i32) -> (i32, i32, i32) {
    %c0_i32 = arith.constant 0 : i32
    %c0_i32_0 = arith.constant 0 : i32
    %c0_i32_1 = arith.constant 0 : i32
    %c0_i32_2 = arith.constant 0 : i32
    return %c0_i32, %c0_i32_0, %c0_i32_1 : i32, i32, i32
  }
  func.func @transform_6(%arg0: i32) -> (i32, i32) {
    %c0_i32 = arith.constant 0 : i32
    %c0_i32_0 = arith.constant 0 : i32
    %c0_i32_1 = arith.constant 0 : i32
    return %c0_i32, %c0_i32_0 : i32, i32
  }
  func.func @transform_7(%arg0: i32) -> (i32, i32, i32) {
    %c0_i32 = arith.constant 0 : i32
    %c0_i32_0 = arith.constant 0 : i32
    %c0_i32_1 = arith.constant 0 : i32
    %c0_i32_2 = arith.constant 0 : i32
    return %c0_i32, %c0_i32_0, %c0_i32_1 : i32, i32, i32
  }
  func.func @transform_8(%arg0: i32) -> (i32, i32) {
    %c0_i32 = arith.constant 0 : i32
    %c0_i32_0 = arith.constant 0 : i32
    %c0_i32_1 = arith.constant 0 : i32
    return %c0_i32, %c0_i32_0 : i32, i32
  }
  func.func @transform_9(%arg0: i32) -> (i32, i32) {
    %c0_i32 = arith.constant 0 : i32
    %c0_i32_0 = arith.constant 0 : i32
    return %arg0, %c0_i32 : i32, i32
  }
}

</mosaic_0001>

<llo_original>
// kernel: conv_body_forward.1
$region0: #{conv_body_forward.1}
  #allocation0 [shape = 'u32[]', space=smem, size = 0x4, offset = 0x4, fixed_abs, tag = 'smem constant byte address 0x4 - core index']
  #allocation1 [shape = 'u32[144,128]{1,0:T(1,128)}', space=vmem, size = 0x12000, scoped, tag = 'internal scratch']
  #allocation2 [shape = 'bf16[4,6,6,16,128]{4,3,2,1,0:T(16,128)(2,1)}', space=vmem, size = 0x90000, scoped, tag = 'scratch operand']
  #allocation3 [shape = 'f32[5,5,16,128]{3,2,1,0:T(8,128)}', space=vmem, size = 0x32000, scoped, tag = 'scratch operand']
  #allocation4 [shape = 'f32[3,3,16,128]{3,2,1,0:T(8,128)}', space=vmem, size = 0x12000, scoped, tag = 'scratch operand']
  %s0 = inlined_call_operand.vmem [shape: bf16[4,6,6,32,64], index: 0, kind: input, shape index: {}]
  %s1 = inlined_call_operand.vmem [shape: bf16[64,128], index: 1, kind: input, shape index: {}]
  %s2 = inlined_call_operand.vmem [shape: f32[1,128], index: 2, kind: input, shape index: {}]
  %s3 = inlined_call_operand.vmem [shape: bf16[4,128,128], index: 3, kind: input, shape index: {}]
  %s4 = inlined_call_operand.vmem [shape: f32[1,128], index: 4, kind: input, shape index: {}]
  %s5 = inlined_call_operand.vmem [shape: bf16[5,128,128], index: 5, kind: input, shape index: {}]
  %s6 = inlined_call_operand.vmem [shape: f32[1,128], index: 6, kind: input, shape index: {}]
  %s7 = inlined_call_operand.vmem [shape: bf16[5,128,128], index: 7, kind: input, shape index: {}]
  %s8 = inlined_call_operand.vmem [shape: f32[1,128], index: 8, kind: input, shape index: {}]
  %s9 = inlined_call_operand.vmem [shape: f32[32,128], index: 9, kind: output, shape index: {}]
  %s10 = sld [smem:[#allocation0]]
  $region110: #{conv_body_forward.1} parent=0
    _
  %s12 = ssub.s32 1, %s10
  %s13 = scalar_select 0, %s12, %s10
  $region1: #{conv_body_forward.1} parent=0
    #allocation5 [shape = 'u8[1179648]{0}', space=vmem, size = 0x120000, scoped, tag = 'input window, operand 0']
    loop: start=0, step=1, limit=4
    $region2: #{conv_body_forward.1} parent=1 // loop_pre_header
      _
    $region3: #{conv_body_forward.1} parent=1 // loop_header
      %s15 = sphi 0, %s19
      %p16 = scmp.ge.s32.totalorder %s15, 4
      %s25 = sphi 0, %s27
      %s28 = sphi 0, %s25
      %s29 = sphi 0, %s28
      %s45 = sphi 0, %s29
      %s49 = sphi 0, %s49
      %s51 = sphi 0, %s49
      %s52 = sphi 0, %s51
      %s66 = sphi 0, %s52
      %s70 = sphi 0, %s70
      %s72 = sphi 0, %s70
      %s73 = sphi 0, %s72
      %s87 = sphi 0, %s73
      %s91 = sphi 0, %s91
      %s93 = sphi 0, %s91
      %s94 = sphi 0, %s93
      %s108 = sphi 0, %s94
      %s112 = sphi 0, %s112
      %s114 = sphi 0, %s112
      %s115 = sphi 0, %s114
      %s129 = sphi 0, %s115
      %s133 = sphi 0, %s133
      %s135 = sphi 0, %s133
      %s136 = sphi 0, %s135
      %s150 = sphi 0, %s136
      %s154 = sphi 0, %s154
      %s156 = sphi 0, %s154
      %s157 = sphi 0, %s156
      %s171 = sphi 0, %s157
      %s175 = sphi 0, %s175
      %s177 = sphi 0, %s175
      %s178 = sphi 0, %s177
      %s192 = sphi 0, %s178
      %s196 = sphi 0, %s196
      %s198 = sphi 0, %s196
      %s199 = sphi 0, %s198
      %s213 = sphi 0, %s199
      %s219 = sphi 0, %s221
      %s222 = sphi 0, %s219
      %s223 = sphi 0, %s222
      %s239 = sphi 0, %s223
    $region4: #{conv_body_forward.1} parent=1 // loop_header_branch
      %18 = sbr.rel (%p16) target = $region8
    $region5: #{conv_body_forward.1} parent=1 // loop_body
      %s20 = ssub.s32 %s15, 1
      %s21 = ssub.s32 %s15, 2
      %s22 = sadd.s32 %s15, 1
      %s23 = ssub.s32 %s15, %s22
      %p24 = scmp.eq.s32.totalorder %s23, 0
      %s26 = sadd.s32 %s25, 1
      %s27 = scalar_select %p24, %s25, %s26
      %p30 = pneg %p24
      %p31 = scmp.eq.s32.totalorder %s15, 1
      %p32 = por %p30, %p31
      %p33 = scmp.ne.s32.totalorder %s25, %s28
      %p34 = scmp.eq.s32.totalorder %s15, 0
      %p35 = por %p33, %p34
      %p36 = scmp.ne.s32.totalorder %s25, %s28
      %p37 = scmp.eq.s32.totalorder %s20, 1
      %p38 = por %p36, %p37
      %p39 = scmp.ne.s32.totalorder %s28, %s29
      %p40 = scmp.eq.s32.totalorder %s20, 0
      %p41 = por %p39, %p40
      %p42 = scmp.ne.s32.totalorder %s28, %s29
      %p43 = scmp.eq.s32.totalorder %s21, 1
      %p44 = por %p42, %p43
      %p46 = scmp.ne.s32.totalorder %s29, %s45
      %p47 = scmp.eq.s32.totalorder %s21, 0
      %p48 = por %p46, %p47
      %s50 = sadd.s32 %s49, 1
      %p53 = scmp.eq.s32.totalorder %s15, 1
      %p54 = scmp.ne.s32.totalorder %s49, %s51
      %p55 = scmp.eq.s32.totalorder %s15, 0
      %p56 = por %p54, %p55
      %p57 = scmp.ne.s32.totalorder %s49, %s51
      %p58 = scmp.eq.s32.totalorder %s20, 1
      %p59 = por %p57, %p58
      %p60 = scmp.ne.s32.totalorder %s51, %s52
      %p61 = scmp.eq.s32.totalorder %s20, 0
      %p62 = por %p60, %p61
      %p63 = scmp.ne.s32.totalorder %s51, %s52
      %p64 = scmp.eq.s32.totalorder %s21, 1
      %p65 = por %p63, %p64
      %p67 = scmp.ne.s32.totalorder %s52, %s66
      %p68 = scmp.eq.s32.totalorder %s21, 0
      %p69 = por %p67, %p68
      %s71 = sadd.s32 %s70, 1
      %p74 = scmp.eq.s32.totalorder %s15, 1
      %p75 = scmp.ne.s32.totalorder %s70, %s72
      %p76 = scmp.eq.s32.totalorder %s15, 0
      %p77 = por %p75, %p76
      %p78 = scmp.ne.s32.totalorder %s70, %s72
      %p79 = scmp.eq.s32.totalorder %s20, 1
      %p80 = por %p78, %p79
      %p81 = scmp.ne.s32.totalorder %s72, %s73
      %p82 = scmp.eq.s32.totalorder %s20, 0
      %p83 = por %p81, %p82
      %p84 = scmp.ne.s32.totalorder %s72, %s73
      %p85 = scmp.eq.s32.totalorder %s21, 1
      %p86 = por %p84, %p85
      %p88 = scmp.ne.s32.totalorder %s73, %s87
      %p89 = scmp.eq.s32.totalorder %s21, 0
      %p90 = por %p88, %p89
      %s92 = sadd.s32 %s91, 1
      %p95 = scmp.eq.s32.totalorder %s15, 1
      %p96 = scmp.ne.s32.totalorder %s91, %s93
      %p97 = scmp.eq.s32.totalorder %s15, 0
      %p98 = por %p96, %p97
      %p99 = scmp.ne.s32.totalorder %s91, %s93
      %p100 = scmp.eq.s32.totalorder %s20, 1
      %p101 = por %p99, %p100
      %p102 = scmp.ne.s32.totalorder %s93, %s94
      %p103 = scmp.eq.s32.totalorder %s20, 0
      %p104 = por %p102, %p103
      %p105 = scmp.ne.s32.totalorder %s93, %s94
      %p106 = scmp.eq.s32.totalorder %s21, 1
      %p107 = por %p105, %p106
      %p109 = scmp.ne.s32.totalorder %s94, %s108
      %p110 = scmp.eq.s32.totalorder %s21, 0
      %p111 = por %p109, %p110
      %s113 = sadd.s32 %s112, 1
      %p116 = scmp.eq.s32.totalorder %s15, 1
      %p117 = scmp.ne.s32.totalorder %s112, %s114
      %p118 = scmp.eq.s32.totalorder %s15, 0
      %p119 = por %p117, %p118
      %p120 = scmp.ne.s32.totalorder %s112, %s114
      %p121 = scmp.eq.s32.totalorder %s20, 1
      %p122 = por %p120, %p121
      %p123 = scmp.ne.s32.totalorder %s114, %s115
      %p124 = scmp.eq.s32.totalorder %s20, 0
      %p125 = por %p123, %p124
      %p126 = scmp.ne.s32.totalorder %s114, %s115
      %p127 = scmp.eq.s32.totalorder %s21, 1
      %p128 = por %p126, %p127
      %p130 = scmp.ne.s32.totalorder %s115, %s129
      %p131 = scmp.eq.s32.totalorder %s21, 0
      %p132 = por %p130, %p131
      %s134 = sadd.s32 %s133, 1
      %p137 = scmp.eq.s32.totalorder %s15, 1
      %p138 = scmp.ne.s32.totalorder %s133, %s135
      %p139 = scmp.eq.s32.totalorder %s15, 0
      %p140 = por %p138, %p139
      %p141 = scmp.ne.s32.totalorder %s133, %s135
      %p142 = scmp.eq.s32.totalorder %s20, 1
      %p143 = por %p141, %p142
      %p144 = scmp.ne.s32.totalorder %s135, %s136
      %p145 = scmp.eq.s32.totalorder %s20, 0
      %p146 = por %p144, %p145
      %p147 = scmp.ne.s32.totalorder %s135, %s136
      %p148 = scmp.eq.s32.totalorder %s21, 1
      %p149 = por %p147, %p148
      %p151 = scmp.ne.s32.totalorder %s136, %s150
      %p152 = scmp.eq.s32.totalorder %s21, 0
      %p153 = por %p151, %p152
      %s155 = sadd.s32 %s154, 1
      %p158 = scmp.eq.s32.totalorder %s15, 1
      %p159 = scmp.ne.s32.totalorder %s154, %s156
      %p160 = scmp.eq.s32.totalorder %s15, 0
      %p161 = por %p159, %p160
      %p162 = scmp.ne.s32.totalorder %s154, %s156
      %p163 = scmp.eq.s32.totalorder %s20, 1
      %p164 = por %p162, %p163
      %p165 = scmp.ne.s32.totalorder %s156, %s157
      %p166 = scmp.eq.s32.totalorder %s20, 0
      %p167 = por %p165, %p166
      %p168 = scmp.ne.s32.totalorder %s156, %s157
      %p169 = scmp.eq.s32.totalorder %s21, 1
      %p170 = por %p168, %p169
      %p172 = scmp.ne.s32.totalorder %s157, %s171
      %p173 = scmp.eq.s32.totalorder %s21, 0
      %p174 = por %p172, %p173
      %s176 = sadd.s32 %s175, 1
      %p179 = scmp.eq.s32.totalorder %s15, 1
      %p180 = scmp.ne.s32.totalorder %s175, %s177
      %p181 = scmp.eq.s32.totalorder %s15, 0
      %p182 = por %p180, %p181
      %p183 = scmp.ne.s32.totalorder %s175, %s177
      %p184 = scmp.eq.s32.totalorder %s20, 1
      %p185 = por %p183, %p184
      %p186 = scmp.ne.s32.totalorder %s177, %s178
      %p187 = scmp.eq.s32.totalorder %s20, 0
      %p188 = por %p186, %p187
      %p189 = scmp.ne.s32.totalorder %s177, %s178
      %p190 = scmp.eq.s32.totalorder %s21, 1
      %p191 = por %p189, %p190
      %p193 = scmp.ne.s32.totalorder %s178, %s192
      %p194 = scmp.eq.s32.totalorder %s21, 0
      %p195 = por %p193, %p194
      %s197 = sadd.s32 %s196, 1
      %p200 = scmp.eq.s32.totalorder %s15, 1
      %p201 = scmp.ne.s32.totalorder %s196, %s198
      %p202 = scmp.eq.s32.totalorder %s15, 0
      %p203 = por %p201, %p202
      %p204 = scmp.ne.s32.totalorder %s196, %s198
      %p205 = scmp.eq.s32.totalorder %s20, 1
      %p206 = por %p204, %p205
      %p207 = scmp.ne.s32.totalorder %s198, %s199
      %p208 = scmp.eq.s32.totalorder %s20, 0
      %p209 = por %p207, %p208
      %p210 = scmp.ne.s32.totalorder %s198, %s199
      %p211 = scmp.eq.s32.totalorder %s21, 1
      %p212 = por %p210, %p211
      %p214 = scmp.ne.s32.totalorder %s199, %s213
      %p215 = scmp.eq.s32.totalorder %s21, 0
      %p216 = por %p214, %p215
      %s217 = ssub.s32 %s15, %s22
      %p218 = scmp.eq.s32.totalorder %s217, 0
      %s220 = sadd.s32 %s219, 1
      %s221 = scalar_select %p218, %s219, %s220
      %p224 = pneg %p218
      %p225 = scmp.eq.s32.totalorder %s15, 1
      %p226 = por %p224, %p225
      %p227 = scmp.ne.s32.totalorder %s219, %s222
      %p228 = scmp.eq.s32.totalorder %s15, 0
      %p229 = por %p227, %p228
      %p230 = scmp.ne.s32.totalorder %s219, %s222
      %p231 = scmp.eq.s32.totalorder %s20, 1
      %p232 = por %p230, %p231
      %p233 = scmp.ne.s32.totalorder %s222, %s223
      %p234 = scmp.eq.s32.totalorder %s20, 0
      %p235 = por %p233, %p234
      %p236 = scmp.ne.s32.totalorder %s222, %s223
      %p237 = scmp.eq.s32.totalorder %s21, 1
      %p238 = por %p236, %p237
      %p240 = scmp.ne.s32.totalorder %s223, %s239
      %p241 = scmp.eq.s32.totalorder %s21, 0
      %p242 = por %p240, %p241
      %p243 = scmp.le.s32.totalorder 1, %s15
      %p244 = scmp.lt.s32.totalorder %s15, 3
      %p245 = pnand %p243, %p244
      %p246 = pneg %p245
      // Predicated region
      $region9: #{conv_body_forward.1} parent=5 // pred_check
        _
      $region10: #{conv_body_forward.1} parent=5 // pred_check_branch
        %248 = sbr.rel (%p245) target = $region12
      $region11: #{conv_body_forward.1} parent=5 // pred_region
        %s249 = ssub.s32 %s15, 1
        // Predicated region
        $region13: #{conv_body_forward.1} parent=11 // pred_check
          %p250 = pneg %p62
        $region14: #{conv_body_forward.1} parent=11 // pred_check_branch
          %252 = sbr.rel (%p250) target = $region16
        $region15: #{conv_body_forward.1} parent=11 // pred_region
          _
        $region16: #{conv_body_forward.1} parent=11 // pred_fallthru
          _
        // Predicated region
        $region17: #{conv_body_forward.1} parent=11 // pred_check
          %p253 = pneg %p83
        $region18: #{conv_body_forward.1} parent=11 // pred_check_branch
          %255 = sbr.rel (%p253) target = $region20
        $region19: #{conv_body_forward.1} parent=11 // pred_region
          _
        $region20: #{conv_body_forward.1} parent=11 // pred_fallthru
          _
        // Predicated region
        $region21: #{conv_body_forward.1} parent=11 // pred_check
          %p256 = pneg %p104
        $region22: #{conv_body_forward.1} parent=11 // pred_check_branch
          %258 = sbr.rel (%p256) target = $region24
        $region23: #{conv_body_forward.1} parent=11 // pred_region
          _
        $region24: #{conv_body_forward.1} parent=11 // pred_fallthru
          _
        // Predicated region
        $region25: #{conv_body_forward.1} parent=11 // pred_check
          %p259 = pneg %p125
        $region26: #{conv_body_forward.1} parent=11 // pred_check_branch
          %261 = sbr.rel (%p259) target = $region28
        $region27: #{conv_body_forward.1} parent=11 // pred_region
          _
        $region28: #{conv_body_forward.1} parent=11 // pred_fallthru
          _
        // Predicated region
        $region29: #{conv_body_forward.1} parent=11 // pred_check
          %p262 = pneg %p146
        $region30: #{conv_body_forward.1} parent=11 // pred_check_branch
          %264 = sbr.rel (%p262) target = $region32
        $region31: #{conv_body_forward.1} parent=11 // pred_region
          _
        $region32: #{conv_body_forward.1} parent=11 // pred_fallthru
          _
        // Predicated region
        $region33: #{conv_body_forward.1} parent=11 // pred_check
          %p265 = pneg %p167
        $region34: #{conv_body_forward.1} parent=11 // pred_check_branch
          %267 = sbr.rel (%p265) target = $region36
        $region35: #{conv_body_forward.1} parent=11 // pred_region
          _
        $region36: #{conv_body_forward.1} parent=11 // pred_fallthru
          _
        // Predicated region
        $region37: #{conv_body_forward.1} parent=11 // pred_check
          %p268 = pneg %p188
        $region38: #{conv_body_forward.1} parent=11 // pred_check_branch
          %270 = sbr.rel (%p268) target = $region40
        $region39: #{conv_body_forward.1} parent=11 // pred_region
          _
        $region40: #{conv_body_forward.1} parent=11 // pred_fallthru
          _
        // Predicated region
        $region41: #{conv_body_forward.1} parent=11 // pred_check
          %p271 = pneg %p209
        $region42: #{conv_body_forward.1} parent=11 // pred_check_branch
          %273 = sbr.rel (%p271) target = $region44
        $region43: #{conv_body_forward.1} parent=11 // pred_region
          _
        $region44: #{conv_body_forward.1} parent=11 // pred_fallthru
          _
      $region12: #{conv_body_forward.1} parent=5 // pred_fallthru
        _
      %p274 = scmp.lt.s32.totalorder %s15, 2
      // Predicated region
      $region45: #{conv_body_forward.1} parent=5 // pred_check
        %p275 = pneg %p274
      $region46: #{conv_body_forward.1} parent=5 // pred_check_branch
        %277 = sbr.rel (%p275) target = $region48
      $region47: #{conv_body_forward.1} parent=5 // pred_region
        // Predicated region
        $region49: #{conv_body_forward.1} parent=47 // pred_check
          %p278 = pneg %p35
        $region50: #{conv_body_forward.1} parent=47 // pred_check_branch
          %280 = sbr.rel (%p278) target = $region52
        $region51: #{conv_body_forward.1} parent=47 // pred_region
          %s281 = sand.u32 %s25, 1
          %s282 = sand.u32 %s25, 1
          %s283 = smul.addr %s282, 1152
          %s284 = scalar_lea.vmem [#allocation5], %s283
          %s285 = smul.u32 2, %s15
          %s286 = smul.addr %s285, 4
          %s287 = scalar_lea.vmem %s0, %s286
          // Predicated region
          $region53: #{conv_body_forward.1} parent=51 // pred_check
            _
          $region54: #{conv_body_forward.1} parent=51 // pred_check_branch
            %289 = sbr.rel (0) target = $region56
          $region55: #{conv_body_forward.1} parent=51 // pred_region
            // Predicated region
            $region57: #{conv_body_forward.1} parent=55 // pred_check
              _
            $region58: #{conv_body_forward.1} parent=55 // pred_check_branch
              %291 = sbr.rel target = $region60
            $region59: #{conv_body_forward.1} parent=55 // pred_region
              // Predicated region
              $region72: #{conv_body_forward.1} parent=59 // pred_check
                _
              $region73: #{conv_body_forward.1} parent=59 // pred_check_branch
                %880 = sbr.rel (0) target = $region75
              $region74: #{conv_body_forward.1} parent=59 // pred_region
                loop: start=0, step=1, limit=1
                $region76: #{conv_body_forward.1} parent=74 // loop_pre_header
                  _
                $region77: #{conv_body_forward.1} parent=74 // loop_header
                  %s882 = sphi 0, %s886
                  %p883 = scmp.ge.s32.totalorder %s882, 1
                  %s887 = sphi %s287, %s287
                  %s888 = sphi %s284, %s284
                $region78: #{conv_body_forward.1} parent=74 // loop_header_branch
                  %885 = sbr.rel (%p883) target = $region82
                $region79: #{conv_body_forward.1} parent=74 // loop_body
                  _
                $region80: #{conv_body_forward.1} parent=74 // loop_footer
                  %s886 = sadd.s32 1, %s882
                $region81: #{conv_body_forward.1} parent=74 // loop_footer_branch
                  %881 = sbr.rel target = $region77
                $region82: #{conv_body_forward.1} parent=74 // loop_exit
                  _
                loop: start=0, step=1, limit=1
                $region83: #{conv_body_forward.1} parent=74 // loop_pre_header
                  _
                $region84: #{conv_body_forward.1} parent=74 // loop_header
                  %s891 = sphi 0, %s895
                  %p892 = scmp.ge.s32.totalorder %s891, 1
                  %s896 = sphi %s287, %s287
                  %s897 = sphi %s284, %s284
                $region85: #{conv_body_forward.1} parent=74 // loop_header_branch
                  %894 = sbr.rel (%p892) target = $region89
                $region86: #{conv_body_forward.1} parent=74 // loop_body
                  %v898 = vld [vmem:[%s896] sm:$0xf]
                  %899 = vst [vmem:[%s897] sm:$0xf] %v898
                  %v900 = vld [vmem:[%s896 + $0x4] sm:$0xf]
                  %901 = vst [vmem:[%s897 + $0x4] sm:$0xf] %v900
                  %v902 = vld [vmem:[%s896 + $0x10] sm:$0xf]
                  %903 = vst [vmem:[%s897 + $0x8] sm:$0xf] %v902
                  %v904 = vld [vmem:[%s896 + $0x14] sm:$0xf]
                  %905 = vst [vmem:[%s897 + $0xc] sm:$0xf] %v904
                  %v906 = vld [vmem:[%s896 + $0x20] sm:$0xf]
                  %907 = vst [vmem:[%s897 + $0x10] sm:$0xf] %v906
                  %v908 = vld [vmem:[%s896 + $0x24] sm:$0xf]
                  %909 = vst [vmem:[%s897 + $0x14] sm:$0xf] %v908
                  %v910 = vld [vmem:[%s896 + $0x30] sm:$0xf]
                  %911 = vst [vmem:[%s897 + $0x18] sm:$0xf] %v910
                  %v912 = vld [vmem:[%s896 + $0x34] sm:$0xf]
                  %913 = vst [vmem:[%s897 + $0x1c] sm:$0xf] %v912
                  %v914 = vld [vmem:[%s896 + $0x40] sm:$0xf]
                  %915 = vst [vmem:[%s897 + $0x20] sm:$0xf] %v914
                  %v916 = vld [vmem:[%s896 + $0x44] sm:$0xf]
                  %917 = vst [vmem:[%s897 + $0x24] sm:$0xf] %v916
                  %v918 = vld [vmem:[%s896 + $0x50] sm:$0xf]
                  %919 = vst [vmem:[%s897 + $0x28] sm:$0xf] %v918
                  %v920 = vld [vmem:[%s896 + $0x54] sm:$0xf]
                  %921 = vst [vmem:[%s897 + $0x2c] sm:$0xf] %v920
                  %v922 = vld [vmem:[%s896 + $0x60] sm:$0xf]
                  %923 = vst [vmem:[%s897 + $0x30] sm:$0xf] %v922
                  %v924 = vld [vmem:[%s896 + $0x64] sm:$0xf]
                  %925 = vst [vmem:[%s897 + $0x34] sm:$0xf] %v924
                  %v926 = vld [vmem:[%s896 + $0x70] sm:$0xf]
                  %927 = vst [vmem:[%s897 + $0x38] sm:$0xf] %v926
                  %v928 = vld [vmem:[%s896 + $0x74] sm:$0xf]
                  %929 = vst [vmem:[%s897 + $0x3c] sm:$0xf] %v928
                  %v930 = vld [vmem:[%s896 + $0x80] sm:$0xf]
                  %931 = vst [vmem:[%s897 + $0x40] sm:$0xf] %v930
                  %v932 = vld [vmem:[%s896 + $0x84] sm:$0xf]
                  %933 = vst [vmem:[%s897 + $0x44] sm:$0xf] %v932
                  %v934 = vld [vmem:[%s896 + $0x90] sm:$0xf]
                  %935 = vst [vmem:[%s897 + $0x48] sm:$0xf] %v934
                  %v936 = vld [vmem:[%s896 + $0x94] sm:$0xf]
                  %937 = vst [vmem:[%s897 + $0x4c] sm:$0xf] %v936
                  %v938 = vld [vmem:[%s896 + $0xa0] sm:$0xf]
                  %939 = vst [vmem:[%s897 + $0x50] sm:$0xf] %v938
                  %v940 = vld [vmem:[%s896 + $0xa4] sm:$0xf]
                  %941 = vst [vmem:[%s897 + $0x54] sm:$0xf] %v940
                  %v942 = vld [vmem:[%s896 + $0xb0] sm:$0xf]
                  %943 = vst [vmem:[%s897 + $0x58] sm:$0xf] %v942
                  %v944 = vld [vmem:[%s896 + $0xb4] sm:$0xf]
                  %945 = vst [vmem:[%s897 + $0x5c] sm:$0xf] %v944
                  %v946 = vld [vmem:[%s896 + $0xc0] sm:$0xf]
                  %947 = vst [vmem:[%s897 + $0x60] sm:$0xf] %v946
                  %v948 = vld [vmem:[%s896 + $0xc4] sm:$0xf]
                  %949 = vst [vmem:[%s897 + $0x64] sm:$0xf] %v948
                  %v950 = vld [vmem:[%s896 + $0xd0] sm:$0xf]
                  %951 = vst [vmem:[%s897 + $0x68] sm:$0xf] %v950
                  %v952 = vld [vmem:[%s896 + $0xd4] sm:$0xf]
                  %953 = vst [vmem:[%s897 + $0x6c] sm:$0xf] %v952
                  %v954 = vld [vmem:[%s896 + $0xe0] sm:$0xf]
                  %955 = vst [vmem:[%s897 + $0x70] sm:$0xf] %v954
                  %v956 = vld [vmem:[%s896 + $0xe4] sm:$0xf]
                  %957 = vst [vmem:[%s897 + $0x74] sm:$0xf] %v956
                  %v958 = vld [vmem:[%s896 + $0xf0] sm:$0xf]
                  %959 = vst [vmem:[%s897 + $0x78] sm:$0xf] %v958
                  %v960 = vld [vmem:[%s896 + $0xf4] sm:$0xf]
                  %961 = vst [vmem:[%s897 + $0x7c] sm:$0xf] %v960
                  %v962 = vld [vmem:[%s896 + $0x100] sm:$0xf]
                  %963 = vst [vmem:[%s897 + $0x80] sm:$0xf] %v962
                  %v964 = vld [vmem:[%s896 + $0x104] sm:$0xf]
                  %965 = vst [vmem:[%s897 + $0x84] sm:$0xf] %v964
                  %v966 = vld [vmem:[%s896 + $0x110] sm:$0xf]
                  %967 = vst [vmem:[%s897 + $0x88] sm:$0xf] %v966
                  %v968 = vld [vmem:[%s896 + $0x114] sm:$0xf]
                  %969 = vst [vmem:[%s897 + $0x8c] sm:$0xf] %v968
                  %v970 = vld [vmem:[%s896 + $0x120] sm:$0xf]
                  %971 = vst [vmem:[%s897 + $0x90] sm:$0xf] %v970
                  %v972 = vld [vmem:[%s896 + $0x124] sm:$0xf]
                  %973 = vst [vmem:[%s897 + $0x94] sm:$0xf] %v972
                  %v974 = vld [vmem:[%s896 + $0x130] sm:$0xf]
                  %975 = vst [vmem:[%s897 + $0x98] sm:$0xf] %v974
                  %v976 = vld [vmem:[%s896 + $0x134] sm:$0xf]
                  %977 = vst [vmem:[%s897 + $0x9c] sm:$0xf] %v976
                  %v978 = vld [vmem:[%s896 + $0x140] sm:$0xf]
                  %979 = vst [vmem:[%s897 + $0xa0] sm:$0xf] %v978
                  %v980 = vld [vmem:[%s896 + $0x144] sm:$0xf]
                  %981 = vst [vmem:[%s897 + $0xa4] sm:$0xf] %v980
                  %v982 = vld [vmem:[%s896 + $0x150] sm:$0xf]
                  %983 = vst [vmem:[%s897 + $0xa8] sm:$0xf] %v982
                  %v984 = vld [vmem:[%s896 + $0x154] sm:$0xf]
                  %985 = vst [vmem:[%s897 + $0xac] sm:$0xf] %v984
                  %v986 = vld [vmem:[%s896 + $0x160] sm:$0xf]
                  %987 = vst [vmem:[%s897 + $0xb0] sm:$0xf] %v986
                  %v988 = vld [vmem:[%s896 + $0x164] sm:$0xf]
                  %989 = vst [vmem:[%s897 + $0xb4] sm:$0xf] %v988
                  %v990 = vld [vmem:[%s896 + $0x170] sm:$0xf]
                  %991 = vst [vmem:[%s897 + $0xb8] sm:$0xf] %v990
                  %v992 = vld [vmem:[%s896 + $0x174] sm:$0xf]
                  %993 = vst [vmem:[%s897 + $0xbc] sm:$0xf] %v992
                  %v994 = vld [vmem:[%s896 + $0x180] sm:$0xf]
                  %995 = vst [vmem:[%s897 + $0xc0] sm:$0xf] %v994
                  %v996 = vld [vmem:[%s896 + $0x184] sm:$0xf]
                  %997 = vst [vmem:[%s897 + $0xc4] sm:$0xf] %v996
                  %v998 = vld [vmem:[%s896 + $0x190] sm:$0xf]
                  %999 = vst [vmem:[%s897 + $0xc8] sm:$0xf] %v998
                  %v1000 = vld [vmem:[%s896 + $0x194] sm:$0xf]
                  %1001 = vst [vmem:[%s897 + $0xcc] sm:$0xf] %v1000
                  %v1002 = vld [vmem:[%s896 + $0x1a0] sm:$0xf]
                  %1003 = vst [vmem:[%s897 + $0xd0] sm:$0xf] %v1002
                  %v1004 = vld [vmem:[%s896 + $0x1a4] sm:$0xf]
                  %1005 = vst [vmem:[%s897 + $0xd4] sm:$0xf] %v1004
                  %v1006 = vld [vmem:[%s896 + $0x1b0] sm:$0xf]
                  %1007 = vst [vmem:[%s897 + $0xd8] sm:$0xf] %v1006
                  %v1008 = vld [vmem:[%s896 + $0x1b4] sm:$0xf]
                  %1009 = vst [vmem:[%s897 + $0xdc] sm:$0xf] %v1008
                  %v1010 = vld [vmem:[%s896 + $0x1c0] sm:$0xf]
                  %1011 = vst [vmem:[%s897 + $0xe0] sm:$0xf] %v1010
                  %v1012 = vld [vmem:[%s896 + $0x1c4] sm:$0xf]
                  %1013 = vst [vmem:[%s897 + $0xe4] sm:$0xf] %v1012
                  %v1014 = vld [vmem:[%s896 + $0x1d0] sm:$0xf]
                  %1015 = vst [vmem:[%s897 + $0xe8] sm:$0xf] %v1014
                  %v1016 = vld [vmem:[%s896 + $0x1d4] sm:$0xf]
                  %1017 = vst [vmem:[%s897 + $0xec] sm:$0xf] %v1016
                  %v1018 = vld [vmem:[%s896 + $0x1e0] sm:$0xf]
                  %1019 = vst [vmem:[%s897 + $0xf0] sm:$0xf] %v1018
                  %v1020 = vld [vmem:[%s896 + $0x1e4] sm:$0xf]
                  %1021 = vst [vmem:[%s897 + $0xf4] sm:$0xf] %v1020
                  %v1022 = vld [vmem:[%s896 + $0x1f0] sm:$0xf]
                  %1023 = vst [vmem:[%s897 + $0xf8] sm:$0xf] %v1022
                  %v1024 = vld [vmem:[%s896 + $0x1f4] sm:$0xf]
                  %1025 = vst [vmem:[%s897 + $0xfc] sm:$0xf] %v1024
                  %v1026 = vld [vmem:[%s896 + $0x200] sm:$0xf]
                  %1027 = vst [vmem:[%s897 + $0x100] sm:$0xf] %v1026
                  %v1028 = vld [vmem:[%s896 + $0x204] sm:$0xf]
                  %1029 = vst [vmem:[%s897 + $0x104] sm:$0xf] %v1028
                  %v1030 = vld [vmem:[%s896 + $0x210] sm:$0xf]
                  %1031 = vst [vmem:[%s897 + $0x108] sm:$0xf] %v1030
                  %v1032 = vld [vmem:[%s896 + $0x214] sm:$0xf]
                  %1033 = vst [vmem:[%s897 + $0x10c] sm:$0xf] %v1032
                  %v1034 = vld [vmem:[%s896 + $0x220] sm:$0xf]
                  %1035 = vst [vmem:[%s897 + $0x110] sm:$0xf] %v1034
                  %v1036 = vld [vmem:[%s896 + $0x224] sm:$0xf]
                  %1037 = vst [vmem:[%s897 + $0x114] sm:$0xf] %v1036
                  %v1038 = vld [vmem:[%s896 + $0x230] sm:$0xf]
                  %1039 = vst [vmem:[%s897 + $0x118] sm:$0xf] %v1038
                  %v1040 = vld [vmem:[%s896 + $0x234] sm:$0xf]
                  %1041 = vst [vmem:[%s897 + $0x11c] sm:$0xf] %v1040
                  %v1042 = vld [vmem:[%s896 + $0x240] sm:$0xf]
                  %1043 = vst [vmem:[%s897 + $0x120] sm:$0xf] %v1042
                  %v1044 = vld [vmem:[%s896 + $0x244] sm:$0xf]
                  %1045 = vst [vmem:[%s897 + $0x124] sm:$0xf] %v1044
                  %v1046 = vld [vmem:[%s896 + $0x250] sm:$0xf]
                  %1047 = vst [vmem:[%s897 + $0x128] sm:$0xf] %v1046
                  %v1048 = vld [vmem:[%s896 + $0x254] sm:$0xf]
                  %1049 = vst [vmem:[%s897 + $0x12c] sm:$0xf] %v1048
                  %v1050 = vld [vmem:[%s896 + $0x260] sm:$0xf]
                  %1051 = vst [vmem:[%s897 + $0x130] sm:$0xf] %v1050
                  %v1052 = vld [vmem:[%s896 + $0x264] sm:$0xf]
                  %1053 = vst [vmem:[%s897 + $0x134] sm:$0xf] %v1052
                  %v1054 = vld [vmem:[%s896 + $0x270] sm:$0xf]
                  %1055 = vst [vmem:[%s897 + $0x138] sm:$0xf] %v1054
                  %v1056 = vld [vmem:[%s896 + $0x274] sm:$0xf]
                  %1057 = vst [vmem:[%s897 + $0x13c] sm:$0xf] %v1056
                  %v1058 = vld [vmem:[%s896 + $0x280] sm:$0xf]
                  %1059 = vst [vmem:[%s897 + $0x140] sm:$0xf] %v1058
                  %v1060 = vld [vmem:[%s896 + $0x284] sm:$0xf]
                  %1061 = vst [vmem:[%s897 + $0x144] sm:$0xf] %v1060
                  %v1062 = vld [vmem:[%s896 + $0x290] sm:$0xf]
                  %1063 = vst [vmem:[%s897 + $0x148] sm:$0xf] %v1062
                  %v1064 = vld [vmem:[%s896 + $0x294] sm:$0xf]
                  %1065 = vst [vmem:[%s897 + $0x14c] sm:$0xf] %v1064
                  %v1066 = vld [vmem:[%s896 + $0x2a0] sm:$0xf]
                  %1067 = vst [vmem:[%s897 + $0x150] sm:$0xf] %v1066
                  %v1068 = vld [vmem:[%s896 + $0x2a4] sm:$0xf]
                  %1069 = vst [vmem:[%s897 + $0x154] sm:$0xf] %v1068
                  %v1070 = vld [vmem:[%s896 + $0x2b0] sm:$0xf]
                  %1071 = vst [vmem:[%s897 + $0x158] sm:$0xf] %v1070
                  %v1072 = vld [vmem:[%s896 + $0x2b4] sm:$0xf]
                  %1073 = vst [vmem:[%s897 + $0x15c] sm:$0xf] %v1072
                  %v1074 = vld [vmem:[%s896 + $0x2c0] sm:$0xf]
                  %1075 = vst [vmem:[%s897 + $0x160] sm:$0xf] %v1074
                  %v1076 = vld [vmem:[%s896 + $0x2c4] sm:$0xf]
                  %1077 = vst [vmem:[%s897 + $0x164] sm:$0xf] %v1076
                  %v1078 = vld [vmem:[%s896 + $0x2d0] sm:$0xf]
                  %1079 = vst [vmem:[%s897 + $0x168] sm:$0xf] %v1078
                  %v1080 = vld [vmem:[%s896 + $0x2d4] sm:$0xf]
                  %1081 = vst [vmem:[%s897 + $0x16c] sm:$0xf] %v1080
                  %v1082 = vld [vmem:[%s896 + $0x2e0] sm:$0xf]
                  %1083 = vst [vmem:[%s897 + $0x170] sm:$0xf] %v1082
                  %v1084 = vld [vmem:[%s896 + $0x2e4] sm:$0xf]
                  %1085 = vst [vmem:[%s897 + $0x174] sm:$0xf] %v1084
                  %v1086 = vld [vmem:[%s896 + $0x2f0] sm:$0xf]
                  %1087 = vst [vmem:[%s897 + $0x178] sm:$0xf] %v1086
                  %v1088 = vld [vmem:[%s896 + $0x2f4] sm:$0xf]
                  %1089 = vst [vmem:[%s897 + $0x17c] sm:$0xf] %v1088
                  %v1090 = vld [vmem:[%s896 + $0x300] sm:$0xf]
                  %1091 = vst [vmem:[%s897 + $0x180] sm:$0xf] %v1090
                  %v1092 = vld [vmem:[%s896 + $0x304] sm:$0xf]
                  %1093 = vst [vmem:[%s897 + $0x184] sm:$0xf] %v1092
                  %v1094 = vld [vmem:[%s896 + $0x310] sm:$0xf]
                  %1095 = vst [vmem:[%s897 + $0x188] sm:$0xf] %v1094
                  %v1096 = vld [vmem:[%s896 + $0x314] sm:$0xf]
                  %1097 = vst [vmem:[%s897 + $0x18c] sm:$0xf] %v1096
                  %v1098 = vld [vmem:[%s896 + $0x320] sm:$0xf]
                  %1099 = vst [vmem:[%s897 + $0x190] sm:$0xf] %v1098
                  %v1100 = vld [vmem:[%s896 + $0x324] sm:$0xf]
                  %1101 = vst [vmem:[%s897 + $0x194] sm:$0xf] %v1100
                  %v1102 = vld [vmem:[%s896 + $0x330] sm:$0xf]
                  %1103 = vst [vmem:[%s897 + $0x198] sm:$0xf] %v1102
                  %v1104 = vld [vmem:[%s896 + $0x334] sm:$0xf]
                  %1105 = vst [vmem:[%s897 + $0x19c] sm:$0xf] %v1104
                  %v1106 = vld [vmem:[%s896 + $0x340] sm:$0xf]
                  %1107 = vst [vmem:[%s897 + $0x1a0] sm:$0xf] %v1106
                  %v1108 = vld [vmem:[%s896 + $0x344] sm:$0xf]
                  %1109 = vst [vmem:[%s897 + $0x1a4] sm:$0xf] %v1108
                  %v1110 = vld [vmem:[%s896 + $0x350] sm:$0xf]
                  %1111 = vst [vmem:[%s897 + $0x1a8] sm:$0xf] %v1110
                  %v1112 = vld [vmem:[%s896 + $0x354] sm:$0xf]
                  %1113 = vst [vmem:[%s897 + $0x1ac] sm:$0xf] %v1112
                  %v1114 = vld [vmem:[%s896 + $0x360] sm:$0xf]
                  %1115 = vst [vmem:[%s897 + $0x1b0] sm:$0xf] %v1114
                  %v1116 = vld [vmem:[%s896 + $0x364] sm:$0xf]
                  %1117 = vst [vmem:[%s897 + $0x1b4] sm:$0xf] %v1116
                  %v1118 = vld [vmem:[%s896 + $0x370] sm:$0xf]
                  %1119 = vst [vmem:[%s897 + $0x1b8] sm:$0xf] %v1118
                  %v1120 = vld [vmem:[%s896 + $0x374] sm:$0xf]
                  %1121 = vst [vmem:[%s897 + $0x1bc] sm:$0xf] %v1120
                  %v1122 = vld [vmem:[%s896 + $0x380] sm:$0xf]
                  %1123 = vst [vmem:[%s897 + $0x1c0] sm:$0xf] %v1122
                  %v1124 = vld [vmem:[%s896 + $0x384] sm:$0xf]
                  %1125 = vst [vmem:[%s897 + $0x1c4] sm:$0xf] %v1124
                  %v1126 = vld [vmem:[%s896 + $0x390] sm:$0xf]
                  %1127 = vst [vmem:[%s897 + $0x1c8] sm:$0xf] %v1126
                  %v1128 = vld [vmem:[%s896 + $0x394] sm:$0xf]
                  %1129 = vst [vmem:[%s897 + $0x1cc] sm:$0xf] %v1128
                  %v1130 = vld [vmem:[%s896 + $0x3a0] sm:$0xf]
                  %1131 = vst [vmem:[%s897 + $0x1d0] sm:$0xf] %v1130
                  %v1132 = vld [vmem:[%s896 + $0x3a4] sm:$0xf]
                  %1133 = vst [vmem:[%s897 + $0x1d4] sm:$0xf] %v1132
                  %v1134 = vld [vmem:[%s896 + $0x3b0] sm:$0xf]
                  %1135 = vst [vmem:[%s897 + $0x1d8] sm:$0xf] %v1134
                  %v1136 = vld [vmem:[%s896 + $0x3b4] sm:$0xf]
                  %1137 = vst [vmem:[%s897 + $0x1dc] sm:$0xf] %v1136
                  %v1138 = vld [vmem:[%s896 + $0x3c0] sm:$0xf]
                  %1139 = vst [vmem:[%s897 + $0x1e0] sm:$0xf] %v1138
                  %v1140 = vld [vmem:[%s896 + $0x3c4] sm:$0xf]
                  %1141 = vst [vmem:[%s897 + $0x1e4] sm:$0xf] %v1140
                  %v1142 = vld [vmem:[%s896 + $0x3d0] sm:$0xf]
                  %1143 = vst [vmem:[%s897 + $0x1e8] sm:$0xf] %v1142
                  %v1144 = vld [vmem:[%s896 + $0x3d4] sm:$0xf]
                  %1145 = vst [vmem:[%s897 + $0x1ec] sm:$0xf] %v1144
                  %v1146 = vld [vmem:[%s896 + $0x3e0] sm:$0xf]
                  %1147 = vst [vmem:[%s897 + $0x1f0] sm:$0xf] %v1146
                  %v1148 = vld [vmem:[%s896 + $0x3e4] sm:$0xf]
                  %1149 = vst [vmem:[%s897 + $0x1f4] sm:$0xf] %v1148
                  %v1150 = vld [vmem:[%s896 + $0x3f0] sm:$0xf]
                  %1151 = vst [vmem:[%s897 + $0x1f8] sm:$0xf] %v1150
                  %v1152 = vld [vmem:[%s896 + $0x3f4] sm:$0xf]
                  %1153 = vst [vmem:[%s897 + $0x1fc] sm:$0xf] %v1152
                  %v1154 = vld [vmem:[%s896 + $0x400] sm:$0xf]
                  %1155 = vst [vmem:[%s897 + $0x200] sm:$0xf] %v1154
                  %v1156 = vld [vmem:[%s896 + $0x404] sm:$0xf]
                  %1157 = vst [vmem:[%s897 + $0x204] sm:$0xf] %v1156
                  %v1158 = vld [vmem:[%s896 + $0x410] sm:$0xf]
                  %1159 = vst [vmem:[%s897 + $0x208] sm:$0xf] %v1158
                  %v1160 = vld [vmem:[%s896 + $0x414] sm:$0xf]
                  %1161 = vst [vmem:[%s897 + $0x20c] sm:$0xf] %v1160
                  %v1162 = vld [vmem:[%s896 + $0x420] sm:$0xf]
                  %1163 = vst [vmem:[%s897 + $0x210] sm:$0xf] %v1162
                  %v1164 = vld [vmem:[%s896 + $0x424] sm:$0xf]
                  %1165 = vst [vmem:[%s897 + $0x214] sm:$0xf] %v1164
                  %v1166 = vld [vmem:[%s896 + $0x430] sm:$0xf]
                  %1167 = vst [vmem:[%s897 + $0x218] sm:$0xf] %v1166
                  %v1168 = vld [vmem:[%s896 + $0x434] sm:$0xf]
                  %1169 = vst [vmem:[%s897 + $0x21c] sm:$0xf] %v1168
                  %v1170 = vld [vmem:[%s896 + $0x440] sm:$0xf]
                  %1171 = vst [vmem:[%s897 + $0x220] sm:$0xf] %v1170
                  %v1172 = vld [vmem:[%s896 + $0x444] sm:$0xf]
                  %1173 = vst [vmem:[%s897 + $0x224] sm:$0xf] %v1172
                  %v1174 = vld [vmem:[%s896 + $0x450] sm:$0xf]
                  %1175 = vst [vmem:[%s897 + $0x228] sm:$0xf] %v1174
                  %v1176 = vld [vmem:[%s896 + $0x454] sm:$0xf]
                  %1177 = vst [vmem:[%s897 + $0x22c] sm:$0xf] %v1176
                  %v1178 = vld [vmem:[%s896 + $0x460] sm:$0xf]
                  %1179 = vst [vmem:[%s897 + $0x230] sm:$0xf] %v1178
                  %v1180 = vld [vmem:[%s896 + $0x464] sm:$0xf]
                  %1181 = vst [vmem:[%s897 + $0x234] sm:$0xf] %v1180
                  %v1182 = vld [vmem:[%s896 + $0x470] sm:$0xf]
                  %1183 = vst [vmem:[%s897 + $0x238] sm:$0xf] %v1182
                  %v1184 = vld [vmem:[%s896 + $0x474] sm:$0xf]
                  %1185 = vst [vmem:[%s897 + $0x23c] sm:$0xf] %v1184
                  %v1186 = vld [vmem:[%s896 + $0x480] sm:$0xf]
                  %1187 = vst [vmem:[%s897 + $0x240] sm:$0xf] %v1186
                  %v1188 = vld [vmem:[%s896 + $0x484] sm:$0xf]
                  %1189 = vst [vmem:[%s897 + $0x244] sm:$0xf] %v1188
                  %v1190 = vld [vmem:[%s896 + $0x490] sm:$0xf]
                  %1191 = vst [vmem:[%s897 + $0x248] sm:$0xf] %v1190
                  %v1192 = vld [vmem:[%s896 + $0x494] sm:$0xf]
                  %1193 = vst [vmem:[%s897 + $0x24c] sm:$0xf] %v1192
                  %v1194 = vld [vmem:[%s896 + $0x4a0] sm:$0xf]
                  %1195 = vst [vmem:[%s897 + $0x250] sm:$0xf] %v1194
                  %v1196 = vld [vmem:[%s896 + $0x4a4] sm:$0xf]
                  %1197 = vst [vmem:[%s897 + $0x254] sm:$0xf] %v1196
                  %v1198 = vld [vmem:[%s896 + $0x4b0] sm:$0xf]
                  %1199 = vst [vmem:[%s897 + $0x258] sm:$0xf] %v1198
                  %v1200 = vld [vmem:[%s896 + $0x4b4] sm:$0xf]
                  %1201 = vst [vmem:[%s897 + $0x25c] sm:$0xf] %v1200
                  %v1202 = vld [vmem:[%s896 + $0x4c0] sm:$0xf]
                  %1203 = vst [vmem:[%s897 + $0x260] sm:$0xf] %v1202
                  %v1204 = vld [vmem:[%s896 + $0x4c4] sm:$0xf]
                  %1205 = vst [vmem:[%s897 + $0x264] sm:$0xf] %v1204
                  %v1206 = vld [vmem:[%s896 + $0x4d0] sm:$0xf]
                  %1207 = vst [vmem:[%s897 + $0x268] sm:$0xf] %v1206
                  %v1208 = vld [vmem:[%s896 + $0x4d4] sm:$0xf]
                  %1209 = vst [vmem:[%s897 + $0x26c] sm:$0xf] %v1208
                  %v1210 = vld [vmem:[%s896 + $0x4e0] sm:$0xf]
                  %1211 = vst [vmem:[%s897 + $0x270] sm:$0xf] %v1210
                  %v1212 = vld [vmem:[%s896 + $0x4e4] sm:$0xf]
                  %1213 = vst [vmem:[%s897 + $0x274] sm:$0xf] %v1212
                  %v1214 = vld [vmem:[%s896 + $0x4f0] sm:$0xf]
                  %1215 = vst [vmem:[%s897 + $0x278] sm:$0xf] %v1214
                  %v1216 = vld [vmem:[%s896 + $0x4f4] sm:$0xf]
                  %1217 = vst [vmem:[%s897 + $0x27c] sm:$0xf] %v1216
                  %v1218 = vld [vmem:[%s896 + $0x500] sm:$0xf]
                  %1219 = vst [vmem:[%s897 + $0x280] sm:$0xf] %v1218
                  %v1220 = vld [vmem:[%s896 + $0x504] sm:$0xf]
                  %1221 = vst [vmem:[%s897 + $0x284] sm:$0xf] %v1220
                  %v1222 = vld [vmem:[%s896 + $0x510] sm:$0xf]
                  %1223 = vst [vmem:[%s897 + $0x288] sm:$0xf] %v1222
                  %v1224 = vld [vmem:[%s896 + $0x514] sm:$0xf]
                  %1225 = vst [vmem:[%s897 + $0x28c] sm:$0xf] %v1224
                  %v1226 = vld [vmem:[%s896 + $0x520] sm:$0xf]
                  %1227 = vst [vmem:[%s897 + $0x290] sm:$0xf] %v1226
                  %v1228 = vld [vmem:[%s896 + $0x524] sm:$0xf]
                  %1229 = vst [vmem:[%s897 + $0x294] sm:$0xf] %v1228
                  %v1230 = vld [vmem:[%s896 + $0x530] sm:$0xf]
                  %1231 = vst [vmem:[%s897 + $0x298] sm:$0xf] %v1230
                  %v1232 = vld [vmem:[%s896 + $0x534] sm:$0xf]
                  %1233 = vst [vmem:[%s897 + $0x29c] sm:$0xf] %v1232
                  %v1234 = vld [vmem:[%s896 + $0x540] sm:$0xf]
                  %1235 = vst [vmem:[%s897 + $0x2a0] sm:$0xf] %v1234
                  %v1236 = vld [vmem:[%s896 + $0x544] sm:$0xf]
                  %1237 = vst [vmem:[%s897 + $0x2a4] sm:$0xf] %v1236
                  %v1238 = vld [vmem:[%s896 + $0x550] sm:$0xf]
                  %1239 = vst [vmem:[%s897 + $0x2a8] sm:$0xf] %v1238
                  %v1240 = vld [vmem:[%s896 + $0x554] sm:$0xf]
                  %1241 = vst [vmem:[%s897 + $0x2ac] sm:$0xf] %v1240
                  %v1242 = vld [vmem:[%s896 + $0x560] sm:$0xf]
                  %1243 = vst [vmem:[%s897 + $0x2b0] sm:$0xf] %v1242
                  %v1244 = vld [vmem:[%s896 + $0x564] sm:$0xf]
                  %1245 = vst [vmem:[%s897 + $0x2b4] sm:$0xf] %v1244
                  %v1246 = vld [vmem:[%s896 + $0x570] sm:$0xf]
                  %1247 = vst [vmem:[%s897 + $0x2b8] sm:$0xf] %v1246
                  %v1248 = vld [vmem:[%s896 + $0x574] sm:$0xf]
                  %1249 = vst [vmem:[%s897 + $0x2bc] sm:$0xf] %v1248
                  %v1250 = vld [vmem:[%s896 + $0x580] sm:$0xf]
                  %1251 = vst [vmem:[%s897 + $0x2c0] sm:$0xf] %v1250
                  %v1252 = vld [vmem:[%s896 + $0x584] sm:$0xf]
                  %1253 = vst [vmem:[%s897 + $0x2c4] sm:$0xf] %v1252
                  %v1254 = vld [vmem:[%s896 + $0x590] sm:$0xf]
                  %1255 = vst [vmem:[%s897 + $0x2c8] sm:$0xf] %v1254
                  %v1256 = vld [vmem:[%s896 + $0x594] sm:$0xf]
                  %1257 = vst [vmem:[%s897 + $0x2cc] sm:$0xf] %v1256
                  %v1258 = vld [vmem:[%s896 + $0x5a0] sm:$0xf]
                  %1259 = vst [vmem:[%s897 + $0x2d0] sm:$0xf] %v1258
                  %v1260 = vld [vmem:[%s896 + $0x5a4] sm:$0xf]
                  %1261 = vst [vmem:[%s897 + $0x2d4] sm:$0xf] %v1260
                  %v1262 = vld [vmem:[%s896 + $0x5b0] sm:$0xf]
                  %1263 = vst [vmem:[%s897 + $0x2d8] sm:$0xf] %v1262
                  %v1264 = vld [vmem:[%s896 + $0x5b4] sm:$0xf]
                  %1265 = vst [vmem:[%s897 + $0x2dc] sm:$0xf] %v1264
                  %v1266 = vld [vmem:[%s896 + $0x5c0] sm:$0xf]
                  %1267 = vst [vmem:[%s897 + $0x2e0] sm:$0xf] %v1266
                  %v1268 = vld [vmem:[%s896 + $0x5c4] sm:$0xf]
                  %1269 = vst [vmem:[%s897 + $0x2e4] sm:$0xf] %v1268
                  %v1270 = vld [vmem:[%s896 + $0x5d0] sm:$0xf]
                  %1271 = vst [vmem:[%s897 + $0x2e8] sm:$0xf] %v1270
                  %v1272 = vld [vmem:[%s896 + $0x5d4] sm:$0xf]
                  %1273 = vst [vmem:[%s897 + $0x2ec] sm:$0xf] %v1272
                  %v1274 = vld [vmem:[%s896 + $0x5e0] sm:$0xf]
                  %1275 = vst [vmem:[%s897 + $0x2f0] sm:$0xf] %v1274
                  %v1276 = vld [vmem:[%s896 + $0x5e4] sm:$0xf]
                  %1277 = vst [vmem:[%s897 + $0x2f4] sm:$0xf] %v1276
                  %v1278 = vld [vmem:[%s896 + $0x5f0] sm:$0xf]
                  %1279 = vst [vmem:[%s897 + $0x2f8] sm:$0xf] %v1278
                  %v1280 = vld [vmem:[%s896 + $0x5f4] sm:$0xf]
                  %1281 = vst [vmem:[%s897 + $0x2fc] sm:$0xf] %v1280
                  %v1282 = vld [vmem:[%s896 + $0x600] sm:$0xf]
                  %1283 = vst [vmem:[%s897 + $0x300] sm:$0xf] %v1282
                  %v1284 = vld [vmem:[%s896 + $0x604] sm:$0xf]
                  %1285 = vst [vmem:[%s897 + $0x304] sm:$0xf] %v1284
                  %v1286 = vld [vmem:[%s896 + $0x610] sm:$0xf]
                  %1287 = vst [vmem:[%s897 + $0x308] sm:$0xf] %v1286
                  %v1288 = vld [vmem:[%s896 + $0x614] sm:$0xf]
                  %1289 = vst [vmem:[%s897 + $0x30c] sm:$0xf] %v1288
                  %v1290 = vld [vmem:[%s896 + $0x620] sm:$0xf]
                  %1291 = vst [vmem:[%s897 + $0x310] sm:$0xf] %v1290
                  %v1292 = vld [vmem:[%s896 + $0x624] sm:$0xf]
                  %1293 = vst [vmem:[%s897 + $0x314] sm:$0xf] %v1292
                  %v1294 = vld [vmem:[%s896 + $0x630] sm:$0xf]
                  %1295 = vst [vmem:[%s897 + $0x318] sm:$0xf] %v1294
                  %v1296 = vld [vmem:[%s896 + $0x634] sm:$0xf]
                  %1297 = vst [vmem:[%s897 + $0x31c] sm:$0xf] %v1296
                  %v1298 = vld [vmem:[%s896 + $0x640] sm:$0xf]
                  %1299 = vst [vmem:[%s897 + $0x320] sm:$0xf] %v1298
                  %v1300 = vld [vmem:[%s896 + $0x644] sm:$0xf]
                  %1301 = vst [vmem:[%s897 + $0x324] sm:$0xf] %v1300
                  %v1302 = vld [vmem:[%s896 + $0x650] sm:$0xf]
                  %1303 = vst [vmem:[%s897 + $0x328] sm:$0xf] %v1302
                  %v1304 = vld [vmem:[%s896 + $0x654] sm:$0xf]
                  %1305 = vst [vmem:[%s897 + $0x32c] sm:$0xf] %v1304
                  %v1306 = vld [vmem:[%s896 + $0x660] sm:$0xf]
                  %1307 = vst [vmem:[%s897 + $0x330] sm:$0xf] %v1306
                  %v1308 = vld [vmem:[%s896 + $0x664] sm:$0xf]
                  %1309 = vst [vmem:[%s897 + $0x334] sm:$0xf] %v1308
                  %v1310 = vld [vmem:[%s896 + $0x670] sm:$0xf]
                  %1311 = vst [vmem:[%s897 + $0x338] sm:$0xf] %v1310
                  %v1312 = vld [vmem:[%s896 + $0x674] sm:$0xf]
                  %1313 = vst [vmem:[%s897 + $0x33c] sm:$0xf] %v1312
                  %v1314 = vld [vmem:[%s896 + $0x680] sm:$0xf]
                  %1315 = vst [vmem:[%s897 + $0x340] sm:$0xf] %v1314
                  %v1316 = vld [vmem:[%s896 + $0x684] sm:$0xf]
                  %1317 = vst [vmem:[%s897 + $0x344] sm:$0xf] %v1316
                  %v1318 = vld [vmem:[%s896 + $0x690] sm:$0xf]
                  %1319 = vst [vmem:[%s897 + $0x348] sm:$0xf] %v1318
                  %v1320 = vld [vmem:[%s896 + $0x694] sm:$0xf]
                  %1321 = vst [vmem:[%s897 + $0x34c] sm:$0xf] %v1320
                  %v1322 = vld [vmem:[%s896 + $0x6a0] sm:$0xf]
                  %1323 = vst [vmem:[%s897 + $0x350] sm:$0xf] %v1322
                  %v1324 = vld [vmem:[%s896 + $0x6a4] sm:$0xf]
                  %1325 = vst [vmem:[%s897 + $0x354] sm:$0xf] %v1324
                  %v1326 = vld [vmem:[%s896 + $0x6b0] sm:$0xf]
                  %1327 = vst [vmem:[%s897 + $0x358] sm:$0xf] %v1326
                  %v1328 = vld [vmem:[%s896 + $0x6b4] sm:$0xf]
                  %1329 = vst [vmem:[%s897 + $0x35c] sm:$0xf] %v1328
                  %v1330 = vld [vmem:[%s896 + $0x6c0] sm:$0xf]
                  %1331 = vst [vmem:[%s897 + $0x360] sm:$0xf] %v1330
                  %v1332 = vld [vmem:[%s896 + $0x6c4] sm:$0xf]
                  %1333 = vst [vmem:[%s897 + $0x364] sm:$0xf] %v1332
                  %v1334 = vld [vmem:[%s896 + $0x6d0] sm:$0xf]
                  %1335 = vst [vmem:[%s897 + $0x368] sm:$0xf] %v1334
                  %v1336 = vld [vmem:[%s896 + $0x6d4] sm:$0xf]
                  %1337 = vst [vmem:[%s897 + $0x36c] sm:$0xf] %v1336
                  %v1338 = vld [vmem:[%s896 + $0x6e0] sm:$0xf]
                  %1339 = vst [vmem:[%s897 + $0x370] sm:$0xf] %v1338
                  %v1340 = vld [vmem:[%s896 + $0x6e4] sm:$0xf]
                  %1341 = vst [vmem:[%s897 + $0x374] sm:$0xf] %v1340
                  %v1342 = vld [vmem:[%s896 + $0x6f0] sm:$0xf]
                  %1343 = vst [vmem:[%s897 + $0x378] sm:$0xf] %v1342
                  %v1344 = vld [vmem:[%s896 + $0x6f4] sm:$0xf]
                  %1345 = vst [vmem:[%s897 + $0x37c] sm:$0xf] %v1344
                  %v1346 = vld [vmem:[%s896 + $0x700] sm:$0xf]
                  %1347 = vst [vmem:[%s897 + $0x380] sm:$0xf] %v1346
                  %v1348 = vld [vmem:[%s896 + $0x704] sm:$0xf]
                  %1349 = vst [vmem:[%s897 + $0x384] sm:$0xf] %v1348
                  %v1350 = vld [vmem:[%s896 + $0x710] sm:$0xf]
                  %1351 = vst [vmem:[%s897 + $0x388] sm:$0xf] %v1350
                  %v1352 = vld [vmem:[%s896 + $0x714] sm:$0xf]
                  %1353 = vst [vmem:[%s897 + $0x38c] sm:$0xf] %v1352
                  %v1354 = vld [vmem:[%s896 + $0x720] sm:$0xf]
                  %1355 = vst [vmem:[%s897 + $0x390] sm:$0xf] %v1354
                  %v1356 = vld [vmem:[%s896 + $0x724] sm:$0xf]
                  %1357 = vst [vmem:[%s897 + $0x394] sm:$0xf] %v1356
                  %v1358 = vld [vmem:[%s896 + $0x730] sm:$0xf]
                  %1359 = vst [vmem:[%s897 + $0x398] sm:$0xf] %v1358
                  %v1360 = vld [vmem:[%s896 + $0x734] sm:$0xf]
                  %1361 = vst [vmem:[%s897 + $0x39c] sm:$0xf] %v1360
                  %v1362 = vld [vmem:[%s896 + $0x740] sm:$0xf]
                  %1363 = vst [vmem:[%s897 + $0x3a0] sm:$0xf] %v1362
                  %v1364 = vld [vmem:[%s896 + $0x744] sm:$0xf]
                  %1365 = vst [vmem:[%s897 + $0x3a4] sm:$0xf] %v1364
                  %v1366 = vld [vmem:[%s896 + $0x750] sm:$0xf]
                  %1367 = vst [vmem:[%s897 + $0x3a8] sm:$0xf] %v1366
                  %v1368 = vld [vmem:[%s896 + $0x754] sm:$0xf]
                  %1369 = vst [vmem:[%s897 + $0x3ac] sm:$0xf] %v1368
                  %v1370 = vld [vmem:[%s896 + $0x760] sm:$0xf]
                  %1371 = vst [vmem:[%s897 + $0x3b0] sm:$0xf] %v1370
                  %v1372 = vld [vmem:[%s896 + $0x764] sm:$0xf]
                  %1373 = vst [vmem:[%s897 + $0x3b4] sm:$0xf] %v1372
                  %v1374 = vld [vmem:[%s896 + $0x770] sm:$0xf]
                  %1375 = vst [vmem:[%s897 + $0x3b8] sm:$0xf] %v1374
                  %v1376 = vld [vmem:[%s896 + $0x774] sm:$0xf]
                  %1377 = vst [vmem:[%s897 + $0x3bc] sm:$0xf] %v1376
                  %v1378 = vld [vmem:[%s896 + $0x780] sm:$0xf]
                  %1379 = vst [vmem:[%s897 + $0x3c0] sm:$0xf] %v1378
                  %v1380 = vld [vmem:[%s896 + $0x784] sm:$0xf]
                  %1381 = vst [vmem:[%s897 + $0x3c4] sm:$0xf] %v1380
                  %v1382 = vld [vmem:[%s896 + $0x790] sm:$0xf]
                  %1383 = vst [vmem:[%s897 + $0x3c8] sm:$0xf] %v1382
                  %v1384 = vld [vmem:[%s896 + $0x794] sm:$0xf]
                  %1385 = vst [vmem:[%s897 + $0x3cc] sm:$0xf] %v1384
                  %v1386 = vld [vmem:[%s896 + $0x7a0] sm:$0xf]
                  %1387 = vst [vmem:[%s897 + $0x3d0] sm:$0xf] %v1386
                  %v1388 = vld [vmem:[%s896 + $0x7a4] sm:$0xf]
                  %1389 = vst [vmem:[%s897 + $0x3d4] sm:$0xf] %v1388
                  %v1390 = vld [vmem:[%s896 + $0x7b0] sm:$0xf]
                  %1391 = vst [vmem:[%s897 + $0x3d8] sm:$0xf] %v1390
                  %v1392 = vld [vmem:[%s896 + $0x7b4] sm:$0xf]
                  %1393 = vst [vmem:[%s897 + $0x3dc] sm:$0xf] %v1392
                  %v1394 = vld [vmem:[%s896 + $0x7c0] sm:$0xf]
                  %1395 = vst [vmem:[%s897 + $0x3e0] sm:$0xf] %v1394
                  %v1396 = vld [vmem:[%s896 + $0x7c4] sm:$0xf]
                  %1397 = vst [vmem:[%s897 + $0x3e4] sm:$0xf] %v1396
                  %v1398 = vld [vmem:[%s896 + $0x7d0] sm:$0xf]
                  %1399 = vst [vmem:[%s897 + $0x3e8] sm:$0xf] %v1398
                  %v1400 = vld [vmem:[%s896 + $0x7d4] sm:$0xf]
                  %1401 = vst [vmem:[%s897 + $0x3ec] sm:$0xf] %v1400
                  %v1402 = vld [vmem:[%s896 + $0x7e0] sm:$0xf]
                  %1403 = vst [vmem:[%s897 + $0x3f0] sm:$0xf] %v1402
                  %v1404 = vld [vmem:[%s896 + $0x7e4] sm:$0xf]
                  %1405 = vst [vmem:[%s897 + $0x3f4] sm:$0xf] %v1404
                  %v1406 = vld [vmem:[%s896 + $0x7f0] sm:$0xf]
                  %1407 = vst [vmem:[%s897 + $0x3f8] sm:$0xf] %v1406
                  %v1408 = vld [vmem:[%s896 + $0x7f4] sm:$0xf]
                  %1409 = vst [vmem:[%s897 + $0x3fc] sm:$0xf] %v1408
                  %v1410 = vld [vmem:[%s896 + $0x800] sm:$0xf]
                  %1411 = vst [vmem:[%s897 + $0x400] sm:$0xf] %v1410
                  %v1412 = vld [vmem:[%s896 + $0x804] sm:$0xf]
                  %1413 = vst [vmem:[%s897 + $0x404] sm:$0xf] %v1412
                  %v1414 = vld [vmem:[%s896 + $0x810] sm:$0xf]
                  %1415 = vst [vmem:[%s897 + $0x408] sm:$0xf] %v1414
                  %v1416 = vld [vmem:[%s896 + $0x814] sm:$0xf]
                  %1417 = vst [vmem:[%s897 + $0x40c] sm:$0xf] %v1416
                  %v1418 = vld [vmem:[%s896 + $0x820] sm:$0xf]
                  %1419 = vst [vmem:[%s897 + $0x410] sm:$0xf] %v1418
                  %v1420 = vld [vmem:[%s896 + $0x824] sm:$0xf]
                  %1421 = vst [vmem:[%s897 + $0x414] sm:$0xf] %v1420
                  %v1422 = vld [vmem:[%s896 + $0x830] sm:$0xf]
                  %1423 = vst [vmem:[%s897 + $0x418] sm:$0xf] %v1422
                  %v1424 = vld [vmem:[%s896 + $0x834] sm:$0xf]
                  %1425 = vst [vmem:[%s897 + $0x41c] sm:$0xf] %v1424
                  %v1426 = vld [vmem:[%s896 + $0x840] sm:$0xf]
                  %1427 = vst [vmem:[%s897 + $0x420] sm:$0xf] %v1426
                  %v1428 = vld [vmem:[%s896 + $0x844] sm:$0xf]
                  %1429 = vst [vmem:[%s897 + $0x424] sm:$0xf] %v1428
                  %v1430 = vld [vmem:[%s896 + $0x850] sm:$0xf]
                  %1431 = vst [vmem:[%s897 + $0x428] sm:$0xf] %v1430
                  %v1432 = vld [vmem:[%s896 + $0x854] sm:$0xf]
                  %1433 = vst [vmem:[%s897 + $0x42c] sm:$0xf] %v1432
                  %v1434 = vld [vmem:[%s896 + $0x860] sm:$0xf]
                  %1435 = vst [vmem:[%s897 + $0x430] sm:$0xf] %v1434
                  %v1436 = vld [vmem:[%s896 + $0x864] sm:$0xf]
                  %1437 = vst [vmem:[%s897 + $0x434] sm:$0xf] %v1436
                  %v1438 = vld [vmem:[%s896 + $0x870] sm:$0xf]
                  %1439 = vst [vmem:[%s897 + $0x438] sm:$0xf] %v1438
                  %v1440 = vld [vmem:[%s896 + $0x874] sm:$0xf]
                  %1441 = vst [vmem:[%s897 + $0x43c] sm:$0xf] %v1440
                  %v1442 = vld [vmem:[%s896 + $0x880] sm:$0xf]
                  %1443 = vst [vmem:[%s897 + $0x440] sm:$0xf] %v1442
                  %v1444 = vld [vmem:[%s896 + $0x884] sm:$0xf]
                  %1445 = vst [vmem:[%s897 + $0x444] sm:$0xf] %v1444
                  %v1446 = vld [vmem:[%s896 + $0x890] sm:$0xf]
                  %1447 = vst [vmem:[%s897 + $0x448] sm:$0xf] %v1446
                  %v1448 = vld [vmem:[%s896 + $0x894] sm:$0xf]
                  %1449 = vst [vmem:[%s897 + $0x44c] sm:$0xf] %v1448
                  %v1450 = vld [vmem:[%s896 + $0x8a0] sm:$0xf]
                  %1451 = vst [vmem:[%s897 + $0x450] sm:$0xf] %v1450
                  %v1452 = vld [vmem:[%s896 + $0x8a4] sm:$0xf]
                  %1453 = vst [vmem:[%s897 + $0x454] sm:$0xf] %v1452
                  %v1454 = vld [vmem:[%s896 + $0x8b0] sm:$0xf]
                  %1455 = vst [vmem:[%s897 + $0x458] sm:$0xf] %v1454
                  %v1456 = vld [vmem:[%s896 + $0x8b4] sm:$0xf]
                  %1457 = vst [vmem:[%s897 + $0x45c] sm:$0xf] %v1456
                  %v1458 = vld [vmem:[%s896 + $0x8c0] sm:$0xf]
                  %1459 = vst [vmem:[%s897 + $0x460] sm:$0xf] %v1458
                  %v1460 = vld [vmem:[%s896 + $0x8c4] sm:$0xf]
                  %1461 = vst [vmem:[%s897 + $0x464] sm:$0xf] %v1460
                  %v1462 = vld [vmem:[%s896 + $0x8d0] sm:$0xf]
                  %1463 = vst [vmem:[%s897 + $0x468] sm:$0xf] %v1462
                  %v1464 = vld [vmem:[%s896 + $0x8d4] sm:$0xf]
                  %1465 = vst [vmem:[%s897 + $0x46c] sm:$0xf] %v1464
                  %v1466 = vld [vmem:[%s896 + $0x8e0] sm:$0xf]
                  %1467 = vst [vmem:[%s897 + $0x470] sm:$0xf] %v1466
                  %v1468 = vld [vmem:[%s896 + $0x8e4] sm:$0xf]
                  %1469 = vst [vmem:[%s897 + $0x474] sm:$0xf] %v1468
                  %v1470 = vld [vmem:[%s896 + $0x8f0] sm:$0xf]
                  %1471 = vst [vmem:[%s897 + $0x478] sm:$0xf] %v1470
                  %v1472 = vld [vmem:[%s896 + $0x8f4] sm:$0xf]
                  %1473 = vst [vmem:[%s897 + $0x47c] sm:$0xf] %v1472
                $region87: #{conv_body_forward.1} parent=74 // loop_footer
                  %s895 = sadd.s32 1, %s891
                $region88: #{conv_body_forward.1} parent=74 // loop_footer_branch
                  %890 = sbr.rel target = $region84
                $region89: #{conv_body_forward.1} parent=74 // loop_exit
                  _
              $region75: #{conv_body_forward.1} parent=59 // pred_fallthru
                _
            $region60: #{conv_body_forward.1} parent=55 // pred_fallthru
              _
            // Predicated region
            $region61: #{conv_body_forward.1} parent=55 // pred_check
              _
            $region62: #{conv_body_forward.1} parent=55 // pred_check_branch
              %293 = sbr.rel (0) target = $region64
            $region63: #{conv_body_forward.1} parent=55 // pred_region
              loop: start=0, step=1, limit=1
              $region65: #{conv_body_forward.1} parent=63 // loop_pre_header
                _
              $region66: #{conv_body_forward.1} parent=63 // loop_header
                %s296 = sphi 0, %s300
                %p297 = scmp.ge.s32.totalorder %s296, 1
                %s301 = sphi %s287, %s287
                %s302 = sphi %s284, %s284
              $region67: #{conv_body_forward.1} parent=63 // loop_header_branch
                %299 = sbr.rel (%p297) target = $region71
              $region68: #{conv_body_forward.1} parent=63 // loop_body
                %v303 = vld [vmem:[%s301] sm:$0xf]
                %304 = vst [vmem:[%s302] sm:$0xf] %v303
                %v305 = vld [vmem:[%s301 + $0x4] sm:$0xf]
                %306 = vst [vmem:[%s302 + $0x4] sm:$0xf] %v305
                %v307 = vld [vmem:[%s301 + $0x10] sm:$0xf]
                %308 = vst [vmem:[%s302 + $0x8] sm:$0xf] %v307
                %v309 = vld [vmem:[%s301 + $0x14] sm:$0xf]
                %310 = vst [vmem:[%s302 + $0xc] sm:$0xf] %v309
                %v311 = vld [vmem:[%s301 + $0x20] sm:$0xf]
                %312 = vst [vmem:[%s302 + $0x10] sm:$0xf] %v311
                %v313 = vld [vmem:[%s301 + $0x24] sm:$0xf]
                %314 = vst [vmem:[%s302 + $0x14] sm:$0xf] %v313
                %v315 = vld [vmem:[%s301 + $0x30] sm:$0xf]
                %316 = vst [vmem:[%s302 + $0x18] sm:$0xf] %v315
                %v317 = vld [vmem:[%s301 + $0x34] sm:$0xf]
                %318 = vst [vmem:[%s302 + $0x1c] sm:$0xf] %v317
                %v319 = vld [vmem:[%s301 + $0x40] sm:$0xf]
                %320 = vst [vmem:[%s302 + $0x20] sm:$0xf] %v319
                %v321 = vld [vmem:[%s301 + $0x44] sm:$0xf]
                %322 = vst [vmem:[%s302 + $0x24] sm:$0xf] %v321
                %v323 = vld [vmem:[%s301 + $0x50] sm:$0xf]
                %324 = vst [vmem:[%s302 + $0x28] sm:$0xf] %v323
                %v325 = vld [vmem:[%s301 + $0x54] sm:$0xf]
                %326 = vst [vmem:[%s302 + $0x2c] sm:$0xf] %v325
                %v327 = vld [vmem:[%s301 + $0x60] sm:$0xf]
                %328 = vst [vmem:[%s302 + $0x30] sm:$0xf] %v327
                %v329 = vld [vmem:[%s301 + $0x64] sm:$0xf]
                %330 = vst [vmem:[%s302 + $0x34] sm:$0xf] %v329
                %v331 = vld [vmem:[%s301 + $0x70] sm:$0xf]
                %332 = vst [vmem:[%s302 + $0x38] sm:$0xf] %v331
                %v333 = vld [vmem:[%s301 + $0x74] sm:$0xf]
                %334 = vst [vmem:[%s302 + $0x3c] sm:$0xf] %v333
                %v335 = vld [vmem:[%s301 + $0x80] sm:$0xf]
                %336 = vst [vmem:[%s302 + $0x40] sm:$0xf] %v335
                %v337 = vld [vmem:[%s301 + $0x84] sm:$0xf]
                %338 = vst [vmem:[%s302 + $0x44] sm:$0xf] %v337
                %v339 = vld [vmem:[%s301 + $0x90] sm:$0xf]
                %340 = vst [vmem:[%s302 + $0x48] sm:$0xf] %v339
                %v341 = vld [vmem:[%s301 + $0x94] sm:$0xf]
                %342 = vst [vmem:[%s302 + $0x4c] sm:$0xf] %v341
                %v343 = vld [vmem:[%s301 + $0xa0] sm:$0xf]
                %344 = vst [vmem:[%s302 + $0x50] sm:$0xf] %v343
                %v345 = vld [vmem:[%s301 + $0xa4] sm:$0xf]
                %346 = vst [vmem:[%s302 + $0x54] sm:$0xf] %v345
                %v347 = vld [vmem:[%s301 + $0xb0] sm:$0xf]
                %348 = vst [vmem:[%s302 + $0x58] sm:$0xf] %v347
                %v349 = vld [vmem:[%s301 + $0xb4] sm:$0xf]
                %350 = vst [vmem:[%s302 + $0x5c] sm:$0xf] %v349
                %v351 = vld [vmem:[%s301 + $0xc0] sm:$0xf]
                %352 = vst [vmem:[%s302 + $0x60] sm:$0xf] %v351
                %v353 = vld [vmem:[%s301 + $0xc4] sm:$0xf]
                %354 = vst [vmem:[%s302 + $0x64] sm:$0xf] %v353
                %v355 = vld [vmem:[%s301 + $0xd0] sm:$0xf]
                %356 = vst [vmem:[%s302 + $0x68] sm:$0xf] %v355
                %v357 = vld [vmem:[%s301 + $0xd4] sm:$0xf]
                %358 = vst [vmem:[%s302 + $0x6c] sm:$0xf] %v357
                %v359 = vld [vmem:[%s301 + $0xe0] sm:$0xf]
                %360 = vst [vmem:[%s302 + $0x70] sm:$0xf] %v359
                %v361 = vld [vmem:[%s301 + $0xe4] sm:$0xf]
                %362 = vst [vmem:[%s302 + $0x74] sm:$0xf] %v361
                %v363 = vld [vmem:[%s301 + $0xf0] sm:$0xf]
                %364 = vst [vmem:[%s302 + $0x78] sm:$0xf] %v363
                %v365 = vld [vmem:[%s301 + $0xf4] sm:$0xf]
                %366 = vst [vmem:[%s302 + $0x7c] sm:$0xf] %v365
                %v367 = vld [vmem:[%s301 + $0x100] sm:$0xf]
                %368 = vst [vmem:[%s302 + $0x80] sm:$0xf] %v367
                %v369 = vld [vmem:[%s301 + $0x104] sm:$0xf]
                %370 = vst [vmem:[%s302 + $0x84] sm:$0xf] %v369
                %v371 = vld [vmem:[%s301 + $0x110] sm:$0xf]
                %372 = vst [vmem:[%s302 + $0x88] sm:$0xf] %v371
                %v373 = vld [vmem:[%s301 + $0x114] sm:$0xf]
                %374 = vst [vmem:[%s302 + $0x8c] sm:$0xf] %v373
                %v375 = vld [vmem:[%s301 + $0x120] sm:$0xf]
                %376 = vst [vmem:[%s302 + $0x90] sm:$0xf] %v375
                %v377 = vld [vmem:[%s301 + $0x124] sm:$0xf]
                %378 = vst [vmem:[%s302 + $0x94] sm:$0xf] %v377
                %v379 = vld [vmem:[%s301 + $0x130] sm:$0xf]
                %380 = vst [vmem:[%s302 + $0x98] sm:$0xf] %v379
                %v381 = vld [vmem:[%s301 + $0x134] sm:$0xf]
                %382 = vst [vmem:[%s302 + $0x9c] sm:$0xf] %v381
                %v383 = vld [vmem:[%s301 + $0x140] sm:$0xf]
                %384 = vst [vmem:[%s302 + $0xa0] sm:$0xf] %v383
                %v385 = vld [vmem:[%s301 + $0x144] sm:$0xf]
                %386 = vst [vmem:[%s302 + $0xa4] sm:$0xf] %v385
                %v387 = vld [vmem:[%s301 + $0x150] sm:$0xf]
                %388 = vst [vmem:[%s302 + $0xa8] sm:$0xf] %v387
                %v389 = vld [vmem:[%s301 + $0x154] sm:$0xf]
                %390 = vst [vmem:[%s302 + $0xac] sm:$0xf] %v389
                %v391 = vld [vmem:[%s301 + $0x160] sm:$0xf]
                %392 = vst [vmem:[%s302 + $0xb0] sm:$0xf] %v391
                %v393 = vld [vmem:[%s301 + $0x164] sm:$0xf]
                %394 = vst [vmem:[%s302 + $0xb4] sm:$0xf] %v393
                %v395 = vld [vmem:[%s301 + $0x170] sm:$0xf]
                %396 = vst [vmem:[%s302 + $0xb8] sm:$0xf] %v395
                %v397 = vld [vmem:[%s301 + $0x174] sm:$0xf]
                %398 = vst [vmem:[%s302 + $0xbc] sm:$0xf] %v397
                %v399 = vld [vmem:[%s301 + $0x180] sm:$0xf]
                %400 = vst [vmem:[%s302 + $0xc0] sm:$0xf] %v399
                %v401 = vld [vmem:[%s301 + $0x184] sm:$0xf]
                %402 = vst [vmem:[%s302 + $0xc4] sm:$0xf] %v401
                %v403 = vld [vmem:[%s301 + $0x190] sm:$0xf]
                %404 = vst [vmem:[%s302 + $0xc8] sm:$0xf] %v403
                %v405 = vld [vmem:[%s301 + $0x194] sm:$0xf]
                %406 = vst [vmem:[%s302 + $0xcc] sm:$0xf] %v405
                %v407 = vld [vmem:[%s301 + $0x1a0] sm:$0xf]
                %408 = vst [vmem:[%s302 + $0xd0] sm:$0xf] %v407
                %v409 = vld [vmem:[%s301 + $0x1a4] sm:$0xf]
                %410 = vst [vmem:[%s302 + $0xd4] sm:$0xf] %v409
                %v411 = vld [vmem:[%s301 + $0x1b0] sm:$0xf]
                %412 = vst [vmem:[%s302 + $0xd8] sm:$0xf] %v411
                %v413 = vld [vmem:[%s301 + $0x1b4] sm:$0xf]
                %414 = vst [vmem:[%s302 + $0xdc] sm:$0xf] %v413
                %v415 = vld [vmem:[%s301 + $0x1c0] sm:$0xf]
                %416 = vst [vmem:[%s302 + $0xe0] sm:$0xf] %v415
                %v417 = vld [vmem:[%s301 + $0x1c4] sm:$0xf]
                %418 = vst [vmem:[%s302 + $0xe4] sm:$0xf] %v417
                %v419 = vld [vmem:[%s301 + $0x1d0] sm:$0xf]
                %420 = vst [vmem:[%s302 + $0xe8] sm:$0xf] %v419
                %v421 = vld [vmem:[%s301 + $0x1d4] sm:$0xf]
                %422 = vst [vmem:[%s302 + $0xec] sm:$0xf] %v421
                %v423 = vld [vmem:[%s301 + $0x1e0] sm:$0xf]
                %424 = vst [vmem:[%s302 + $0xf0] sm:$0xf] %v423
                %v425 = vld [vmem:[%s301 + $0x1e4] sm:$0xf]
                %426 = vst [vmem:[%s302 + $0xf4] sm:$0xf] %v425
                %v427 = vld [vmem:[%s301 + $0x1f0] sm:$0xf]
                %428 = vst [vmem:[%s302 + $0xf8] sm:$0xf] %v427
                %v429 = vld [vmem:[%s301 + $0x1f4] sm:$0xf]
                %430 = vst [vmem:[%s302 + $0xfc] sm:$0xf] %v429
                %v431 = vld [vmem:[%s301 + $0x200] sm:$0xf]
                %432 = vst [vmem:[%s302 + $0x100] sm:$0xf] %v431
                %v433 = vld [vmem:[%s301 + $0x204] sm:$0xf]
                %434 = vst [vmem:[%s302 + $0x104] sm:$0xf] %v433
                %v435 = vld [vmem:[%s301 + $0x210] sm:$0xf]
                %436 = vst [vmem:[%s302 + $0x108] sm:$0xf] %v435
                %v437 = vld [vmem:[%s301 + $0x214] sm:$0xf]
                %438 = vst [vmem:[%s302 + $0x10c] sm:$0xf] %v437
                %v439 = vld [vmem:[%s301 + $0x220] sm:$0xf]
                %440 = vst [vmem:[%s302 + $0x110] sm:$0xf] %v439
                %v441 = vld [vmem:[%s301 + $0x224] sm:$0xf]
                %442 = vst [vmem:[%s302 + $0x114] sm:$0xf] %v441
                %v443 = vld [vmem:[%s301 + $0x230] sm:$0xf]
                %444 = vst [vmem:[%s302 + $0x118] sm:$0xf] %v443
                %v445 = vld [vmem:[%s301 + $0x234] sm:$0xf]
                %446 = vst [vmem:[%s302 + $0x11c] sm:$0xf] %v445
                %v447 = vld [vmem:[%s301 + $0x240] sm:$0xf]
                %448 = vst [vmem:[%s302 + $0x120] sm:$0xf] %v447
                %v449 = vld [vmem:[%s301 + $0x244] sm:$0xf]
                %450 = vst [vmem:[%s302 + $0x124] sm:$0xf] %v449
                %v451 = vld [vmem:[%s301 + $0x250] sm:$0xf]
                %452 = vst [vmem:[%s302 + $0x128] sm:$0xf] %v451
                %v453 = vld [vmem:[%s301 + $0x254] sm:$0xf]
                %454 = vst [vmem:[%s302 + $0x12c] sm:$0xf] %v453
                %v455 = vld [vmem:[%s301 + $0x260] sm:$0xf]
                %456 = vst [vmem:[%s302 + $0x130] sm:$0xf] %v455
                %v457 = vld [vmem:[%s301 + $0x264] sm:$0xf]
                %458 = vst [vmem:[%s302 + $0x134] sm:$0xf] %v457
                %v459 = vld [vmem:[%s301 + $0x270] sm:$0xf]
                %460 = vst [vmem:[%s302 + $0x138] sm:$0xf] %v459
                %v461 = vld [vmem:[%s301 + $0x274] sm:$0xf]
                %462 = vst [vmem:[%s302 + $0x13c] sm:$0xf] %v461
                %v463 = vld [vmem:[%s301 + $0x280] sm:$0xf]
                %464 = vst [vmem:[%s302 + $0x140] sm:$0xf] %v463
                %v465 = vld [vmem:[%s301 + $0x284] sm:$0xf]
                %466 = vst [vmem:[%s302 + $0x144] sm:$0xf] %v465
                %v467 = vld [vmem:[%s301 + $0x290] sm:$0xf]
                %468 = vst [vmem:[%s302 + $0x148] sm:$0xf] %v467
                %v469 = vld [vmem:[%s301 + $0x294] sm:$0xf]
                %470 = vst [vmem:[%s302 + $0x14c] sm:$0xf] %v469
                %v471 = vld [vmem:[%s301 + $0x2a0] sm:$0xf]
                %472 = vst [vmem:[%s302 + $0x150] sm:$0xf] %v471
                %v473 = vld [vmem:[%s301 + $0x2a4] sm:$0xf]
                %474 = vst [vmem:[%s302 + $0x154] sm:$0xf] %v473
                %v475 = vld [vmem:[%s301 + $0x2b0] sm:$0xf]
                %476 = vst [vmem:[%s302 + $0x158] sm:$0xf] %v475
                %v477 = vld [vmem:[%s301 + $0x2b4] sm:$0xf]
                %478 = vst [vmem:[%s302 + $0x15c] sm:$0xf] %v477
                %v479 = vld [vmem:[%s301 + $0x2c0] sm:$0xf]
                %480 = vst [vmem:[%s302 + $0x160] sm:$0xf] %v479
                %v481 = vld [vmem:[%s301 + $0x2c4] sm:$0xf]
                %482 = vst [vmem:[%s302 + $0x164] sm:$0xf] %v481
                %v483 = vld [vmem:[%s301 + $0x2d0] sm:$0xf]
                %484 = vst [vmem:[%s302 + $0x168] sm:$0xf] %v483
                %v485 = vld [vmem:[%s301 + $0x2d4] sm:$0xf]
                %486 = vst [vmem:[%s302 + $0x16c] sm:$0xf] %v485
                %v487 = vld [vmem:[%s301 + $0x2e0] sm:$0xf]
                %488 = vst [vmem:[%s302 + $0x170] sm:$0xf] %v487
                %v489 = vld [vmem:[%s301 + $0x2e4] sm:$0xf]
                %490 = vst [vmem:[%s302 + $0x174] sm:$0xf] %v489
                %v491 = vld [vmem:[%s301 + $0x2f0] sm:$0xf]
                %492 = vst [vmem:[%s302 + $0x178] sm:$0xf] %v491
                %v493 = vld [vmem:[%s301 + $0x2f4] sm:$0xf]
                %494 = vst [vmem:[%s302 + $0x17c] sm:$0xf] %v493
                %v495 = vld [vmem:[%s301 + $0x300] sm:$0xf]
                %496 = vst [vmem:[%s302 + $0x180] sm:$0xf] %v495
                %v497 = vld [vmem:[%s301 + $0x304] sm:$0xf]
                %498 = vst [vmem:[%s302 + $0x184] sm:$0xf] %v497
                %v499 = vld [vmem:[%s301 + $0x310] sm:$0xf]
                %500 = vst [vmem:[%s302 + $0x188] sm:$0xf] %v499
                %v501 = vld [vmem:[%s301 + $0x314] sm:$0xf]
                %502 = vst [vmem:[%s302 + $0x18c] sm:$0xf] %v501
                %v503 = vld [vmem:[%s301 + $0x320] sm:$0xf]
                %504 = vst [vmem:[%s302 + $0x190] sm:$0xf] %v503
                %v505 = vld [vmem:[%s301 + $0x324] sm:$0xf]
                %506 = vst [vmem:[%s302 + $0x194] sm:$0xf] %v505
                %v507 = vld [vmem:[%s301 + $0x330] sm:$0xf]
                %508 = vst [vmem:[%s302 + $0x198] sm:$0xf] %v507
                %v509 = vld [vmem:[%s301 + $0x334] sm:$0xf]
                %510 = vst [vmem:[%s302 + $0x19c] sm:$0xf] %v509
                %v511 = vld [vmem:[%s301 + $0x340] sm:$0xf]
                %512 = vst [vmem:[%s302 + $0x1a0] sm:$0xf] %v511
                %v513 = vld [vmem:[%s301 + $0x344] sm:$0xf]
                %514 = vst [vmem:[%s302 + $0x1a4] sm:$0xf] %v513
                %v515 = vld [vmem:[%s301 + $0x350] sm:$0xf]
                %516 = vst [vmem:[%s302 + $0x1a8] sm:$0xf] %v515
                %v517 = vld [vmem:[%s301 + $0x354] sm:$0xf]
                %518 = vst [vmem:[%s302 + $0x1ac] sm:$0xf] %v517
                %v519 = vld [vmem:[%s301 + $0x360] sm:$0xf]
                %520 = vst [vmem:[%s302 + $0x1b0] sm:$0xf] %v519
                %v521 = vld [vmem:[%s301 + $0x364] sm:$0xf]
                %522 = vst [vmem:[%s302 + $0x1b4] sm:$0xf] %v521
                %v523 = vld [vmem:[%s301 + $0x370] sm:$0xf]
                %524 = vst [vmem:[%s302 + $0x1b8] sm:$0xf] %v523
                %v525 = vld [vmem:[%s301 + $0x374] sm:$0xf]
                %526 = vst [vmem:[%s302 + $0x1bc] sm:$0xf] %v525
                %v527 = vld [vmem:[%s301 + $0x380] sm:$0xf]
                %528 = vst [vmem:[%s302 + $0x1c0] sm:$0xf] %v527
                %v529 = vld [vmem:[%s301 + $0x384] sm:$0xf]
                %530 = vst [vmem:[%s302 + $0x1c4] sm:$0xf] %v529
                %v531 = vld [vmem:[%s301 + $0x390] sm:$0xf]
                %532 = vst [vmem:[%s302 + $0x1c8] sm:$0xf] %v531
                %v533 = vld [vmem:[%s301 + $0x394] sm:$0xf]
                %534 = vst [vmem:[%s302 + $0x1cc] sm:$0xf] %v533
                %v535 = vld [vmem:[%s301 + $0x3a0] sm:$0xf]
                %536 = vst [vmem:[%s302 + $0x1d0] sm:$0xf] %v535
                %v537 = vld [vmem:[%s301 + $0x3a4] sm:$0xf]
                %538 = vst [vmem:[%s302 + $0x1d4] sm:$0xf] %v537
                %v539 = vld [vmem:[%s301 + $0x3b0] sm:$0xf]
                %540 = vst [vmem:[%s302 + $0x1d8] sm:$0xf] %v539
                %v541 = vld [vmem:[%s301 + $0x3b4] sm:$0xf]
                %542 = vst [vmem:[%s302 + $0x1dc] sm:$0xf] %v541
                %v543 = vld [vmem:[%s301 + $0x3c0] sm:$0xf]
                %544 = vst [vmem:[%s302 + $0x1e0] sm:$0xf] %v543
                %v545 = vld [vmem:[%s301 + $0x3c4] sm:$0xf]
                %546 = vst [vmem:[%s302 + $0x1e4] sm:$0xf] %v545
                %v547 = vld [vmem:[%s301 + $0x3d0] sm:$0xf]
                %548 = vst [vmem:[%s302 + $0x1e8] sm:$0xf] %v547
                %v549 = vld [vmem:[%s301 + $0x3d4] sm:$0xf]
                %550 = vst [vmem:[%s302 + $0x1ec] sm:$0xf] %v549
                %v551 = vld [vmem:[%s301 + $0x3e0] sm:$0xf]
                %552 = vst [vmem:[%s302 + $0x1f0] sm:$0xf] %v551
                %v553 = vld [vmem:[%s301 + $0x3e4] sm:$0xf]
                %554 = vst [vmem:[%s302 + $0x1f4] sm:$0xf] %v553
                %v555 = vld [vmem:[%s301 + $0x3f0] sm:$0xf]
                %556 = vst [vmem:[%s302 + $0x1f8] sm:$0xf] %v555
                %v557 = vld [vmem:[%s301 + $0x3f4] sm:$0xf]
                %558 = vst [vmem:[%s302 + $0x1fc] sm:$0xf] %v557
                %v559 = vld [vmem:[%s301 + $0x400] sm:$0xf]
                %560 = vst [vmem:[%s302 + $0x200] sm:$0xf] %v559
                %v561 = vld [vmem:[%s301 + $0x404] sm:$0xf]
                %562 = vst [vmem:[%s302 + $0x204] sm:$0xf] %v561
                %v563 = vld [vmem:[%s301 + $0x410] sm:$0xf]
                %564 = vst [vmem:[%s302 + $0x208] sm:$0xf] %v563
                %v565 = vld [vmem:[%s301 + $0x414] sm:$0xf]
                %566 = vst [vmem:[%s302 + $0x20c] sm:$0xf] %v565
                %v567 = vld [vmem:[%s301 + $0x420] sm:$0xf]
                %568 = vst [vmem:[%s302 + $0x210] sm:$0xf] %v567
                %v569 = vld [vmem:[%s301 + $0x424] sm:$0xf]
                %570 = vst [vmem:[%s302 + $0x214] sm:$0xf] %v569
                %v571 = vld [vmem:[%s301 + $0x430] sm:$0xf]
                %572 = vst [vmem:[%s302 + $0x218] sm:$0xf] %v571
                %v573 = vld [vmem:[%s301 + $0x434] sm:$0xf]
                %574 = vst [vmem:[%s302 + $0x21c] sm:$0xf] %v573
                %v575 = vld [vmem:[%s301 + $0x440] sm:$0xf]
                %576 = vst [vmem:[%s302 + $0x220] sm:$0xf] %v575
                %v577 = vld [vmem:[%s301 + $0x444] sm:$0xf]
                %578 = vst [vmem:[%s302 + $0x224] sm:$0xf] %v577
                %v579 = vld [vmem:[%s301 + $0x450] sm:$0xf]
                %580 = vst [vmem:[%s302 + $0x228] sm:$0xf] %v579
                %v581 = vld [vmem:[%s301 + $0x454] sm:$0xf]
                %582 = vst [vmem:[%s302 + $0x22c] sm:$0xf] %v581
                %v583 = vld [vmem:[%s301 + $0x460] sm:$0xf]
                %584 = vst [vmem:[%s302 + $0x230] sm:$0xf] %v583
                %v585 = vld [vmem:[%s301 + $0x464] sm:$0xf]
                %586 = vst [vmem:[%s302 + $0x234] sm:$0xf] %v585
                %v587 = vld [vmem:[%s301 + $0x470] sm:$0xf]
                %588 = vst [vmem:[%s302 + $0x238] sm:$0xf] %v587
                %v589 = vld [vmem:[%s301 + $0x474] sm:$0xf]
                %590 = vst [vmem:[%s302 + $0x23c] sm:$0xf] %v589
                %v591 = vld [vmem:[%s301 + $0x480] sm:$0xf]
                %592 = vst [vmem:[%s302 + $0x240] sm:$0xf] %v591
                %v593 = vld [vmem:[%s301 + $0x484] sm:$0xf]
                %594 = vst [vmem:[%s302 + $0x244] sm:$0xf] %v593
                %v595 = vld [vmem:[%s301 + $0x490] sm:$0xf]
                %596 = vst [vmem:[%s302 + $0x248] sm:$0xf] %v595
                %v597 = vld [vmem:[%s301 + $0x494] sm:$0xf]
                %598 = vst [vmem:[%s302 + $0x24c] sm:$0xf] %v597
                %v599 = vld [vmem:[%s301 + $0x4a0] sm:$0xf]
                %600 = vst [vmem:[%s302 + $0x250] sm:$0xf] %v599
                %v601 = vld [vmem:[%s301 + $0x4a4] sm:$0xf]
                %602 = vst [vmem:[%s302 + $0x254] sm:$0xf] %v601
                %v603 = vld [vmem:[%s301 + $0x4b0] sm:$0xf]
                %604 = vst [vmem:[%s302 + $0x258] sm:$0xf] %v603
                %v605 = vld [vmem:[%s301 + $0x4b4] sm:$0xf]
                %606 = vst [vmem:[%s302 + $0x25c] sm:$0xf] %v605
                %v607 = vld [vmem:[%s301 + $0x4c0] sm:$0xf]
                %608 = vst [vmem:[%s302 + $0x260] sm:$0xf] %v607
                %v609 = vld [vmem:[%s301 + $0x4c4] sm:$0xf]
                %610 = vst [vmem:[%s302 + $0x264] sm:$0xf] %v609
                %v611 = vld [vmem:[%s301 + $0x4d0] sm:$0xf]
                %612 = vst [vmem:[%s302 + $0x268] sm:$0xf] %v611
                %v613 = vld [vmem:[%s301 + $0x4d4] sm:$0xf]
                %614 = vst [vmem:[%s302 + $0x26c] sm:$0xf] %v613
                %v615 = vld [vmem:[%s301 + $0x4e0] sm:$0xf]
                %616 = vst [vmem:[%s302 + $0x270] sm:$0xf] %v615
                %v617 = vld [vmem:[%s301 + $0x4e4] sm:$0xf]
                %618 = vst [vmem:[%s302 + $0x274] sm:$0xf] %v617
                %v619 = vld [vmem:[%s301 + $0x4f0] sm:$0xf]
                %620 = vst [vmem:[%s302 + $0x278] sm:$0xf] %v619
                %v621 = vld [vmem:[%s301 + $0x4f4] sm:$0xf]
                %622 = vst [vmem:[%s302 + $0x27c] sm:$0xf] %v621
                %v623 = vld [vmem:[%s301 + $0x500] sm:$0xf]
                %624 = vst [vmem:[%s302 + $0x280] sm:$0xf] %v623
                %v625 = vld [vmem:[%s301 + $0x504] sm:$0xf]
                %626 = vst [vmem:[%s302 + $0x284] sm:$0xf] %v625
                %v627 = vld [vmem:[%s301 + $0x510] sm:$0xf]
                %628 = vst [vmem:[%s302 + $0x288] sm:$0xf] %v627
                %v629 = vld [vmem:[%s301 + $0x514] sm:$0xf]
                %630 = vst [vmem:[%s302 + $0x28c] sm:$0xf] %v629
                %v631 = vld [vmem:[%s301 + $0x520] sm:$0xf]
                %632 = vst [vmem:[%s302 + $0x290] sm:$0xf] %v631
                %v633 = vld [vmem:[%s301 + $0x524] sm:$0xf]
                %634 = vst [vmem:[%s302 + $0x294] sm:$0xf] %v633
                %v635 = vld [vmem:[%s301 + $0x530] sm:$0xf]
                %636 = vst [vmem:[%s302 + $0x298] sm:$0xf] %v635
                %v637 = vld [vmem:[%s301 + $0x534] sm:$0xf]
                %638 = vst [vmem:[%s302 + $0x29c] sm:$0xf] %v637
                %v639 = vld [vmem:[%s301 + $0x540] sm:$0xf]
                %640 = vst [vmem:[%s302 + $0x2a0] sm:$0xf] %v639
                %v641 = vld [vmem:[%s301 + $0x544] sm:$0xf]
                %642 = vst [vmem:[%s302 + $0x2a4] sm:$0xf] %v641
                %v643 = vld [vmem:[%s301 + $0x550] sm:$0xf]
                %644 = vst [vmem:[%s302 + $0x2a8] sm:$0xf] %v643
                %v645 = vld [vmem:[%s301 + $0x554] sm:$0xf]
                %646 = vst [vmem:[%s302 + $0x2ac] sm:$0xf] %v645
                %v647 = vld [vmem:[%s301 + $0x560] sm:$0xf]
                %648 = vst [vmem:[%s302 + $0x2b0] sm:$0xf] %v647
                %v649 = vld [vmem:[%s301 + $0x564] sm:$0xf]
                %650 = vst [vmem:[%s302 + $0x2b4] sm:$0xf] %v649
                %v651 = vld [vmem:[%s301 + $0x570] sm:$0xf]
                %652 = vst [vmem:[%s302 + $0x2b8] sm:$0xf] %v651
                %v653 = vld [vmem:[%s301 + $0x574] sm:$0xf]
                %654 = vst [vmem:[%s302 + $0x2bc] sm:$0xf] %v653
                %v655 = vld [vmem:[%s301 + $0x580] sm:$0xf]
                %656 = vst [vmem:[%s302 + $0x2c0] sm:$0xf] %v655
                %v657 = vld [vmem:[%s301 + $0x584] sm:$0xf]
                %658 = vst [vmem:[%s302 + $0x2c4] sm:$0xf] %v657
                %v659 = vld [vmem:[%s301 + $0x590] sm:$0xf]
                %660 = vst [vmem:[%s302 + $0x2c8] sm:$0xf] %v659
                %v661 = vld [vmem:[%s301 + $0x594] sm:$0xf]
                %662 = vst [vmem:[%s302 + $0x2cc] sm:$0xf] %v661
                %v663 = vld [vmem:[%s301 + $0x5a0] sm:$0xf]
                %664 = vst [vmem:[%s302 + $0x2d0] sm:$0xf] %v663
                %v665 = vld [vmem:[%s301 + $0x5a4] sm:$0xf]
                %666 = vst [vmem:[%s302 + $0x2d4] sm:$0xf] %v665
                %v667 = vld [vmem:[%s301 + $0x5b0] sm:$0xf]
                %668 = vst [vmem:[%s302 + $0x2d8] sm:$0xf] %v667
                %v669 = vld [vmem:[%s301 + $0x5b4] sm:$0xf]
                %670 = vst [vmem:[%s302 + $0x2dc] sm:$0xf] %v669
                %v671 = vld [vmem:[%s301 + $0x5c0] sm:$0xf]
                %672 = vst [vmem:[%s302 + $0x2e0] sm:$0xf] %v671
                %v673 = vld [vmem:[%s301 + $0x5c4] sm:$0xf]
                %674 = vst [vmem:[%s302 + $0x2e4] sm:$0xf] %v673
                %v675 = vld [vmem:[%s301 + $0x5d0] sm:$0xf]
                %676 = vst [vmem:[%s302 + $0x2e8] sm:$0xf] %v675
                %v677 = vld [vmem:[%s301 + $0x5d4] sm:$0xf]
                %678 = vst [vmem:[%s302 + $0x2ec] sm:$0xf] %v677
                %v679 = vld [vmem:[%s301 + $0x5e0] sm:$0xf]
                %680 = vst [vmem:[%s302 + $0x2f0] sm:$0xf] %v679
                %v681 = vld [vmem:[%s301 + $0x5e4] sm:$0xf]
                %682 = vst [vmem:[%s302 + $0x2f4] sm:$0xf] %v681
                %v683 = vld [vmem:[%s301 + $0x5f0] sm:$0xf]
                %684 = vst [vmem:[%s302 + $0x2f8] sm:$0xf] %v683
                %v685 = vld [vmem:[%s301 + $0x5f4] sm:$0xf]
                %686 = vst [vmem:[%s302 + $0x2fc] sm:$0xf] %v685
                %v687 = vld [vmem:[%s301 + $0x600] sm:$0xf]
                %688 = vst [vmem:[%s302 + $0x300] sm:$0xf] %v687
                %v689 = vld [vmem:[%s301 + $0x604] sm:$0xf]
                %690 = vst [vmem:[%s302 + $0x304] sm:$0xf] %v689
                %v691 = vld [vmem:[%s301 + $0x610] sm:$0xf]
                %692 = vst [vmem:[%s302 + $0x308] sm:$0xf] %v691
                %v693 = vld [vmem:[%s301 + $0x614] sm:$0xf]
                %694 = vst [vmem:[%s302 + $0x30c] sm:$0xf] %v693
                %v695 = vld [vmem:[%s301 + $0x620] sm:$0xf]
                %696 = vst [vmem:[%s302 + $0x310] sm:$0xf] %v695
                %v697 = vld [vmem:[%s301 + $0x624] sm:$0xf]
                %698 = vst [vmem:[%s302 + $0x314] sm:$0xf] %v697
                %v699 = vld [vmem:[%s301 + $0x630] sm:$0xf]
                %700 = vst [vmem:[%s302 + $0x318] sm:$0xf] %v699
                %v701 = vld [vmem:[%s301 + $0x634] sm:$0xf]
                %702 = vst [vmem:[%s302 + $0x31c] sm:$0xf] %v701
                %v703 = vld [vmem:[%s301 + $0x640] sm:$0xf]
                %704 = vst [vmem:[%s302 + $0x320] sm:$0xf] %v703
                %v705 = vld [vmem:[%s301 + $0x644] sm:$0xf]
                %706 = vst [vmem:[%s302 + $0x324] sm:$0xf] %v705
                %v707 = vld [vmem:[%s301 + $0x650] sm:$0xf]
                %708 = vst [vmem:[%s302 + $0x328] sm:$0xf] %v707
                %v709 = vld [vmem:[%s301 + $0x654] sm:$0xf]
                %710 = vst [vmem:[%s302 + $0x32c] sm:$0xf] %v709
                %v711 = vld [vmem:[%s301 + $0x660] sm:$0xf]
                %712 = vst [vmem:[%s302 + $0x330] sm:$0xf] %v711
                %v713 = vld [vmem:[%s301 + $0x664] sm:$0xf]
                %714 = vst [vmem:[%s302 + $0x334] sm:$0xf] %v713
                %v715 = vld [vmem:[%s301 + $0x670] sm:$0xf]
                %716 = vst [vmem:[%s302 + $0x338] sm:$0xf] %v715
                %v717 = vld [vmem:[%s301 + $0x674] sm:$0xf]
                %718 = vst [vmem:[%s302 + $0x33c] sm:$0xf] %v717
                %v719 = vld [vmem:[%s301 + $0x680] sm:$0xf]
                %720 = vst [vmem:[%s302 + $0x340] sm:$0xf] %v719
                %v721 = vld [vmem:[%s301 + $0x684] sm:$0xf]
                %722 = vst [vmem:[%s302 + $0x344] sm:$0xf] %v721
                %v723 = vld [vmem:[%s301 + $0x690] sm:$0xf]
                %724 = vst [vmem:[%s302 + $0x348] sm:$0xf] %v723
                %v725 = vld [vmem:[%s301 + $0x694] sm:$0xf]
                %726 = vst [vmem:[%s302 + $0x34c] sm:$0xf] %v725
                %v727 = vld [vmem:[%s301 + $0x6a0] sm:$0xf]
                %728 = vst [vmem:[%s302 + $0x350] sm:$0xf] %v727
                %v729 = vld [vmem:[%s301 + $0x6a4] sm:$0xf]
                %730 = vst [vmem:[%s302 + $0x354] sm:$0xf] %v729
                %v731 = vld [vmem:[%s301 + $0x6b0] sm:$0xf]
                %732 = vst [vmem:[%s302 + $0x358] sm:$0xf] %v731
                %v733 = vld [vmem:[%s301 + $0x6b4] sm:$0xf]
                %734 = vst [vmem:[%s302 + $0x35c] sm:$0xf] %v733
                %v735 = vld [vmem:[%s301 + $0x6c0] sm:$0xf]
                %736 = vst [vmem:[%s302 + $0x360] sm:$0xf] %v735
                %v737 = vld [vmem:[%s301 + $0x6c4] sm:$0xf]
                %738 = vst [vmem:[%s302 + $0x364] sm:$0xf] %v737
                %v739 = vld [vmem:[%s301 + $0x6d0] sm:$0xf]
                %740 = vst [vmem:[%s302 + $0x368] sm:$0xf] %v739
                %v741 = vld [vmem:[%s301 + $0x6d4] sm:$0xf]
                %742 = vst [vmem:[%s302 + $0x36c] sm:$0xf] %v741
                %v743 = vld [vmem:[%s301 + $0x6e0] sm:$0xf]
                %744 = vst [vmem:[%s302 + $0x370] sm:$0xf] %v743
                %v745 = vld [vmem:[%s301 + $0x6e4] sm:$0xf]
                %746 = vst [vmem:[%s302 + $0x374] sm:$0xf] %v745
                %v747 = vld [vmem:[%s301 + $0x6f0] sm:$0xf]
                %748 = vst [vmem:[%s302 + $0x378] sm:$0xf] %v747
                %v749 = vld [vmem:[%s301 + $0x6f4] sm:$0xf]
                %750 = vst [vmem:[%s302 + $0x37c] sm:$0xf] %v749
                %v751 = vld [vmem:[%s301 + $0x700] sm:$0xf]
                %752 = vst [vmem:[%s302 + $0x380] sm:$0xf] %v751
                %v753 = vld [vmem:[%s301 + $0x704] sm:$0xf]
                %754 = vst [vmem:[%s302 + $0x384] sm:$0xf] %v753
                %v755 = vld [vmem:[%s301 + $0x710] sm:$0xf]
                %756 = vst [vmem:[%s302 + $0x388] sm:$0xf] %v755
                %v757 = vld [vmem:[%s301 + $0x714] sm:$0xf]
                %758 = vst [vmem:[%s302 + $0x38c] sm:$0xf] %v757
                %v759 = vld [vmem:[%s301 + $0x720] sm:$0xf]
                %760 = vst [vmem:[%s302 + $0x390] sm:$0xf] %v759
                %v761 = vld [vmem:[%s301 + $0x724] sm:$0xf]
                %762 = vst [vmem:[%s302 + $0x394] sm:$0xf] %v761
                %v763 = vld [vmem:[%s301 + $0x730] sm:$0xf]
                %764 = vst [vmem:[%s302 + $0x398] sm:$0xf] %v763
                %v765 = vld [vmem:[%s301 + $0x734] sm:$0xf]
                %766 = vst [vmem:[%s302 + $0x39c] sm:$0xf] %v765
                %v767 = vld [vmem:[%s301 + $0x740] sm:$0xf]
                %768 = vst [vmem:[%s302 + $0x3a0] sm:$0xf] %v767
                %v769 = vld [vmem:[%s301 + $0x744] sm:$0xf]
                %770 = vst [vmem:[%s302 + $0x3a4] sm:$0xf] %v769
                %v771 = vld [vmem:[%s301 + $0x750] sm:$0xf]
                %772 = vst [vmem:[%s302 + $0x3a8] sm:$0xf] %v771
                %v773 = vld [vmem:[%s301 + $0x754] sm:$0xf]
                %774 = vst [vmem:[%s302 + $0x3ac] sm:$0xf] %v773
                %v775 = vld [vmem:[%s301 + $0x760] sm:$0xf]
                %776 = vst [vmem:[%s302 + $0x3b0] sm:$0xf] %v775
                %v777 = vld [vmem:[%s301 + $0x764] sm:$0xf]
                %778 = vst [vmem:[%s302 + $0x3b4] sm:$0xf] %v777
                %v779 = vld [vmem:[%s301 + $0x770] sm:$0xf]
                %780 = vst [vmem:[%s302 + $0x3b8] sm:$0xf] %v779
                %v781 = vld [vmem:[%s301 + $0x774] sm:$0xf]
                %782 = vst [vmem:[%s302 + $0x3bc] sm:$0xf] %v781
                %v783 = vld [vmem:[%s301 + $0x780] sm:$0xf]
                %784 = vst [vmem:[%s302 + $0x3c0] sm:$0xf] %v783
                %v785 = vld [vmem:[%s301 + $0x784] sm:$0xf]
                %786 = vst [vmem:[%s302 + $0x3c4] sm:$0xf] %v785
                %v787 = vld [vmem:[%s301 + $0x790] sm:$0xf]
                %788 = vst [vmem:[%s302 + $0x3c8] sm:$0xf] %v787
                %v789 = vld [vmem:[%s301 + $0x794] sm:$0xf]
                %790 = vst [vmem:[%s302 + $0x3cc] sm:$0xf] %v789
                %v791 = vld [vmem:[%s301 + $0x7a0] sm:$0xf]
                %792 = vst [vmem:[%s302 + $0x3d0] sm:$0xf] %v791
                %v793 = vld [vmem:[%s301 + $0x7a4] sm:$0xf]
                %794 = vst [vmem:[%s302 + $0x3d4] sm:$0xf] %v793
                %v795 = vld [vmem:[%s301 + $0x7b0] sm:$0xf]
                %796 = vst [vmem:[%s302 + $0x3d8] sm:$0xf] %v795
                %v797 = vld [vmem:[%s301 + $0x7b4] sm:$0xf]
                %798 = vst [vmem:[%s302 + $0x3dc] sm:$0xf] %v797
                %v799 = vld [vmem:[%s301 + $0x7c0] sm:$0xf]
                %800 = vst [vmem:[%s302 + $0x3e0] sm:$0xf] %v799
                %v801 = vld [vmem:[%s301 + $0x7c4] sm:$0xf]
                %802 = vst [vmem:[%s302 + $0x3e4] sm:$0xf] %v801
                %v803 = vld [vmem:[%s301 + $0x7d0] sm:$0xf]
                %804 = vst [vmem:[%s302 + $0x3e8] sm:$0xf] %v803
                %v805 = vld [vmem:[%s301 + $0x7d4] sm:$0xf]
                %806 = vst [vmem:[%s302 + $0x3ec] sm:$0xf] %v805
                %v807 = vld [vmem:[%s301 + $0x7e0] sm:$0xf]
                %808 = vst [vmem:[%s302 + $0x3f0] sm:$0xf] %v807
                %v809 = vld [vmem:[%s301 + $0x7e4] sm:$0xf]
                %810 = vst [vmem:[%s302 + $0x3f4] sm:$0xf] %v809
                %v811 = vld [vmem:[%s301 + $0x7f0] sm:$0xf]
                %812 = vst [vmem:[%s302 + $0x3f8] sm:$0xf] %v811
                %v813 = vld [vmem:[%s301 + $0x7f4] sm:$0xf]
                %814 = vst [vmem:[%s302 + $0x3fc] sm:$0xf] %v813
                %v815 = vld [vmem:[%s301 + $0x800] sm:$0xf]
                %816 = vst [vmem:[%s302 + $0x400] sm:$0xf] %v815
                %v817 = vld [vmem:[%s301 + $0x804] sm:$0xf]
                %818 = vst [vmem:[%s302 + $0x404] sm:$0xf] %v817
                %v819 = vld [vmem:[%s301 + $0x810] sm:$0xf]
                %820 = vst [vmem:[%s302 + $0x408] sm:$0xf] %v819
                %v821 = vld [vmem:[%s301 + $0x814] sm:$0xf]
                %822 = vst [vmem:[%s302 + $0x40c] sm:$0xf] %v821
                %v823 = vld [vmem:[%s301 + $0x820] sm:$0xf]
                %824 = vst [vmem:[%s302 + $0x410] sm:$0xf] %v823
                %v825 = vld [vmem:[%s301 + $0x824] sm:$0xf]
                %826 = vst [vmem:[%s302 + $0x414] sm:$0xf] %v825
                %v827 = vld [vmem:[%s301 + $0x830] sm:$0xf]
                %828 = vst [vmem:[%s302 + $0x418] sm:$0xf] %v827
                %v829 = vld [vmem:[%s301 + $0x834] sm:$0xf]
                %830 = vst [vmem:[%s302 + $0x41c] sm:$0xf] %v829
                %v831 = vld [vmem:[%s301 + $0x840] sm:$0xf]
                %832 = vst [vmem:[%s302 + $0x420] sm:$0xf] %v831
                %v833 = vld [vmem:[%s301 + $0x844] sm:$0xf]
                %834 = vst [vmem:[%s302 + $0x424] sm:$0xf] %v833
                %v835 = vld [vmem:[%s301 + $0x850] sm:$0xf]
                %836 = vst [vmem:[%s302 + $0x428] sm:$0xf] %v835
                %v837 = vld [vmem:[%s301 + $0x854] sm:$0xf]
                %838 = vst [vmem:[%s302 + $0x42c] sm:$0xf] %v837
                %v839 = vld [vmem:[%s301 + $0x860] sm:$0xf]
                %840 = vst [vmem:[%s302 + $0x430] sm:$0xf] %v839
                %v841 = vld [vmem:[%s301 + $0x864] sm:$0xf]
                %842 = vst [vmem:[%s302 + $0x434] sm:$0xf] %v841
                %v843 = vld [vmem:[%s301 + $0x870] sm:$0xf]
                %844 = vst [vmem:[%s302 + $0x438] sm:$0xf] %v843
                %v845 = vld [vmem:[%s301 + $0x874] sm:$0xf]
                %846 = vst [vmem:[%s302 + $0x43c] sm:$0xf] %v845
                %v847 = vld [vmem:[%s301 + $0x880] sm:$0xf]
                %848 = vst [vmem:[%s302 + $0x440] sm:$0xf] %v847
                %v849 = vld [vmem:[%s301 + $0x884] sm:$0xf]
                %850 = vst [vmem:[%s302 + $0x444] sm:$0xf] %v849
                %v851 = vld [vmem:[%s301 + $0x890] sm:$0xf]
                %852 = vst [vmem:[%s302 + $0x448] sm:$0xf] %v851
                %v853 = vld [vmem:[%s301 + $0x894] sm:$0xf]
                %854 = vst [vmem:[%s302 + $0x44c] sm:$0xf] %v853
                %v855 = vld [vmem:[%s301 + $0x8a0] sm:$0xf]
                %856 = vst [vmem:[%s302 + $0x450] sm:$0xf] %v855
                %v857 = vld [vmem:[%s301 + $0x8a4] sm:$0xf]
                %858 = vst [vmem:[%s302 + $0x454] sm:$0xf] %v857
                %v859 = vld [vmem:[%s301 + $0x8b0] sm:$0xf]
                %860 = vst [vmem:[%s302 + $0x458] sm:$0xf] %v859
                %v861 = vld [vmem:[%s301 + $0x8b4] sm:$0xf]
                %862 = vst [vmem:[%s302 + $0x45c] sm:$0xf] %v861
                %v863 = vld [vmem:[%s301 + $0x8c0] sm:$0xf]
                %864 = vst [vmem:[%s302 + $0x460] sm:$0xf] %v863
                %v865 = vld [vmem:[%s301 + $0x8c4] sm:$0xf]
                %866 = vst [vmem:[%s302 + $0x464] sm:$0xf] %v865
                %v867 = vld [vmem:[%s301 + $0x8d0] sm:$0xf]
                %868 = vst [vmem:[%s302 + $0x468] sm:$0xf] %v867
                %v869 = vld [vmem:[%s301 + $0x8d4] sm:$0xf]
                %870 = vst [vmem:[%s302 + $0x46c] sm:$0xf] %v869
                %v871 = vld [vmem:[%s301 + $0x8e0] sm:$0xf]
                %872 = vst [vmem:[%s302 + $0x470] sm:$0xf] %v871
                %v873 = vld [vmem:[%s301 + $0x8e4] sm:$0xf]
                %874 = vst [vmem:[%s302 + $0x474] sm:$0xf] %v873
                %v875 = vld [vmem:[%s301 + $0x8f0] sm:$0xf]
                %876 = vst [vmem:[%s302 + $0x478] sm:$0xf] %v875
                %v877 = vld [vmem:[%s301 + $0x8f4] sm:$0xf]
                %878 = vst [vmem:[%s302 + $0x47c] sm:$0xf] %v877
              $region69: #{conv_body_forward.1} parent=63 // loop_footer
                %s300 = sadd.s32 1, %s296
              $region70: #{conv_body_forward.1} parent=63 // loop_footer_branch
                %295 = sbr.rel target = $region66
              $region71: #{conv_body_forward.1} parent=63 // loop_exit
                _
            $region64: #{conv_body_forward.1} parent=55 // pred_fallthru
              _
          $region56: #{conv_body_forward.1} parent=51 // pred_fallthru
            _
          %1474 = vnop
        $region52: #{conv_body_forward.1} parent=47 // pred_fallthru
          _
      $region48: #{conv_body_forward.1} parent=5 // pred_fallthru
        _
      %p1475 = scmp.le.s32.totalorder 1, %s15
      %p1476 = scmp.lt.s32.totalorder %s15, 3
      %p1477 = pnand %p1475, %p1476
      %p1478 = pneg %p1477
      // Predicated region
      $region90: #{conv_body_forward.1} parent=5 // pred_check
        _
      $region91: #{conv_body_forward.1} parent=5 // pred_check_branch
        %1480 = sbr.rel (%p1477) target = $region93
      $region92: #{conv_body_forward.1} parent=5 // pred_region
        %s1481 = ssub.s32 %s15, 1
        %s1482 = sand.u32 %s28, 1
        %s1483 = sand.u32 %s28, 1
        %s1484 = smul.addr %s1483, 1152
        %s1485 = scalar_lea.vmem [#allocation5], %s1484
        // Predicated region
        $region94: #{conv_body_forward.1} parent=92 // pred_check
          %p1486 = pneg %p41
        $region95: #{conv_body_forward.1} parent=92 // pred_check_branch
          %1488 = sbr.rel (%p1486) target = $region97
        $region96: #{conv_body_forward.1} parent=92 // pred_region
          _
        $region97: #{conv_body_forward.1} parent=92 // pred_fallthru
          _
        %s1489 = sand.u32 %s28, 1
        %s1490 = sand.u32 %s28, 1
        %s1491 = smul.addr %s1490, 1152
        %s1492 = scalar_lea.vmem [#allocation5], %s1491
        %p1493 = pneg %p41
        %p1494 = pneg %p38
        %p1495 = pneg %p62
        %p1496 = pneg %p59
        %p1497 = pneg %p83
        %p1498 = pneg %p80
        %p1499 = pneg %p104
        %p1500 = pneg %p101
        %p1501 = pneg %p125
        %p1502 = pneg %p122
        %p1503 = pneg %p146
        %p1504 = pneg %p143
        %p1505 = pneg %p167
        %p1506 = pneg %p164
        %p1507 = pneg %p188
        %p1508 = pneg %p185
        %p1509 = pneg %p209
        %p1510 = pneg %p206
        %p1511 = pneg %p235
        %p1512 = pneg %p232
        %s1513 = smul.u32 2, %s20
        %p1514 = scmp.lt.s32.totalorder %s1513, 3
        %s1515 = scalar_select %p1514, %s1513, 3
        %s1516 = smul.addr %s1515, 8
        %s1517 = scalar_lea.vmem %s9, %s1516
        %s1518 = smul.u32 2, %s20
        %s1519 = smul.u32 2, %s20
        %p1520 = scmp.lt.s32.totalorder %s1519, 3
        %s1521 = scalar_select %p1520, %s1519, 3
        %s1522 = smul.addr %s1521, 8
        %s1523 = scalar_lea.vmem %s9, %s1522
        %s1524 = smul.u32 2, %s20
        %v1528 = vld [vmem:[%s1485] sm:$0xf]
        %v1529 = vld [vmem:[%s1485 + $0x4] sm:$0xf]
        %v1530 = vld [vmem:[%s1485 + $0x8] sm:$0xf]
        %v1531 = vld [vmem:[%s1485 + $0xc] sm:$0xf]
        %v1532 = vld [vmem:[%s1485 + $0x10] sm:$0xf]
        %v1533 = vld [vmem:[%s1485 + $0x14] sm:$0xf]
        %v1534 = vld [vmem:[%s1485 + $0x18] sm:$0xf]
        %v1535 = vld [vmem:[%s1485 + $0x1c] sm:$0xf]
        %v1536 = vld [vmem:[%s1485 + $0x20] sm:$0xf]
        %v1537 = vld [vmem:[%s1485 + $0x24] sm:$0xf]
        %v1538 = vld [vmem:[%s1485 + $0x28] sm:$0xf]
        %v1539 = vld [vmem:[%s1485 + $0x2c] sm:$0xf]
        %v1540 = vld [vmem:[%s1485 + $0x30] sm:$0xf]
        %v1541 = vld [vmem:[%s1485 + $0x34] sm:$0xf]
        %v1542 = vld [vmem:[%s1485 + $0x38] sm:$0xf]
        %v1543 = vld [vmem:[%s1485 + $0x3c] sm:$0xf]
        %v1544 = vld [vmem:[%s1485 + $0x40] sm:$0xf]
        %v1545 = vld [vmem:[%s1485 + $0x44] sm:$0xf]
        %v1546 = vld [vmem:[%s1485 + $0x48] sm:$0xf]
        %v1547 = vld [vmem:[%s1485 + $0x4c] sm:$0xf]
        %v1548 = vld [vmem:[%s1485 + $0x50] sm:$0xf]
        %v1549 = vld [vmem:[%s1485 + $0x54] sm:$0xf]
        %v1550 = vld [vmem:[%s1485 + $0x58] sm:$0xf]
        %v1551 = vld [vmem:[%s1485 + $0x5c] sm:$0xf]
        %v1552 = vld [vmem:[%s1485 + $0x60] sm:$0xf]
        %v1553 = vld [vmem:[%s1485 + $0x64] sm:$0xf]
        %v1554 = vld [vmem:[%s1485 + $0x68] sm:$0xf]
        %v1555 = vld [vmem:[%s1485 + $0x6c] sm:$0xf]
        %v1556 = vld [vmem:[%s1485 + $0x70] sm:$0xf]
        %v1557 = vld [vmem:[%s1485 + $0x74] sm:$0xf]
        %v1558 = vld [vmem:[%s1485 + $0x78] sm:$0xf]
        %v1559 = vld [vmem:[%s1485 + $0x7c] sm:$0xf]
        %v1560 = vld [vmem:[%s1485 + $0x80] sm:$0xf]
        %v1561 = vld [vmem:[%s1485 + $0x84] sm:$0xf]
        %v1562 = vld [vmem:[%s1485 + $0x88] sm:$0xf]
        %v1563 = vld [vmem:[%s1485 + $0x8c] sm:$0xf]
        %v1564 = vld [vmem:[%s1485 + $0x90] sm:$0xf]
        %v1565 = vld [vmem:[%s1485 + $0x94] sm:$0xf]
        %v1566 = vld [vmem:[%s1485 + $0x98] sm:$0xf]
        %v1567 = vld [vmem:[%s1485 + $0x9c] sm:$0xf]
        %v1568 = vld [vmem:[%s1485 + $0xa0] sm:$0xf]
        %v1569 = vld [vmem:[%s1485 + $0xa4] sm:$0xf]
        %v1570 = vld [vmem:[%s1485 + $0xa8] sm:$0xf]
        %v1571 = vld [vmem:[%s1485 + $0xac] sm:$0xf]
        %v1572 = vld [vmem:[%s1485 + $0xb0] sm:$0xf]
        %v1573 = vld [vmem:[%s1485 + $0xb4] sm:$0xf]
        %v1574 = vld [vmem:[%s1485 + $0xb8] sm:$0xf]
        %v1575 = vld [vmem:[%s1485 + $0xbc] sm:$0xf]
        %v1576 = vld [vmem:[%s1485 + $0xc0] sm:$0xf]
        %v1577 = vld [vmem:[%s1485 + $0xc4] sm:$0xf]
        %v1578 = vld [vmem:[%s1485 + $0xc8] sm:$0xf]
        %v1579 = vld [vmem:[%s1485 + $0xcc] sm:$0xf]
        %v1580 = vld [vmem:[%s1485 + $0xd0] sm:$0xf]
        %v1581 = vld [vmem:[%s1485 + $0xd4] sm:$0xf]
        %v1582 = vld [vmem:[%s1485 + $0xd8] sm:$0xf]
        %v1583 = vld [vmem:[%s1485 + $0xdc] sm:$0xf]
        %v1584 = vld [vmem:[%s1485 + $0xe0] sm:$0xf]
        %v1585 = vld [vmem:[%s1485 + $0xe4] sm:$0xf]
        %v1586 = vld [vmem:[%s1485 + $0xe8] sm:$0xf]
        %v1587 = vld [vmem:[%s1485 + $0xec] sm:$0xf]
        %v1588 = vld [vmem:[%s1485 + $0xf0] sm:$0xf]
        %v1589 = vld [vmem:[%s1485 + $0xf4] sm:$0xf]
        %v1590 = vld [vmem:[%s1485 + $0xf8] sm:$0xf]
        %v1591 = vld [vmem:[%s1485 + $0xfc] sm:$0xf]
        %v1592 = vld [vmem:[%s1485 + $0x100] sm:$0xf]
        %v1593 = vld [vmem:[%s1485 + $0x104] sm:$0xf]
        %v1594 = vld [vmem:[%s1485 + $0x108] sm:$0xf]
        %v1595 = vld [vmem:[%s1485 + $0x10c] sm:$0xf]
        %v1596 = vld [vmem:[%s1485 + $0x110] sm:$0xf]
        %v1597 = vld [vmem:[%s1485 + $0x114] sm:$0xf]
        %v1598 = vld [vmem:[%s1485 + $0x118] sm:$0xf]
        %v1599 = vld [vmem:[%s1485 + $0x11c] sm:$0xf]
        %v1600 = vld [vmem:[%s1485 + $0x120] sm:$0xf]
        %v1601 = vld [vmem:[%s1485 + $0x124] sm:$0xf]
        %v1602 = vld [vmem:[%s1485 + $0x128] sm:$0xf]
        %v1603 = vld [vmem:[%s1485 + $0x12c] sm:$0xf]
        %v1604 = vld [vmem:[%s1485 + $0x130] sm:$0xf]
        %v1605 = vld [vmem:[%s1485 + $0x134] sm:$0xf]
        %v1606 = vld [vmem:[%s1485 + $0x138] sm:$0xf]
        %v1607 = vld [vmem:[%s1485 + $0x13c] sm:$0xf]
        %v1608 = vld [vmem:[%s1485 + $0x140] sm:$0xf]
        %v1609 = vld [vmem:[%s1485 + $0x144] sm:$0xf]
        %v1610 = vld [vmem:[%s1485 + $0x148] sm:$0xf]
        %v1611 = vld [vmem:[%s1485 + $0x14c] sm:$0xf]
        %v1612 = vld [vmem:[%s1485 + $0x150] sm:$0xf]
        %v1613 = vld [vmem:[%s1485 + $0x154] sm:$0xf]
        %v1614 = vld [vmem:[%s1485 + $0x158] sm:$0xf]
        %v1615 = vld [vmem:[%s1485 + $0x15c] sm:$0xf]
        %v1616 = vld [vmem:[%s1485 + $0x160] sm:$0xf]
        %v1617 = vld [vmem:[%s1485 + $0x164] sm:$0xf]
        %v1618 = vld [vmem:[%s1485 + $0x168] sm:$0xf]
        %v1619 = vld [vmem:[%s1485 + $0x16c] sm:$0xf]
        %v1620 = vld [vmem:[%s1485 + $0x170] sm:$0xf]
        %v1621 = vld [vmem:[%s1485 + $0x174] sm:$0xf]
        %v1622 = vld [vmem:[%s1485 + $0x178] sm:$0xf]
        %v1623 = vld [vmem:[%s1485 + $0x17c] sm:$0xf]
        %v1624 = vld [vmem:[%s1485 + $0x180] sm:$0xf]
        %v1625 = vld [vmem:[%s1485 + $0x184] sm:$0xf]
        %v1626 = vld [vmem:[%s1485 + $0x188] sm:$0xf]
        %v1627 = vld [vmem:[%s1485 + $0x18c] sm:$0xf]
        %v1628 = vld [vmem:[%s1485 + $0x190] sm:$0xf]
        %v1629 = vld [vmem:[%s1485 + $0x194] sm:$0xf]
        %v1630 = vld [vmem:[%s1485 + $0x198] sm:$0xf]
        %v1631 = vld [vmem:[%s1485 + $0x19c] sm:$0xf]
        %v1632 = vld [vmem:[%s1485 + $0x1a0] sm:$0xf]
        %v1633 = vld [vmem:[%s1485 + $0x1a4] sm:$0xf]
        %v1634 = vld [vmem:[%s1485 + $0x1a8] sm:$0xf]
        %v1635 = vld [vmem:[%s1485 + $0x1ac] sm:$0xf]
        %v1636 = vld [vmem:[%s1485 + $0x1b0] sm:$0xf]
        %v1637 = vld [vmem:[%s1485 + $0x1b4] sm:$0xf]
        %v1638 = vld [vmem:[%s1485 + $0x1b8] sm:$0xf]
        %v1639 = vld [vmem:[%s1485 + $0x1bc] sm:$0xf]
        %v1640 = vld [vmem:[%s1485 + $0x1c0] sm:$0xf]
        %v1641 = vld [vmem:[%s1485 + $0x1c4] sm:$0xf]
        %v1642 = vld [vmem:[%s1485 + $0x1c8] sm:$0xf]
        %v1643 = vld [vmem:[%s1485 + $0x1cc] sm:$0xf]
        %v1644 = vld [vmem:[%s1485 + $0x1d0] sm:$0xf]
        %v1645 = vld [vmem:[%s1485 + $0x1d4] sm:$0xf]
        %v1646 = vld [vmem:[%s1485 + $0x1d8] sm:$0xf]
        %v1647 = vld [vmem:[%s1485 + $0x1dc] sm:$0xf]
        %v1648 = vld [vmem:[%s1485 + $0x1e0] sm:$0xf]
        %v1649 = vld [vmem:[%s1485 + $0x1e4] sm:$0xf]
        %v1650 = vld [vmem:[%s1485 + $0x1e8] sm:$0xf]
        %v1651 = vld [vmem:[%s1485 + $0x1ec] sm:$0xf]
        %v1652 = vld [vmem:[%s1485 + $0x1f0] sm:$0xf]
        %v1653 = vld [vmem:[%s1485 + $0x1f4] sm:$0xf]
        %v1654 = vld [vmem:[%s1485 + $0x1f8] sm:$0xf]
        %v1655 = vld [vmem:[%s1485 + $0x1fc] sm:$0xf]
        %v1656 = vld [vmem:[%s1485 + $0x200] sm:$0xf]
        %v1657 = vld [vmem:[%s1485 + $0x204] sm:$0xf]
        %v1658 = vld [vmem:[%s1485 + $0x208] sm:$0xf]
        %v1659 = vld [vmem:[%s1485 + $0x20c] sm:$0xf]
        %v1660 = vld [vmem:[%s1485 + $0x210] sm:$0xf]
        %v1661 = vld [vmem:[%s1485 + $0x214] sm:$0xf]
        %v1662 = vld [vmem:[%s1485 + $0x218] sm:$0xf]
        %v1663 = vld [vmem:[%s1485 + $0x21c] sm:$0xf]
        %v1664 = vld [vmem:[%s1485 + $0x220] sm:$0xf]
        %v1665 = vld [vmem:[%s1485 + $0x224] sm:$0xf]
        %v1666 = vld [vmem:[%s1485 + $0x228] sm:$0xf]
        %v1667 = vld [vmem:[%s1485 + $0x22c] sm:$0xf]
        %v1668 = vld [vmem:[%s1485 + $0x230] sm:$0xf]
        %v1669 = vld [vmem:[%s1485 + $0x234] sm:$0xf]
        %v1670 = vld [vmem:[%s1485 + $0x238] sm:$0xf]
        %v1671 = vld [vmem:[%s1485 + $0x23c] sm:$0xf]
        %v1672 = vld [vmem:[%s1485 + $0x240] sm:$0xf]
        %v1673 = vld [vmem:[%s1485 + $0x244] sm:$0xf]
        %v1674 = vld [vmem:[%s1485 + $0x248] sm:$0xf]
        %v1675 = vld [vmem:[%s1485 + $0x24c] sm:$0xf]
        %v1676 = vld [vmem:[%s1485 + $0x250] sm:$0xf]
        %v1677 = vld [vmem:[%s1485 + $0x254] sm:$0xf]
        %v1678 = vld [vmem:[%s1485 + $0x258] sm:$0xf]
        %v1679 = vld [vmem:[%s1485 + $0x25c] sm:$0xf]
        %v1680 = vld [vmem:[%s1485 + $0x260] sm:$0xf]
        %v1681 = vld [vmem:[%s1485 + $0x264] sm:$0xf]
        %v1682 = vld [vmem:[%s1485 + $0x268] sm:$0xf]
        %v1683 = vld [vmem:[%s1485 + $0x26c] sm:$0xf]
        %v1684 = vld [vmem:[%s1485 + $0x270] sm:$0xf]
        %v1685 = vld [vmem:[%s1485 + $0x274] sm:$0xf]
        %v1686 = vld [vmem:[%s1485 + $0x278] sm:$0xf]
        %v1687 = vld [vmem:[%s1485 + $0x27c] sm:$0xf]
        %v1688 = vld [vmem:[%s1485 + $0x280] sm:$0xf]
        %v1689 = vld [vmem:[%s1485 + $0x284] sm:$0xf]
        %v1690 = vld [vmem:[%s1485 + $0x288] sm:$0xf]
        %v1691 = vld [vmem:[%s1485 + $0x28c] sm:$0xf]
        %v1692 = vld [vmem:[%s1485 + $0x290] sm:$0xf]
        %v1693 = vld [vmem:[%s1485 + $0x294] sm:$0xf]
        %v1694 = vld [vmem:[%s1485 + $0x298] sm:$0xf]
        %v1695 = vld [vmem:[%s1485 + $0x29c] sm:$0xf]
        %v1696 = vld [vmem:[%s1485 + $0x2a0] sm:$0xf]
        %v1697 = vld [vmem:[%s1485 + $0x2a4] sm:$0xf]
        %v1698 = vld [vmem:[%s1485 + $0x2a8] sm:$0xf]
        %v1699 = vld [vmem:[%s1485 + $0x2ac] sm:$0xf]
        %v1700 = vld [vmem:[%s1485 + $0x2b0] sm:$0xf]
        %v1701 = vld [vmem:[%s1485 + $0x2b4] sm:$0xf]
        %v1702 = vld [vmem:[%s1485 + $0x2b8] sm:$0xf]
        %v1703 = vld [vmem:[%s1485 + $0x2bc] sm:$0xf]
        %v1704 = vld [vmem:[%s1485 + $0x2c0] sm:$0xf]
        %v1705 = vld [vmem:[%s1485 + $0x2c4] sm:$0xf]
        %v1706 = vld [vmem:[%s1485 + $0x2c8] sm:$0xf]
        %v1707 = vld [vmem:[%s1485 + $0x2cc] sm:$0xf]
        %v1708 = vld [vmem:[%s1485 + $0x2d0] sm:$0xf]
        %v1709 = vld [vmem:[%s1485 + $0x2d4] sm:$0xf]
        %v1710 = vld [vmem:[%s1485 + $0x2d8] sm:$0xf]
        %v1711 = vld [vmem:[%s1485 + $0x2dc] sm:$0xf]
        %v1712 = vld [vmem:[%s1485 + $0x2e0] sm:$0xf]
        %v1713 = vld [vmem:[%s1485 + $0x2e4] sm:$0xf]
        %v1714 = vld [vmem:[%s1485 + $0x2e8] sm:$0xf]
        %v1715 = vld [vmem:[%s1485 + $0x2ec] sm:$0xf]
        %v1716 = vld [vmem:[%s1485 + $0x2f0] sm:$0xf]
        %v1717 = vld [vmem:[%s1485 + $0x2f4] sm:$0xf]
        %v1718 = vld [vmem:[%s1485 + $0x2f8] sm:$0xf]
        %v1719 = vld [vmem:[%s1485 + $0x2fc] sm:$0xf]
        %v1720 = vld [vmem:[%s1485 + $0x300] sm:$0xf]
        %v1721 = vld [vmem:[%s1485 + $0x304] sm:$0xf]
        %v1722 = vld [vmem:[%s1485 + $0x308] sm:$0xf]
        %v1723 = vld [vmem:[%s1485 + $0x30c] sm:$0xf]
        %v1724 = vld [vmem:[%s1485 + $0x310] sm:$0xf]
        %v1725 = vld [vmem:[%s1485 + $0x314] sm:$0xf]
        %v1726 = vld [vmem:[%s1485 + $0x318] sm:$0xf]
        %v1727 = vld [vmem:[%s1485 + $0x31c] sm:$0xf]
        %v1728 = vld [vmem:[%s1485 + $0x320] sm:$0xf]
        %v1729 = vld [vmem:[%s1485 + $0x324] sm:$0xf]
        %v1730 = vld [vmem:[%s1485 + $0x328] sm:$0xf]
        %v1731 = vld [vmem:[%s1485 + $0x32c] sm:$0xf]
        %v1732 = vld [vmem:[%s1485 + $0x330] sm:$0xf]
        %v1733 = vld [vmem:[%s1485 + $0x334] sm:$0xf]
        %v1734 = vld [vmem:[%s1485 + $0x338] sm:$0xf]
        %v1735 = vld [vmem:[%s1485 + $0x33c] sm:$0xf]
        %v1736 = vld [vmem:[%s1485 + $0x340] sm:$0xf]
        %v1737 = vld [vmem:[%s1485 + $0x344] sm:$0xf]
        %v1738 = vld [vmem:[%s1485 + $0x348] sm:$0xf]
        %v1739 = vld [vmem:[%s1485 + $0x34c] sm:$0xf]
        %v1740 = vld [vmem:[%s1485 + $0x350] sm:$0xf]
        %v1741 = vld [vmem:[%s1485 + $0x354] sm:$0xf]
        %v1742 = vld [vmem:[%s1485 + $0x358] sm:$0xf]
        %v1743 = vld [vmem:[%s1485 + $0x35c] sm:$0xf]
        %v1744 = vld [vmem:[%s1485 + $0x360] sm:$0xf]
        %v1745 = vld [vmem:[%s1485 + $0x364] sm:$0xf]
        %v1746 = vld [vmem:[%s1485 + $0x368] sm:$0xf]
        %v1747 = vld [vmem:[%s1485 + $0x36c] sm:$0xf]
        %v1748 = vld [vmem:[%s1485 + $0x370] sm:$0xf]
        %v1749 = vld [vmem:[%s1485 + $0x374] sm:$0xf]
        %v1750 = vld [vmem:[%s1485 + $0x378] sm:$0xf]
        %v1751 = vld [vmem:[%s1485 + $0x37c] sm:$0xf]
        %v1752 = vld [vmem:[%s1485 + $0x380] sm:$0xf]
        %v1753 = vld [vmem:[%s1485 + $0x384] sm:$0xf]
        %v1754 = vld [vmem:[%s1485 + $0x388] sm:$0xf]
        %v1755 = vld [vmem:[%s1485 + $0x38c] sm:$0xf]
        %v1756 = vld [vmem:[%s1485 + $0x390] sm:$0xf]
        %v1757 = vld [vmem:[%s1485 + $0x394] sm:$0xf]
        %v1758 = vld [vmem:[%s1485 + $0x398] sm:$0xf]
        %v1759 = vld [vmem:[%s1485 + $0x39c] sm:$0xf]
        %v1760 = vld [vmem:[%s1485 + $0x3a0] sm:$0xf]
        %v1761 = vld [vmem:[%s1485 + $0x3a4] sm:$0xf]
        %v1762 = vld [vmem:[%s1485 + $0x3a8] sm:$0xf]
        %v1763 = vld [vmem:[%s1485 + $0x3ac] sm:$0xf]
        %v1764 = vld [vmem:[%s1485 + $0x3b0] sm:$0xf]
        %v1765 = vld [vmem:[%s1485 + $0x3b4] sm:$0xf]
        %v1766 = vld [vmem:[%s1485 + $0x3b8] sm:$0xf]
        %v1767 = vld [vmem:[%s1485 + $0x3bc] sm:$0xf]
        %v1768 = vld [vmem:[%s1485 + $0x3c0] sm:$0xf]
        %v1769 = vld [vmem:[%s1485 + $0x3c4] sm:$0xf]
        %v1770 = vld [vmem:[%s1485 + $0x3c8] sm:$0xf]
        %v1771 = vld [vmem:[%s1485 + $0x3cc] sm:$0xf]
        %v1772 = vld [vmem:[%s1485 + $0x3d0] sm:$0xf]
        %v1773 = vld [vmem:[%s1485 + $0x3d4] sm:$0xf]
        %v1774 = vld [vmem:[%s1485 + $0x3d8] sm:$0xf]
        %v1775 = vld [vmem:[%s1485 + $0x3dc] sm:$0xf]
        %v1776 = vld [vmem:[%s1485 + $0x3e0] sm:$0xf]
        %v1777 = vld [vmem:[%s1485 + $0x3e4] sm:$0xf]
        %v1778 = vld [vmem:[%s1485 + $0x3e8] sm:$0xf]
        %v1779 = vld [vmem:[%s1485 + $0x3ec] sm:$0xf]
        %v1780 = vld [vmem:[%s1485 + $0x3f0] sm:$0xf]
        %v1781 = vld [vmem:[%s1485 + $0x3f4] sm:$0xf]
        %v1782 = vld [vmem:[%s1485 + $0x3f8] sm:$0xf]
        %v1783 = vld [vmem:[%s1485 + $0x3fc] sm:$0xf]
        %v1784 = vld [vmem:[%s1485 + $0x400] sm:$0xf]
        %v1785 = vld [vmem:[%s1485 + $0x404] sm:$0xf]
        %v1786 = vld [vmem:[%s1485 + $0x408] sm:$0xf]
        %v1787 = vld [vmem:[%s1485 + $0x40c] sm:$0xf]
        %v1788 = vld [vmem:[%s1485 + $0x410] sm:$0xf]
        %v1789 = vld [vmem:[%s1485 + $0x414] sm:$0xf]
        %v1790 = vld [vmem:[%s1485 + $0x418] sm:$0xf]
        %v1791 = vld [vmem:[%s1485 + $0x41c] sm:$0xf]
        %v1792 = vld [vmem:[%s1485 + $0x420] sm:$0xf]
        %v1793 = vld [vmem:[%s1485 + $0x424] sm:$0xf]
        %v1794 = vld [vmem:[%s1485 + $0x428] sm:$0xf]
        %v1795 = vld [vmem:[%s1485 + $0x42c] sm:$0xf]
        %v1796 = vld [vmem:[%s1485 + $0x430] sm:$0xf]
        %v1797 = vld [vmem:[%s1485 + $0x434] sm:$0xf]
        %v1798 = vld [vmem:[%s1485 + $0x438] sm:$0xf]
        %v1799 = vld [vmem:[%s1485 + $0x43c] sm:$0xf]
        %v1800 = vld [vmem:[%s1485 + $0x440] sm:$0xf]
        %v1801 = vld [vmem:[%s1485 + $0x444] sm:$0xf]
        %v1802 = vld [vmem:[%s1485 + $0x448] sm:$0xf]
        %v1803 = vld [vmem:[%s1485 + $0x44c] sm:$0xf]
        %v1804 = vld [vmem:[%s1485 + $0x450] sm:$0xf]
        %v1805 = vld [vmem:[%s1485 + $0x454] sm:$0xf]
        %v1806 = vld [vmem:[%s1485 + $0x458] sm:$0xf]
        %v1807 = vld [vmem:[%s1485 + $0x45c] sm:$0xf]
        %v1808 = vld [vmem:[%s1485 + $0x460] sm:$0xf]
        %v1809 = vld [vmem:[%s1485 + $0x464] sm:$0xf]
        %v1810 = vld [vmem:[%s1485 + $0x468] sm:$0xf]
        %v1811 = vld [vmem:[%s1485 + $0x46c] sm:$0xf]
        %v1812 = vld [vmem:[%s1485 + $0x470] sm:$0xf]
        %v1813 = vld [vmem:[%s1485 + $0x474] sm:$0xf]
        %v1814 = vld [vmem:[%s1485 + $0x478] sm:$0xf]
        %v1815 = vld [vmem:[%s1485 + $0x47c] sm:$0xf]
        %v1816 = vld [vmem:[%s1] sm:$0xf]
        %v1817 = vld [vmem:[%s1 + $0x4] sm:$0xf]
        %v1818 = vld [vmem:[%s1 + $0x8] sm:$0xf]
        %v1819 = vld [vmem:[%s1 + $0xc] sm:$0xf]
        %v1820 = vld [vmem:[%s1 + $0x10] sm:$0xf]
        %v1821 = vld [vmem:[%s1 + $0x14] sm:$0xf]
        %v1822 = vld [vmem:[%s1 + $0x18] sm:$0xf]
        %v1823 = vld [vmem:[%s1 + $0x1c] sm:$0xf]
        %v1824 = vld [vmem:[%s2] sm:$0x1]
        %v1826 = vlaneseq
        %v1827 = vshrl.u32 %v1826, 7
        %v1828 = vsub.s32 0, %v1827
        %v1829 = vrot.slane %v1824, %v1828
        %v2119 = vunpack.c.l.b16 %v1528
        %v2120 = vunpack.c.l.b16 %v1529
        %v2121 = vunpack.c.l.b16 %v1530
        %v2122 = vunpack.c.l.b16 %v1531
        %v2123 = vunpack.c.l.b16 %v1532
        %v2124 = vunpack.c.l.b16 %v1533
        %v2125 = vunpack.c.l.b16 %v1534
        %v2126 = vunpack.c.l.b16 %v1535
        %v2127 = vunpack.c.l.b16 %v1536
        %v2128 = vunpack.c.l.b16 %v1537
        %v2129 = vunpack.c.l.b16 %v1538
        %v2130 = vunpack.c.l.b16 %v1539
        %v2131 = vunpack.c.l.b16 %v1540
        %v2132 = vunpack.c.l.b16 %v1541
        %v2133 = vunpack.c.l.b16 %v1542
        %v2134 = vunpack.c.l.b16 %v1543
        %v2135 = vunpack.c.l.b16 %v1544
        %v2136 = vunpack.c.l.b16 %v1545
        %v2137 = vunpack.c.l.b16 %v1546
        %v2138 = vunpack.c.l.b16 %v1547
        %v2139 = vunpack.c.l.b16 %v1548
        %v2140 = vunpack.c.l.b16 %v1549
        %v2141 = vunpack.c.l.b16 %v1550
        %v2142 = vunpack.c.l.b16 %v1551
        %v2143 = vunpack.c.l.b16 %v1552
        %v2144 = vunpack.c.l.b16 %v1553
        %v2145 = vunpack.c.l.b16 %v1554
        %v2146 = vunpack.c.l.b16 %v1555
        %v2147 = vunpack.c.l.b16 %v1556
        %v2148 = vunpack.c.l.b16 %v1557
        %v2149 = vunpack.c.l.b16 %v1558
        %v2150 = vunpack.c.l.b16 %v1559
        %v2151 = vunpack.c.l.b16 %v1560
        %v2152 = vunpack.c.l.b16 %v1561
        %v2153 = vunpack.c.l.b16 %v1562
        %v2154 = vunpack.c.l.b16 %v1563
        %v2155 = vunpack.c.l.b16 %v1564
        %v2156 = vunpack.c.l.b16 %v1565
        %v2157 = vunpack.c.l.b16 %v1566
        %v2158 = vunpack.c.l.b16 %v1567
        %v2159 = vunpack.c.l.b16 %v1568
        %v2160 = vunpack.c.l.b16 %v1569
        %v2161 = vunpack.c.l.b16 %v1570
        %v2162 = vunpack.c.l.b16 %v1571
        %v2163 = vunpack.c.l.b16 %v1572
        %v2164 = vunpack.c.l.b16 %v1573
        %v2165 = vunpack.c.l.b16 %v1574
        %v2166 = vunpack.c.l.b16 %v1575
        %v2167 = vunpack.c.l.b16 %v1576
        %v2168 = vunpack.c.l.b16 %v1577
        %v2169 = vunpack.c.l.b16 %v1578
        %v2170 = vunpack.c.l.b16 %v1579
        %v2171 = vunpack.c.l.b16 %v1580
        %v2172 = vunpack.c.l.b16 %v1581
        %v2173 = vunpack.c.l.b16 %v1582
        %v2174 = vunpack.c.l.b16 %v1583
        %v2175 = vunpack.c.l.b16 %v1584
        %v2176 = vunpack.c.l.b16 %v1585
        %v2177 = vunpack.c.l.b16 %v1586
        %v2178 = vunpack.c.l.b16 %v1587
        %v2179 = vunpack.c.l.b16 %v1588
        %v2180 = vunpack.c.l.b16 %v1589
        %v2181 = vunpack.c.l.b16 %v1590
        %v2182 = vunpack.c.l.b16 %v1591
        %v2183 = vunpack.c.l.b16 %v1592
        %v2184 = vunpack.c.l.b16 %v1593
        %v2185 = vunpack.c.l.b16 %v1594
        %v2186 = vunpack.c.l.b16 %v1595
        %v2187 = vunpack.c.l.b16 %v1596
        %v2188 = vunpack.c.l.b16 %v1597
        %v2189 = vunpack.c.l.b16 %v1598
        %v2190 = vunpack.c.l.b16 %v1599
        %v2191 = vunpack.c.l.b16 %v1600
        %v2192 = vunpack.c.l.b16 %v1601
        %v2193 = vunpack.c.l.b16 %v1602
        %v2194 = vunpack.c.l.b16 %v1603
        %v2195 = vunpack.c.l.b16 %v1604
        %v2196 = vunpack.c.l.b16 %v1605
        %v2197 = vunpack.c.l.b16 %v1606
        %v2198 = vunpack.c.l.b16 %v1607
        %v2199 = vunpack.c.l.b16 %v1608
        %v2200 = vunpack.c.l.b16 %v1609
        %v2201 = vunpack.c.l.b16 %v1610
        %v2202 = vunpack.c.l.b16 %v1611
        %v2203 = vunpack.c.l.b16 %v1612
        %v2204 = vunpack.c.l.b16 %v1613
        %v2205 = vunpack.c.l.b16 %v1614
        %v2206 = vunpack.c.l.b16 %v1615
        %v2207 = vunpack.c.l.b16 %v1616
        %v2208 = vunpack.c.l.b16 %v1617
        %v2209 = vunpack.c.l.b16 %v1618
        %v2210 = vunpack.c.l.b16 %v1619
        %v2211 = vunpack.c.l.b16 %v1620
        %v2212 = vunpack.c.l.b16 %v1621
        %v2213 = vunpack.c.l.b16 %v1622
        %v2214 = vunpack.c.l.b16 %v1623
        %v2215 = vunpack.c.l.b16 %v1624
        %v2216 = vunpack.c.l.b16 %v1625
        %v2217 = vunpack.c.l.b16 %v1626
        %v2218 = vunpack.c.l.b16 %v1627
        %v2219 = vunpack.c.l.b16 %v1628
        %v2220 = vunpack.c.l.b16 %v1629
        %v2221 = vunpack.c.l.b16 %v1630
        %v2222 = vunpack.c.l.b16 %v1631
        %v2223 = vunpack.c.l.b16 %v1632
        %v2224 = vunpack.c.l.b16 %v1633
        %v2225 = vunpack.c.l.b16 %v1634
        %v2226 = vunpack.c.l.b16 %v1635
        %v2227 = vunpack.c.l.b16 %v1636
        %v2228 = vunpack.c.l.b16 %v1637
        %v2229 = vunpack.c.l.b16 %v1638
        %v2230 = vunpack.c.l.b16 %v1639
        %v2231 = vunpack.c.l.b16 %v1640
        %v2232 = vunpack.c.l.b16 %v1641
        %v2233 = vunpack.c.l.b16 %v1642
        %v2234 = vunpack.c.l.b16 %v1643
        %v2235 = vunpack.c.l.b16 %v1644
        %v2236 = vunpack.c.l.b16 %v1645
        %v2237 = vunpack.c.l.b16 %v1646
        %v2238 = vunpack.c.l.b16 %v1647
        %v2239 = vunpack.c.l.b16 %v1648
        %v2240 = vunpack.c.l.b16 %v1649
        %v2241 = vunpack.c.l.b16 %v1650
        %v2242 = vunpack.c.l.b16 %v1651
        %v2243 = vunpack.c.l.b16 %v1652
        %v2244 = vunpack.c.l.b16 %v1653
        %v2245 = vunpack.c.l.b16 %v1654
        %v2246 = vunpack.c.l.b16 %v1655
        %v2247 = vunpack.c.l.b16 %v1656
        %v2248 = vunpack.c.l.b16 %v1657
        %v2249 = vunpack.c.l.b16 %v1658
        %v2250 = vunpack.c.l.b16 %v1659
        %v2251 = vunpack.c.l.b16 %v1660
        %v2252 = vunpack.c.l.b16 %v1661
        %v2253 = vunpack.c.l.b16 %v1662
        %v2254 = vunpack.c.l.b16 %v1663
        %v2255 = vunpack.c.l.b16 %v1664
        %v2256 = vunpack.c.l.b16 %v1665
        %v2257 = vunpack.c.l.b16 %v1666
        %v2258 = vunpack.c.l.b16 %v1667
        %v2259 = vunpack.c.l.b16 %v1668
        %v2260 = vunpack.c.l.b16 %v1669
        %v2261 = vunpack.c.l.b16 %v1670
        %v2262 = vunpack.c.l.b16 %v1671
        %v2263 = vunpack.c.l.b16 %v1672
        %v2264 = vunpack.c.l.b16 %v1673
        %v2265 = vunpack.c.l.b16 %v1674
        %v2266 = vunpack.c.l.b16 %v1675
        %v2267 = vunpack.c.l.b16 %v1676
        %v2268 = vunpack.c.l.b16 %v1677
        %v2269 = vunpack.c.l.b16 %v1678
        %v2270 = vunpack.c.l.b16 %v1679
        %v2271 = vunpack.c.l.b16 %v1680
        %v2272 = vunpack.c.l.b16 %v1681
        %v2273 = vunpack.c.l.b16 %v1682
        %v2274 = vunpack.c.l.b16 %v1683
        %v2275 = vunpack.c.l.b16 %v1684
        %v2276 = vunpack.c.l.b16 %v1685
        %v2277 = vunpack.c.l.b16 %v1686
        %v2278 = vunpack.c.l.b16 %v1687
        %v2279 = vunpack.c.l.b16 %v1688
        %v2280 = vunpack.c.l.b16 %v1689
        %v2281 = vunpack.c.l.b16 %v1690
        %v2282 = vunpack.c.l.b16 %v1691
        %v2283 = vunpack.c.l.b16 %v1692
        %v2284 = vunpack.c.l.b16 %v1693
        %v2285 = vunpack.c.l.b16 %v1694
        %v2286 = vunpack.c.l.b16 %v1695
        %v2287 = vunpack.c.l.b16 %v1696
        %v2288 = vunpack.c.l.b16 %v1697
        %v2289 = vunpack.c.l.b16 %v1698
        %v2290 = vunpack.c.l.b16 %v1699
        %v2291 = vunpack.c.l.b16 %v1700
        %v2292 = vunpack.c.l.b16 %v1701
        %v2293 = vunpack.c.l.b16 %v1702
        %v2294 = vunpack.c.l.b16 %v1703
        %v2295 = vunpack.c.l.b16 %v1704
        %v2296 = vunpack.c.l.b16 %v1705
        %v2297 = vunpack.c.l.b16 %v1706
        %v2298 = vunpack.c.l.b16 %v1707
        %v2299 = vunpack.c.l.b16 %v1708
        %v2300 = vunpack.c.l.b16 %v1709
        %v2301 = vunpack.c.l.b16 %v1710
        %v2302 = vunpack.c.l.b16 %v1711
        %v2303 = vunpack.c.l.b16 %v1712
        %v2304 = vunpack.c.l.b16 %v1713
        %v2305 = vunpack.c.l.b16 %v1714
        %v2306 = vunpack.c.l.b16 %v1715
        %v2307 = vunpack.c.l.b16 %v1716
        %v2308 = vunpack.c.l.b16 %v1717
        %v2309 = vunpack.c.l.b16 %v1718
        %v2310 = vunpack.c.l.b16 %v1719
        %v2311 = vunpack.c.l.b16 %v1720
        %v2312 = vunpack.c.l.b16 %v1721
        %v2313 = vunpack.c.l.b16 %v1722
        %v2314 = vunpack.c.l.b16 %v1723
        %v2315 = vunpack.c.l.b16 %v1724
        %v2316 = vunpack.c.l.b16 %v1725
        %v2317 = vunpack.c.l.b16 %v1726
        %v2318 = vunpack.c.l.b16 %v1727
        %v2319 = vunpack.c.l.b16 %v1728
        %v2320 = vunpack.c.l.b16 %v1729
        %v2321 = vunpack.c.l.b16 %v1730
        %v2322 = vunpack.c.l.b16 %v1731
        %v2323 = vunpack.c.l.b16 %v1732
        %v2324 = vunpack.c.l.b16 %v1733
        %v2325 = vunpack.c.l.b16 %v1734
        %v2326 = vunpack.c.l.b16 %v1735
        %v2327 = vunpack.c.l.b16 %v1736
        %v2328 = vunpack.c.l.b16 %v1737
        %v2329 = vunpack.c.l.b16 %v1738
        %v2330 = vunpack.c.l.b16 %v1739
        %v2331 = vunpack.c.l.b16 %v1740
        %v2332 = vunpack.c.l.b16 %v1741
        %v2333 = vunpack.c.l.b16 %v1742
        %v2334 = vunpack.c.l.b16 %v1743
        %v2335 = vunpack.c.l.b16 %v1744
        %v2336 = vunpack.c.l.b16 %v1745
        %v2337 = vunpack.c.l.b16 %v1746
        %v2338 = vunpack.c.l.b16 %v1747
        %v2339 = vunpack.c.l.b16 %v1748
        %v2340 = vunpack.c.l.b16 %v1749
        %v2341 = vunpack.c.l.b16 %v1750
        %v2342 = vunpack.c.l.b16 %v1751
        %v2343 = vunpack.c.l.b16 %v1752
        %v2344 = vunpack.c.l.b16 %v1753
        %v2345 = vunpack.c.l.b16 %v1754
        %v2346 = vunpack.c.l.b16 %v1755
        %v2347 = vunpack.c.l.b16 %v1756
        %v2348 = vunpack.c.l.b16 %v1757
        %v2349 = vunpack.c.l.b16 %v1758
        %v2350 = vunpack.c.l.b16 %v1759
        %v2351 = vunpack.c.l.b16 %v1760
        %v2352 = vunpack.c.l.b16 %v1761
        %v2353 = vunpack.c.l.b16 %v1762
        %v2354 = vunpack.c.l.b16 %v1763
        %v2355 = vunpack.c.l.b16 %v1764
        %v2356 = vunpack.c.l.b16 %v1765
        %v2357 = vunpack.c.l.b16 %v1766
        %v2358 = vunpack.c.l.b16 %v1767
        %v2359 = vunpack.c.l.b16 %v1768
        %v2360 = vunpack.c.l.b16 %v1769
        %v2361 = vunpack.c.l.b16 %v1770
        %v2362 = vunpack.c.l.b16 %v1771
        %v2363 = vunpack.c.l.b16 %v1772
        %v2364 = vunpack.c.l.b16 %v1773
        %v2365 = vunpack.c.l.b16 %v1774
        %v2366 = vunpack.c.l.b16 %v1775
        %v2367 = vunpack.c.l.b16 %v1776
        %v2368 = vunpack.c.l.b16 %v1777
        %v2369 = vunpack.c.l.b16 %v1778
        %v2370 = vunpack.c.l.b16 %v1779
        %v2371 = vunpack.c.l.b16 %v1780
        %v2372 = vunpack.c.l.b16 %v1781
        %v2373 = vunpack.c.l.b16 %v1782
        %v2374 = vunpack.c.l.b16 %v1783
        %v2375 = vunpack.c.l.b16 %v1784
        %v2376 = vunpack.c.l.b16 %v1785
        %v2377 = vunpack.c.l.b16 %v1786
        %v2378 = vunpack.c.l.b16 %v1787
        %v2379 = vunpack.c.l.b16 %v1788
        %v2380 = vunpack.c.l.b16 %v1789
        %v2381 = vunpack.c.l.b16 %v1790
        %v2382 = vunpack.c.l.b16 %v1791
        %v2383 = vunpack.c.l.b16 %v1792
        %v2384 = vunpack.c.l.b16 %v1793
        %v2385 = vunpack.c.l.b16 %v1794
        %v2386 = vunpack.c.l.b16 %v1795
        %v2387 = vunpack.c.l.b16 %v1796
        %v2388 = vunpack.c.l.b16 %v1797
        %v2389 = vunpack.c.l.b16 %v1798
        %v2390 = vunpack.c.l.b16 %v1799
        %v2391 = vunpack.c.l.b16 %v1800
        %v2392 = vunpack.c.l.b16 %v1801
        %v2393 = vunpack.c.l.b16 %v1802
        %v2394 = vunpack.c.l.b16 %v1803
        %v2395 = vunpack.c.l.b16 %v1804
        %v2396 = vunpack.c.l.b16 %v1805
        %v2397 = vunpack.c.l.b16 %v1806
        %v2398 = vunpack.c.l.b16 %v1807
        %v2399 = vunpack.c.l.b16 %v1808
        %v2400 = vunpack.c.l.b16 %v1809
        %v2401 = vunpack.c.l.b16 %v1810
        %v2402 = vunpack.c.l.b16 %v1811
        %v2403 = vunpack.c.l.b16 %v1812
        %v2404 = vunpack.c.l.b16 %v1813
        %v2405 = vunpack.c.l.b16 %v1814
        %v2406 = vunpack.c.l.b16 %v1815
        %v2407 = vpack.c.b16 %v2120, %v2119
        %v2408 = vpack.c.b16 %v2122, %v2121
        %v2409 = vpack.c.b16 %v2124, %v2123
        %v2410 = vpack.c.b16 %v2126, %v2125
        %v2411 = vpack.c.b16 %v2128, %v2127
        %v2412 = vpack.c.b16 %v2130, %v2129
        %v2413 = vpack.c.b16 %v2132, %v2131
        %v2414 = vpack.c.b16 %v2134, %v2133
        %v2415 = vpack.c.b16 %v2136, %v2135
        %v2416 = vpack.c.b16 %v2138, %v2137
        %v2417 = vpack.c.b16 %v2140, %v2139
        %v2418 = vpack.c.b16 %v2142, %v2141
        %v2419 = vpack.c.b16 %v2144, %v2143
        %v2420 = vpack.c.b16 %v2146, %v2145
        %v2421 = vpack.c.b16 %v2148, %v2147
        %v2422 = vpack.c.b16 %v2150, %v2149
        %v2423 = vpack.c.b16 %v2152, %v2151
        %v2424 = vpack.c.b16 %v2154, %v2153
        %v2425 = vpack.c.b16 %v2156, %v2155
        %v2426 = vpack.c.b16 %v2158, %v2157
        %v2427 = vpack.c.b16 %v2160, %v2159
        %v2428 = vpack.c.b16 %v2162, %v2161
        %v2429 = vpack.c.b16 %v2164, %v2163
        %v2430 = vpack.c.b16 %v2166, %v2165
        %v2431 = vpack.c.b16 %v2168, %v2167
        %v2432 = vpack.c.b16 %v2170, %v2169
        %v2433 = vpack.c.b16 %v2172, %v2171
        %v2434 = vpack.c.b16 %v2174, %v2173
        %v2435 = vpack.c.b16 %v2176, %v2175
        %v2436 = vpack.c.b16 %v2178, %v2177
        %v2437 = vpack.c.b16 %v2180, %v2179
        %v2438 = vpack.c.b16 %v2182, %v2181
        %v2439 = vpack.c.b16 %v2184, %v2183
        %v2440 = vpack.c.b16 %v2186, %v2185
        %v2441 = vpack.c.b16 %v2188, %v2187
        %v2442 = vpack.c.b16 %v2190, %v2189
        %v2443 = vpack.c.b16 %v2192, %v2191
        %v2444 = vpack.c.b16 %v2194, %v2193
        %v2445 = vpack.c.b16 %v2196, %v2195
        %v2446 = vpack.c.b16 %v2198, %v2197
        %v2447 = vpack.c.b16 %v2200, %v2199
        %v2448 = vpack.c.b16 %v2202, %v2201
        %v2449 = vpack.c.b16 %v2204, %v2203
        %v2450 = vpack.c.b16 %v2206, %v2205
        %v2451 = vpack.c.b16 %v2208, %v2207
        %v2452 = vpack.c.b16 %v2210, %v2209
        %v2453 = vpack.c.b16 %v2212, %v2211
        %v2454 = vpack.c.b16 %v2214, %v2213
        %v2455 = vpack.c.b16 %v2216, %v2215
        %v2456 = vpack.c.b16 %v2218, %v2217
        %v2457 = vpack.c.b16 %v2220, %v2219
        %v2458 = vpack.c.b16 %v2222, %v2221
        %v2459 = vpack.c.b16 %v2224, %v2223
        %v2460 = vpack.c.b16 %v2226, %v2225
        %v2461 = vpack.c.b16 %v2228, %v2227
        %v2462 = vpack.c.b16 %v2230, %v2229
        %v2463 = vpack.c.b16 %v2232, %v2231
        %v2464 = vpack.c.b16 %v2234, %v2233
        %v2465 = vpack.c.b16 %v2236, %v2235
        %v2466 = vpack.c.b16 %v2238, %v2237
        %v2467 = vpack.c.b16 %v2240, %v2239
        %v2468 = vpack.c.b16 %v2242, %v2241
        %v2469 = vpack.c.b16 %v2244, %v2243
        %v2470 = vpack.c.b16 %v2246, %v2245
        %v2471 = vpack.c.b16 %v2248, %v2247
        %v2472 = vpack.c.b16 %v2250, %v2249
        %v2473 = vpack.c.b16 %v2252, %v2251
        %v2474 = vpack.c.b16 %v2254, %v2253
        %v2475 = vpack.c.b16 %v2256, %v2255
        %v2476 = vpack.c.b16 %v2258, %v2257
        %v2477 = vpack.c.b16 %v2260, %v2259
        %v2478 = vpack.c.b16 %v2262, %v2261
        %v2479 = vpack.c.b16 %v2264, %v2263
        %v2480 = vpack.c.b16 %v2266, %v2265
        %v2481 = vpack.c.b16 %v2268, %v2267
        %v2482 = vpack.c.b16 %v2270, %v2269
        %v2483 = vpack.c.b16 %v2272, %v2271
        %v2484 = vpack.c.b16 %v2274, %v2273
        %v2485 = vpack.c.b16 %v2276, %v2275
        %v2486 = vpack.c.b16 %v2278, %v2277
        %v2487 = vpack.c.b16 %v2280, %v2279
        %v2488 = vpack.c.b16 %v2282, %v2281
        %v2489 = vpack.c.b16 %v2284, %v2283
        %v2490 = vpack.c.b16 %v2286, %v2285
        %v2491 = vpack.c.b16 %v2288, %v2287
        %v2492 = vpack.c.b16 %v2290, %v2289
        %v2493 = vpack.c.b16 %v2292, %v2291
        %v2494 = vpack.c.b16 %v2294, %v2293
        %v2495 = vpack.c.b16 %v2296, %v2295
        %v2496 = vpack.c.b16 %v2298, %v2297
        %v2497 = vpack.c.b16 %v2300, %v2299
        %v2498 = vpack.c.b16 %v2302, %v2301
        %v2499 = vpack.c.b16 %v2304, %v2303
        %v2500 = vpack.c.b16 %v2306, %v2305
        %v2501 = vpack.c.b16 %v2308, %v2307
        %v2502 = vpack.c.b16 %v2310, %v2309
        %v2503 = vpack.c.b16 %v2312, %v2311
        %v2504 = vpack.c.b16 %v2314, %v2313
        %v2505 = vpack.c.b16 %v2316, %v2315
        %v2506 = vpack.c.b16 %v2318, %v2317
        %v2507 = vpack.c.b16 %v2320, %v2319
        %v2508 = vpack.c.b16 %v2322, %v2321
        %v2509 = vpack.c.b16 %v2324, %v2323
        %v2510 = vpack.c.b16 %v2326, %v2325
        %v2511 = vpack.c.b16 %v2328, %v2327
        %v2512 = vpack.c.b16 %v2330, %v2329
        %v2513 = vpack.c.b16 %v2332, %v2331
        %v2514 = vpack.c.b16 %v2334, %v2333
        %v2515 = vpack.c.b16 %v2336, %v2335
        %v2516 = vpack.c.b16 %v2338, %v2337
        %v2517 = vpack.c.b16 %v2340, %v2339
        %v2518 = vpack.c.b16 %v2342, %v2341
        %v2519 = vpack.c.b16 %v2344, %v2343
        %v2520 = vpack.c.b16 %v2346, %v2345
        %v2521 = vpack.c.b16 %v2348, %v2347
        %v2522 = vpack.c.b16 %v2350, %v2349
        %v2523 = vpack.c.b16 %v2352, %v2351
        %v2524 = vpack.c.b16 %v2354, %v2353
        %v2525 = vpack.c.b16 %v2356, %v2355
        %v2526 = vpack.c.b16 %v2358, %v2357
        %v2527 = vpack.c.b16 %v2360, %v2359
        %v2528 = vpack.c.b16 %v2362, %v2361
        %v2529 = vpack.c.b16 %v2364, %v2363
        %v2530 = vpack.c.b16 %v2366, %v2365
        %v2531 = vpack.c.b16 %v2368, %v2367
        %v2532 = vpack.c.b16 %v2370, %v2369
        %v2533 = vpack.c.b16 %v2372, %v2371
        %v2534 = vpack.c.b16 %v2374, %v2373
        %v2535 = vpack.c.b16 %v2376, %v2375
        %v2536 = vpack.c.b16 %v2378, %v2377
        %v2537 = vpack.c.b16 %v2380, %v2379
        %v2538 = vpack.c.b16 %v2382, %v2381
        %v2539 = vpack.c.b16 %v2384, %v2383
        %v2540 = vpack.c.b16 %v2386, %v2385
        %v2541 = vpack.c.b16 %v2388, %v2387
        %v2542 = vpack.c.b16 %v2390, %v2389
        %v2543 = vpack.c.b16 %v2392, %v2391
        %v2544 = vpack.c.b16 %v2394, %v2393
        %v2545 = vpack.c.b16 %v2396, %v2395
        %v2546 = vpack.c.b16 %v2398, %v2397
        %v2547 = vpack.c.b16 %v2400, %v2399
        %v2548 = vpack.c.b16 %v2402, %v2401
        %v2549 = vpack.c.b16 %v2404, %v2403
        %v2550 = vpack.c.b16 %v2406, %v2405
        %v2559 = vunpack.c.l.b16 %v1816
        %v2560 = vunpack.c.l.b16 %v1817
        %v2561 = vunpack.c.l.b16 %v1818
        %v2562 = vunpack.c.l.b16 %v1819
        %v2563 = vunpack.c.l.b16 %v1820
        %v2564 = vunpack.c.l.b16 %v1821
        %v2565 = vunpack.c.l.b16 %v1822
        %v2566 = vunpack.c.l.b16 %v1823
        %v2567 = vpack.c.b16 %v2560, %v2559
        %v2568 = vpack.c.b16 %v2562, %v2561
        %v2569 = vpack.c.b16 %v2564, %v2563
        %v2570 = vpack.c.b16 %v2566, %v2565
        %vm2575 = vcmask 523264
        %v2577 = vsel %vm2575, %v2407, 0
        %v2580 = vsel %vm2575, %v2408, 0
        %v2583 = vsel %vm2575, %v2409, 0
        %v2586 = vsel %vm2575, %v2410, 0
        %v2589 = vsel %vm2575, %v2411, 0
        %v2592 = vsel %vm2575, %v2412, 0
        %v2595 = vsel %vm2575, %v2413, 0
        %v2598 = vsel %vm2575, %v2414, 0
        %v2601 = vsel %vm2575, %v2415, 0
        %v2604 = vsel %vm2575, %v2416, 0
        %v2607 = vsel %vm2575, %v2417, 0
        %v2610 = vsel %vm2575, %v2418, 0
        %v2613 = vsel %vm2575, %v2419, 0
        %v2616 = vsel %vm2575, %v2420, 0
        %v2619 = vsel %vm2575, %v2421, 0
        %v2622 = vsel %vm2575, %v2422, 0
        %v2625 = vsel %vm2575, %v2423, 0
        %v2628 = vsel %vm2575, %v2424, 0
        %v2631 = vsel %vm2575, %v2425, 0
        %v2634 = vsel %vm2575, %v2426, 0
        %v2637 = vsel %vm2575, %v2427, 0
        %v2640 = vsel %vm2575, %v2428, 0
        %v2643 = vsel %vm2575, %v2429, 0
        %v2646 = vsel %vm2575, %v2430, 0
        %v2649 = vsel %vm2575, %v2431, 0
        %v2652 = vsel %vm2575, %v2432, 0
        %v2655 = vsel %vm2575, %v2433, 0
        %v2658 = vsel %vm2575, %v2434, 0
        %v2661 = vsel %vm2575, %v2435, 0
        %v2664 = vsel %vm2575, %v2436, 0
        %v2667 = vsel %vm2575, %v2437, 0
        %v2670 = vsel %vm2575, %v2438, 0
        %v2673 = vsel %vm2575, %v2439, 0
        %v2676 = vsel %vm2575, %v2440, 0
        %v2679 = vsel %vm2575, %v2441, 0
        %v2682 = vsel %vm2575, %v2442, 0
        %v2685 = vsel %vm2575, %v2443, 0
        %v2688 = vsel %vm2575, %v2444, 0
        %v2691 = vsel %vm2575, %v2445, 0
        %v2694 = vsel %vm2575, %v2446, 0
        %v2697 = vsel %vm2575, %v2447, 0
        %v2700 = vsel %vm2575, %v2448, 0
        %v2703 = vsel %vm2575, %v2449, 0
        %v2706 = vsel %vm2575, %v2450, 0
        %v2709 = vsel %vm2575, %v2451, 0
        %v2712 = vsel %vm2575, %v2452, 0
        %v2715 = vsel %vm2575, %v2453, 0
        %v2718 = vsel %vm2575, %v2454, 0
        %v2721 = vsel %vm2575, %v2455, 0
        %v2724 = vsel %vm2575, %v2456, 0
        %v2727 = vsel %vm2575, %v2457, 0
        %v2730 = vsel %vm2575, %v2458, 0
        %v2733 = vsel %vm2575, %v2459, 0
        %v2736 = vsel %vm2575, %v2460, 0
        %v2739 = vsel %vm2575, %v2461, 0
        %v2742 = vsel %vm2575, %v2462, 0
        %v2745 = vsel %vm2575, %v2463, 0
        %v2748 = vsel %vm2575, %v2464, 0
        %v2751 = vsel %vm2575, %v2465, 0
        %v2754 = vsel %vm2575, %v2466, 0
        %v2757 = vsel %vm2575, %v2467, 0
        %v2760 = vsel %vm2575, %v2468, 0
        %v2763 = vsel %vm2575, %v2469, 0
        %v2766 = vsel %vm2575, %v2470, 0
        %v2769 = vsel %vm2575, %v2471, 0
        %v2772 = vsel %vm2575, %v2472, 0
        %v2775 = vsel %vm2575, %v2473, 0
        %v2778 = vsel %vm2575, %v2474, 0
        %v2781 = vsel %vm2575, %v2475, 0
        %v2784 = vsel %vm2575, %v2476, 0
        %v2787 = vsel %vm2575, %v2477, 0
        %v2790 = vsel %vm2575, %v2478, 0
        %v2793 = vsel %vm2575, %v2479, 0
        %v2796 = vsel %vm2575, %v2480, 0
        %v2799 = vsel %vm2575, %v2481, 0
        %v2802 = vsel %vm2575, %v2482, 0
        %v2805 = vsel %vm2575, %v2483, 0
        %v2808 = vsel %vm2575, %v2484, 0
        %v2811 = vsel %vm2575, %v2485, 0
        %v2814 = vsel %vm2575, %v2486, 0
        %v2817 = vsel %vm2575, %v2487, 0
        %v2820 = vsel %vm2575, %v2488, 0
        %v2823 = vsel %vm2575, %v2489, 0
        %v2826 = vsel %vm2575, %v2490, 0
        %v2829 = vsel %vm2575, %v2491, 0
        %v2832 = vsel %vm2575, %v2492, 0
        %v2835 = vsel %vm2575, %v2493, 0
        %v2838 = vsel %vm2575, %v2494, 0
        %v2841 = vsel %vm2575, %v2495, 0
        %v2844 = vsel %vm2575, %v2496, 0
        %v2847 = vsel %vm2575, %v2497, 0
        %v2850 = vsel %vm2575, %v2498, 0
        %v2853 = vsel %vm2575, %v2499, 0
        %v2856 = vsel %vm2575, %v2500, 0
        %v2859 = vsel %vm2575, %v2501, 0
        %v2862 = vsel %vm2575, %v2502, 0
        %v2865 = vsel %vm2575, %v2503, 0
        %v2868 = vsel %vm2575, %v2504, 0
        %v2871 = vsel %vm2575, %v2505, 0
        %v2874 = vsel %vm2575, %v2506, 0
        %v2877 = vsel %vm2575, %v2507, 0
        %v2880 = vsel %vm2575, %v2508, 0
        %v2883 = vsel %vm2575, %v2509, 0
        %v2886 = vsel %vm2575, %v2510, 0
        %v2889 = vsel %vm2575, %v2511, 0
        %v2892 = vsel %vm2575, %v2512, 0
        %v2895 = vsel %vm2575, %v2513, 0
        %v2898 = vsel %vm2575, %v2514, 0
        %v2901 = vsel %vm2575, %v2515, 0
        %v2904 = vsel %vm2575, %v2516, 0
        %v2907 = vsel %vm2575, %v2517, 0
        %v2910 = vsel %vm2575, %v2518, 0
        %v2913 = vsel %vm2575, %v2519, 0
        %v2916 = vsel %vm2575, %v2520, 0
        %v2919 = vsel %vm2575, %v2521, 0
        %v2922 = vsel %vm2575, %v2522, 0
        %v2925 = vsel %vm2575, %v2523, 0
        %v2928 = vsel %vm2575, %v2524, 0
        %v2931 = vsel %vm2575, %v2525, 0
        %v2934 = vsel %vm2575, %v2526, 0
        %v2937 = vsel %vm2575, %v2527, 0
        %v2940 = vsel %vm2575, %v2528, 0
        %v2943 = vsel %vm2575, %v2529, 0
        %v2946 = vsel %vm2575, %v2530, 0
        %v2949 = vsel %vm2575, %v2531, 0
        %v2952 = vsel %vm2575, %v2532, 0
        %v2955 = vsel %vm2575, %v2533, 0
        %v2958 = vsel %vm2575, %v2534, 0
        %v2961 = vsel %vm2575, %v2535, 0
        %v2964 = vsel %vm2575, %v2536, 0
        %v2967 = vsel %vm2575, %v2537, 0
        %v2970 = vsel %vm2575, %v2538, 0
        %v2973 = vsel %vm2575, %v2539, 0
        %v2976 = vsel %vm2575, %v2540, 0
        %v2979 = vsel %vm2575, %v2541, 0
        %v2982 = vsel %vm2575, %v2542, 0
        %v2985 = vsel %vm2575, %v2543, 0
        %v2988 = vsel %vm2575, %v2544, 0
        %v2991 = vsel %vm2575, %v2545, 0
        %v2994 = vsel %vm2575, %v2546, 0
        %v2997 = vsel %vm2575, %v2547, 0
        %v3000 = vsel %vm2575, %v2548, 0
        %v3003 = vsel %vm2575, %v2549, 0
        %v3006 = vsel %vm2575, %v2550, 0
        %3008 = vmatprep.subr.bf16.mxu0 0
        %3009 = vmatpush1.bf16.msra.mxu0 %v2567
        %3010 = vmatprep.subr.bf16.mxu0 0
        %3011 = vmatpush1.bf16.msra.mxu0 %v2568
        %3012 = vmatprep.subr.bf16.mxu0 0
        %3013 = vmatpush1.bf16.msra.mxu0 %v2569
        %3014 = vmatprep.subr.bf16.mxu0 0
        %3015 = vmatpush1.bf16.msra.mxu0 %v2570
        %3016 = vmatprep.subr.bf16.mxu0 0
        %3017 = vmatpush1.bf16.msra.mxu0 0
        %3018 = vmatprep.subr.bf16.mxu0 0
        %3019 = vmatpush1.bf16.msra.mxu0 0
        %3020 = vmatprep.subr.bf16.mxu0 0
        %3021 = vmatpush1.bf16.msra.mxu0 0
        %3022 = vmatprep.subr.bf16.mxu0 0
        %3023 = vmatpush1.bf16.msra.mxu0 0
        %3024 = vmatprep.subr.bf16.mxu0 0
        %3025 = vmatpush1.bf16.msra.mxu0 0
        %3026 = vmatprep.subr.bf16.mxu0 0
        %3027 = vmatpush1.bf16.msra.mxu0 0
        %3028 = vmatprep.subr.bf16.mxu0 0
        %3029 = vmatpush1.bf16.msra.mxu0 0
        %3030 = vmatprep.subr.bf16.mxu0 0
        %3031 = vmatpush1.bf16.msra.mxu0 0
        %3032 = vmatprep.subr.bf16.mxu0 0
        %3033 = vmatpush1.bf16.msra.mxu0 0
        %3034 = vmatprep.subr.bf16.mxu0 0
        %3035 = vmatpush1.bf16.msra.mxu0 0
        %3036 = vmatprep.subr.bf16.mxu0 0
        %3037 = vmatpush1.bf16.msra.mxu0 0
        %3038 = vmatprep.subr.bf16.mxu0 0
        %3039 = vmatpush1.bf16.msra.mxu0 0
        %3040 = vmatprep.mubr.bf16.mxu0 0
        %3041 = vmatmul.mubr.bf16.gmra.mrb[0].mxu0 %v2577
        %v3042 = vpop.f32.mrb[0].mxu0
        %v3043 = vadd.f32 %v1829, %v3042
        %v3044 = vpop.f32.mrb[0].mxu0
        %v3045 = vpop.f32.mrb[0].mxu0
        %v3046 = vadd.f32 %v1829, %v3045
        %v3047 = vpop.f32.mrb[0].mxu0
        %3048 = vmatprep.mubr.bf16.mxu0 0
        %3049 = vmatmul.mubr.bf16.gmra.mrb[0].mxu0 %v2580
        %v3050 = vpop.f32.mrb[0].mxu0
        %v3051 = vadd.f32 %v1829, %v3050
        %v3052 = vpop.f32.mrb[0].mxu0
        %v3053 = vpop.f32.mrb[0].mxu0
        %v3054 = vadd.f32 %v1829, %v3053
        %v3055 = vpop.f32.mrb[0].mxu0
        %3056 = vmatprep.mubr.bf16.mxu0 0
        %3057 = vmatmul.mubr.bf16.gmra.mrb[0].mxu0 %v2583
        %v3058 = vpop.f32.mrb[0].mxu0
        %v3059 = vadd.f32 %v1829, %v3058
        %v3060 = vpop.f32.mrb[0].mxu0
        %v3061 = vpop.f32.mrb[0].mxu0
        %v3062 = vadd.f32 %v1829, %v3061
        %v3063 = vpop.f32.mrb[0].mxu0
        %3064 = vmatprep.mubr.bf16.mxu0 0
        %3065 = vmatmul.mubr.bf16.gmra.mrb[0].mxu0 %v2586
        %v3066 = vpop.f32.mrb[0].mxu0
        %v3067 = vadd.f32 %v1829, %v3066
        %v3068 = vpop.f32.mrb[0].mxu0
        %v3069 = vpop.f32.mrb[0].mxu0
        %v3070 = vadd.f32 %v1829, %v3069
        %v3071 = vpop.f32.mrb[0].mxu0
        %3072 = vmatprep.mubr.bf16.mxu0 0
        %3073 = vmatmul.mubr.bf16.gmra.mrb[0].mxu0 %v2589
        %v3074 = vpop.f32.mrb[0].mxu0
        %v3075 = vadd.f32 %v1829, %v3074
        %v3076 = vpop.f32.mrb[0].mxu0
        %v3077 = vpop.f32.mrb[0].mxu0
        %v3078 = vadd.f32 %v1829, %v3077
        %v3079 = vpop.f32.mrb[0].mxu0
        %3080 = vmatprep.mubr.bf16.mxu0 0
        %3081 = vmatmul.mubr.bf16.gmra.mrb[0].mxu0 %v2592
        %v3082 = vpop.f32.mrb[0].mxu0
        %v3083 = vadd.f32 %v1829, %v3082
        %v3084 = vpop.f32.mrb[0].mxu0
        %v3085 = vpop.f32.mrb[0].mxu0
        %v3086 = vadd.f32 %v1829, %v3085
        %v3087 = vpop.f32.mrb[0].mxu0
        %3088 = vmatprep.mubr.bf16.mxu0 0
        %3089 = vmatmul.mubr.bf16.gmra.mrb[0].mxu0 %v2595
        %v3090 = vpop.f32.mrb[0].mxu0
        %v3091 = vadd.f32 %v1829, %v3090
        %v3092 = vpop.f32.mrb[0].mxu0
        %v3093 = vpop.f32.mrb[0].mxu0
        %v3094 = vadd.f32 %v1829, %v3093
        %v3095 = vpop.f32.mrb[0].mxu0
        %3096 = vmatprep.mubr.bf16.mxu0 0
        %3097 = vmatmul.mubr.bf16.gmra.mrb[0].mxu0 %v2598
        %v3098 = vpop.f32.mrb[0].mxu0
        %v3099 = vadd.f32 %v1829, %v3098
        %v3100 = vpop.f32.mrb[0].mxu0
        %v3101 = vpop.f32.mrb[0].mxu0
        %v3102 = vadd.f32 %v1829, %v3101
        %v3103 = vpop.f32.mrb[0].mxu0
        %3104 = vmatprep.mubr.bf16.mxu0 0
        %3105 = vmatmul.mubr.bf16.gmra.mrb[0].mxu0 %v2601
        %v3106 = vpop.f32.mrb[0].mxu0
        %v3107 = vadd.f32 %v1829, %v3106
        %v3108 = vpop.f32.mrb[0].mxu0
        %v3109 = vpop.f32.mrb[0].mxu0
        %v3110 = vadd.f32 %v1829, %v3109
        %v3111 = vpop.f32.mrb[0].mxu0
        %3112 = vmatprep.mubr.bf16.mxu0 0
        %3113 = vmatmul.mubr.bf16.gmra.mrb[0].mxu0 %v2604
        %v3114 = vpop.f32.mrb[0].mxu0
        %v3115 = vadd.f32 %v1829, %v3114
        %v3116 = vpop.f32.mrb[0].mxu0
        %v3117 = vpop.f32.mrb[0].mxu0
        %v3118 = vadd.f32 %v1829, %v3117
        %v3119 = vpop.f32.mrb[0].mxu0
        %3120 = vmatprep.mubr.bf16.mxu0 0
        %3121 = vmatmul.mubr.bf16.gmra.mrb[0].mxu0 %v2607
        %v3122 = vpop.f32.mrb[0].mxu0
        %v3123 = vadd.f32 %v1829, %v3122
        %v3124 = vpop.f32.mrb[0].mxu0
        %v3125 = vpop.f32.mrb[0].mxu0
        %v3126 = vadd.f32 %v1829, %v3125
        %v3127 = vpop.f32.mrb[0].mxu0
        %3128 = vmatprep.mubr.bf16.mxu0 0
        %3129 = vmatmul.mubr.bf16.gmra.mrb[0].mxu0 %v2610
        %v3130 = vpop.f32.mrb[0].mxu0
        %v3131 = vadd.f32 %v1829, %v3130
        %v3132 = vpop.f32.mrb[0].mxu0
        %v3133 = vpop.f32.mrb[0].mxu0
        %v3134 = vadd.f32 %v1829, %v3133
        %v3135 = vpop.f32.mrb[0].mxu0
        %3136 = vmatprep.mubr.bf16.mxu0 0
        %3137 = vmatmul.mubr.bf16.gmra.mrb[0].mxu0 %v2613
        %v3138 = vpop.f32.mrb[0].mxu0
        %v3139 = vadd.f32 %v1829, %v3138
        %v3140 = vpop.f32.mrb[0].mxu0
        %v3141 = vpop.f32.mrb[0].mxu0
        %v3142 = vadd.f32 %v1829, %v3141
        %v3143 = vpop.f32.mrb[0].mxu0
        %3144 = vmatprep.mubr.bf16.mxu0 0
        %3145 = vmatmul.mubr.bf16.gmra.mrb[0].mxu0 %v2616
        %v3146 = vpop.f32.mrb[0].mxu0
        %v3147 = vadd.f32 %v1829, %v3146
        %v3148 = vpop.f32.mrb[0].mxu0
        %v3149 = vpop.f32.mrb[0].mxu0
        %v3150 = vadd.f32 %v1829, %v3149
        %v3151 = vpop.f32.mrb[0].mxu0
        %3152 = vmatprep.mubr.bf16.mxu0 0
        %3153 = vmatmul.mubr.bf16.gmra.mrb[0].mxu0 %v2619
        %v3154 = vpop.f32.mrb[0].mxu0
        %v3155 = vadd.f32 %v1829, %v3154
        %v3156 = vpop.f32.mrb[0].mxu0
        %v3157 = vpop.f32.mrb[0].mxu0
        %v3158 = vadd.f32 %v1829, %v3157
        %v3159 = vpop.f32.mrb[0].mxu0
        %3160 = vmatprep.mubr.bf16.mxu0 0
        %3161 = vmatmul.mubr.bf16.gmra.mrb[0].mxu0 %v2622
        %v3162 = vpop.f32.mrb[0].mxu0
        %v3163 = vadd.f32 %v1829, %v3162
        %v3164 = vpop.f32.mrb[0].mxu0
        %v3165 = vpop.f32.mrb[0].mxu0
        %v3166 = vadd.f32 %v1829, %v3165
        %v3167 = vpop.f32.mrb[0].mxu0
        %3168 = vmatprep.mubr.bf16.mxu0 0
        %3169 = vmatmul.mubr.bf16.gmra.mrb[0].mxu0 %v2625
        %v3170 = vpop.f32.mrb[0].mxu0
        %v3171 = vadd.f32 %v1829, %v3170
        %v3172 = vpop.f32.mrb[0].mxu0
        %v3173 = vpop.f32.mrb[0].mxu0
        %v3174 = vadd.f32 %v1829, %v3173
        %v3175 = vpop.f32.mrb[0].mxu0
        %3176 = vmatprep.mubr.bf16.mxu0 0
        %3177 = vmatmul.mubr.bf16.gmra.mrb[0].mxu0 %v2628
        %v3178 = vpop.f32.mrb[0].mxu0
        %v3179 = vadd.f32 %v1829, %v3178
        %v3180 = vpop.f32.mrb[0].mxu0
        %v3181 = vpop.f32.mrb[0].mxu0
        %v3182 = vadd.f32 %v1829, %v3181
        %v3183 = vpop.f32.mrb[0].mxu0
        %3184 = vmatprep.mubr.bf16.mxu0 0
        %3185 = vmatmul.mubr.bf16.gmra.mrb[0].mxu0 %v2631
        %v3186 = vpop.f32.mrb[0].mxu0
        %v3187 = vadd.f32 %v1829, %v3186
        %v3188 = vpop.f32.mrb[0].mxu0
        %v3189 = vpop.f32.mrb[0].mxu0
        %v3190 = vadd.f32 %v1829, %v3189
        %v3191 = vpop.f32.mrb[0].mxu0
        %3192 = vmatprep.mubr.bf16.mxu0 0
        %3193 = vmatmul.mubr.bf16.gmra.mrb[0].mxu0 %v2634
        %v3194 = vpop.f32.mrb[0].mxu0
        %v3195 = vadd.f32 %v1829, %v3194
        %v3196 = vpop.f32.mrb[0].mxu0
        %v3197 = vpop.f32.mrb[0].mxu0
        %v3198 = vadd.f32 %v1829, %v3197
        %v3199 = vpop.f32.mrb[0].mxu0
        %3200 = vmatprep.mubr.bf16.mxu0 0
        %3201 = vmatmul.mubr.bf16.gmra.mrb[0].mxu0 %v2637
        %v3202 = vpop.f32.mrb[0].mxu0
        %v3203 = vadd.f32 %v1829, %v3202
        %v3204 = vpop.f32.mrb[0].mxu0
        %v3205 = vpop.f32.mrb[0].mxu0
        %v3206 = vadd.f32 %v1829, %v3205
        %v3207 = vpop.f32.mrb[0].mxu0
        %3208 = vmatprep.mubr.bf16.mxu0 0
        %3209 = vmatmul.mubr.bf16.gmra.mrb[0].mxu0 %v2640
        %v3210 = vpop.f32.mrb[0].mxu0
        %v3211 = vadd.f32 %v1829, %v3210
        %v3212 = vpop.f32.mrb[0].mxu0
        %v3213 = vpop.f32.mrb[0].mxu0
        %v3214 = vadd.f32 %v1829, %v3213
        %v3215 = vpop.f32.mrb[0].mxu0
        %3216 = vmatprep.mubr.bf16.mxu0 0
        %3217 = vmatmul.mubr.bf16.gmra.mrb[0].mxu0 %v2643
        %v3218 = vpop.f32.mrb[0].mxu0
        %v3219 = vadd.f32 %v1829, %v3218
        %v3220 = vpop.f32.mrb[0].mxu0
        %v3221 = vpop.f32.mrb[0].mxu0
        %v3222 = vadd.f32 %v1829, %v3221
        %v3223 = vpop.f32.mrb[0].mxu0
        %3224 = vmatprep.mubr.bf16.mxu0 0
        %3225 = vmatmul.mubr.bf16.gmra.mrb[0].mxu0 %v2646
        %v3226 = vpop.f32.mrb[0].mxu0
        %v3227 = vadd.f32 %v1829, %v3226
        %v3228 = vpop.f32.mrb[0].mxu0
        %v3229 = vpop.f32.mrb[0].mxu0
        %v3230 = vadd.f32 %v1829, %v3229
        %v3231 = vpop.f32.mrb[0].mxu0
        %3232 = vmatprep.mubr.bf16.mxu0 0
        %3233 = vmatmul.mubr.bf16.gmra.mrb[0].mxu0 %v2649
        %v3234 = vpop.f32.mrb[0].mxu0
        %v3235 = vadd.f32 %v1829, %v3234
        %v3236 = vpop.f32.mrb[0].mxu0
        %v3237 = vpop.f32.mrb[0].mxu0
        %v3238 = vadd.f32 %v1829, %v3237
        %v3239 = vpop.f32.mrb[0].mxu0
        %3240 = vmatprep.mubr.bf16.mxu0 0
        %3241 = vmatmul.mubr.bf16.gmra.mrb[0].mxu0 %v2652
        %v3242 = vpop.f32.mrb[0].mxu0
        %v3243 = vadd.f32 %v1829, %v3242
        %v3244 = vpop.f32.mrb[0].mxu0
        %v3245 = vpop.f32.mrb[0].mxu0
        %v3246 = vadd.f32 %v1829, %v3245
        %v3247 = vpop.f32.mrb[0].mxu0
        %3248 = vmatprep.mubr.bf16.mxu0 0
        %3249 = vmatmul.mubr.bf16.gmra.mrb[0].mxu0 %v2655
        %v3250 = vpop.f32.mrb[0].mxu0
        %v3251 = vadd.f32 %v1829, %v3250
        %v3252 = vpop.f32.mrb[0].mxu0
        %v3253 = vpop.f32.mrb[0].mxu0
        %v3254 = vadd.f32 %v1829, %v3253
        %v3255 = vpop.f32.mrb[0].mxu0
        %3256 = vmatprep.mubr.bf16.mxu0 0
        %3257 = vmatmul.mubr.bf16.gmra.mrb[0].mxu0 %v2658
        %v3258 = vpop.f32.mrb[0].mxu0
        %v3259 = vadd.f32 %v1829, %v3258
        %v3260 = vpop.f32.mrb[0].mxu0
        %v3261 = vpop.f32.mrb[0].mxu0
        %v3262 = vadd.f32 %v1829, %v3261
        %v3263 = vpop.f32.mrb[0].mxu0
        %3264 = vmatprep.mubr.bf16.mxu0 0
        %3265 = vmatmul.mubr.bf16.gmra.mrb[0].mxu0 %v2661
        %v3266 = vpop.f32.mrb[0].mxu0
        %v3267 = vadd.f32 %v1829, %v3266
        %v3268 = vpop.f32.mrb[0].mxu0
        %v3269 = vpop.f32.mrb[0].mxu0
        %v3270 = vadd.f32 %v1829, %v3269
        %v3271 = vpop.f32.mrb[0].mxu0
        %3272 = vmatprep.mubr.bf16.mxu0 0
        %3273 = vmatmul.mubr.bf16.gmra.mrb[0].mxu0 %v2664
        %v3274 = vpop.f32.mrb[0].mxu0
        %v3275 = vadd.f32 %v1829, %v3274
        %v3276 = vpop.f32.mrb[0].mxu0
        %v3277 = vpop.f32.mrb[0].mxu0
        %v3278 = vadd.f32 %v1829, %v3277
        %v3279 = vpop.f32.mrb[0].mxu0
        %3280 = vmatprep.mubr.bf16.mxu0 0
        %3281 = vmatmul.mubr.bf16.gmra.mrb[0].mxu0 %v2667
        %v3282 = vpop.f32.mrb[0].mxu0
        %v3283 = vadd.f32 %v1829, %v3282
        %v3284 = vpop.f32.mrb[0].mxu0
        %v3285 = vpop.f32.mrb[0].mxu0
        %v3286 = vadd.f32 %v1829, %v3285
        %v3287 = vpop.f32.mrb[0].mxu0
        %3288 = vmatprep.mubr.bf16.mxu0 0
        %3289 = vmatmul.mubr.bf16.gmra.mrb[0].mxu0 %v2670
        %v3290 = vpop.f32.mrb[0].mxu0
        %v3291 = vadd.f32 %v1829, %v3290
        %v3292 = vpop.f32.mrb[0].mxu0
        %v3293 = vpop.f32.mrb[0].mxu0
        %v3294 = vadd.f32 %v1829, %v3293
        %v3295 = vpop.f32.mrb[0].mxu0
        %3296 = vmatprep.mubr.bf16.mxu0 0
        %3297 = vmatmul.mubr.bf16.gmra.mrb[0].mxu0 %v2673
        %v3298 = vpop.f32.mrb[0].mxu0
        %v3299 = vadd.f32 %v1829, %v3298
        %v3300 = vpop.f32.mrb[0].mxu0
        %v3301 = vpop.f32.mrb[0].mxu0
        %v3302 = vadd.f32 %v1829, %v3301
        %v3303 = vpop.f32.mrb[0].mxu0
        %3304 = vmatprep.mubr.bf16.mxu0 0
        %3305 = vmatmul.mubr.bf16.gmra.mrb[0].mxu0 %v2676
        %v3306 = vpop.f32.mrb[0].mxu0
        %v3307 = vadd.f32 %v1829, %v3306
        %v3308 = vpop.f32.mrb[0].mxu0
        %v3309 = vpop.f32.mrb[0].mxu0
        %v3310 = vadd.f32 %v1829, %v3309
        %v3311 = vpop.f32.mrb[0].mxu0
        %3312 = vmatprep.mubr.bf16.mxu0 0
        %3313 = vmatmul.mubr.bf16.gmra.mrb[0].mxu0 %v2679
        %v3314 = vpop.f32.mrb[0].mxu0
        %v3315 = vadd.f32 %v1829, %v3314
        %v3316 = vpop.f32.mrb[0].mxu0
        %v3317 = vpop.f32.mrb[0].mxu0
        %v3318 = vadd.f32 %v1829, %v3317
        %v3319 = vpop.f32.mrb[0].mxu0
        %3320 = vmatprep.mubr.bf16.mxu0 0
        %3321 = vmatmul.mubr.bf16.gmra.mrb[0].mxu0 %v2682
        %v3322 = vpop.f32.mrb[0].mxu0
        %v3323 = vadd.f32 %v1829, %v3322
        %v3324 = vpop.f32.mrb[0].mxu0
        %v3325 = vpop.f32.mrb[0].mxu0
        %v3326 = vadd.f32 %v1829, %v3325
        %v3327 = vpop.f32.mrb[0].mxu0
        %3328 = vmatprep.mubr.bf16.mxu0 0
        %3329 = vmatmul.mubr.bf16.gmra.mrb[0].mxu0 %v2685
        %v3330 = vpop.f32.mrb[0].mxu0
        %v3331 = vadd.f32 %v1829, %v3330
        %v3332 = vpop.f32.mrb[0].mxu0
        %v3333 = vpop.f32.mrb[0].mxu0
        %v3334 = vadd.f32 %v1829, %v3333
        %v3335 = vpop.f32.mrb[0].mxu0
        %3336 = vmatprep.mubr.bf16.mxu0 0
        %3337 = vmatmul.mubr.bf16.gmra.mrb[0].mxu0 %v2688
        %v3338 = vpop.f32.mrb[0].mxu0
        %v3339 = vadd.f32 %v1829, %v3338
        %v3340 = vpop.f32.mrb[0].mxu0
        %v3341 = vpop.f32.mrb[0].mxu0
        %v3342 = vadd.f32 %v1829, %v3341
        %v3343 = vpop.f32.mrb[0].mxu0
        %3344 = vmatprep.mubr.bf16.mxu0 0
        %3345 = vmatmul.mubr.bf16.gmra.mrb[0].mxu0 %v2691
        %v3346 = vpop.f32.mrb[0].mxu0
        %v3347 = vadd.f32 %v1829, %v3346
        %v3348 = vpop.f32.mrb[0].mxu0
        %v3349 = vpop.f32.mrb[0].mxu0
        %v3350 = vadd.f32 %v1829, %v3349
        %v3351 = vpop.f32.mrb[0].mxu0
        %3352 = vmatprep.mubr.bf16.mxu0 0
        %3353 = vmatmul.mubr.bf16.gmra.mrb[0].mxu0 %v2694
        %v3354 = vpop.f32.mrb[0].mxu0
        %v3355 = vadd.f32 %v1829, %v3354
        %v3356 = vpop.f32.mrb[0].mxu0
        %v3357 = vpop.f32.mrb[0].mxu0
        %v3358 = vadd.f32 %v1829, %v3357
        %v3359 = vpop.f32.mrb[0].mxu0
        %3360 = vmatprep.mubr.bf16.mxu0 0
        %3361 = vmatmul.mubr.bf16.gmra.mrb[0].mxu0 %v2697
        %v3362 = vpop.f32.mrb[0].mxu0
        %v3363 = vadd.f32 %v1829, %v3362
        %v3364 = vpop.f32.mrb[0].mxu0
        %v3365 = vpop.f32.mrb[0].mxu0
        %v3366 = vadd.f32 %v1829, %v3365
        %v3367 = vpop.f32.mrb[0].mxu0
        %3368 = vmatprep.mubr.bf16.mxu0 0
        %3369 = vmatmul.mubr.bf16.gmra.mrb[0].mxu0 %v2700
        %v3370 = vpop.f32.mrb[0].mxu0
        %v3371 = vadd.f32 %v1829, %v3370
        %v3372 = vpop.f32.mrb[0].mxu0
        %v3373 = vpop.f32.mrb[0].mxu0
        %v3374 = vadd.f32 %v1829, %v3373
        %v3375 = vpop.f32.mrb[0].mxu0
        %3376 = vmatprep.mubr.bf16.mxu0 0
        %3377 = vmatmul.mubr.bf16.gmra.mrb[0].mxu0 %v2703
        %v3378 = vpop.f32.mrb[0].mxu0
        %v3379 = vadd.f32 %v1829, %v3378
        %v3380 = vpop.f32.mrb[0].mxu0
        %v3381 = vpop.f32.mrb[0].mxu0
        %v3382 = vadd.f32 %v1829, %v3381
        %v3383 = vpop.f32.mrb[0].mxu0
        %3384 = vmatprep.mubr.bf16.mxu0 0
        %3385 = vmatmul.mubr.bf16.gmra.mrb[0].mxu0 %v2706
        %v3386 = vpop.f32.mrb[0].mxu0
        %v3387 = vadd.f32 %v1829, %v3386
        %v3388 = vpop.f32.mrb[0].mxu0
        %v3389 = vpop.f32.mrb[0].mxu0
        %v3390 = vadd.f32 %v1829, %v3389
        %v3391 = vpop.f32.mrb[0].mxu0
        %3392 = vmatprep.mubr.bf16.mxu0 0
        %3393 = vmatmul.mubr.bf16.gmra.mrb[0].mxu0 %v2709
        %v3394 = vpop.f32.mrb[0].mxu0
        %v3395 = vadd.f32 %v1829, %v3394
        %v3396 = vpop.f32.mrb[0].mxu0
        %v3397 = vpop.f32.mrb[0].mxu0
        %v3398 = vadd.f32 %v1829, %v3397
        %v3399 = vpop.f32.mrb[0].mxu0
        %3400 = vmatprep.mubr.bf16.mxu0 0
        %3401 = vmatmul.mubr.bf16.gmra.mrb[0].mxu0 %v2712
        %v3402 = vpop.f32.mrb[0].mxu0
        %v3403 = vadd.f32 %v1829, %v3402
        %v3404 = vpop.f32.mrb[0].mxu0
        %v3405 = vpop.f32.mrb[0].mxu0
        %v3406 = vadd.f32 %v1829, %v3405
        %v3407 = vpop.f32.mrb[0].mxu0
        %3408 = vmatprep.mubr.bf16.mxu0 0
        %3409 = vmatmul.mubr.bf16.gmra.mrb[0].mxu0 %v2715
        %v3410 = vpop.f32.mrb[0].mxu0
        %v3411 = vadd.f32 %v1829, %v3410
        %v3412 = vpop.f32.mrb[0].mxu0
        %v3413 = vpop.f32.mrb[0].mxu0
        %v3414 = vadd.f32 %v1829, %v3413
        %v3415 = vpop.f32.mrb[0].mxu0
        %3416 = vmatprep.mubr.bf16.mxu0 0
        %3417 = vmatmul.mubr.bf16.gmra.mrb[0].mxu0 %v2718
        %v3418 = vpop.f32.mrb[0].mxu0
        %v3419 = vadd.f32 %v1829, %v3418
        %v3420 = vpop.f32.mrb[0].mxu0
        %v3421 = vpop.f32.mrb[0].mxu0
        %v3422 = vadd.f32 %v1829, %v3421
        %v3423 = vpop.f32.mrb[0].mxu0
        %3424 = vmatprep.mubr.bf16.mxu0 0
        %3425 = vmatmul.mubr.bf16.gmra.mrb[0].mxu0 %v2721
        %v3426 = vpop.f32.mrb[0].mxu0
        %v3427 = vadd.f32 %v1829, %v3426
        %v3428 = vpop.f32.mrb[0].mxu0
        %v3429 = vpop.f32.mrb[0].mxu0
        %v3430 = vadd.f32 %v1829, %v3429
        %v3431 = vpop.f32.mrb[0].mxu0
        %3432 = vmatprep.mubr.bf16.mxu0 0
        %3433 = vmatmul.mubr.bf16.gmra.mrb[0].mxu0 %v2724
        %v3434 = vpop.f32.mrb[0].mxu0
        %v3435 = vadd.f32 %v1829, %v3434
        %v3436 = vpop.f32.mrb[0].mxu0
        %v3437 = vpop.f32.mrb[0].mxu0
        %v3438 = vadd.f32 %v1829, %v3437
        %v3439 = vpop.f32.mrb[0].mxu0
        %3440 = vmatprep.mubr.bf16.mxu0 0
        %3441 = vmatmul.mubr.bf16.gmra.mrb[0].mxu0 %v2727
        %v3442 = vpop.f32.mrb[0].mxu0
        %v3443 = vadd.f32 %v1829, %v3442
        %v3444 = vpop.f32.mrb[0].mxu0
        %v3445 = vpop.f32.mrb[0].mxu0
        %v3446 = vadd.f32 %v1829, %v3445
        %v3447 = vpop.f32.mrb[0].mxu0
        %3448 = vmatprep.mubr.bf16.mxu0 0
        %3449 = vmatmul.mubr.bf16.gmra.mrb[0].mxu0 %v2730
        %v3450 = vpop.f32.mrb[0].mxu0
        %v3451 = vadd.f32 %v1829, %v3450
        %v3452 = vpop.f32.mrb[0].mxu0
        %v3453 = vpop.f32.mrb[0].mxu0
        %v3454 = vadd.f32 %v1829, %v3453
        %v3455 = vpop.f32.mrb[0].mxu0
        %3456 = vmatprep.mubr.bf16.mxu0 0
        %3457 = vmatmul.mubr.bf16.gmra.mrb[0].mxu0 %v2733
        %v3458 = vpop.f32.mrb[0].mxu0
        %v3459 = vadd.f32 %v1829, %v3458
        %v3460 = vpop.f32.mrb[0].mxu0
        %v3461 = vpop.f32.mrb[0].mxu0
        %v3462 = vadd.f32 %v1829, %v3461
        %v3463 = vpop.f32.mrb[0].mxu0
        %3464 = vmatprep.mubr.bf16.mxu0 0
        %3465 = vmatmul.mubr.bf16.gmra.mrb[0].mxu0 %v2736
        %v3466 = vpop.f32.mrb[0].mxu0
        %v3467 = vadd.f32 %v1829, %v3466
        %v3468 = vpop.f32.mrb[0].mxu0
        %v3469 = vpop.f32.mrb[0].mxu0
        %v3470 = vadd.f32 %v1829, %v3469
        %v3471 = vpop.f32.mrb[0].mxu0
        %3472 = vmatprep.mubr.bf16.mxu0 0
        %3473 = vmatmul.mubr.bf16.gmra.mrb[0].mxu0 %v2739
        %v3474 = vpop.f32.mrb[0].mxu0
        %v3475 = vadd.f32 %v1829, %v3474
        %v3476 = vpop.f32.mrb[0].mxu0
        %v3477 = vpop.f32.mrb[0].mxu0
        %v3478 = vadd.f32 %v1829, %v3477
        %v3479 = vpop.f32.mrb[0].mxu0
        %3480 = vmatprep.mubr.bf16.mxu0 0
        %3481 = vmatmul.mubr.bf16.gmra.mrb[0].mxu0 %v2742
        %v3482 = vpop.f32.mrb[0].mxu0
        %v3483 = vadd.f32 %v1829, %v3482
        %v3484 = vpop.f32.mrb[0].mxu0
        %v3485 = vpop.f32.mrb[0].mxu0
        %v3486 = vadd.f32 %v1829, %v3485
        %v3487 = vpop.f32.mrb[0].mxu0
        %3488 = vmatprep.mubr.bf16.mxu0 0
        %3489 = vmatmul.mubr.bf16.gmra.mrb[0].mxu0 %v2745
        %v3490 = vpop.f32.mrb[0].mxu0
        %v3491 = vadd.f32 %v1829, %v3490
        %v3492 = vpop.f32.mrb[0].mxu0
        %v3493 = vpop.f32.mrb[0].mxu0
        %v3494 = vadd.f32 %v1829, %v3493
        %v3495 = vpop.f32.mrb[0].mxu0
        %3496 = vmatprep.mubr.bf16.mxu0 0
        %3497 = vmatmul.mubr.bf16.gmra.mrb[0].mxu0 %v2748
        %v3498 = vpop.f32.mrb[0].mxu0
        %v3499 = vadd.f32 %v1829, %v3498
        %v3500 = vpop.f32.mrb[0].mxu0
        %v3501 = vpop.f32.mrb[0].mxu0
        %v3502 = vadd.f32 %v1829, %v3501
        %v3503 = vpop.f32.mrb[0].mxu0
        %3504 = vmatprep.mubr.bf16.mxu0 0
        %3505 = vmatmul.mubr.bf16.gmra.mrb[0].mxu0 %v2751
        %v3506 = vpop.f32.mrb[0].mxu0
        %v3507 = vadd.f32 %v1829, %v3506
        %v3508 = vpop.f32.mrb[0].mxu0
        %v3509 = vpop.f32.mrb[0].mxu0
        %v3510 = vadd.f32 %v1829, %v3509
        %v3511 = vpop.f32.mrb[0].mxu0
        %3512 = vmatprep.mubr.bf16.mxu0 0
        %3513 = vmatmul.mubr.bf16.gmra.mrb[0].mxu0 %v2754
        %v3514 = vpop.f32.mrb[0].mxu0
        %v3515 = vadd.f32 %v1829, %v3514
        %v3516 = vpop.f32.mrb[0].mxu0
        %v3517 = vpop.f32.mrb[0].mxu0
        %v3518 = vadd.f32 %v1829, %v3517
        %v3519 = vpop.f32.mrb[0].mxu0
        %3520 = vmatprep.mubr.bf16.mxu0 0
        %3521 = vmatmul.mubr.bf16.gmra.mrb[0].mxu0 %v2757
        %v3522 = vpop.f32.mrb[0].mxu0
        %v3523 = vadd.f32 %v1829, %v3522
        %v3524 = vpop.f32.mrb[0].mxu0
        %v3525 = vpop.f32.mrb[0].mxu0
        %v3526 = vadd.f32 %v1829, %v3525
        %v3527 = vpop.f32.mrb[0].mxu0
        %3528 = vmatprep.mubr.bf16.mxu0 0
        %3529 = vmatmul.mubr.bf16.gmra.mrb[0].mxu0 %v2760
        %v3530 = vpop.f32.mrb[0].mxu0
        %v3531 = vadd.f32 %v1829, %v3530
        %v3532 = vpop.f32.mrb[0].mxu0
        %v3533 = vpop.f32.mrb[0].mxu0
        %v3534 = vadd.f32 %v1829, %v3533
        %v3535 = vpop.f32.mrb[0].mxu0
        %3536 = vmatprep.mubr.bf16.mxu0 0
        %3537 = vmatmul.mubr.bf16.gmra.mrb[0].mxu0 %v2763
        %v3538 = vpop.f32.mrb[0].mxu0
        %v3539 = vadd.f32 %v1829, %v3538
        %v3540 = vpop.f32.mrb[0].mxu0
        %v3541 = vpop.f32.mrb[0].mxu0
        %v3542 = vadd.f32 %v1829, %v3541
        %v3543 = vpop.f32.mrb[0].mxu0
        %3544 = vmatprep.mubr.bf16.mxu0 0
        %3545 = vmatmul.mubr.bf16.gmra.mrb[0].mxu0 %v2766
        %v3546 = vpop.f32.mrb[0].mxu0
        %v3547 = vadd.f32 %v1829, %v3546
        %v3548 = vpop.f32.mrb[0].mxu0
        %v3549 = vpop.f32.mrb[0].mxu0
        %v3550 = vadd.f32 %v1829, %v3549
        %v3551 = vpop.f32.mrb[0].mxu0
        %3552 = vmatprep.mubr.bf16.mxu0 0
        %3553 = vmatmul.mubr.bf16.gmra.mrb[0].mxu0 %v2769
        %v3554 = vpop.f32.mrb[0].mxu0
        %v3555 = vadd.f32 %v1829, %v3554
        %v3556 = vpop.f32.mrb[0].mxu0
        %v3557 = vpop.f32.mrb[0].mxu0
        %v3558 = vadd.f32 %v1829, %v3557
        %v3559 = vpop.f32.mrb[0].mxu0
        %3560 = vmatprep.mubr.bf16.mxu0 0
        %3561 = vmatmul.mubr.bf16.gmra.mrb[0].mxu0 %v2772
        %v3562 = vpop.f32.mrb[0].mxu0
        %v3563 = vadd.f32 %v1829, %v3562
        %v3564 = vpop.f32.mrb[0].mxu0
        %v3565 = vpop.f32.mrb[0].mxu0
        %v3566 = vadd.f32 %v1829, %v3565
        %v3567 = vpop.f32.mrb[0].mxu0
        %3568 = vmatprep.mubr.bf16.mxu0 0
        %3569 = vmatmul.mubr.bf16.gmra.mrb[0].mxu0 %v2775
        %v3570 = vpop.f32.mrb[0].mxu0
        %v3571 = vadd.f32 %v1829, %v3570
        %v3572 = vpop.f32.mrb[0].mxu0
        %v3573 = vpop.f32.mrb[0].mxu0
        %v3574 = vadd.f32 %v1829, %v3573
        %v3575 = vpop.f32.mrb[0].mxu0
        %3576 = vmatprep.mubr.bf16.mxu0 0
        %3577 = vmatmul.mubr.bf16.gmra.mrb[0].mxu0 %v2778
        %v3578 = vpop.f32.mrb[0].mxu0
        %v3579 = vadd.f32 %v1829, %v3578
        %v3580 = vpop.f32.mrb[0].mxu0
        %v3581 = vpop.f32.mrb[0].mxu0
        %v3582 = vadd.f32 %v1829, %v3581
        %v3583 = vpop.f32.mrb[0].mxu0
        %3584 = vmatprep.mubr.bf16.mxu0 0
        %3585 = vmatmul.mubr.bf16.gmra.mrb[0].mxu0 %v2781
        %v3586 = vpop.f32.mrb[0].mxu0
        %v3587 = vadd.f32 %v1829, %v3586
        %v3588 = vpop.f32.mrb[0].mxu0
        %v3589 = vpop.f32.mrb[0].mxu0
        %v3590 = vadd.f32 %v1829, %v3589
        %v3591 = vpop.f32.mrb[0].mxu0
        %3592 = vmatprep.mubr.bf16.mxu0 0
        %3593 = vmatmul.mubr.bf16.gmra.mrb[0].mxu0 %v2784
        %v3594 = vpop.f32.mrb[0].mxu0
        %v3595 = vadd.f32 %v1829, %v3594
        %v3596 = vpop.f32.mrb[0].mxu0
        %v3597 = vpop.f32.mrb[0].mxu0
        %v3598 = vadd.f32 %v1829, %v3597
        %v3599 = vpop.f32.mrb[0].mxu0
        %3600 = vmatprep.mubr.bf16.mxu0 0
        %3601 = vmatmul.mubr.bf16.gmra.mrb[0].mxu0 %v2787
        %v3602 = vpop.f32.mrb[0].mxu0
        %v3603 = vadd.f32 %v1829, %v3602
        %v3604 = vpop.f32.mrb[0].mxu0
        %v3605 = vpop.f32.mrb[0].mxu0
        %v3606 = vadd.f32 %v1829, %v3605
        %v3607 = vpop.f32.mrb[0].mxu0
        %3608 = vmatprep.mubr.bf16.mxu0 0
        %3609 = vmatmul.mubr.bf16.gmra.mrb[0].mxu0 %v2790
        %v3610 = vpop.f32.mrb[0].mxu0
        %v3611 = vadd.f32 %v1829, %v3610
        %v3612 = vpop.f32.mrb[0].mxu0
        %v3613 = vpop.f32.mrb[0].mxu0
        %v3614 = vadd.f32 %v1829, %v3613
        %v3615 = vpop.f32.mrb[0].mxu0
        %3616 = vmatprep.mubr.bf16.mxu0 0
        %3617 = vmatmul.mubr.bf16.gmra.mrb[0].mxu0 %v2793
        %v3618 = vpop.f32.mrb[0].mxu0
        %v3619 = vadd.f32 %v1829, %v3618
        %v3620 = vpop.f32.mrb[0].mxu0
        %v3621 = vpop.f32.mrb[0].mxu0
        %v3622 = vadd.f32 %v1829, %v3621
        %v3623 = vpop.f32.mrb[0].mxu0
        %3624 = vmatprep.mubr.bf16.mxu0 0
        %3625 = vmatmul.mubr.bf16.gmra.mrb[0].mxu0 %v2796
        %v3626 = vpop.f32.mrb[0].mxu0
        %v3627 = vadd.f32 %v1829, %v3626
        %v3628 = vpop.f32.mrb[0].mxu0
        %v3629 = vpop.f32.mrb[0].mxu0
        %v3630 = vadd.f32 %v1829, %v3629
        %v3631 = vpop.f32.mrb[0].mxu0
        %3632 = vmatprep.mubr.bf16.mxu0 0
        %3633 = vmatmul.mubr.bf16.gmra.mrb[0].mxu0 %v2799
        %v3634 = vpop.f32.mrb[0].mxu0
        %v3635 = vadd.f32 %v1829, %v3634
        %v3636 = vpop.f32.mrb[0].mxu0
        %v3637 = vpop.f32.mrb[0].mxu0
        %v3638 = vadd.f32 %v1829, %v3637
        %v3639 = vpop.f32.mrb[0].mxu0
        %3640 = vmatprep.mubr.bf16.mxu0 0
        %3641 = vmatmul.mubr.bf16.gmra.mrb[0].mxu0 %v2802
        %v3642 = vpop.f32.mrb[0].mxu0
        %v3643 = vadd.f32 %v1829, %v3642
        %v3644 = vpop.f32.mrb[0].mxu0
        %v3645 = vpop.f32.mrb[0].mxu0
        %v3646 = vadd.f32 %v1829, %v3645
        %v3647 = vpop.f32.mrb[0].mxu0
        %3648 = vmatprep.mubr.bf16.mxu0 0
        %3649 = vmatmul.mubr.bf16.gmra.mrb[0].mxu0 %v2805
        %v3650 = vpop.f32.mrb[0].mxu0
        %v3651 = vadd.f32 %v1829, %v3650
        %v3652 = vpop.f32.mrb[0].mxu0
        %v3653 = vpop.f32.mrb[0].mxu0
        %v3654 = vadd.f32 %v1829, %v3653
        %v3655 = vpop.f32.mrb[0].mxu0
        %3656 = vmatprep.mubr.bf16.mxu0 0
        %3657 = vmatmul.mubr.bf16.gmra.mrb[0].mxu0 %v2808
        %v3658 = vpop.f32.mrb[0].mxu0
        %v3659 = vadd.f32 %v1829, %v3658
        %v3660 = vpop.f32.mrb[0].mxu0
        %v3661 = vpop.f32.mrb[0].mxu0
        %v3662 = vadd.f32 %v1829, %v3661
        %v3663 = vpop.f32.mrb[0].mxu0
        %3664 = vmatprep.mubr.bf16.mxu0 0
        %3665 = vmatmul.mubr.bf16.gmra.mrb[0].mxu0 %v2811
        %v3666 = vpop.f32.mrb[0].mxu0
        %v3667 = vadd.f32 %v1829, %v3666
        %v3668 = vpop.f32.mrb[0].mxu0
        %v3669 = vpop.f32.mrb[0].mxu0
        %v3670 = vadd.f32 %v1829, %v3669
        %v3671 = vpop.f32.mrb[0].mxu0
        %3672 = vmatprep.mubr.bf16.mxu0 0
        %3673 = vmatmul.mubr.bf16.gmra.mrb[0].mxu0 %v2814
        %v3674 = vpop.f32.mrb[0].mxu0
        %v3675 = vadd.f32 %v1829, %v3674
        %v3676 = vpop.f32.mrb[0].mxu0
        %v3677 = vpop.f32.mrb[0].mxu0
        %v3678 = vadd.f32 %v1829, %v3677
        %v3679 = vpop.f32.mrb[0].mxu0
        %3680 = vmatprep.mubr.bf16.mxu0 0
        %3681 = vmatmul.mubr.bf16.gmra.mrb[0].mxu0 %v2817
        %v3682 = vpop.f32.mrb[0].mxu0
        %v3683 = vadd.f32 %v1829, %v3682
        %v3684 = vpop.f32.mrb[0].mxu0
        %v3685 = vpop.f32.mrb[0].mxu0
        %v3686 = vadd.f32 %v1829, %v3685
        %v3687 = vpop.f32.mrb[0].mxu0
        %3688 = vmatprep.mubr.bf16.mxu0 0
        %3689 = vmatmul.mubr.bf16.gmra.mrb[0].mxu0 %v2820
        %v3690 = vpop.f32.mrb[0].mxu0
        %v3691 = vadd.f32 %v1829, %v3690
        %v3692 = vpop.f32.mrb[0].mxu0
        %v3693 = vpop.f32.mrb[0].mxu0
        %v3694 = vadd.f32 %v1829, %v3693
        %v3695 = vpop.f32.mrb[0].mxu0
        %3696 = vmatprep.mubr.bf16.mxu0 0
        %3697 = vmatmul.mubr.bf16.gmra.mrb[0].mxu0 %v2823
        %v3698 = vpop.f32.mrb[0].mxu0
        %v3699 = vadd.f32 %v1829, %v3698
        %v3700 = vpop.f32.mrb[0].mxu0
        %v3701 = vpop.f32.mrb[0].mxu0
        %v3702 = vadd.f32 %v1829, %v3701
        %v3703 = vpop.f32.mrb[0].mxu0
        %3704 = vmatprep.mubr.bf16.mxu0 0
        %3705 = vmatmul.mubr.bf16.gmra.mrb[0].mxu0 %v2826
        %v3706 = vpop.f32.mrb[0].mxu0
        %v3707 = vadd.f32 %v1829, %v3706
        %v3708 = vpop.f32.mrb[0].mxu0
        %v3709 = vpop.f32.mrb[0].mxu0
        %v3710 = vadd.f32 %v1829, %v3709
        %v3711 = vpop.f32.mrb[0].mxu0
        %3712 = vmatprep.mubr.bf16.mxu0 0
        %3713 = vmatmul.mubr.bf16.gmra.mrb[0].mxu0 %v2829
        %v3714 = vpop.f32.mrb[0].mxu0
        %v3715 = vadd.f32 %v1829, %v3714
        %v3716 = vpop.f32.mrb[0].mxu0
        %v3717 = vpop.f32.mrb[0].mxu0
        %v3718 = vadd.f32 %v1829, %v3717
        %v3719 = vpop.f32.mrb[0].mxu0
        %3720 = vmatprep.mubr.bf16.mxu0 0
        %3721 = vmatmul.mubr.bf16.gmra.mrb[0].mxu0 %v2832
        %v3722 = vpop.f32.mrb[0].mxu0
        %v3723 = vadd.f32 %v1829, %v3722
        %v3724 = vpop.f32.mrb[0].mxu0
        %v3725 = vpop.f32.mrb[0].mxu0
        %v3726 = vadd.f32 %v1829, %v3725
        %v3727 = vpop.f32.mrb[0].mxu0
        %3728 = vmatprep.mubr.bf16.mxu0 0
        %3729 = vmatmul.mubr.bf16.gmra.mrb[0].mxu0 %v2835
        %v3730 = vpop.f32.mrb[0].mxu0
        %v3731 = vadd.f32 %v1829, %v3730
        %v3732 = vpop.f32.mrb[0].mxu0
        %v3733 = vpop.f32.mrb[0].mxu0
        %v3734 = vadd.f32 %v1829, %v3733
        %v3735 = vpop.f32.mrb[0].mxu0
        %3736 = vmatprep.mubr.bf16.mxu0 0
        %3737 = vmatmul.mubr.bf16.gmra.mrb[0].mxu0 %v2838
        %v3738 = vpop.f32.mrb[0].mxu0
        %v3739 = vadd.f32 %v1829, %v3738
        %v3740 = vpop.f32.mrb[0].mxu0
        %v3741 = vpop.f32.mrb[0].mxu0
        %v3742 = vadd.f32 %v1829, %v3741
        %v3743 = vpop.f32.mrb[0].mxu0
        %3744 = vmatprep.mubr.bf16.mxu0 0
        %3745 = vmatmul.mubr.bf16.gmra.mrb[0].mxu0 %v2841
        %v3746 = vpop.f32.mrb[0].mxu0
        %v3747 = vadd.f32 %v1829, %v3746
        %v3748 = vpop.f32.mrb[0].mxu0
        %v3749 = vpop.f32.mrb[0].mxu0
        %v3750 = vadd.f32 %v1829, %v3749
        %v3751 = vpop.f32.mrb[0].mxu0
        %3752 = vmatprep.mubr.bf16.mxu0 0
        %3753 = vmatmul.mubr.bf16.gmra.mrb[0].mxu0 %v2844
        %v3754 = vpop.f32.mrb[0].mxu0
        %v3755 = vadd.f32 %v1829, %v3754
        %v3756 = vpop.f32.mrb[0].mxu0
        %v3757 = vpop.f32.mrb[0].mxu0
        %v3758 = vadd.f32 %v1829, %v3757
        %v3759 = vpop.f32.mrb[0].mxu0
        %3760 = vmatprep.mubr.bf16.mxu0 0
        %3761 = vmatmul.mubr.bf16.gmra.mrb[0].mxu0 %v2847
        %v3762 = vpop.f32.mrb[0].mxu0
        %v3763 = vadd.f32 %v1829, %v3762
        %v3764 = vpop.f32.mrb[0].mxu0
        %v3765 = vpop.f32.mrb[0].mxu0
        %v3766 = vadd.f32 %v1829, %v3765
        %v3767 = vpop.f32.mrb[0].mxu0
        %3768 = vmatprep.mubr.bf16.mxu0 0
        %3769 = vmatmul.mubr.bf16.gmra.mrb[0].mxu0 %v2850
        %v3770 = vpop.f32.mrb[0].mxu0
        %v3771 = vadd.f32 %v1829, %v3770
        %v3772 = vpop.f32.mrb[0].mxu0
        %v3773 = vpop.f32.mrb[0].mxu0
        %v3774 = vadd.f32 %v1829, %v3773
        %v3775 = vpop.f32.mrb[0].mxu0
        %3776 = vmatprep.mubr.bf16.mxu0 0
        %3777 = vmatmul.mubr.bf16.gmra.mrb[0].mxu0 %v2853
        %v3778 = vpop.f32.mrb[0].mxu0
        %v3779 = vadd.f32 %v1829, %v3778
        %v3780 = vpop.f32.mrb[0].mxu0
        %v3781 = vpop.f32.mrb[0].mxu0
        %v3782 = vadd.f32 %v1829, %v3781
        %v3783 = vpop.f32.mrb[0].mxu0
        %3784 = vmatprep.mubr.bf16.mxu0 0
        %3785 = vmatmul.mubr.bf16.gmra.mrb[0].mxu0 %v2856
        %v3786 = vpop.f32.mrb[0].mxu0
        %v3787 = vadd.f32 %v1829, %v3786
        %v3788 = vpop.f32.mrb[0].mxu0
        %v3789 = vpop.f32.mrb[0].mxu0
        %v3790 = vadd.f32 %v1829, %v3789
        %v3791 = vpop.f32.mrb[0].mxu0
        %3792 = vmatprep.mubr.bf16.mxu0 0
        %3793 = vmatmul.mubr.bf16.gmra.mrb[0].mxu0 %v2859
        %v3794 = vpop.f32.mrb[0].mxu0
        %v3795 = vadd.f32 %v1829, %v3794
        %v3796 = vpop.f32.mrb[0].mxu0
        %v3797 = vpop.f32.mrb[0].mxu0
        %v3798 = vadd.f32 %v1829, %v3797
        %v3799 = vpop.f32.mrb[0].mxu0
        %3800 = vmatprep.mubr.bf16.mxu0 0
        %3801 = vmatmul.mubr.bf16.gmra.mrb[0].mxu0 %v2862
        %v3802 = vpop.f32.mrb[0].mxu0
        %v3803 = vadd.f32 %v1829, %v3802
        %v3804 = vpop.f32.mrb[0].mxu0
        %v3805 = vpop.f32.mrb[0].mxu0
        %v3806 = vadd.f32 %v1829, %v3805
        %v3807 = vpop.f32.mrb[0].mxu0
        %3808 = vmatprep.mubr.bf16.mxu0 0
        %3809 = vmatmul.mubr.bf16.gmra.mrb[0].mxu0 %v2865
        %v3810 = vpop.f32.mrb[0].mxu0
        %v3811 = vadd.f32 %v1829, %v3810
        %v3812 = vpop.f32.mrb[0].mxu0
        %v3813 = vpop.f32.mrb[0].mxu0
        %v3814 = vadd.f32 %v1829, %v3813
        %v3815 = vpop.f32.mrb[0].mxu0
        %3816 = vmatprep.mubr.bf16.mxu0 0
        %3817 = vmatmul.mubr.bf16.gmra.mrb[0].mxu0 %v2868
        %v3818 = vpop.f32.mrb[0].mxu0
        %v3819 = vadd.f32 %v1829, %v3818
        %v3820 = vpop.f32.mrb[0].mxu0
        %v3821 = vpop.f32.mrb[0].mxu0
        %v3822 = vadd.f32 %v1829, %v3821
        %v3823 = vpop.f32.mrb[0].mxu0
        %3824 = vmatprep.mubr.bf16.mxu0 0
        %3825 = vmatmul.mubr.bf16.gmra.mrb[0].mxu0 %v2871
        %v3826 = vpop.f32.mrb[0].mxu0
        %v3827 = vadd.f32 %v1829, %v3826
        %v3828 = vpop.f32.mrb[0].mxu0
        %v3829 = vpop.f32.mrb[0].mxu0
        %v3830 = vadd.f32 %v1829, %v3829
        %v3831 = vpop.f32.mrb[0].mxu0
        %3832 = vmatprep.mubr.bf16.mxu0 0
        %3833 = vmatmul.mubr.bf16.gmra.mrb[0].mxu0 %v2874
        %v3834 = vpop.f32.mrb[0].mxu0
        %v3835 = vadd.f32 %v1829, %v3834
        %v3836 = vpop.f32.mrb[0].mxu0
        %v3837 = vpop.f32.mrb[0].mxu0
        %v3838 = vadd.f32 %v1829, %v3837
        %v3839 = vpop.f32.mrb[0].mxu0
        %3840 = vmatprep.mubr.bf16.mxu0 0
        %3841 = vmatmul.mubr.bf16.gmra.mrb[0].mxu0 %v2877
        %v3842 = vpop.f32.mrb[0].mxu0
        %v3843 = vadd.f32 %v1829, %v3842
        %v3844 = vpop.f32.mrb[0].mxu0
        %v3845 = vpop.f32.mrb[0].mxu0
        %v3846 = vadd.f32 %v1829, %v3845
        %v3847 = vpop.f32.mrb[0].mxu0
        %3848 = vmatprep.mubr.bf16.mxu0 0
        %3849 = vmatmul.mubr.bf16.gmra.mrb[0].mxu0 %v2880
        %v3850 = vpop.f32.mrb[0].mxu0
        %v3851 = vadd.f32 %v1829, %v3850
        %v3852 = vpop.f32.mrb[0].mxu0
        %v3853 = vpop.f32.mrb[0].mxu0
        %v3854 = vadd.f32 %v1829, %v3853
        %v3855 = vpop.f32.mrb[0].mxu0
        %3856 = vmatprep.mubr.bf16.mxu0 0
        %3857 = vmatmul.mubr.bf16.gmra.mrb[0].mxu0 %v2883
        %v3858 = vpop.f32.mrb[0].mxu0
        %v3859 = vadd.f32 %v1829, %v3858
        %v3860 = vpop.f32.mrb[0].mxu0
        %v3861 = vpop.f32.mrb[0].mxu0
        %v3862 = vadd.f32 %v1829, %v3861
        %v3863 = vpop.f32.mrb[0].mxu0
        %3864 = vmatprep.mubr.bf16.mxu0 0
        %3865 = vmatmul.mubr.bf16.gmra.mrb[0].mxu0 %v2886
        %v3866 = vpop.f32.mrb[0].mxu0
        %v3867 = vadd.f32 %v1829, %v3866
        %v3868 = vpop.f32.mrb[0].mxu0
        %v3869 = vpop.f32.mrb[0].mxu0
        %v3870 = vadd.f32 %v1829, %v3869
        %v3871 = vpop.f32.mrb[0].mxu0
        %3872 = vmatprep.mubr.bf16.mxu0 0
        %3873 = vmatmul.mubr.bf16.gmra.mrb[0].mxu0 %v2889
        %v3874 = vpop.f32.mrb[0].mxu0
        %v3875 = vadd.f32 %v1829, %v3874
        %v3876 = vpop.f32.mrb[0].mxu0
        %v3877 = vpop.f32.mrb[0].mxu0
        %v3878 = vadd.f32 %v1829, %v3877
        %v3879 = vpop.f32.mrb[0].mxu0
        %3880 = vmatprep.mubr.bf16.mxu0 0
        %3881 = vmatmul.mubr.bf16.gmra.mrb[0].mxu0 %v2892
        %v3882 = vpop.f32.mrb[0].mxu0
        %v3883 = vadd.f32 %v1829, %v3882
        %v3884 = vpop.f32.mrb[0].mxu0
        %v3885 = vpop.f32.mrb[0].mxu0
        %v3886 = vadd.f32 %v1829, %v3885
        %v3887 = vpop.f32.mrb[0].mxu0
        %3888 = vmatprep.mubr.bf16.mxu0 0
        %3889 = vmatmul.mubr.bf16.gmra.mrb[0].mxu0 %v2895
        %v3890 = vpop.f32.mrb[0].mxu0
        %v3891 = vadd.f32 %v1829, %v3890
        %v3892 = vpop.f32.mrb[0].mxu0
        %v3893 = vpop.f32.mrb[0].mxu0
        %v3894 = vadd.f32 %v1829, %v3893
        %v3895 = vpop.f32.mrb[0].mxu0
        %3896 = vmatprep.mubr.bf16.mxu0 0
        %3897 = vmatmul.mubr.bf16.gmra.mrb[0].mxu0 %v2898
        %v3898 = vpop.f32.mrb[0].mxu0
        %v3899 = vadd.f32 %v1829, %v3898
        %v3900 = vpop.f32.mrb[0].mxu0
        %v3901 = vpop.f32.mrb[0].mxu0
        %v3902 = vadd.f32 %v1829, %v3901
        %v3903 = vpop.f32.mrb[0].mxu0
        %3904 = vmatprep.mubr.bf16.mxu0 0
        %3905 = vmatmul.mubr.bf16.gmra.mrb[0].mxu0 %v2901
        %v3906 = vpop.f32.mrb[0].mxu0
        %v3907 = vadd.f32 %v1829, %v3906
        %v3908 = vpop.f32.mrb[0].mxu0
        %v3909 = vpop.f32.mrb[0].mxu0
        %v3910 = vadd.f32 %v1829, %v3909
        %v3911 = vpop.f32.mrb[0].mxu0
        %3912 = vmatprep.mubr.bf16.mxu0 0
        %3913 = vmatmul.mubr.bf16.gmra.mrb[0].mxu0 %v2904
        %v3914 = vpop.f32.mrb[0].mxu0
        %v3915 = vadd.f32 %v1829, %v3914
        %v3916 = vpop.f32.mrb[0].mxu0
        %v3917 = vpop.f32.mrb[0].mxu0
        %v3918 = vadd.f32 %v1829, %v3917
        %v3919 = vpop.f32.mrb[0].mxu0
        %3920 = vmatprep.mubr.bf16.mxu0 0
        %3921 = vmatmul.mubr.bf16.gmra.mrb[0].mxu0 %v2907
        %v3922 = vpop.f32.mrb[0].mxu0
        %v3923 = vadd.f32 %v1829, %v3922
        %v3924 = vpop.f32.mrb[0].mxu0
        %v3925 = vpop.f32.mrb[0].mxu0
        %v3926 = vadd.f32 %v1829, %v3925
        %v3927 = vpop.f32.mrb[0].mxu0
        %3928 = vmatprep.mubr.bf16.mxu0 0
        %3929 = vmatmul.mubr.bf16.gmra.mrb[0].mxu0 %v2910
        %v3930 = vpop.f32.mrb[0].mxu0
        %v3931 = vadd.f32 %v1829, %v3930
        %v3932 = vpop.f32.mrb[0].mxu0
        %v3933 = vpop.f32.mrb[0].mxu0
        %v3934 = vadd.f32 %v1829, %v3933
        %v3935 = vpop.f32.mrb[0].mxu0
        %3936 = vmatprep.mubr.bf16.mxu0 0
        %3937 = vmatmul.mubr.bf16.gmra.mrb[0].mxu0 %v2913
        %v3938 = vpop.f32.mrb[0].mxu0
        %v3939 = vadd.f32 %v1829, %v3938
        %v3940 = vpop.f32.mrb[0].mxu0
        %v3941 = vpop.f32.mrb[0].mxu0
        %v3942 = vadd.f32 %v1829, %v3941
        %v3943 = vpop.f32.mrb[0].mxu0
        %3944 = vmatprep.mubr.bf16.mxu0 0
        %3945 = vmatmul.mubr.bf16.gmra.mrb[0].mxu0 %v2916
        %v3946 = vpop.f32.mrb[0].mxu0
        %v3947 = vadd.f32 %v1829, %v3946
        %v3948 = vpop.f32.mrb[0].mxu0
        %v3949 = vpop.f32.mrb[0].mxu0
        %v3950 = vadd.f32 %v1829, %v3949
        %v3951 = vpop.f32.mrb[0].mxu0
        %3952 = vmatprep.mubr.bf16.mxu0 0
        %3953 = vmatmul.mubr.bf16.gmra.mrb[0].mxu0 %v2919
        %v3954 = vpop.f32.mrb[0].mxu0
        %v3955 = vadd.f32 %v1829, %v3954
        %v3956 = vpop.f32.mrb[0].mxu0
        %v3957 = vpop.f32.mrb[0].mxu0
        %v3958 = vadd.f32 %v1829, %v3957
        %v3959 = vpop.f32.mrb[0].mxu0
        %3960 = vmatprep.mubr.bf16.mxu0 0
        %3961 = vmatmul.mubr.bf16.gmra.mrb[0].mxu0 %v2922
        %v3962 = vpop.f32.mrb[0].mxu0
        %v3963 = vadd.f32 %v1829, %v3962
        %v3964 = vpop.f32.mrb[0].mxu0
        %v3965 = vpop.f32.mrb[0].mxu0
        %v3966 = vadd.f32 %v1829, %v3965
        %v3967 = vpop.f32.mrb[0].mxu0
        %3968 = vmatprep.mubr.bf16.mxu0 0
        %3969 = vmatmul.mubr.bf16.gmra.mrb[0].mxu0 %v2925
        %v3970 = vpop.f32.mrb[0].mxu0
        %v3971 = vadd.f32 %v1829, %v3970
        %v3972 = vpop.f32.mrb[0].mxu0
        %v3973 = vpop.f32.mrb[0].mxu0
        %v3974 = vadd.f32 %v1829, %v3973
        %v3975 = vpop.f32.mrb[0].mxu0
        %3976 = vmatprep.mubr.bf16.mxu0 0
        %3977 = vmatmul.mubr.bf16.gmra.mrb[0].mxu0 %v2928
        %v3978 = vpop.f32.mrb[0].mxu0
        %v3979 = vadd.f32 %v1829, %v3978
        %v3980 = vpop.f32.mrb[0].mxu0
        %v3981 = vpop.f32.mrb[0].mxu0
        %v3982 = vadd.f32 %v1829, %v3981
        %v3983 = vpop.f32.mrb[0].mxu0
        %3984 = vmatprep.mubr.bf16.mxu0 0
        %3985 = vmatmul.mubr.bf16.gmra.mrb[0].mxu0 %v2931
        %v3986 = vpop.f32.mrb[0].mxu0
        %v3987 = vadd.f32 %v1829, %v3986
        %v3988 = vpop.f32.mrb[0].mxu0
        %v3989 = vpop.f32.mrb[0].mxu0
        %v3990 = vadd.f32 %v1829, %v3989
        %v3991 = vpop.f32.mrb[0].mxu0
        %3992 = vmatprep.mubr.bf16.mxu0 0
        %3993 = vmatmul.mubr.bf16.gmra.mrb[0].mxu0 %v2934
        %v3994 = vpop.f32.mrb[0].mxu0
        %v3995 = vadd.f32 %v1829, %v3994
        %v3996 = vpop.f32.mrb[0].mxu0
        %v3997 = vpop.f32.mrb[0].mxu0
        %v3998 = vadd.f32 %v1829, %v3997
        %v3999 = vpop.f32.mrb[0].mxu0
        %4000 = vmatprep.mubr.bf16.mxu0 0
        %4001 = vmatmul.mubr.bf16.gmra.mrb[0].mxu0 %v2937
        %v4002 = vpop.f32.mrb[0].mxu0
        %v4003 = vadd.f32 %v1829, %v4002
        %v4004 = vpop.f32.mrb[0].mxu0
        %v4005 = vpop.f32.mrb[0].mxu0
        %v4006 = vadd.f32 %v1829, %v4005
        %v4007 = vpop.f32.mrb[0].mxu0
        %4008 = vmatprep.mubr.bf16.mxu0 0
        %4009 = vmatmul.mubr.bf16.gmra.mrb[0].mxu0 %v2940
        %v4010 = vpop.f32.mrb[0].mxu0
        %v4011 = vadd.f32 %v1829, %v4010
        %v4012 = vpop.f32.mrb[0].mxu0
        %v4013 = vpop.f32.mrb[0].mxu0
        %v4014 = vadd.f32 %v1829, %v4013
        %v4015 = vpop.f32.mrb[0].mxu0
        %4016 = vmatprep.mubr.bf16.mxu0 0
        %4017 = vmatmul.mubr.bf16.gmra.mrb[0].mxu0 %v2943
        %v4018 = vpop.f32.mrb[0].mxu0
        %v4019 = vadd.f32 %v1829, %v4018
        %v4020 = vpop.f32.mrb[0].mxu0
        %v4021 = vpop.f32.mrb[0].mxu0
        %v4022 = vadd.f32 %v1829, %v4021
        %v4023 = vpop.f32.mrb[0].mxu0
        %4024 = vmatprep.mubr.bf16.mxu0 0
        %4025 = vmatmul.mubr.bf16.gmra.mrb[0].mxu0 %v2946
        %v4026 = vpop.f32.mrb[0].mxu0
        %v4027 = vadd.f32 %v1829, %v4026
        %v4028 = vpop.f32.mrb[0].mxu0
        %v4029 = vpop.f32.mrb[0].mxu0
        %v4030 = vadd.f32 %v1829, %v4029
        %v4031 = vpop.f32.mrb[0].mxu0
        %4032 = vmatprep.mubr.bf16.mxu0 0
        %4033 = vmatmul.mubr.bf16.gmra.mrb[0].mxu0 %v2949
        %v4034 = vpop.f32.mrb[0].mxu0
        %v4035 = vadd.f32 %v1829, %v4034
        %v4036 = vpop.f32.mrb[0].mxu0
        %v4037 = vpop.f32.mrb[0].mxu0
        %v4038 = vadd.f32 %v1829, %v4037
        %v4039 = vpop.f32.mrb[0].mxu0
        %4040 = vmatprep.mubr.bf16.mxu0 0
        %4041 = vmatmul.mubr.bf16.gmra.mrb[0].mxu0 %v2952
        %v4042 = vpop.f32.mrb[0].mxu0
        %v4043 = vadd.f32 %v1829, %v4042
        %v4044 = vpop.f32.mrb[0].mxu0
        %v4045 = vpop.f32.mrb[0].mxu0
        %v4046 = vadd.f32 %v1829, %v4045
        %v4047 = vpop.f32.mrb[0].mxu0
        %4048 = vmatprep.mubr.bf16.mxu0 0
        %4049 = vmatmul.mubr.bf16.gmra.mrb[0].mxu0 %v2955
        %v4050 = vpop.f32.mrb[0].mxu0
        %v4051 = vadd.f32 %v1829, %v4050
        %v4052 = vpop.f32.mrb[0].mxu0
        %v4053 = vpop.f32.mrb[0].mxu0
        %v4054 = vadd.f32 %v1829, %v4053
        %v4055 = vpop.f32.mrb[0].mxu0
        %4056 = vmatprep.mubr.bf16.mxu0 0
        %4057 = vmatmul.mubr.bf16.gmra.mrb[0].mxu0 %v2958
        %v4058 = vpop.f32.mrb[0].mxu0
        %v4059 = vadd.f32 %v1829, %v4058
        %v4060 = vpop.f32.mrb[0].mxu0
        %v4061 = vpop.f32.mrb[0].mxu0
        %v4062 = vadd.f32 %v1829, %v4061
        %v4063 = vpop.f32.mrb[0].mxu0
        %4064 = vmatprep.mubr.bf16.mxu0 0
        %4065 = vmatmul.mubr.bf16.gmra.mrb[0].mxu0 %v2961
        %v4066 = vpop.f32.mrb[0].mxu0
        %v4067 = vadd.f32 %v1829, %v4066
        %v4068 = vpop.f32.mrb[0].mxu0
        %v4069 = vpop.f32.mrb[0].mxu0
        %v4070 = vadd.f32 %v1829, %v4069
        %v4071 = vpop.f32.mrb[0].mxu0
        %4072 = vmatprep.mubr.bf16.mxu0 0
        %4073 = vmatmul.mubr.bf16.gmra.mrb[0].mxu0 %v2964
        %v4074 = vpop.f32.mrb[0].mxu0
        %v4075 = vadd.f32 %v1829, %v4074
        %v4076 = vpop.f32.mrb[0].mxu0
        %v4077 = vpop.f32.mrb[0].mxu0
        %v4078 = vadd.f32 %v1829, %v4077
        %v4079 = vpop.f32.mrb[0].mxu0
        %4080 = vmatprep.mubr.bf16.mxu0 0
        %4081 = vmatmul.mubr.bf16.gmra.mrb[0].mxu0 %v2967
        %v4082 = vpop.f32.mrb[0].mxu0
        %v4083 = vadd.f32 %v1829, %v4082
        %v4084 = vpop.f32.mrb[0].mxu0
        %v4085 = vpop.f32.mrb[0].mxu0
        %v4086 = vadd.f32 %v1829, %v4085
        %v4087 = vpop.f32.mrb[0].mxu0
        %4088 = vmatprep.mubr.bf16.mxu0 0
        %4089 = vmatmul.mubr.bf16.gmra.mrb[0].mxu0 %v2970
        %v4090 = vpop.f32.mrb[0].mxu0
        %v4091 = vadd.f32 %v1829, %v4090
        %v4092 = vpop.f32.mrb[0].mxu0
        %v4093 = vpop.f32.mrb[0].mxu0
        %v4094 = vadd.f32 %v1829, %v4093
        %v4095 = vpop.f32.mrb[0].mxu0
        %4096 = vmatprep.mubr.bf16.mxu0 0
        %4097 = vmatmul.mubr.bf16.gmra.mrb[0].mxu0 %v2973
        %v4098 = vpop.f32.mrb[0].mxu0
        %v4099 = vadd.f32 %v1829, %v4098
        %v4100 = vpop.f32.mrb[0].mxu0
        %v4101 = vpop.f32.mrb[0].mxu0
        %v4102 = vadd.f32 %v1829, %v4101
        %v4103 = vpop.f32.mrb[0].mxu0
        %4104 = vmatprep.mubr.bf16.mxu0 0
        %4105 = vmatmul.mubr.bf16.gmra.mrb[0].mxu0 %v2976
        %v4106 = vpop.f32.mrb[0].mxu0
        %v4107 = vadd.f32 %v1829, %v4106
        %v4108 = vpop.f32.mrb[0].mxu0
        %v4109 = vpop.f32.mrb[0].mxu0
        %v4110 = vadd.f32 %v1829, %v4109
        %v4111 = vpop.f32.mrb[0].mxu0
        %4112 = vmatprep.mubr.bf16.mxu0 0
        %4113 = vmatmul.mubr.bf16.gmra.mrb[0].mxu0 %v2979
        %v4114 = vpop.f32.mrb[0].mxu0
        %v4115 = vadd.f32 %v1829, %v4114
        %v4116 = vpop.f32.mrb[0].mxu0
        %v4117 = vpop.f32.mrb[0].mxu0
        %v4118 = vadd.f32 %v1829, %v4117
        %v4119 = vpop.f32.mrb[0].mxu0
        %4120 = vmatprep.mubr.bf16.mxu0 0
        %4121 = vmatmul.mubr.bf16.gmra.mrb[0].mxu0 %v2982
        %v4122 = vpop.f32.mrb[0].mxu0
        %v4123 = vadd.f32 %v1829, %v4122
        %v4124 = vpop.f32.mrb[0].mxu0
        %v4125 = vpop.f32.mrb[0].mxu0
        %v4126 = vadd.f32 %v1829, %v4125
        %v4127 = vpop.f32.mrb[0].mxu0
        %4128 = vmatprep.mubr.bf16.mxu0 0
        %4129 = vmatmul.mubr.bf16.gmra.mrb[0].mxu0 %v2985
        %v4130 = vpop.f32.mrb[0].mxu0
        %v4131 = vadd.f32 %v1829, %v4130
        %v4132 = vpop.f32.mrb[0].mxu0
        %v4133 = vpop.f32.mrb[0].mxu0
        %v4134 = vadd.f32 %v1829, %v4133
        %v4135 = vpop.f32.mrb[0].mxu0
        %4136 = vmatprep.mubr.bf16.mxu0 0
        %4137 = vmatmul.mubr.bf16.gmra.mrb[0].mxu0 %v2988
        %v4138 = vpop.f32.mrb[0].mxu0
        %v4139 = vadd.f32 %v1829, %v4138
        %v4140 = vpop.f32.mrb[0].mxu0
        %v4141 = vpop.f32.mrb[0].mxu0
        %v4142 = vadd.f32 %v1829, %v4141
        %v4143 = vpop.f32.mrb[0].mxu0
        %4144 = vmatprep.mubr.bf16.mxu0 0
        %4145 = vmatmul.mubr.bf16.gmra.mrb[0].mxu0 %v2991
        %v4146 = vpop.f32.mrb[0].mxu0
        %v4147 = vadd.f32 %v1829, %v4146
        %v4148 = vpop.f32.mrb[0].mxu0
        %v4149 = vpop.f32.mrb[0].mxu0
        %v4150 = vadd.f32 %v1829, %v4149
        %v4151 = vpop.f32.mrb[0].mxu0
        %4152 = vmatprep.mubr.bf16.mxu0 0
        %4153 = vmatmul.mubr.bf16.gmra.mrb[0].mxu0 %v2994
        %v4154 = vpop.f32.mrb[0].mxu0
        %v4155 = vadd.f32 %v1829, %v4154
        %v4156 = vpop.f32.mrb[0].mxu0
        %v4157 = vpop.f32.mrb[0].mxu0
        %v4158 = vadd.f32 %v1829, %v4157
        %v4159 = vpop.f32.mrb[0].mxu0
        %4160 = vmatprep.mubr.bf16.mxu0 0
        %4161 = vmatmul.mubr.bf16.gmra.mrb[0].mxu0 %v2997
        %v4162 = vpop.f32.mrb[0].mxu0
        %v4163 = vadd.f32 %v1829, %v4162
        %v4164 = vpop.f32.mrb[0].mxu0
        %v4165 = vpop.f32.mrb[0].mxu0
        %v4166 = vadd.f32 %v1829, %v4165
        %v4167 = vpop.f32.mrb[0].mxu0
        %4168 = vmatprep.mubr.bf16.mxu0 0
        %4169 = vmatmul.mubr.bf16.gmra.mrb[0].mxu0 %v3000
        %v4170 = vpop.f32.mrb[0].mxu0
        %v4171 = vadd.f32 %v1829, %v4170
        %v4172 = vpop.f32.mrb[0].mxu0
        %v4173 = vpop.f32.mrb[0].mxu0
        %v4174 = vadd.f32 %v1829, %v4173
        %v4175 = vpop.f32.mrb[0].mxu0
        %4176 = vmatprep.mubr.bf16.mxu0 0
        %4177 = vmatmul.mubr.bf16.gmra.mrb[0].mxu0 %v3003
        %v4178 = vpop.f32.mrb[0].mxu0
        %v4179 = vadd.f32 %v1829, %v4178
        %v4180 = vpop.f32.mrb[0].mxu0
        %v4181 = vpop.f32.mrb[0].mxu0
        %v4182 = vadd.f32 %v1829, %v4181
        %v4183 = vpop.f32.mrb[0].mxu0
        %4184 = vmatprep.mubr.bf16.mxu0 0
        %4185 = vmatmul.mubr.bf16.gmra.mrb[0].mxu0 %v3006
        %v4186 = vpop.f32.mrb[0].mxu0
        %v4187 = vadd.f32 %v1829, %v4186
        %v4188 = vpop.f32.mrb[0].mxu0
        %v4189 = vpop.f32.mrb[0].mxu0
        %v4190 = vadd.f32 %v1829, %v4189
        %v4191 = vpop.f32.mrb[0].mxu0
        %4192 = vdwg.mxu0
        %v4193 = vmax.f32 %v3043, 0.0
        %v4194 = vmax.f32 %v3046, 0.0
        %v4195 = vmax.f32 %v3051, 0.0
        %v4196 = vmax.f32 %v3054, 0.0
        %v4197 = vmax.f32 %v3059, 0.0
        %v4198 = vmax.f32 %v3062, 0.0
        %v4199 = vmax.f32 %v3067, 0.0
        %v4200 = vmax.f32 %v3070, 0.0
        %v4201 = vmax.f32 %v3075, 0.0
        %v4202 = vmax.f32 %v3078, 0.0
        %v4203 = vmax.f32 %v3083, 0.0
        %v4204 = vmax.f32 %v3086, 0.0
        %v4205 = vmax.f32 %v3091, 0.0
        %v4206 = vmax.f32 %v3094, 0.0
        %v4207 = vmax.f32 %v3099, 0.0
        %v4208 = vmax.f32 %v3102, 0.0
        %v4209 = vmax.f32 %v3107, 0.0
        %v4210 = vmax.f32 %v3110, 0.0
        %v4211 = vmax.f32 %v3115, 0.0
        %v4212 = vmax.f32 %v3118, 0.0
        %v4213 = vmax.f32 %v3123, 0.0
        %v4214 = vmax.f32 %v3126, 0.0
        %v4215 = vmax.f32 %v3131, 0.0
        %v4216 = vmax.f32 %v3134, 0.0
        %v4217 = vmax.f32 %v3139, 0.0
        %v4218 = vmax.f32 %v3142, 0.0
        %v4219 = vmax.f32 %v3147, 0.0
        %v4220 = vmax.f32 %v3150, 0.0
        %v4221 = vmax.f32 %v3155, 0.0
        %v4222 = vmax.f32 %v3158, 0.0
        %v4223 = vmax.f32 %v3163, 0.0
        %v4224 = vmax.f32 %v3166, 0.0
        %v4225 = vmax.f32 %v3171, 0.0
        %v4226 = vmax.f32 %v3174, 0.0
        %v4227 = vmax.f32 %v3179, 0.0
        %v4228 = vmax.f32 %v3182, 0.0
        %v4229 = vmax.f32 %v3187, 0.0
        %v4230 = vmax.f32 %v3190, 0.0
        %v4231 = vmax.f32 %v3195, 0.0
        %v4232 = vmax.f32 %v3198, 0.0
        %v4233 = vmax.f32 %v3203, 0.0
        %v4234 = vmax.f32 %v3206, 0.0
        %v4235 = vmax.f32 %v3211, 0.0
        %v4236 = vmax.f32 %v3214, 0.0
        %v4237 = vmax.f32 %v3219, 0.0
        %v4238 = vmax.f32 %v3222, 0.0
        %v4239 = vmax.f32 %v3227, 0.0
        %v4240 = vmax.f32 %v3230, 0.0
        %v4241 = vmax.f32 %v3235, 0.0
        %v4242 = vmax.f32 %v3238, 0.0
        %v4243 = vmax.f32 %v3243, 0.0
        %v4244 = vmax.f32 %v3246, 0.0
        %v4245 = vmax.f32 %v3251, 0.0
        %v4246 = vmax.f32 %v3254, 0.0
        %v4247 = vmax.f32 %v3259, 0.0
        %v4248 = vmax.f32 %v3262, 0.0
        %v4249 = vmax.f32 %v3267, 0.0
        %v4250 = vmax.f32 %v3270, 0.0
        %v4251 = vmax.f32 %v3275, 0.0
        %v4252 = vmax.f32 %v3278, 0.0
        %v4253 = vmax.f32 %v3283, 0.0
        %v4254 = vmax.f32 %v3286, 0.0
        %v4255 = vmax.f32 %v3291, 0.0
        %v4256 = vmax.f32 %v3294, 0.0
        %v4257 = vmax.f32 %v3299, 0.0
        %v4258 = vmax.f32 %v3302, 0.0
        %v4259 = vmax.f32 %v3307, 0.0
        %v4260 = vmax.f32 %v3310, 0.0
        %v4261 = vmax.f32 %v3315, 0.0
        %v4262 = vmax.f32 %v3318, 0.0
        %v4263 = vmax.f32 %v3323, 0.0
        %v4264 = vmax.f32 %v3326, 0.0
        %v4265 = vmax.f32 %v3331, 0.0
        %v4266 = vmax.f32 %v3334, 0.0
        %v4267 = vmax.f32 %v3339, 0.0
        %v4268 = vmax.f32 %v3342, 0.0
        %v4269 = vmax.f32 %v3347, 0.0
        %v4270 = vmax.f32 %v3350, 0.0
        %v4271 = vmax.f32 %v3355, 0.0
        %v4272 = vmax.f32 %v3358, 0.0
        %v4273 = vmax.f32 %v3363, 0.0
        %v4274 = vmax.f32 %v3366, 0.0
        %v4275 = vmax.f32 %v3371, 0.0
        %v4276 = vmax.f32 %v3374, 0.0
        %v4277 = vmax.f32 %v3379, 0.0
        %v4278 = vmax.f32 %v3382, 0.0
        %v4279 = vmax.f32 %v3387, 0.0
        %v4280 = vmax.f32 %v3390, 0.0
        %v4281 = vmax.f32 %v3395, 0.0
        %v4282 = vmax.f32 %v3398, 0.0
        %v4283 = vmax.f32 %v3403, 0.0
        %v4284 = vmax.f32 %v3406, 0.0
        %v4285 = vmax.f32 %v3411, 0.0
        %v4286 = vmax.f32 %v3414, 0.0
        %v4287 = vmax.f32 %v3419, 0.0
        %v4288 = vmax.f32 %v3422, 0.0
        %v4289 = vmax.f32 %v3427, 0.0
        %v4290 = vmax.f32 %v3430, 0.0
        %v4291 = vmax.f32 %v3435, 0.0
        %v4292 = vmax.f32 %v3438, 0.0
        %v4293 = vmax.f32 %v3443, 0.0
        %v4294 = vmax.f32 %v3446, 0.0
        %v4295 = vmax.f32 %v3451, 0.0
        %v4296 = vmax.f32 %v3454, 0.0
        %v4297 = vmax.f32 %v3459, 0.0
        %v4298 = vmax.f32 %v3462, 0.0
        %v4299 = vmax.f32 %v3467, 0.0
        %v4300 = vmax.f32 %v3470, 0.0
        %v4301 = vmax.f32 %v3475, 0.0
        %v4302 = vmax.f32 %v3478, 0.0
        %v4303 = vmax.f32 %v3483, 0.0
        %v4304 = vmax.f32 %v3486, 0.0
        %v4305 = vmax.f32 %v3491, 0.0
        %v4306 = vmax.f32 %v3494, 0.0
        %v4307 = vmax.f32 %v3499, 0.0
        %v4308 = vmax.f32 %v3502, 0.0
        %v4309 = vmax.f32 %v3507, 0.0
        %v4310 = vmax.f32 %v3510, 0.0
        %v4311 = vmax.f32 %v3515, 0.0
        %v4312 = vmax.f32 %v3518, 0.0
        %v4313 = vmax.f32 %v3523, 0.0
        %v4314 = vmax.f32 %v3526, 0.0
        %v4315 = vmax.f32 %v3531, 0.0
        %v4316 = vmax.f32 %v3534, 0.0
        %v4317 = vmax.f32 %v3539, 0.0
        %v4318 = vmax.f32 %v3542, 0.0
        %v4319 = vmax.f32 %v3547, 0.0
        %v4320 = vmax.f32 %v3550, 0.0
        %v4321 = vmax.f32 %v3555, 0.0
        %v4322 = vmax.f32 %v3558, 0.0
        %v4323 = vmax.f32 %v3563, 0.0
        %v4324 = vmax.f32 %v3566, 0.0
        %v4325 = vmax.f32 %v3571, 0.0
        %v4326 = vmax.f32 %v3574, 0.0
        %v4327 = vmax.f32 %v3579, 0.0
        %v4328 = vmax.f32 %v3582, 0.0
        %v4329 = vmax.f32 %v3587, 0.0
        %v4330 = vmax.f32 %v3590, 0.0
        %v4331 = vmax.f32 %v3595, 0.0
        %v4332 = vmax.f32 %v3598, 0.0
        %v4333 = vmax.f32 %v3603, 0.0
        %v4334 = vmax.f32 %v3606, 0.0
        %v4335 = vmax.f32 %v3611, 0.0
        %v4336 = vmax.f32 %v3614, 0.0
        %v4337 = vmax.f32 %v3619, 0.0
        %v4338 = vmax.f32 %v3622, 0.0
        %v4339 = vmax.f32 %v3627, 0.0
        %v4340 = vmax.f32 %v3630, 0.0
        %v4341 = vmax.f32 %v3635, 0.0
        %v4342 = vmax.f32 %v3638, 0.0
        %v4343 = vmax.f32 %v3643, 0.0
        %v4344 = vmax.f32 %v3646, 0.0
        %v4345 = vmax.f32 %v3651, 0.0
        %v4346 = vmax.f32 %v3654, 0.0
        %v4347 = vmax.f32 %v3659, 0.0
        %v4348 = vmax.f32 %v3662, 0.0
        %v4349 = vmax.f32 %v3667, 0.0
        %v4350 = vmax.f32 %v3670, 0.0
        %v4351 = vmax.f32 %v3675, 0.0
        %v4352 = vmax.f32 %v3678, 0.0
        %v4353 = vmax.f32 %v3683, 0.0
        %v4354 = vmax.f32 %v3686, 0.0
        %v4355 = vmax.f32 %v3691, 0.0
        %v4356 = vmax.f32 %v3694, 0.0
        %v4357 = vmax.f32 %v3699, 0.0
        %v4358 = vmax.f32 %v3702, 0.0
        %v4359 = vmax.f32 %v3707, 0.0
        %v4360 = vmax.f32 %v3710, 0.0
        %v4361 = vmax.f32 %v3715, 0.0
        %v4362 = vmax.f32 %v3718, 0.0
        %v4363 = vmax.f32 %v3723, 0.0
        %v4364 = vmax.f32 %v3726, 0.0
        %v4365 = vmax.f32 %v3731, 0.0
        %v4366 = vmax.f32 %v3734, 0.0
        %v4367 = vmax.f32 %v3739, 0.0
        %v4368 = vmax.f32 %v3742, 0.0
        %v4369 = vmax.f32 %v3747, 0.0
        %v4370 = vmax.f32 %v3750, 0.0
        %v4371 = vmax.f32 %v3755, 0.0
        %v4372 = vmax.f32 %v3758, 0.0
        %v4373 = vmax.f32 %v3763, 0.0
        %v4374 = vmax.f32 %v3766, 0.0
        %v4375 = vmax.f32 %v3771, 0.0
        %v4376 = vmax.f32 %v3774, 0.0
        %v4377 = vmax.f32 %v3779, 0.0
        %v4378 = vmax.f32 %v3782, 0.0
        %v4379 = vmax.f32 %v3787, 0.0
        %v4380 = vmax.f32 %v3790, 0.0
        %v4381 = vmax.f32 %v3795, 0.0
        %v4382 = vmax.f32 %v3798, 0.0
        %v4383 = vmax.f32 %v3803, 0.0
        %v4384 = vmax.f32 %v3806, 0.0
        %v4385 = vmax.f32 %v3811, 0.0
        %v4386 = vmax.f32 %v3814, 0.0
        %v4387 = vmax.f32 %v3819, 0.0
        %v4388 = vmax.f32 %v3822, 0.0
        %v4389 = vmax.f32 %v3827, 0.0
        %v4390 = vmax.f32 %v3830, 0.0
        %v4391 = vmax.f32 %v3835, 0.0
        %v4392 = vmax.f32 %v3838, 0.0
        %v4393 = vmax.f32 %v3843, 0.0
        %v4394 = vmax.f32 %v3846, 0.0
        %v4395 = vmax.f32 %v3851, 0.0
        %v4396 = vmax.f32 %v3854, 0.0
        %v4397 = vmax.f32 %v3859, 0.0
        %v4398 = vmax.f32 %v3862, 0.0
        %v4399 = vmax.f32 %v3867, 0.0
        %v4400 = vmax.f32 %v3870, 0.0
        %v4401 = vmax.f32 %v3875, 0.0
        %v4402 = vmax.f32 %v3878, 0.0
        %v4403 = vmax.f32 %v3883, 0.0
        %v4404 = vmax.f32 %v3886, 0.0
        %v4405 = vmax.f32 %v3891, 0.0
        %v4406 = vmax.f32 %v3894, 0.0
        %v4407 = vmax.f32 %v3899, 0.0
        %v4408 = vmax.f32 %v3902, 0.0
        %v4409 = vmax.f32 %v3907, 0.0
        %v4410 = vmax.f32 %v3910, 0.0
        %v4411 = vmax.f32 %v3915, 0.0
        %v4412 = vmax.f32 %v3918, 0.0
        %v4413 = vmax.f32 %v3923, 0.0
        %v4414 = vmax.f32 %v3926, 0.0
        %v4415 = vmax.f32 %v3931, 0.0
        %v4416 = vmax.f32 %v3934, 0.0
        %v4417 = vmax.f32 %v3939, 0.0
        %v4418 = vmax.f32 %v3942, 0.0
        %v4419 = vmax.f32 %v3947, 0.0
        %v4420 = vmax.f32 %v3950, 0.0
        %v4421 = vmax.f32 %v3955, 0.0
        %v4422 = vmax.f32 %v3958, 0.0
        %v4423 = vmax.f32 %v3963, 0.0
        %v4424 = vmax.f32 %v3966, 0.0
        %v4425 = vmax.f32 %v3971, 0.0
        %v4426 = vmax.f32 %v3974, 0.0
        %v4427 = vmax.f32 %v3979, 0.0
        %v4428 = vmax.f32 %v3982, 0.0
        %v4429 = vmax.f32 %v3987, 0.0
        %v4430 = vmax.f32 %v3990, 0.0
        %v4431 = vmax.f32 %v3995, 0.0
        %v4432 = vmax.f32 %v3998, 0.0
        %v4433 = vmax.f32 %v4003, 0.0
        %v4434 = vmax.f32 %v4006, 0.0
        %v4435 = vmax.f32 %v4011, 0.0
        %v4436 = vmax.f32 %v4014, 0.0
        %v4437 = vmax.f32 %v4019, 0.0
        %v4438 = vmax.f32 %v4022, 0.0
        %v4439 = vmax.f32 %v4027, 0.0
        %v4440 = vmax.f32 %v4030, 0.0
        %v4441 = vmax.f32 %v4035, 0.0
        %v4442 = vmax.f32 %v4038, 0.0
        %v4443 = vmax.f32 %v4043, 0.0
        %v4444 = vmax.f32 %v4046, 0.0
        %v4445 = vmax.f32 %v4051, 0.0
        %v4446 = vmax.f32 %v4054, 0.0
        %v4447 = vmax.f32 %v4059, 0.0
        %v4448 = vmax.f32 %v4062, 0.0
        %v4449 = vmax.f32 %v4067, 0.0
        %v4450 = vmax.f32 %v4070, 0.0
        %v4451 = vmax.f32 %v4075, 0.0
        %v4452 = vmax.f32 %v4078, 0.0
        %v4453 = vmax.f32 %v4083, 0.0
        %v4454 = vmax.f32 %v4086, 0.0
        %v4455 = vmax.f32 %v4091, 0.0
        %v4456 = vmax.f32 %v4094, 0.0
        %v4457 = vmax.f32 %v4099, 0.0
        %v4458 = vmax.f32 %v4102, 0.0
        %v4459 = vmax.f32 %v4107, 0.0
        %v4460 = vmax.f32 %v4110, 0.0
        %v4461 = vmax.f32 %v4115, 0.0
        %v4462 = vmax.f32 %v4118, 0.0
        %v4463 = vmax.f32 %v4123, 0.0
        %v4464 = vmax.f32 %v4126, 0.0
        %v4465 = vmax.f32 %v4131, 0.0
        %v4466 = vmax.f32 %v4134, 0.0
        %v4467 = vmax.f32 %v4139, 0.0
        %v4468 = vmax.f32 %v4142, 0.0
        %v4469 = vmax.f32 %v4147, 0.0
        %v4470 = vmax.f32 %v4150, 0.0
        %v4471 = vmax.f32 %v4155, 0.0
        %v4472 = vmax.f32 %v4158, 0.0
        %v4473 = vmax.f32 %v4163, 0.0
        %v4474 = vmax.f32 %v4166, 0.0
        %v4475 = vmax.f32 %v4171, 0.0
        %v4476 = vmax.f32 %v4174, 0.0
        %v4477 = vmax.f32 %v4179, 0.0
        %v4478 = vmax.f32 %v4182, 0.0
        %v4479 = vmax.f32 %v4187, 0.0
        %v4480 = vmax.f32 %v4190, 0.0
        %v4481 = vpack.c.bf16 %v4194, %v4193
        %v4482 = vpack.c.bf16 %v4196, %v4195
        %v4483 = vpack.c.bf16 %v4198, %v4197
        %v4484 = vpack.c.bf16 %v4200, %v4199
        %v4485 = vpack.c.bf16 %v4202, %v4201
        %v4486 = vpack.c.bf16 %v4204, %v4203
        %v4487 = vpack.c.bf16 %v4206, %v4205
        %v4488 = vpack.c.bf16 %v4208, %v4207
        %v4489 = vpack.c.bf16 %v4210, %v4209
        %v4490 = vpack.c.bf16 %v4212, %v4211
        %v4491 = vpack.c.bf16 %v4214, %v4213
        %v4492 = vpack.c.bf16 %v4216, %v4215
        %v4493 = vpack.c.bf16 %v4218, %v4217
        %v4494 = vpack.c.bf16 %v4220, %v4219
        %v4495 = vpack.c.bf16 %v4222, %v4221
        %v4496 = vpack.c.bf16 %v4224, %v4223
        %v4497 = vpack.c.bf16 %v4226, %v4225
        %v4498 = vpack.c.bf16 %v4228, %v4227
        %v4499 = vpack.c.bf16 %v4230, %v4229
        %v4500 = vpack.c.bf16 %v4232, %v4231
        %v4501 = vpack.c.bf16 %v4234, %v4233
        %v4502 = vpack.c.bf16 %v4236, %v4235
        %v4503 = vpack.c.bf16 %v4238, %v4237
        %v4504 = vpack.c.bf16 %v4240, %v4239
        %v4505 = vpack.c.bf16 %v4242, %v4241
        %v4506 = vpack.c.bf16 %v4244, %v4243
        %v4507 = vpack.c.bf16 %v4246, %v4245
        %v4508 = vpack.c.bf16 %v4248, %v4247
        %v4509 = vpack.c.bf16 %v4250, %v4249
        %v4510 = vpack.c.bf16 %v4252, %v4251
        %v4511 = vpack.c.bf16 %v4254, %v4253
        %v4512 = vpack.c.bf16 %v4256, %v4255
        %v4513 = vpack.c.bf16 %v4258, %v4257
        %v4514 = vpack.c.bf16 %v4260, %v4259
        %v4515 = vpack.c.bf16 %v4262, %v4261
        %v4516 = vpack.c.bf16 %v4264, %v4263
        %v4517 = vpack.c.bf16 %v4266, %v4265
        %v4518 = vpack.c.bf16 %v4268, %v4267
        %v4519 = vpack.c.bf16 %v4270, %v4269
        %v4520 = vpack.c.bf16 %v4272, %v4271
        %v4521 = vpack.c.bf16 %v4274, %v4273
        %v4522 = vpack.c.bf16 %v4276, %v4275
        %v4523 = vpack.c.bf16 %v4278, %v4277
        %v4524 = vpack.c.bf16 %v4280, %v4279
        %v4525 = vpack.c.bf16 %v4282, %v4281
        %v4526 = vpack.c.bf16 %v4284, %v4283
        %v4527 = vpack.c.bf16 %v4286, %v4285
        %v4528 = vpack.c.bf16 %v4288, %v4287
        %v4529 = vpack.c.bf16 %v4290, %v4289
        %v4530 = vpack.c.bf16 %v4292, %v4291
        %v4531 = vpack.c.bf16 %v4294, %v4293
        %v4532 = vpack.c.bf16 %v4296, %v4295
        %v4533 = vpack.c.bf16 %v4298, %v4297
        %v4534 = vpack.c.bf16 %v4300, %v4299
        %v4535 = vpack.c.bf16 %v4302, %v4301
        %v4536 = vpack.c.bf16 %v4304, %v4303
        %v4537 = vpack.c.bf16 %v4306, %v4305
        %v4538 = vpack.c.bf16 %v4308, %v4307
        %v4539 = vpack.c.bf16 %v4310, %v4309
        %v4540 = vpack.c.bf16 %v4312, %v4311
        %v4541 = vpack.c.bf16 %v4314, %v4313
        %v4542 = vpack.c.bf16 %v4316, %v4315
        %v4543 = vpack.c.bf16 %v4318, %v4317
        %v4544 = vpack.c.bf16 %v4320, %v4319
        %v4545 = vpack.c.bf16 %v4322, %v4321
        %v4546 = vpack.c.bf16 %v4324, %v4323
        %v4547 = vpack.c.bf16 %v4326, %v4325
        %v4548 = vpack.c.bf16 %v4328, %v4327
        %v4549 = vpack.c.bf16 %v4330, %v4329
        %v4550 = vpack.c.bf16 %v4332, %v4331
        %v4551 = vpack.c.bf16 %v4334, %v4333
        %v4552 = vpack.c.bf16 %v4336, %v4335
        %v4553 = vpack.c.bf16 %v4338, %v4337
        %v4554 = vpack.c.bf16 %v4340, %v4339
        %v4555 = vpack.c.bf16 %v4342, %v4341
        %v4556 = vpack.c.bf16 %v4344, %v4343
        %v4557 = vpack.c.bf16 %v4346, %v4345
        %v4558 = vpack.c.bf16 %v4348, %v4347
        %v4559 = vpack.c.bf16 %v4350, %v4349
        %v4560 = vpack.c.bf16 %v4352, %v4351
        %v4561 = vpack.c.bf16 %v4354, %v4353
        %v4562 = vpack.c.bf16 %v4356, %v4355
        %v4563 = vpack.c.bf16 %v4358, %v4357
        %v4564 = vpack.c.bf16 %v4360, %v4359
        %v4565 = vpack.c.bf16 %v4362, %v4361
        %v4566 = vpack.c.bf16 %v4364, %v4363
        %v4567 = vpack.c.bf16 %v4366, %v4365
        %v4568 = vpack.c.bf16 %v4368, %v4367
        %v4569 = vpack.c.bf16 %v4370, %v4369
        %v4570 = vpack.c.bf16 %v4372, %v4371
        %v4571 = vpack.c.bf16 %v4374, %v4373
        %v4572 = vpack.c.bf16 %v4376, %v4375
        %v4573 = vpack.c.bf16 %v4378, %v4377
        %v4574 = vpack.c.bf16 %v4380, %v4379
        %v4575 = vpack.c.bf16 %v4382, %v4381
        %v4576 = vpack.c.bf16 %v4384, %v4383
        %v4577 = vpack.c.bf16 %v4386, %v4385
        %v4578 = vpack.c.bf16 %v4388, %v4387
        %v4579 = vpack.c.bf16 %v4390, %v4389
        %v4580 = vpack.c.bf16 %v4392, %v4391
        %v4581 = vpack.c.bf16 %v4394, %v4393
        %v4582 = vpack.c.bf16 %v4396, %v4395
        %v4583 = vpack.c.bf16 %v4398, %v4397
        %v4584 = vpack.c.bf16 %v4400, %v4399
        %v4585 = vpack.c.bf16 %v4402, %v4401
        %v4586 = vpack.c.bf16 %v4404, %v4403
        %v4587 = vpack.c.bf16 %v4406, %v4405
        %v4588 = vpack.c.bf16 %v4408, %v4407
        %v4589 = vpack.c.bf16 %v4410, %v4409
        %v4590 = vpack.c.bf16 %v4412, %v4411
        %v4591 = vpack.c.bf16 %v4414, %v4413
        %v4592 = vpack.c.bf16 %v4416, %v4415
        %v4593 = vpack.c.bf16 %v4418, %v4417
        %v4594 = vpack.c.bf16 %v4420, %v4419
        %v4595 = vpack.c.bf16 %v4422, %v4421
        %v4596 = vpack.c.bf16 %v4424, %v4423
        %v4597 = vpack.c.bf16 %v4426, %v4425
        %v4598 = vpack.c.bf16 %v4428, %v4427
        %v4599 = vpack.c.bf16 %v4430, %v4429
        %v4600 = vpack.c.bf16 %v4432, %v4431
        %v4601 = vpack.c.bf16 %v4434, %v4433
        %v4602 = vpack.c.bf16 %v4436, %v4435
        %v4603 = vpack.c.bf16 %v4438, %v4437
        %v4604 = vpack.c.bf16 %v4440, %v4439
        %v4605 = vpack.c.bf16 %v4442, %v4441
        %v4606 = vpack.c.bf16 %v4444, %v4443
        %v4607 = vpack.c.bf16 %v4446, %v4445
        %v4608 = vpack.c.bf16 %v4448, %v4447
        %v4609 = vpack.c.bf16 %v4450, %v4449
        %v4610 = vpack.c.bf16 %v4452, %v4451
        %v4611 = vpack.c.bf16 %v4454, %v4453
        %v4612 = vpack.c.bf16 %v4456, %v4455
        %v4613 = vpack.c.bf16 %v4458, %v4457
        %v4614 = vpack.c.bf16 %v4460, %v4459
        %v4615 = vpack.c.bf16 %v4462, %v4461
        %v4616 = vpack.c.bf16 %v4464, %v4463
        %v4617 = vpack.c.bf16 %v4466, %v4465
        %v4618 = vpack.c.bf16 %v4468, %v4467
        %v4619 = vpack.c.bf16 %v4470, %v4469
        %v4620 = vpack.c.bf16 %v4472, %v4471
        %v4621 = vpack.c.bf16 %v4474, %v4473
        %v4622 = vpack.c.bf16 %v4476, %v4475
        %v4623 = vpack.c.bf16 %v4478, %v4477
        %v4624 = vpack.c.bf16 %v4480, %v4479
        %4625 = vst [vmem:[#allocation2] sm:$0xff] %v4481
        %4626 = vst [vmem:[#allocation2 + $0x8] sm:$0xff] %v4482
        %4627 = vst [vmem:[#allocation2 + $0x10] sm:$0xff] %v4483
        %4628 = vst [vmem:[#allocation2 + $0x18] sm:$0xff] %v4484
        %4629 = vst [vmem:[#allocation2 + $0x20] sm:$0xff] %v4485
        %4630 = vst [vmem:[#allocation2 + $0x28] sm:$0xff] %v4486
        %4631 = vst [vmem:[#allocation2 + $0x30] sm:$0xff] %v4487
        %4632 = vst [vmem:[#allocation2 + $0x38] sm:$0xff] %v4488
        %4633 = vst [vmem:[#allocation2 + $0x40] sm:$0xff] %v4489
        %4634 = vst [vmem:[#allocation2 + $0x48] sm:$0xff] %v4490
        %4635 = vst [vmem:[#allocation2 + $0x50] sm:$0xff] %v4491
        %4636 = vst [vmem:[#allocation2 + $0x58] sm:$0xff] %v4492
        %4637 = vst [vmem:[#allocation2 + $0x60] sm:$0xff] %v4493
        %4638 = vst [vmem:[#allocation2 + $0x68] sm:$0xff] %v4494
        %4639 = vst [vmem:[#allocation2 + $0x70] sm:$0xff] %v4495
        %4640 = vst [vmem:[#allocation2 + $0x78] sm:$0xff] %v4496
        %4641 = vst [vmem:[#allocation2 + $0x80] sm:$0xff] %v4497
        %4642 = vst [vmem:[#allocation2 + $0x88] sm:$0xff] %v4498
        %4643 = vst [vmem:[#allocation2 + $0x90] sm:$0xff] %v4499
        %4644 = vst [vmem:[#allocation2 + $0x98] sm:$0xff] %v4500
        %4645 = vst [vmem:[#allocation2 + $0xa0] sm:$0xff] %v4501
        %4646 = vst [vmem:[#allocation2 + $0xa8] sm:$0xff] %v4502
        %4647 = vst [vmem:[#allocation2 + $0xb0] sm:$0xff] %v4503
        %4648 = vst [vmem:[#allocation2 + $0xb8] sm:$0xff] %v4504
        %4649 = vst [vmem:[#allocation2 + $0xc0] sm:$0xff] %v4505
        %4650 = vst [vmem:[#allocation2 + $0xc8] sm:$0xff] %v4506
        %4651 = vst [vmem:[#allocation2 + $0xd0] sm:$0xff] %v4507
        %4652 = vst [vmem:[#allocation2 + $0xd8] sm:$0xff] %v4508
        %4653 = vst [vmem:[#allocation2 + $0xe0] sm:$0xff] %v4509
        %4654 = vst [vmem:[#allocation2 + $0xe8] sm:$0xff] %v4510
        %4655 = vst [vmem:[#allocation2 + $0xf0] sm:$0xff] %v4511
        %4656 = vst [vmem:[#allocation2 + $0xf8] sm:$0xff] %v4512
        %4657 = vst [vmem:[#allocation2 + $0x100] sm:$0xff] %v4513
        %4658 = vst [vmem:[#allocation2 + $0x108] sm:$0xff] %v4514
        %4659 = vst [vmem:[#allocation2 + $0x110] sm:$0xff] %v4515
        %4660 = vst [vmem:[#allocation2 + $0x118] sm:$0xff] %v4516
        %4661 = vst [vmem:[#allocation2 + $0x120] sm:$0xff] %v4517
        %4662 = vst [vmem:[#allocation2 + $0x128] sm:$0xff] %v4518
        %4663 = vst [vmem:[#allocation2 + $0x130] sm:$0xff] %v4519
        %4664 = vst [vmem:[#allocation2 + $0x138] sm:$0xff] %v4520
        %4665 = vst [vmem:[#allocation2 + $0x140] sm:$0xff] %v4521
        %4666 = vst [vmem:[#allocation2 + $0x148] sm:$0xff] %v4522
        %4667 = vst [vmem:[#allocation2 + $0x150] sm:$0xff] %v4523
        %4668 = vst [vmem:[#allocation2 + $0x158] sm:$0xff] %v4524
        %4669 = vst [vmem:[#allocation2 + $0x160] sm:$0xff] %v4525
        %4670 = vst [vmem:[#allocation2 + $0x168] sm:$0xff] %v4526
        %4671 = vst [vmem:[#allocation2 + $0x170] sm:$0xff] %v4527
        %4672 = vst [vmem:[#allocation2 + $0x178] sm:$0xff] %v4528
        %4673 = vst [vmem:[#allocation2 + $0x180] sm:$0xff] %v4529
        %4674 = vst [vmem:[#allocation2 + $0x188] sm:$0xff] %v4530
        %4675 = vst [vmem:[#allocation2 + $0x190] sm:$0xff] %v4531
        %4676 = vst [vmem:[#allocation2 + $0x198] sm:$0xff] %v4532
        %4677 = vst [vmem:[#allocation2 + $0x1a0] sm:$0xff] %v4533
        %4678 = vst [vmem:[#allocation2 + $0x1a8] sm:$0xff] %v4534
        %4679 = vst [vmem:[#allocation2 + $0x1b0] sm:$0xff] %v4535
        %4680 = vst [vmem:[#allocation2 + $0x1b8] sm:$0xff] %v4536
        %4681 = vst [vmem:[#allocation2 + $0x1c0] sm:$0xff] %v4537
        %4682 = vst [vmem:[#allocation2 + $0x1c8] sm:$0xff] %v4538
        %4683 = vst [vmem:[#allocation2 + $0x1d0] sm:$0xff] %v4539
        %4684 = vst [vmem:[#allocation2 + $0x1d8] sm:$0xff] %v4540
        %4685 = vst [vmem:[#allocation2 + $0x1e0] sm:$0xff] %v4541
        %4686 = vst [vmem:[#allocation2 + $0x1e8] sm:$0xff] %v4542
        %4687 = vst [vmem:[#allocation2 + $0x1f0] sm:$0xff] %v4543
        %4688 = vst [vmem:[#allocation2 + $0x1f8] sm:$0xff] %v4544
        %4689 = vst [vmem:[#allocation2 + $0x200] sm:$0xff] %v4545
        %4690 = vst [vmem:[#allocation2 + $0x208] sm:$0xff] %v4546
        %4691 = vst [vmem:[#allocation2 + $0x210] sm:$0xff] %v4547
        %4692 = vst [vmem:[#allocation2 + $0x218] sm:$0xff] %v4548
        %4693 = vst [vmem:[#allocation2 + $0x220] sm:$0xff] %v4549
        %4694 = vst [vmem:[#allocation2 + $0x228] sm:$0xff] %v4550
        %4695 = vst [vmem:[#allocation2 + $0x230] sm:$0xff] %v4551
        %4696 = vst [vmem:[#allocation2 + $0x238] sm:$0xff] %v4552
        %4697 = vst [vmem:[#allocation2 + $0x240] sm:$0xff] %v4553
        %4698 = vst [vmem:[#allocation2 + $0x248] sm:$0xff] %v4554
        %4699 = vst [vmem:[#allocation2 + $0x250] sm:$0xff] %v4555
        %4700 = vst [vmem:[#allocation2 + $0x258] sm:$0xff] %v4556
        %4701 = vst [vmem:[#allocation2 + $0x260] sm:$0xff] %v4557
        %4702 = vst [vmem:[#allocation2 + $0x268] sm:$0xff] %v4558
        %4703 = vst [vmem:[#allocation2 + $0x270] sm:$0xff] %v4559
        %4704 = vst [vmem:[#allocation2 + $0x278] sm:$0xff] %v4560
        %4705 = vst [vmem:[#allocation2 + $0x280] sm:$0xff] %v4561
        %4706 = vst [vmem:[#allocation2 + $0x288] sm:$0xff] %v4562
        %4707 = vst [vmem:[#allocation2 + $0x290] sm:$0xff] %v4563
        %4708 = vst [vmem:[#allocation2 + $0x298] sm:$0xff] %v4564
        %4709 = vst [vmem:[#allocation2 + $0x2a0] sm:$0xff] %v4565
        %4710 = vst [vmem:[#allocation2 + $0x2a8] sm:$0xff] %v4566
        %4711 = vst [vmem:[#allocation2 + $0x2b0] sm:$0xff] %v4567
        %4712 = vst [vmem:[#allocation2 + $0x2b8] sm:$0xff] %v4568
        %4713 = vst [vmem:[#allocation2 + $0x2c0] sm:$0xff] %v4569
        %4714 = vst [vmem:[#allocation2 + $0x2c8] sm:$0xff] %v4570
        %4715 = vst [vmem:[#allocation2 + $0x2d0] sm:$0xff] %v4571
        %4716 = vst [vmem:[#allocation2 + $0x2d8] sm:$0xff] %v4572
        %4717 = vst [vmem:[#allocation2 + $0x2e0] sm:$0xff] %v4573
        %4718 = vst [vmem:[#allocation2 + $0x2e8] sm:$0xff] %v4574
        %4719 = vst [vmem:[#allocation2 + $0x2f0] sm:$0xff] %v4575
        %4720 = vst [vmem:[#allocation2 + $0x2f8] sm:$0xff] %v4576
        %4721 = vst [vmem:[#allocation2 + $0x300] sm:$0xff] %v4577
        %4722 = vst [vmem:[#allocation2 + $0x308] sm:$0xff] %v4578
        %4723 = vst [vmem:[#allocation2 + $0x310] sm:$0xff] %v4579
        %4724 = vst [vmem:[#allocation2 + $0x318] sm:$0xff] %v4580
        %4725 = vst [vmem:[#allocation2 + $0x320] sm:$0xff] %v4581
        %4726 = vst [vmem:[#allocation2 + $0x328] sm:$0xff] %v4582
        %4727 = vst [vmem:[#allocation2 + $0x330] sm:$0xff] %v4583
        %4728 = vst [vmem:[#allocation2 + $0x338] sm:$0xff] %v4584
        %4729 = vst [vmem:[#allocation2 + $0x340] sm:$0xff] %v4585
        %4730 = vst [vmem:[#allocation2 + $0x348] sm:$0xff] %v4586
        %4731 = vst [vmem:[#allocation2 + $0x350] sm:$0xff] %v4587
        %4732 = vst [vmem:[#allocation2 + $0x358] sm:$0xff] %v4588
        %4733 = vst [vmem:[#allocation2 + $0x360] sm:$0xff] %v4589
        %4734 = vst [vmem:[#allocation2 + $0x368] sm:$0xff] %v4590
        %4735 = vst [vmem:[#allocation2 + $0x370] sm:$0xff] %v4591
        %4736 = vst [vmem:[#allocation2 + $0x378] sm:$0xff] %v4592
        %4737 = vst [vmem:[#allocation2 + $0x380] sm:$0xff] %v4593
        %4738 = vst [vmem:[#allocation2 + $0x388] sm:$0xff] %v4594
        %4739 = vst [vmem:[#allocation2 + $0x390] sm:$0xff] %v4595
        %4740 = vst [vmem:[#allocation2 + $0x398] sm:$0xff] %v4596
        %4741 = vst [vmem:[#allocation2 + $0x3a0] sm:$0xff] %v4597
        %4742 = vst [vmem:[#allocation2 + $0x3a8] sm:$0xff] %v4598
        %4743 = vst [vmem:[#allocation2 + $0x3b0] sm:$0xff] %v4599
        %4744 = vst [vmem:[#allocation2 + $0x3b8] sm:$0xff] %v4600
        %4745 = vst [vmem:[#allocation2 + $0x3c0] sm:$0xff] %v4601
        %4746 = vst [vmem:[#allocation2 + $0x3c8] sm:$0xff] %v4602
        %4747 = vst [vmem:[#allocation2 + $0x3d0] sm:$0xff] %v4603
        %4748 = vst [vmem:[#allocation2 + $0x3d8] sm:$0xff] %v4604
        %4749 = vst [vmem:[#allocation2 + $0x3e0] sm:$0xff] %v4605
        %4750 = vst [vmem:[#allocation2 + $0x3e8] sm:$0xff] %v4606
        %4751 = vst [vmem:[#allocation2 + $0x3f0] sm:$0xff] %v4607
        %4752 = vst [vmem:[#allocation2 + $0x3f8] sm:$0xff] %v4608
        %4753 = vst [vmem:[#allocation2 + $0x400] sm:$0xff] %v4609
        %4754 = vst [vmem:[#allocation2 + $0x408] sm:$0xff] %v4610
        %4755 = vst [vmem:[#allocation2 + $0x410] sm:$0xff] %v4611
        %4756 = vst [vmem:[#allocation2 + $0x418] sm:$0xff] %v4612
        %4757 = vst [vmem:[#allocation2 + $0x420] sm:$0xff] %v4613
        %4758 = vst [vmem:[#allocation2 + $0x428] sm:$0xff] %v4614
        %4759 = vst [vmem:[#allocation2 + $0x430] sm:$0xff] %v4615
        %4760 = vst [vmem:[#allocation2 + $0x438] sm:$0xff] %v4616
        %4761 = vst [vmem:[#allocation2 + $0x440] sm:$0xff] %v4617
        %4762 = vst [vmem:[#allocation2 + $0x448] sm:$0xff] %v4618
        %4763 = vst [vmem:[#allocation2 + $0x450] sm:$0xff] %v4619
        %4764 = vst [vmem:[#allocation2 + $0x458] sm:$0xff] %v4620
        %4765 = vst [vmem:[#allocation2 + $0x460] sm:$0xff] %v4621
        %4766 = vst [vmem:[#allocation2 + $0x468] sm:$0xff] %v4622
        %4767 = vst [vmem:[#allocation2 + $0x470] sm:$0xff] %v4623
        %4768 = vst [vmem:[#allocation2 + $0x478] sm:$0xff] %v4624
        %v4769 = vlaneseq
        %v4770 = vand.u32 %v4769, 127
        %vm4771 = vcmp.lt.s32.totalorder %v4770, 32
        %vm4772 = vcmp.lt.s32.totalorder %v4770, 64
        %vm4773 = vcmp.lt.s32.totalorder %v4770, 96
        %v4774 = vld [vmem:[#allocation2] sm:$0xff]
        %v4775 = vld [vmem:[#allocation2 + $0x8] sm:$0xff]
        %v4776 = vld [vmem:[#allocation2 + $0x10] sm:$0xff]
        %v4777 = vld [vmem:[#allocation2 + $0x18] sm:$0xff]
        %v4778 = vld [vmem:[#allocation2 + $0x20] sm:$0xff]
        %v4779 = vld [vmem:[#allocation2 + $0x30] sm:$0xff]
        %v4780 = vld [vmem:[#allocation2 + $0x38] sm:$0xff]
        %v4781 = vld [vmem:[#allocation2 + $0x40] sm:$0xff]
        %v4782 = vld [vmem:[#allocation2 + $0x48] sm:$0xff]
        %v4783 = vld [vmem:[#allocation2 + $0x50] sm:$0xff]
        %v4784 = vld [vmem:[#allocation2 + $0x60] sm:$0xff]
        %v4785 = vld [vmem:[#allocation2 + $0x68] sm:$0xff]
        %v4786 = vld [vmem:[#allocation2 + $0x70] sm:$0xff]
        %v4787 = vld [vmem:[#allocation2 + $0x78] sm:$0xff]
        %v4788 = vld [vmem:[#allocation2 + $0x80] sm:$0xff]
        %v4789 = vld [vmem:[#allocation2 + $0x90] sm:$0xff]
        %v4790 = vld [vmem:[#allocation2 + $0x98] sm:$0xff]
        %v4791 = vld [vmem:[#allocation2 + $0xa0] sm:$0xff]
        %v4792 = vld [vmem:[#allocation2 + $0xa8] sm:$0xff]
        %v4793 = vld [vmem:[#allocation2 + $0xb0] sm:$0xff]
        %v4794 = vld [vmem:[#allocation2 + $0xc0] sm:$0xff]
        %v4795 = vld [vmem:[#allocation2 + $0xc8] sm:$0xff]
        %v4796 = vld [vmem:[#allocation2 + $0xd0] sm:$0xff]
        %v4797 = vld [vmem:[#allocation2 + $0xd8] sm:$0xff]
        %v4798 = vld [vmem:[#allocation2 + $0xe0] sm:$0xff]
        %s4799 = scalar_lea.vmem [#allocation2], 8
        %v4800 = vld [vmem:[%s4799] sm:$0xff]
        %v4801 = vld [vmem:[%s4799 + $0x8] sm:$0xff]
        %v4802 = vld [vmem:[%s4799 + $0x10] sm:$0xff]
        %v4803 = vld [vmem:[%s4799 + $0x18] sm:$0xff]
        %v4804 = vld [vmem:[%s4799 + $0x20] sm:$0xff]
        %v4805 = vld [vmem:[%s4799 + $0x30] sm:$0xff]
        %v4806 = vld [vmem:[%s4799 + $0x38] sm:$0xff]
        %v4807 = vld [vmem:[%s4799 + $0x40] sm:$0xff]
        %v4808 = vld [vmem:[%s4799 + $0x48] sm:$0xff]
        %v4809 = vld [vmem:[%s4799 + $0x50] sm:$0xff]
        %v4810 = vld [vmem:[%s4799 + $0x60] sm:$0xff]
        %v4811 = vld [vmem:[%s4799 + $0x68] sm:$0xff]
        %v4812 = vld [vmem:[%s4799 + $0x70] sm:$0xff]
        %v4813 = vld [vmem:[%s4799 + $0x78] sm:$0xff]
        %v4814 = vld [vmem:[%s4799 + $0x80] sm:$0xff]
        %v4815 = vld [vmem:[%s4799 + $0x90] sm:$0xff]
        %v4816 = vld [vmem:[%s4799 + $0x98] sm:$0xff]
        %v4817 = vld [vmem:[%s4799 + $0xa0] sm:$0xff]
        %v4818 = vld [vmem:[%s4799 + $0xa8] sm:$0xff]
        %v4819 = vld [vmem:[%s4799 + $0xb0] sm:$0xff]
        %v4820 = vld [vmem:[%s4799 + $0xc0] sm:$0xff]
        %v4821 = vld [vmem:[%s4799 + $0xc8] sm:$0xff]
        %v4822 = vld [vmem:[%s4799 + $0xd0] sm:$0xff]
        %v4823 = vld [vmem:[%s4799 + $0xd8] sm:$0xff]
        %v4824 = vld [vmem:[%s4799 + $0xe0] sm:$0xff]
        %s4825 = scalar_lea.vmem [#allocation2], 48
        %v4826 = vld [vmem:[%s4825] sm:$0xff]
        %v4827 = vld [vmem:[%s4825 + $0x8] sm:$0xff]
        %v4828 = vld [vmem:[%s4825 + $0x10] sm:$0xff]
        %v4829 = vld [vmem:[%s4825 + $0x18] sm:$0xff]
        %v4830 = vld [vmem:[%s4825 + $0x20] sm:$0xff]
        %v4831 = vld [vmem:[%s4825 + $0x30] sm:$0xff]
        %v4832 = vld [vmem:[%s4825 + $0x38] sm:$0xff]
        %v4833 = vld [vmem:[%s4825 + $0x40] sm:$0xff]
        %v4834 = vld [vmem:[%s4825 + $0x48] sm:$0xff]
        %v4835 = vld [vmem:[%s4825 + $0x50] sm:$0xff]
        %v4836 = vld [vmem:[%s4825 + $0x60] sm:$0xff]
        %v4837 = vld [vmem:[%s4825 + $0x68] sm:$0xff]
        %v4838 = vld [vmem:[%s4825 + $0x70] sm:$0xff]
        %v4839 = vld [vmem:[%s4825 + $0x78] sm:$0xff]
        %v4840 = vld [vmem:[%s4825 + $0x80] sm:$0xff]
        %v4841 = vld [vmem:[%s4825 + $0x90] sm:$0xff]
        %v4842 = vld [vmem:[%s4825 + $0x98] sm:$0xff]
        %v4843 = vld [vmem:[%s4825 + $0xa0] sm:$0xff]
        %v4844 = vld [vmem:[%s4825 + $0xa8] sm:$0xff]
        %v4845 = vld [vmem:[%s4825 + $0xb0] sm:$0xff]
        %v4846 = vld [vmem:[%s4825 + $0xc0] sm:$0xff]
        %v4847 = vld [vmem:[%s4825 + $0xc8] sm:$0xff]
        %v4848 = vld [vmem:[%s4825 + $0xd0] sm:$0xff]
        %v4849 = vld [vmem:[%s4825 + $0xd8] sm:$0xff]
        %v4850 = vld [vmem:[%s4825 + $0xe0] sm:$0xff]
        %s4851 = scalar_lea.vmem [#allocation2], 56
        %v4852 = vld [vmem:[%s4851] sm:$0xff]
        %v4853 = vld [vmem:[%s4851 + $0x8] sm:$0xff]
        %v4854 = vld [vmem:[%s4851 + $0x10] sm:$0xff]
        %v4855 = vld [vmem:[%s4851 + $0x18] sm:$0xff]
        %v4856 = vld [vmem:[%s4851 + $0x20] sm:$0xff]
        %v4857 = vld [vmem:[%s4851 + $0x30] sm:$0xff]
        %v4858 = vld [vmem:[%s4851 + $0x38] sm:$0xff]
        %v4859 = vld [vmem:[%s4851 + $0x40] sm:$0xff]
        %v4860 = vld [vmem:[%s4851 + $0x48] sm:$0xff]
        %v4861 = vld [vmem:[%s4851 + $0x50] sm:$0xff]
        %v4862 = vld [vmem:[%s4851 + $0x60] sm:$0xff]
        %v4863 = vld [vmem:[%s4851 + $0x68] sm:$0xff]
        %v4864 = vld [vmem:[%s4851 + $0x70] sm:$0xff]
        %v4865 = vld [vmem:[%s4851 + $0x78] sm:$0xff]
        %v4866 = vld [vmem:[%s4851 + $0x80] sm:$0xff]
        %v4867 = vld [vmem:[%s4851 + $0x90] sm:$0xff]
        %v4868 = vld [vmem:[%s4851 + $0x98] sm:$0xff]
        %v4869 = vld [vmem:[%s4851 + $0xa0] sm:$0xff]
        %v4870 = vld [vmem:[%s4851 + $0xa8] sm:$0xff]
        %v4871 = vld [vmem:[%s4851 + $0xb0] sm:$0xff]
        %v4872 = vld [vmem:[%s4851 + $0xc0] sm:$0xff]
        %v4873 = vld [vmem:[%s4851 + $0xc8] sm:$0xff]
        %v4874 = vld [vmem:[%s4851 + $0xd0] sm:$0xff]
        %v4875 = vld [vmem:[%s4851 + $0xd8] sm:$0xff]
        %v4876 = vld [vmem:[%s4851 + $0xe0] sm:$0xff]
        %vm4877 = vmpackc.low %vm4773, %vm4773
        %v4878 = vsel %vm4877, 65537, 0
        %v4879 = vlaneseq
        %v4880 = vshrl.u32 %v4879, 7
        %v4881 = vsub.s32 0, %v4880
        %v4882 = vrot.slane %v4878, %v4881
        %vm4883 = vcmp.ne.s16.totalorder %v4882, 0
        %v4884 = vsel %vm4883, %v4826, %v4852
        %v4885 = vsel %vm4883, %v4827, %v4853
        %v4886 = vsel %vm4883, %v4828, %v4854
        %v4887 = vsel %vm4883, %v4829, %v4855
        %v4888 = vsel %vm4883, %v4830, %v4856
        %v4889 = vsel %vm4883, %v4831, %v4857
        %v4890 = vsel %vm4883, %v4832, %v4858
        %v4891 = vsel %vm4883, %v4833, %v4859
        %v4892 = vsel %vm4883, %v4834, %v4860
        %v4893 = vsel %vm4883, %v4835, %v4861
        %v4894 = vsel %vm4883, %v4836, %v4862
        %v4895 = vsel %vm4883, %v4837, %v4863
        %v4896 = vsel %vm4883, %v4838, %v4864
        %v4897 = vsel %vm4883, %v4839, %v4865
        %v4898 = vsel %vm4883, %v4840, %v4866
        %v4899 = vsel %vm4883, %v4841, %v4867
        %v4900 = vsel %vm4883, %v4842, %v4868
        %v4901 = vsel %vm4883, %v4843, %v4869
        %v4902 = vsel %vm4883, %v4844, %v4870
        %v4903 = vsel %vm4883, %v4845, %v4871
        %v4904 = vsel %vm4883, %v4846, %v4872
        %v4905 = vsel %vm4883, %v4847, %v4873
        %v4906 = vsel %vm4883, %v4848, %v4874
        %v4907 = vsel %vm4883, %v4849, %v4875
        %v4908 = vsel %vm4883, %v4850, %v4876
        %vm4909 = vmpackc.low %vm4772, %vm4772
        %v4910 = vsel %vm4909, 65537, 0
        %v4911 = vlaneseq
        %v4912 = vshrl.u32 %v4911, 7
        %v4913 = vsub.s32 0, %v4912
        %v4914 = vrot.slane %v4910, %v4913
        %vm4915 = vcmp.ne.s16.totalorder %v4914, 0
        %v4916 = vsel %vm4915, %v4800, %v4884
        %v4917 = vsel %vm4915, %v4801, %v4885
        %v4918 = vsel %vm4915, %v4802, %v4886
        %v4919 = vsel %vm4915, %v4803, %v4887
        %v4920 = vsel %vm4915, %v4804, %v4888
        %v4921 = vsel %vm4915, %v4805, %v4889
        %v4922 = vsel %vm4915, %v4806, %v4890
        %v4923 = vsel %vm4915, %v4807, %v4891
        %v4924 = vsel %vm4915, %v4808, %v4892
        %v4925 = vsel %vm4915, %v4809, %v4893
        %v4926 = vsel %vm4915, %v4810, %v4894
        %v4927 = vsel %vm4915, %v4811, %v4895
        %v4928 = vsel %vm4915, %v4812, %v4896
        %v4929 = vsel %vm4915, %v4813, %v4897
        %v4930 = vsel %vm4915, %v4814, %v4898
        %v4931 = vsel %vm4915, %v4815, %v4899
        %v4932 = vsel %vm4915, %v4816, %v4900
        %v4933 = vsel %vm4915, %v4817, %v4901
        %v4934 = vsel %vm4915, %v4818, %v4902
        %v4935 = vsel %vm4915, %v4819, %v4903
        %v4936 = vsel %vm4915, %v4820, %v4904
        %v4937 = vsel %vm4915, %v4821, %v4905
        %v4938 = vsel %vm4915, %v4822, %v4906
        %v4939 = vsel %vm4915, %v4823, %v4907
        %v4940 = vsel %vm4915, %v4824, %v4908
        %vm4941 = vmpackc.low %vm4771, %vm4771
        %v4942 = vsel %vm4941, 65537, 0
        %v4943 = vlaneseq
        %v4944 = vshrl.u32 %v4943, 7
        %v4945 = vsub.s32 0, %v4944
        %v4946 = vrot.slane %v4942, %v4945
        %vm4947 = vcmp.ne.s16.totalorder %v4946, 0
        %v4948 = vsel %vm4947, %v4774, %v4916
        %v4949 = vsel %vm4947, %v4775, %v4917
        %v4950 = vsel %vm4947, %v4776, %v4918
        %v4951 = vsel %vm4947, %v4777, %v4919
        %v4952 = vsel %vm4947, %v4778, %v4920
        %v4953 = vsel %vm4947, %v4779, %v4921
        %v4954 = vsel %vm4947, %v4780, %v4922
        %v4955 = vsel %vm4947, %v4781, %v4923
        %v4956 = vsel %vm4947, %v4782, %v4924
        %v4957 = vsel %vm4947, %v4783, %v4925
        %v4958 = vsel %vm4947, %v4784, %v4926
        %v4959 = vsel %vm4947, %v4785, %v4927
        %v4960 = vsel %vm4947, %v4786, %v4928
        %v4961 = vsel %vm4947, %v4787, %v4929
        %v4962 = vsel %vm4947, %v4788, %v4930
        %v4963 = vsel %vm4947, %v4789, %v4931
        %v4964 = vsel %vm4947, %v4790, %v4932
        %v4965 = vsel %vm4947, %v4791, %v4933
        %v4966 = vsel %vm4947, %v4792, %v4934
        %v4967 = vsel %vm4947, %v4793, %v4935
        %v4968 = vsel %vm4947, %v4794, %v4936
        %v4969 = vsel %vm4947, %v4795, %v4937
        %v4970 = vsel %vm4947, %v4796, %v4938
        %v4971 = vsel %vm4947, %v4797, %v4939
        %v4972 = vsel %vm4947, %v4798, %v4940
        %v4973 = vld [vmem:[%s3] sm:$0xf]
        %v4974 = vld [vmem:[%s3 + $0x4] sm:$0xf]
        %v4975 = vld [vmem:[%s3 + $0x8] sm:$0xf]
        %v4976 = vld [vmem:[%s3 + $0xc] sm:$0xf]
        %v4977 = vld [vmem:[%s3 + $0x10] sm:$0xf]
        %v4978 = vld [vmem:[%s3 + $0x14] sm:$0xf]
        %v4979 = vld [vmem:[%s3 + $0x18] sm:$0xf]
        %v4980 = vld [vmem:[%s3 + $0x1c] sm:$0xf]
        %v4981 = vld [vmem:[%s3 + $0x20] sm:$0xf]
        %v4982 = vld [vmem:[%s3 + $0x24] sm:$0xf]
        %v4983 = vld [vmem:[%s3 + $0x28] sm:$0xf]
        %v4984 = vld [vmem:[%s3 + $0x2c] sm:$0xf]
        %v4985 = vld [vmem:[%s3 + $0x30] sm:$0xf]
        %v4986 = vld [vmem:[%s3 + $0x34] sm:$0xf]
        %v4987 = vld [vmem:[%s3 + $0x38] sm:$0xf]
        %v4988 = vld [vmem:[%s3 + $0x3c] sm:$0xf]
        %v4989 = vld [vmem:[%s4] sm:$0x1]
        %v4991 = vlaneseq
        %v4992 = vshrl.u32 %v4991, 7
        %v4993 = vsub.s32 0, %v4992
        %v4994 = vrot.slane %v4989, %v4993
        %v5012 = vunpack.c.l.b16 %v4973
        %v5013 = vunpack.c.l.b16 %v4974
        %v5014 = vunpack.c.l.b16 %v4975
        %v5015 = vunpack.c.l.b16 %v4976
        %v5016 = vunpack.c.l.b16 %v4977
        %v5017 = vunpack.c.l.b16 %v4978
        %v5018 = vunpack.c.l.b16 %v4979
        %v5019 = vunpack.c.l.b16 %v4980
        %v5020 = vunpack.c.l.b16 %v4981
        %v5021 = vunpack.c.l.b16 %v4982
        %v5022 = vunpack.c.l.b16 %v4983
        %v5023 = vunpack.c.l.b16 %v4984
        %v5024 = vunpack.c.l.b16 %v4985
        %v5025 = vunpack.c.l.b16 %v4986
        %v5026 = vunpack.c.l.b16 %v4987
        %v5027 = vunpack.c.l.b16 %v4988
        %v5028 = vpack.c.b16 %v5013, %v5012
        %v5029 = vpack.c.b16 %v5015, %v5014
        %v5030 = vpack.c.b16 %v5017, %v5016
        %v5031 = vpack.c.b16 %v5019, %v5018
        %v5032 = vpack.c.b16 %v5021, %v5020
        %v5033 = vpack.c.b16 %v5023, %v5022
        %v5034 = vpack.c.b16 %v5025, %v5024
        %v5035 = vpack.c.b16 %v5027, %v5026
        %5044 = vmatprep.subr.bf16.mxu0 0
        %5045 = vmatpush1.bf16.msra.mxu0 %v5028
        %5046 = vmatprep.subr.bf16.mxu0 0
        %5047 = vmatpush1.bf16.msra.mxu0 %v5029
        %5048 = vmatprep.subr.bf16.mxu0 0
        %5049 = vmatpush1.bf16.msra.mxu0 %v5030
        %5050 = vmatprep.subr.bf16.mxu0 0
        %5051 = vmatpush1.bf16.msra.mxu0 %v5031
        %5052 = vmatprep.subr.bf16.mxu0 0
        %5053 = vmatpush1.bf16.msra.mxu0 %v5032
        %5054 = vmatprep.subr.bf16.mxu0 0
        %5055 = vmatpush1.bf16.msra.mxu0 %v5033
        %5056 = vmatprep.subr.bf16.mxu0 0
        %5057 = vmatpush1.bf16.msra.mxu0 %v5034
        %5058 = vmatprep.subr.bf16.mxu0 0
        %5059 = vmatpush1.bf16.msra.mxu0 %v5035
        %5060 = vmatprep.subr.bf16.mxu0 0
        %5061 = vmatpush1.bf16.msra.mxu0 0
        %5062 = vmatprep.subr.bf16.mxu0 0
        %5063 = vmatpush1.bf16.msra.mxu0 0
        %5064 = vmatprep.subr.bf16.mxu0 0
        %5065 = vmatpush1.bf16.msra.mxu0 0
        %5066 = vmatprep.subr.bf16.mxu0 0
        %5067 = vmatpush1.bf16.msra.mxu0 0
        %5068 = vmatprep.subr.bf16.mxu0 0
        %5069 = vmatpush1.bf16.msra.mxu0 0
        %5070 = vmatprep.subr.bf16.mxu0 0
        %5071 = vmatpush1.bf16.msra.mxu0 0
        %5072 = vmatprep.subr.bf16.mxu0 0
        %5073 = vmatpush1.bf16.msra.mxu0 0
        %5074 = vmatprep.subr.bf16.mxu0 0
        %5075 = vmatpush1.bf16.msra.mxu0 0
        %5076 = vmatprep.mubr.bf16.mxu0 0
        %5077 = vmatmul.mubr.bf16.gmra.mrb[0].mxu0 %v4948
        %v5078 = vpop.f32.mrb[0].mxu0
        %v5079 = vadd.f32 %v4994, %v5078
        %v5080 = vpop.f32.mrb[0].mxu0
        %v5081 = vpop.f32.mrb[0].mxu0
        %v5082 = vadd.f32 %v4994, %v5081
        %v5083 = vpop.f32.mrb[0].mxu0
        %5084 = vmatprep.mubr.bf16.mxu0 0
        %5085 = vmatmul.mubr.bf16.gmra.mrb[0].mxu0 %v4949
        %v5086 = vpop.f32.mrb[0].mxu0
        %v5087 = vadd.f32 %v4994, %v5086
        %v5088 = vpop.f32.mrb[0].mxu0
        %v5089 = vpop.f32.mrb[0].mxu0
        %v5090 = vadd.f32 %v4994, %v5089
        %v5091 = vpop.f32.mrb[0].mxu0
        %5092 = vmatprep.mubr.bf16.mxu0 0
        %5093 = vmatmul.mubr.bf16.gmra.mrb[0].mxu0 %v4950
        %v5094 = vpop.f32.mrb[0].mxu0
        %v5095 = vadd.f32 %v4994, %v5094
        %v5096 = vpop.f32.mrb[0].mxu0
        %v5097 = vpop.f32.mrb[0].mxu0
        %v5098 = vadd.f32 %v4994, %v5097
        %v5099 = vpop.f32.mrb[0].mxu0
        %5100 = vmatprep.mubr.bf16.mxu0 0
        %5101 = vmatmul.mubr.bf16.gmra.mrb[0].mxu0 %v4951
        %v5102 = vpop.f32.mrb[0].mxu0
        %v5103 = vadd.f32 %v4994, %v5102
        %v5104 = vpop.f32.mrb[0].mxu0
        %v5105 = vpop.f32.mrb[0].mxu0
        %v5106 = vadd.f32 %v4994, %v5105
        %v5107 = vpop.f32.mrb[0].mxu0
        %5108 = vmatprep.mubr.bf16.mxu0 0
        %5109 = vmatmul.mubr.bf16.gmra.mrb[0].mxu0 %v4952
        %v5110 = vpop.f32.mrb[0].mxu0
        %v5111 = vadd.f32 %v4994, %v5110
        %v5112 = vpop.f32.mrb[0].mxu0
        %v5113 = vpop.f32.mrb[0].mxu0
        %v5114 = vadd.f32 %v4994, %v5113
        %v5115 = vpop.f32.mrb[0].mxu0
        %5116 = vmatprep.mubr.bf16.mxu0 0
        %5117 = vmatmul.mubr.bf16.gmra.mrb[0].mxu0 %v4953
        %v5118 = vpop.f32.mrb[0].mxu0
        %v5119 = vadd.f32 %v4994, %v5118
        %v5120 = vpop.f32.mrb[0].mxu0
        %v5121 = vpop.f32.mrb[0].mxu0
        %v5122 = vadd.f32 %v4994, %v5121
        %v5123 = vpop.f32.mrb[0].mxu0
        %5124 = vmatprep.mubr.bf16.mxu0 0
        %5125 = vmatmul.mubr.bf16.gmra.mrb[0].mxu0 %v4954
        %v5126 = vpop.f32.mrb[0].mxu0
        %v5127 = vadd.f32 %v4994, %v5126
        %v5128 = vpop.f32.mrb[0].mxu0
        %v5129 = vpop.f32.mrb[0].mxu0
        %v5130 = vadd.f32 %v4994, %v5129
        %v5131 = vpop.f32.mrb[0].mxu0
        %5132 = vmatprep.mubr.bf16.mxu0 0
        %5133 = vmatmul.mubr.bf16.gmra.mrb[0].mxu0 %v4955
        %v5134 = vpop.f32.mrb[0].mxu0
        %v5135 = vadd.f32 %v4994, %v5134
        %v5136 = vpop.f32.mrb[0].mxu0
        %v5137 = vpop.f32.mrb[0].mxu0
        %v5138 = vadd.f32 %v4994, %v5137
        %v5139 = vpop.f32.mrb[0].mxu0
        %5140 = vmatprep.mubr.bf16.mxu0 0
        %5141 = vmatmul.mubr.bf16.gmra.mrb[0].mxu0 %v4956
        %v5142 = vpop.f32.mrb[0].mxu0
        %v5143 = vadd.f32 %v4994, %v5142
        %v5144 = vpop.f32.mrb[0].mxu0
        %v5145 = vpop.f32.mrb[0].mxu0
        %v5146 = vadd.f32 %v4994, %v5145
        %v5147 = vpop.f32.mrb[0].mxu0
        %5148 = vmatprep.mubr.bf16.mxu0 0
        %5149 = vmatmul.mubr.bf16.gmra.mrb[0].mxu0 %v4957
        %v5150 = vpop.f32.mrb[0].mxu0
        %v5151 = vadd.f32 %v4994, %v5150
        %v5152 = vpop.f32.mrb[0].mxu0
        %v5153 = vpop.f32.mrb[0].mxu0
        %v5154 = vadd.f32 %v4994, %v5153
        %v5155 = vpop.f32.mrb[0].mxu0
        %5156 = vmatprep.mubr.bf16.mxu0 0
        %5157 = vmatmul.mubr.bf16.gmra.mrb[0].mxu0 %v4958
        %v5158 = vpop.f32.mrb[0].mxu0
        %v5159 = vadd.f32 %v4994, %v5158
        %v5160 = vpop.f32.mrb[0].mxu0
        %v5161 = vpop.f32.mrb[0].mxu0
        %v5162 = vadd.f32 %v4994, %v5161
        %v5163 = vpop.f32.mrb[0].mxu0
        %5164 = vmatprep.mubr.bf16.mxu0 0
        %5165 = vmatmul.mubr.bf16.gmra.mrb[0].mxu0 %v4959
        %v5166 = vpop.f32.mrb[0].mxu0
        %v5167 = vadd.f32 %v4994, %v5166
        %v5168 = vpop.f32.mrb[0].mxu0
        %v5169 = vpop.f32.mrb[0].mxu0
        %v5170 = vadd.f32 %v4994, %v5169
        %v5171 = vpop.f32.mrb[0].mxu0
        %5172 = vmatprep.mubr.bf16.mxu0 0
        %5173 = vmatmul.mubr.bf16.gmra.mrb[0].mxu0 %v4960
        %v5174 = vpop.f32.mrb[0].mxu0
        %v5175 = vadd.f32 %v4994, %v5174
        %v5176 = vpop.f32.mrb[0].mxu0
        %v5177 = vpop.f32.mrb[0].mxu0
        %v5178 = vadd.f32 %v4994, %v5177
        %v5179 = vpop.f32.mrb[0].mxu0
        %5180 = vmatprep.mubr.bf16.mxu0 0
        %5181 = vmatmul.mubr.bf16.gmra.mrb[0].mxu0 %v4961
        %v5182 = vpop.f32.mrb[0].mxu0
        %v5183 = vadd.f32 %v4994, %v5182
        %v5184 = vpop.f32.mrb[0].mxu0
        %v5185 = vpop.f32.mrb[0].mxu0
        %v5186 = vadd.f32 %v4994, %v5185
        %v5187 = vpop.f32.mrb[0].mxu0
        %5188 = vmatprep.mubr.bf16.mxu0 0
        %5189 = vmatmul.mubr.bf16.gmra.mrb[0].mxu0 %v4962
        %v5190 = vpop.f32.mrb[0].mxu0
        %v5191 = vadd.f32 %v4994, %v5190
        %v5192 = vpop.f32.mrb[0].mxu0
        %v5193 = vpop.f32.mrb[0].mxu0
        %v5194 = vadd.f32 %v4994, %v5193
        %v5195 = vpop.f32.mrb[0].mxu0
        %5196 = vmatprep.mubr.bf16.mxu0 0
        %5197 = vmatmul.mubr.bf16.gmra.mrb[0].mxu0 %v4963
        %v5198 = vpop.f32.mrb[0].mxu0
        %v5199 = vadd.f32 %v4994, %v5198
        %v5200 = vpop.f32.mrb[0].mxu0
        %v5201 = vpop.f32.mrb[0].mxu0
        %v5202 = vadd.f32 %v4994, %v5201
        %v5203 = vpop.f32.mrb[0].mxu0
        %5204 = vmatprep.mubr.bf16.mxu0 0
        %5205 = vmatmul.mubr.bf16.gmra.mrb[0].mxu0 %v4964
        %v5206 = vpop.f32.mrb[0].mxu0
        %v5207 = vadd.f32 %v4994, %v5206
        %v5208 = vpop.f32.mrb[0].mxu0
        %v5209 = vpop.f32.mrb[0].mxu0
        %v5210 = vadd.f32 %v4994, %v5209
        %v5211 = vpop.f32.mrb[0].mxu0
        %5212 = vmatprep.mubr.bf16.mxu0 0
        %5213 = vmatmul.mubr.bf16.gmra.mrb[0].mxu0 %v4965
        %v5214 = vpop.f32.mrb[0].mxu0
        %v5215 = vadd.f32 %v4994, %v5214
        %v5216 = vpop.f32.mrb[0].mxu0
        %v5217 = vpop.f32.mrb[0].mxu0
        %v5218 = vadd.f32 %v4994, %v5217
        %v5219 = vpop.f32.mrb[0].mxu0
        %5220 = vmatprep.mubr.bf16.mxu0 0
        %5221 = vmatmul.mubr.bf16.gmra.mrb[0].mxu0 %v4966
        %v5222 = vpop.f32.mrb[0].mxu0
        %v5223 = vadd.f32 %v4994, %v5222
        %v5224 = vpop.f32.mrb[0].mxu0
        %v5225 = vpop.f32.mrb[0].mxu0
        %v5226 = vadd.f32 %v4994, %v5225
        %v5227 = vpop.f32.mrb[0].mxu0
        %5228 = vmatprep.mubr.bf16.mxu0 0
        %5229 = vmatmul.mubr.bf16.gmra.mrb[0].mxu0 %v4967
        %v5230 = vpop.f32.mrb[0].mxu0
        %v5231 = vadd.f32 %v4994, %v5230
        %v5232 = vpop.f32.mrb[0].mxu0
        %v5233 = vpop.f32.mrb[0].mxu0
        %v5234 = vadd.f32 %v4994, %v5233
        %v5235 = vpop.f32.mrb[0].mxu0
        %5236 = vmatprep.mubr.bf16.mxu0 0
        %5237 = vmatmul.mubr.bf16.gmra.mrb[0].mxu0 %v4968
        %v5238 = vpop.f32.mrb[0].mxu0
        %v5239 = vadd.f32 %v4994, %v5238
        %v5240 = vpop.f32.mrb[0].mxu0
        %v5241 = vpop.f32.mrb[0].mxu0
        %v5242 = vadd.f32 %v4994, %v5241
        %v5243 = vpop.f32.mrb[0].mxu0
        %5244 = vmatprep.mubr.bf16.mxu0 0
        %5245 = vmatmul.mubr.bf16.gmra.mrb[0].mxu0 %v4969
        %v5246 = vpop.f32.mrb[0].mxu0
        %v5247 = vadd.f32 %v4994, %v5246
        %v5248 = vpop.f32.mrb[0].mxu0
        %v5249 = vpop.f32.mrb[0].mxu0
        %v5250 = vadd.f32 %v4994, %v5249
        %v5251 = vpop.f32.mrb[0].mxu0
        %5252 = vmatprep.mubr.bf16.mxu0 0
        %5253 = vmatmul.mubr.bf16.gmra.mrb[0].mxu0 %v4970
        %v5254 = vpop.f32.mrb[0].mxu0
        %v5255 = vadd.f32 %v4994, %v5254
        %v5256 = vpop.f32.mrb[0].mxu0
        %v5257 = vpop.f32.mrb[0].mxu0
        %v5258 = vadd.f32 %v4994, %v5257
        %v5259 = vpop.f32.mrb[0].mxu0
        %5260 = vmatprep.mubr.bf16.mxu0 0
        %5261 = vmatmul.mubr.bf16.gmra.mrb[0].mxu0 %v4971
        %v5262 = vpop.f32.mrb[0].mxu0
        %v5263 = vadd.f32 %v4994, %v5262
        %v5264 = vpop.f32.mrb[0].mxu0
        %v5265 = vpop.f32.mrb[0].mxu0
        %v5266 = vadd.f32 %v4994, %v5265
        %v5267 = vpop.f32.mrb[0].mxu0
        %5268 = vmatprep.mubr.bf16.mxu0 0
        %5269 = vmatmul.mubr.bf16.gmra.mrb[0].mxu0 %v4972
        %v5270 = vpop.f32.mrb[0].mxu0
        %v5271 = vadd.f32 %v4994, %v5270
        %v5272 = vpop.f32.mrb[0].mxu0
        %v5273 = vpop.f32.mrb[0].mxu0
        %v5274 = vadd.f32 %v4994, %v5273
        %v5275 = vpop.f32.mrb[0].mxu0
        %5276 = vdwg.mxu0
        %5277 = vst [vmem:[#allocation3] sm:$0xff] %v5079
        %5278 = vst [vmem:[#allocation3 + $0x8] sm:$0xff] %v5082
        %5279 = vst [vmem:[#allocation3 + $0x10] sm:$0xff] %v5087
        %5280 = vst [vmem:[#allocation3 + $0x18] sm:$0xff] %v5090
        %5281 = vst [vmem:[#allocation3 + $0x20] sm:$0xff] %v5095
        %5282 = vst [vmem:[#allocation3 + $0x28] sm:$0xff] %v5098
        %5283 = vst [vmem:[#allocation3 + $0x30] sm:$0xff] %v5103
        %5284 = vst [vmem:[#allocation3 + $0x38] sm:$0xff] %v5106
        %5285 = vst [vmem:[#allocation3 + $0x40] sm:$0xff] %v5111
        %5286 = vst [vmem:[#allocation3 + $0x48] sm:$0xff] %v5114
        %5287 = vst [vmem:[#allocation3 + $0x50] sm:$0xff] %v5119
        %5288 = vst [vmem:[#allocation3 + $0x58] sm:$0xff] %v5122
        %5289 = vst [vmem:[#allocation3 + $0x60] sm:$0xff] %v5127
        %5290 = vst [vmem:[#allocation3 + $0x68] sm:$0xff] %v5130
        %5291 = vst [vmem:[#allocation3 + $0x70] sm:$0xff] %v5135
        %5292 = vst [vmem:[#allocation3 + $0x78] sm:$0xff] %v5138
        %5293 = vst [vmem:[#allocation3 + $0x80] sm:$0xff] %v5143
        %5294 = vst [vmem:[#allocation3 + $0x88] sm:$0xff] %v5146
        %5295 = vst [vmem:[#allocation3 + $0x90] sm:$0xff] %v5151
        %5296 = vst [vmem:[#allocation3 + $0x98] sm:$0xff] %v5154
        %5297 = vst [vmem:[#allocation3 + $0xa0] sm:$0xff] %v5159
        %5298 = vst [vmem:[#allocation3 + $0xa8] sm:$0xff] %v5162
        %5299 = vst [vmem:[#allocation3 + $0xb0] sm:$0xff] %v5167
        %5300 = vst [vmem:[#allocation3 + $0xb8] sm:$0xff] %v5170
        %5301 = vst [vmem:[#allocation3 + $0xc0] sm:$0xff] %v5175
        %5302 = vst [vmem:[#allocation3 + $0xc8] sm:$0xff] %v5178
        %5303 = vst [vmem:[#allocation3 + $0xd0] sm:$0xff] %v5183
        %5304 = vst [vmem:[#allocation3 + $0xd8] sm:$0xff] %v5186
        %5305 = vst [vmem:[#allocation3 + $0xe0] sm:$0xff] %v5191
        %5306 = vst [vmem:[#allocation3 + $0xe8] sm:$0xff] %v5194
        %5307 = vst [vmem:[#allocation3 + $0xf0] sm:$0xff] %v5199
        %5308 = vst [vmem:[#allocation3 + $0xf8] sm:$0xff] %v5202
        %5309 = vst [vmem:[#allocation3 + $0x100] sm:$0xff] %v5207
        %5310 = vst [vmem:[#allocation3 + $0x108] sm:$0xff] %v5210
        %5311 = vst [vmem:[#allocation3 + $0x110] sm:$0xff] %v5215
        %5312 = vst [vmem:[#allocation3 + $0x118] sm:$0xff] %v5218
        %5313 = vst [vmem:[#allocation3 + $0x120] sm:$0xff] %v5223
        %5314 = vst [vmem:[#allocation3 + $0x128] sm:$0xff] %v5226
        %5315 = vst [vmem:[#allocation3 + $0x130] sm:$0xff] %v5231
        %5316 = vst [vmem:[#allocation3 + $0x138] sm:$0xff] %v5234
        %5317 = vst [vmem:[#allocation3 + $0x140] sm:$0xff] %v5239
        %5318 = vst [vmem:[#allocation3 + $0x148] sm:$0xff] %v5242
        %5319 = vst [vmem:[#allocation3 + $0x150] sm:$0xff] %v5247
        %5320 = vst [vmem:[#allocation3 + $0x158] sm:$0xff] %v5250
        %5321 = vst [vmem:[#allocation3 + $0x160] sm:$0xff] %v5255
        %5322 = vst [vmem:[#allocation3 + $0x168] sm:$0xff] %v5258
        %5323 = vst [vmem:[#allocation3 + $0x170] sm:$0xff] %v5263
        %5324 = vst [vmem:[#allocation3 + $0x178] sm:$0xff] %v5266
        %5325 = vst [vmem:[#allocation3 + $0x180] sm:$0xff] %v5271
        %5326 = vst [vmem:[#allocation3 + $0x188] sm:$0xff] %v5274
        %s5327 = scalar_lea.vmem [#allocation2], 288
        %v5328 = vld [vmem:[%s5327] sm:$0xff]
        %v5329 = vld [vmem:[%s5327 + $0x8] sm:$0xff]
        %v5330 = vld [vmem:[%s5327 + $0x10] sm:$0xff]
        %v5331 = vld [vmem:[%s5327 + $0x18] sm:$0xff]
        %v5332 = vld [vmem:[%s5327 + $0x20] sm:$0xff]
        %v5333 = vld [vmem:[%s5327 + $0x30] sm:$0xff]
        %v5334 = vld [vmem:[%s5327 + $0x38] sm:$0xff]
        %v5335 = vld [vmem:[%s5327 + $0x40] sm:$0xff]
        %v5336 = vld [vmem:[%s5327 + $0x48] sm:$0xff]
        %v5337 = vld [vmem:[%s5327 + $0x50] sm:$0xff]
        %v5338 = vld [vmem:[%s5327 + $0x60] sm:$0xff]
        %v5339 = vld [vmem:[%s5327 + $0x68] sm:$0xff]
        %v5340 = vld [vmem:[%s5327 + $0x70] sm:$0xff]
        %v5341 = vld [vmem:[%s5327 + $0x78] sm:$0xff]
        %v5342 = vld [vmem:[%s5327 + $0x80] sm:$0xff]
        %v5343 = vld [vmem:[%s5327 + $0x90] sm:$0xff]
        %v5344 = vld [vmem:[%s5327 + $0x98] sm:$0xff]
        %v5345 = vld [vmem:[%s5327 + $0xa0] sm:$0xff]
        %v5346 = vld [vmem:[%s5327 + $0xa8] sm:$0xff]
        %v5347 = vld [vmem:[%s5327 + $0xb0] sm:$0xff]
        %v5348 = vld [vmem:[%s5327 + $0xc0] sm:$0xff]
        %v5349 = vld [vmem:[%s5327 + $0xc8] sm:$0xff]
        %v5350 = vld [vmem:[%s5327 + $0xd0] sm:$0xff]
        %v5351 = vld [vmem:[%s5327 + $0xd8] sm:$0xff]
        %v5352 = vld [vmem:[%s5327 + $0xe0] sm:$0xff]
        %s5353 = scalar_lea.vmem [#allocation2], 296
        %v5354 = vld [vmem:[%s5353] sm:$0xff]
        %v5355 = vld [vmem:[%s5353 + $0x8] sm:$0xff]
        %v5356 = vld [vmem:[%s5353 + $0x10] sm:$0xff]
        %v5357 = vld [vmem:[%s5353 + $0x18] sm:$0xff]
        %v5358 = vld [vmem:[%s5353 + $0x20] sm:$0xff]
        %v5359 = vld [vmem:[%s5353 + $0x30] sm:$0xff]
        %v5360 = vld [vmem:[%s5353 + $0x38] sm:$0xff]
        %v5361 = vld [vmem:[%s5353 + $0x40] sm:$0xff]
        %v5362 = vld [vmem:[%s5353 + $0x48] sm:$0xff]
        %v5363 = vld [vmem:[%s5353 + $0x50] sm:$0xff]
        %v5364 = vld [vmem:[%s5353 + $0x60] sm:$0xff]
        %v5365 = vld [vmem:[%s5353 + $0x68] sm:$0xff]
        %v5366 = vld [vmem:[%s5353 + $0x70] sm:$0xff]
        %v5367 = vld [vmem:[%s5353 + $0x78] sm:$0xff]
        %v5368 = vld [vmem:[%s5353 + $0x80] sm:$0xff]
        %v5369 = vld [vmem:[%s5353 + $0x90] sm:$0xff]
        %v5370 = vld [vmem:[%s5353 + $0x98] sm:$0xff]
        %v5371 = vld [vmem:[%s5353 + $0xa0] sm:$0xff]
        %v5372 = vld [vmem:[%s5353 + $0xa8] sm:$0xff]
        %v5373 = vld [vmem:[%s5353 + $0xb0] sm:$0xff]
        %v5374 = vld [vmem:[%s5353 + $0xc0] sm:$0xff]
        %v5375 = vld [vmem:[%s5353 + $0xc8] sm:$0xff]
        %v5376 = vld [vmem:[%s5353 + $0xd0] sm:$0xff]
        %v5377 = vld [vmem:[%s5353 + $0xd8] sm:$0xff]
        %v5378 = vld [vmem:[%s5353 + $0xe0] sm:$0xff]
        %s5379 = scalar_lea.vmem [#allocation2], 336
        %v5380 = vld [vmem:[%s5379] sm:$0xff]
        %v5381 = vld [vmem:[%s5379 + $0x8] sm:$0xff]
        %v5382 = vld [vmem:[%s5379 + $0x10] sm:$0xff]
        %v5383 = vld [vmem:[%s5379 + $0x18] sm:$0xff]
        %v5384 = vld [vmem:[%s5379 + $0x20] sm:$0xff]
        %v5385 = vld [vmem:[%s5379 + $0x30] sm:$0xff]
        %v5386 = vld [vmem:[%s5379 + $0x38] sm:$0xff]
        %v5387 = vld [vmem:[%s5379 + $0x40] sm:$0xff]
        %v5388 = vld [vmem:[%s5379 + $0x48] sm:$0xff]
        %v5389 = vld [vmem:[%s5379 + $0x50] sm:$0xff]
        %v5390 = vld [vmem:[%s5379 + $0x60] sm:$0xff]
        %v5391 = vld [vmem:[%s5379 + $0x68] sm:$0xff]
        %v5392 = vld [vmem:[%s5379 + $0x70] sm:$0xff]
        %v5393 = vld [vmem:[%s5379 + $0x78] sm:$0xff]
        %v5394 = vld [vmem:[%s5379 + $0x80] sm:$0xff]
        %v5395 = vld [vmem:[%s5379 + $0x90] sm:$0xff]
        %v5396 = vld [vmem:[%s5379 + $0x98] sm:$0xff]
        %v5397 = vld [vmem:[%s5379 + $0xa0] sm:$0xff]
        %v5398 = vld [vmem:[%s5379 + $0xa8] sm:$0xff]
        %v5399 = vld [vmem:[%s5379 + $0xb0] sm:$0xff]
        %v5400 = vld [vmem:[%s5379 + $0xc0] sm:$0xff]
        %v5401 = vld [vmem:[%s5379 + $0xc8] sm:$0xff]
        %v5402 = vld [vmem:[%s5379 + $0xd0] sm:$0xff]
        %v5403 = vld [vmem:[%s5379 + $0xd8] sm:$0xff]
        %v5404 = vld [vmem:[%s5379 + $0xe0] sm:$0xff]
        %s5405 = scalar_lea.vmem [#allocation2], 344
        %v5406 = vld [vmem:[%s5405] sm:$0xff]
        %v5407 = vld [vmem:[%s5405 + $0x8] sm:$0xff]
        %v5408 = vld [vmem:[%s5405 + $0x10] sm:$0xff]
        %v5409 = vld [vmem:[%s5405 + $0x18] sm:$0xff]
        %v5410 = vld [vmem:[%s5405 + $0x20] sm:$0xff]
        %v5411 = vld [vmem:[%s5405 + $0x30] sm:$0xff]
        %v5412 = vld [vmem:[%s5405 + $0x38] sm:$0xff]
        %v5413 = vld [vmem:[%s5405 + $0x40] sm:$0xff]
        %v5414 = vld [vmem:[%s5405 + $0x48] sm:$0xff]
        %v5415 = vld [vmem:[%s5405 + $0x50] sm:$0xff]
        %v5416 = vld [vmem:[%s5405 + $0x60] sm:$0xff]
        %v5417 = vld [vmem:[%s5405 + $0x68] sm:$0xff]
        %v5418 = vld [vmem:[%s5405 + $0x70] sm:$0xff]
        %v5419 = vld [vmem:[%s5405 + $0x78] sm:$0xff]
        %v5420 = vld [vmem:[%s5405 + $0x80] sm:$0xff]
        %v5421 = vld [vmem:[%s5405 + $0x90] sm:$0xff]
        %v5422 = vld [vmem:[%s5405 + $0x98] sm:$0xff]
        %v5423 = vld [vmem:[%s5405 + $0xa0] sm:$0xff]
        %v5424 = vld [vmem:[%s5405 + $0xa8] sm:$0xff]
        %v5425 = vld [vmem:[%s5405 + $0xb0] sm:$0xff]
        %v5426 = vld [vmem:[%s5405 + $0xc0] sm:$0xff]
        %v5427 = vld [vmem:[%s5405 + $0xc8] sm:$0xff]
        %v5428 = vld [vmem:[%s5405 + $0xd0] sm:$0xff]
        %v5429 = vld [vmem:[%s5405 + $0xd8] sm:$0xff]
        %v5430 = vld [vmem:[%s5405 + $0xe0] sm:$0xff]
        %v5431 = vsel %vm4883, %v5380, %v5406
        %v5432 = vsel %vm4883, %v5381, %v5407
        %v5433 = vsel %vm4883, %v5382, %v5408
        %v5434 = vsel %vm4883, %v5383, %v5409
        %v5435 = vsel %vm4883, %v5384, %v5410
        %v5436 = vsel %vm4883, %v5385, %v5411
        %v5437 = vsel %vm4883, %v5386, %v5412
        %v5438 = vsel %vm4883, %v5387, %v5413
        %v5439 = vsel %vm4883, %v5388, %v5414
        %v5440 = vsel %vm4883, %v5389, %v5415
        %v5441 = vsel %vm4883, %v5390, %v5416
        %v5442 = vsel %vm4883, %v5391, %v5417
        %v5443 = vsel %vm4883, %v5392, %v5418
        %v5444 = vsel %vm4883, %v5393, %v5419
        %v5445 = vsel %vm4883, %v5394, %v5420
        %v5446 = vsel %vm4883, %v5395, %v5421
        %v5447 = vsel %vm4883, %v5396, %v5422
        %v5448 = vsel %vm4883, %v5397, %v5423
        %v5449 = vsel %vm4883, %v5398, %v5424
        %v5450 = vsel %vm4883, %v5399, %v5425
        %v5451 = vsel %vm4883, %v5400, %v5426
        %v5452 = vsel %vm4883, %v5401, %v5427
        %v5453 = vsel %vm4883, %v5402, %v5428
        %v5454 = vsel %vm4883, %v5403, %v5429
        %v5455 = vsel %vm4883, %v5404, %v5430
        %v5456 = vsel %vm4915, %v5354, %v5431
        %v5457 = vsel %vm4915, %v5355, %v5432
        %v5458 = vsel %vm4915, %v5356, %v5433
        %v5459 = vsel %vm4915, %v5357, %v5434
        %v5460 = vsel %vm4915, %v5358, %v5435
        %v5461 = vsel %vm4915, %v5359, %v5436
        %v5462 = vsel %vm4915, %v5360, %v5437
        %v5463 = vsel %vm4915, %v5361, %v5438
        %v5464 = vsel %vm4915, %v5362, %v5439
        %v5465 = vsel %vm4915, %v5363, %v5440
        %v5466 = vsel %vm4915, %v5364, %v5441
        %v5467 = vsel %vm4915, %v5365, %v5442
        %v5468 = vsel %vm4915, %v5366, %v5443
        %v5469 = vsel %vm4915, %v5367, %v5444
        %v5470 = vsel %vm4915, %v5368, %v5445
        %v5471 = vsel %vm4915, %v5369, %v5446
        %v5472 = vsel %vm4915, %v5370, %v5447
        %v5473 = vsel %vm4915, %v5371, %v5448
        %v5474 = vsel %vm4915, %v5372, %v5449
        %v5475 = vsel %vm4915, %v5373, %v5450
        %v5476 = vsel %vm4915, %v5374, %v5451
        %v5477 = vsel %vm4915, %v5375, %v5452
        %v5478 = vsel %vm4915, %v5376, %v5453
        %v5479 = vsel %vm4915, %v5377, %v5454
        %v5480 = vsel %vm4915, %v5378, %v5455
        %v5481 = vsel %vm4947, %v5328, %v5456
        %v5482 = vsel %vm4947, %v5329, %v5457
        %v5483 = vsel %vm4947, %v5330, %v5458
        %v5484 = vsel %vm4947, %v5331, %v5459
        %v5485 = vsel %vm4947, %v5332, %v5460
        %v5486 = vsel %vm4947, %v5333, %v5461
        %v5487 = vsel %vm4947, %v5334, %v5462
        %v5488 = vsel %vm4947, %v5335, %v5463
        %v5489 = vsel %vm4947, %v5336, %v5464
        %v5490 = vsel %vm4947, %v5337, %v5465
        %v5491 = vsel %vm4947, %v5338, %v5466
        %v5492 = vsel %vm4947, %v5339, %v5467
        %v5493 = vsel %vm4947, %v5340, %v5468
        %v5494 = vsel %vm4947, %v5341, %v5469
        %v5495 = vsel %vm4947, %v5342, %v5470
        %v5496 = vsel %vm4947, %v5343, %v5471
        %v5497 = vsel %vm4947, %v5344, %v5472
        %v5498 = vsel %vm4947, %v5345, %v5473
        %v5499 = vsel %vm4947, %v5346, %v5474
        %v5500 = vsel %vm4947, %v5347, %v5475
        %v5501 = vsel %vm4947, %v5348, %v5476
        %v5502 = vsel %vm4947, %v5349, %v5477
        %v5503 = vsel %vm4947, %v5350, %v5478
        %v5504 = vsel %vm4947, %v5351, %v5479
        %v5505 = vsel %vm4947, %v5352, %v5480
        %s5506 = scalar_lea.vmem %s3, 64
        %v5507 = vld [vmem:[%s5506] sm:$0xf]
        %v5508 = vld [vmem:[%s5506 + $0x4] sm:$0xf]
        %v5509 = vld [vmem:[%s5506 + $0x8] sm:$0xf]
        %v5510 = vld [vmem:[%s5506 + $0xc] sm:$0xf]
        %v5511 = vld [vmem:[%s5506 + $0x10] sm:$0xf]
        %v5512 = vld [vmem:[%s5506 + $0x14] sm:$0xf]
        %v5513 = vld [vmem:[%s5506 + $0x18] sm:$0xf]
        %v5514 = vld [vmem:[%s5506 + $0x1c] sm:$0xf]
        %v5515 = vld [vmem:[%s5506 + $0x20] sm:$0xf]
        %v5516 = vld [vmem:[%s5506 + $0x24] sm:$0xf]
        %v5517 = vld [vmem:[%s5506 + $0x28] sm:$0xf]
        %v5518 = vld [vmem:[%s5506 + $0x2c] sm:$0xf]
        %v5519 = vld [vmem:[%s5506 + $0x30] sm:$0xf]
        %v5520 = vld [vmem:[%s5506 + $0x34] sm:$0xf]
        %v5521 = vld [vmem:[%s5506 + $0x38] sm:$0xf]
        %v5522 = vld [vmem:[%s5506 + $0x3c] sm:$0xf]
        %v5539 = vunpack.c.l.b16 %v5507
        %v5540 = vunpack.c.l.b16 %v5508
        %v5541 = vunpack.c.l.b16 %v5509
        %v5542 = vunpack.c.l.b16 %v5510
        %v5543 = vunpack.c.l.b16 %v5511
        %v5544 = vunpack.c.l.b16 %v5512
        %v5545 = vunpack.c.l.b16 %v5513
        %v5546 = vunpack.c.l.b16 %v5514
        %v5547 = vunpack.c.l.b16 %v5515
        %v5548 = vunpack.c.l.b16 %v5516
        %v5549 = vunpack.c.l.b16 %v5517
        %v5550 = vunpack.c.l.b16 %v5518
        %v5551 = vunpack.c.l.b16 %v5519
        %v5552 = vunpack.c.l.b16 %v5520
        %v5553 = vunpack.c.l.b16 %v5521
        %v5554 = vunpack.c.l.b16 %v5522
        %v5555 = vpack.c.b16 %v5540, %v5539
        %v5556 = vpack.c.b16 %v5542, %v5541
        %v5557 = vpack.c.b16 %v5544, %v5543
        %v5558 = vpack.c.b16 %v5546, %v5545
        %v5559 = vpack.c.b16 %v5548, %v5547
        %v5560 = vpack.c.b16 %v5550, %v5549
        %v5561 = vpack.c.b16 %v5552, %v5551
        %v5562 = vpack.c.b16 %v5554, %v5553
        %5571 = vmatprep.subr.bf16.mxu0 0
        %5572 = vmatpush1.bf16.msra.mxu0 %v5555
        %5573 = vmatprep.subr.bf16.mxu0 0
        %5574 = vmatpush1.bf16.msra.mxu0 %v5556
        %5575 = vmatprep.subr.bf16.mxu0 0
        %5576 = vmatpush1.bf16.msra.mxu0 %v5557
        %5577 = vmatprep.subr.bf16.mxu0 0
        %5578 = vmatpush1.bf16.msra.mxu0 %v5558
        %5579 = vmatprep.subr.bf16.mxu0 0
        %5580 = vmatpush1.bf16.msra.mxu0 %v5559
        %5581 = vmatprep.subr.bf16.mxu0 0
        %5582 = vmatpush1.bf16.msra.mxu0 %v5560
        %5583 = vmatprep.subr.bf16.mxu0 0
        %5584 = vmatpush1.bf16.msra.mxu0 %v5561
        %5585 = vmatprep.subr.bf16.mxu0 0
        %5586 = vmatpush1.bf16.msra.mxu0 %v5562
        %5587 = vmatprep.subr.bf16.mxu0 0
        %5588 = vmatpush1.bf16.msra.mxu0 0
        %5589 = vmatprep.subr.bf16.mxu0 0
        %5590 = vmatpush1.bf16.msra.mxu0 0
        %5591 = vmatprep.subr.bf16.mxu0 0
        %5592 = vmatpush1.bf16.msra.mxu0 0
        %5593 = vmatprep.subr.bf16.mxu0 0
        %5594 = vmatpush1.bf16.msra.mxu0 0
        %5595 = vmatprep.subr.bf16.mxu0 0
        %5596 = vmatpush1.bf16.msra.mxu0 0
        %5597 = vmatprep.subr.bf16.mxu0 0
        %5598 = vmatpush1.bf16.msra.mxu0 0
        %5599 = vmatprep.subr.bf16.mxu0 0
        %5600 = vmatpush1.bf16.msra.mxu0 0
        %5601 = vmatprep.subr.bf16.mxu0 0
        %5602 = vmatpush1.bf16.msra.mxu0 0
        %5603 = vmatprep.mubr.bf16.mxu0 0
        %5604 = vmatmul.mubr.bf16.gmra.mrb[0].mxu0 %v5481
        %v5605 = vpop.f32.mrb[0].mxu0
        %v5606 = vadd.f32 0.0, %v5605
        %v5607 = vpop.f32.mrb[0].mxu0
        %v5608 = vpop.f32.mrb[0].mxu0
        %v5609 = vadd.f32 0.0, %v5608
        %v5610 = vpop.f32.mrb[0].mxu0
        %5611 = vmatprep.mubr.bf16.mxu0 0
        %5612 = vmatmul.mubr.bf16.gmra.mrb[0].mxu0 %v5482
        %v5613 = vpop.f32.mrb[0].mxu0
        %v5614 = vadd.f32 0.0, %v5613
        %v5615 = vpop.f32.mrb[0].mxu0
        %v5616 = vpop.f32.mrb[0].mxu0
        %v5617 = vadd.f32 0.0, %v5616
        %v5618 = vpop.f32.mrb[0].mxu0
        %5619 = vmatprep.mubr.bf16.mxu0 0
        %5620 = vmatmul.mubr.bf16.gmra.mrb[0].mxu0 %v5483
        %v5621 = vpop.f32.mrb[0].mxu0
        %v5622 = vadd.f32 0.0, %v5621
        %v5623 = vpop.f32.mrb[0].mxu0
        %v5624 = vpop.f32.mrb[0].mxu0
        %v5625 = vadd.f32 0.0, %v5624
        %v5626 = vpop.f32.mrb[0].mxu0
        %5627 = vmatprep.mubr.bf16.mxu0 0
        %5628 = vmatmul.mubr.bf16.gmra.mrb[0].mxu0 %v5484
        %v5629 = vpop.f32.mrb[0].mxu0
        %v5630 = vadd.f32 0.0, %v5629
        %v5631 = vpop.f32.mrb[0].mxu0
        %v5632 = vpop.f32.mrb[0].mxu0
        %v5633 = vadd.f32 0.0, %v5632
        %v5634 = vpop.f32.mrb[0].mxu0
        %5635 = vmatprep.mubr.bf16.mxu0 0
        %5636 = vmatmul.mubr.bf16.gmra.mrb[0].mxu0 %v5485
        %v5637 = vpop.f32.mrb[0].mxu0
        %v5638 = vadd.f32 0.0, %v5637
        %v5639 = vpop.f32.mrb[0].mxu0
        %v5640 = vpop.f32.mrb[0].mxu0
        %v5641 = vadd.f32 0.0, %v5640
        %v5642 = vpop.f32.mrb[0].mxu0
        %5643 = vmatprep.mubr.bf16.mxu0 0
        %5644 = vmatmul.mubr.bf16.gmra.mrb[0].mxu0 %v5486
        %v5645 = vpop.f32.mrb[0].mxu0
        %v5646 = vadd.f32 0.0, %v5645
        %v5647 = vpop.f32.mrb[0].mxu0
        %v5648 = vpop.f32.mrb[0].mxu0
        %v5649 = vadd.f32 0.0, %v5648
        %v5650 = vpop.f32.mrb[0].mxu0
        %5651 = vmatprep.mubr.bf16.mxu0 0
        %5652 = vmatmul.mubr.bf16.gmra.mrb[0].mxu0 %v5487
        %v5653 = vpop.f32.mrb[0].mxu0
        %v5654 = vadd.f32 0.0, %v5653
        %v5655 = vpop.f32.mrb[0].mxu0
        %v5656 = vpop.f32.mrb[0].mxu0
        %v5657 = vadd.f32 0.0, %v5656
        %v5658 = vpop.f32.mrb[0].mxu0
        %5659 = vmatprep.mubr.bf16.mxu0 0
        %5660 = vmatmul.mubr.bf16.gmra.mrb[0].mxu0 %v5488
        %v5661 = vpop.f32.mrb[0].mxu0
        %v5662 = vadd.f32 0.0, %v5661
        %v5663 = vpop.f32.mrb[0].mxu0
        %v5664 = vpop.f32.mrb[0].mxu0
        %v5665 = vadd.f32 0.0, %v5664
        %v5666 = vpop.f32.mrb[0].mxu0
        %5667 = vmatprep.mubr.bf16.mxu0 0
        %5668 = vmatmul.mubr.bf16.gmra.mrb[0].mxu0 %v5489
        %v5669 = vpop.f32.mrb[0].mxu0
        %v5670 = vadd.f32 0.0, %v5669
        %v5671 = vpop.f32.mrb[0].mxu0
        %v5672 = vpop.f32.mrb[0].mxu0
        %v5673 = vadd.f32 0.0, %v5672
        %v5674 = vpop.f32.mrb[0].mxu0
        %5675 = vmatprep.mubr.bf16.mxu0 0
        %5676 = vmatmul.mubr.bf16.gmra.mrb[0].mxu0 %v5490
        %v5677 = vpop.f32.mrb[0].mxu0
        %v5678 = vadd.f32 0.0, %v5677
        %v5679 = vpop.f32.mrb[0].mxu0
        %v5680 = vpop.f32.mrb[0].mxu0
        %v5681 = vadd.f32 0.0, %v5680
        %v5682 = vpop.f32.mrb[0].mxu0
        %5683 = vmatprep.mubr.bf16.mxu0 0
        %5684 = vmatmul.mubr.bf16.gmra.mrb[0].mxu0 %v5491
        %v5685 = vpop.f32.mrb[0].mxu0
        %v5686 = vadd.f32 0.0, %v5685
        %v5687 = vpop.f32.mrb[0].mxu0
        %v5688 = vpop.f32.mrb[0].mxu0
        %v5689 = vadd.f32 0.0, %v5688
        %v5690 = vpop.f32.mrb[0].mxu0
        %5691 = vmatprep.mubr.bf16.mxu0 0
        %5692 = vmatmul.mubr.bf16.gmra.mrb[0].mxu0 %v5492
        %v5693 = vpop.f32.mrb[0].mxu0
        %v5694 = vadd.f32 0.0, %v5693
        %v5695 = vpop.f32.mrb[0].mxu0
        %v5696 = vpop.f32.mrb[0].mxu0
        %v5697 = vadd.f32 0.0, %v5696
        %v5698 = vpop.f32.mrb[0].mxu0
        %5699 = vmatprep.mubr.bf16.mxu0 0
        %5700 = vmatmul.mubr.bf16.gmra.mrb[0].mxu0 %v5493
        %v5701 = vpop.f32.mrb[0].mxu0
        %v5702 = vadd.f32 0.0, %v5701
        %v5703 = vpop.f32.mrb[0].mxu0
        %v5704 = vpop.f32.mrb[0].mxu0
        %v5705 = vadd.f32 0.0, %v5704
        %v5706 = vpop.f32.mrb[0].mxu0
        %5707 = vmatprep.mubr.bf16.mxu0 0
        %5708 = vmatmul.mubr.bf16.gmra.mrb[0].mxu0 %v5494
        %v5709 = vpop.f32.mrb[0].mxu0
        %v5710 = vadd.f32 0.0, %v5709
        %v5711 = vpop.f32.mrb[0].mxu0
        %v5712 = vpop.f32.mrb[0].mxu0
        %v5713 = vadd.f32 0.0, %v5712
        %v5714 = vpop.f32.mrb[0].mxu0
        %5715 = vmatprep.mubr.bf16.mxu0 0
        %5716 = vmatmul.mubr.bf16.gmra.mrb[0].mxu0 %v5495
        %v5717 = vpop.f32.mrb[0].mxu0
        %v5718 = vadd.f32 0.0, %v5717
        %v5719 = vpop.f32.mrb[0].mxu0
        %v5720 = vpop.f32.mrb[0].mxu0
        %v5721 = vadd.f32 0.0, %v5720
        %v5722 = vpop.f32.mrb[0].mxu0
        %5723 = vmatprep.mubr.bf16.mxu0 0
        %5724 = vmatmul.mubr.bf16.gmra.mrb[0].mxu0 %v5496
        %v5725 = vpop.f32.mrb[0].mxu0
        %v5726 = vadd.f32 0.0, %v5725
        %v5727 = vpop.f32.mrb[0].mxu0
        %v5728 = vpop.f32.mrb[0].mxu0
        %v5729 = vadd.f32 0.0, %v5728
        %v5730 = vpop.f32.mrb[0].mxu0
        %5731 = vmatprep.mubr.bf16.mxu0 0
        %5732 = vmatmul.mubr.bf16.gmra.mrb[0].mxu0 %v5497
        %v5733 = vpop.f32.mrb[0].mxu0
        %v5734 = vadd.f32 0.0, %v5733
        %v5735 = vpop.f32.mrb[0].mxu0
        %v5736 = vpop.f32.mrb[0].mxu0
        %v5737 = vadd.f32 0.0, %v5736
        %v5738 = vpop.f32.mrb[0].mxu0
        %5739 = vmatprep.mubr.bf16.mxu0 0
        %5740 = vmatmul.mubr.bf16.gmra.mrb[0].mxu0 %v5498
        %v5741 = vpop.f32.mrb[0].mxu0
        %v5742 = vadd.f32 0.0, %v5741
        %v5743 = vpop.f32.mrb[0].mxu0
        %v5744 = vpop.f32.mrb[0].mxu0
        %v5745 = vadd.f32 0.0, %v5744
        %v5746 = vpop.f32.mrb[0].mxu0
        %5747 = vmatprep.mubr.bf16.mxu0 0
        %5748 = vmatmul.mubr.bf16.gmra.mrb[0].mxu0 %v5499
        %v5749 = vpop.f32.mrb[0].mxu0
        %v5750 = vadd.f32 0.0, %v5749
        %v5751 = vpop.f32.mrb[0].mxu0
        %v5752 = vpop.f32.mrb[0].mxu0
        %v5753 = vadd.f32 0.0, %v5752
        %v5754 = vpop.f32.mrb[0].mxu0
        %5755 = vmatprep.mubr.bf16.mxu0 0
        %5756 = vmatmul.mubr.bf16.gmra.mrb[0].mxu0 %v5500
        %v5757 = vpop.f32.mrb[0].mxu0
        %v5758 = vadd.f32 0.0, %v5757
        %v5759 = vpop.f32.mrb[0].mxu0
        %v5760 = vpop.f32.mrb[0].mxu0
        %v5761 = vadd.f32 0.0, %v5760
        %v5762 = vpop.f32.mrb[0].mxu0
        %5763 = vmatprep.mubr.bf16.mxu0 0
        %5764 = vmatmul.mubr.bf16.gmra.mrb[0].mxu0 %v5501
        %v5765 = vpop.f32.mrb[0].mxu0
        %v5766 = vadd.f32 0.0, %v5765
        %v5767 = vpop.f32.mrb[0].mxu0
        %v5768 = vpop.f32.mrb[0].mxu0
        %v5769 = vadd.f32 0.0, %v5768
        %v5770 = vpop.f32.mrb[0].mxu0
        %5771 = vmatprep.mubr.bf16.mxu0 0
        %5772 = vmatmul.mubr.bf16.gmra.mrb[0].mxu0 %v5502
        %v5773 = vpop.f32.mrb[0].mxu0
        %v5774 = vadd.f32 0.0, %v5773
        %v5775 = vpop.f32.mrb[0].mxu0
        %v5776 = vpop.f32.mrb[0].mxu0
        %v5777 = vadd.f32 0.0, %v5776
        %v5778 = vpop.f32.mrb[0].mxu0
        %5779 = vmatprep.mubr.bf16.mxu0 0
        %5780 = vmatmul.mubr.bf16.gmra.mrb[0].mxu0 %v5503
        %v5781 = vpop.f32.mrb[0].mxu0
        %v5782 = vadd.f32 0.0, %v5781
        %v5783 = vpop.f32.mrb[0].mxu0
        %v5784 = vpop.f32.mrb[0].mxu0
        %v5785 = vadd.f32 0.0, %v5784
        %v5786 = vpop.f32.mrb[0].mxu0
        %5787 = vmatprep.mubr.bf16.mxu0 0
        %5788 = vmatmul.mubr.bf16.gmra.mrb[0].mxu0 %v5504
        %v5789 = vpop.f32.mrb[0].mxu0
        %v5790 = vadd.f32 0.0, %v5789
        %v5791 = vpop.f32.mrb[0].mxu0
        %v5792 = vpop.f32.mrb[0].mxu0
        %v5793 = vadd.f32 0.0, %v5792
        %v5794 = vpop.f32.mrb[0].mxu0
        %5795 = vmatprep.mubr.bf16.mxu0 0
        %5796 = vmatmul.mubr.bf16.gmra.mrb[0].mxu0 %v5505
        %v5797 = vpop.f32.mrb[0].mxu0
        %v5798 = vadd.f32 0.0, %v5797
        %v5799 = vpop.f32.mrb[0].mxu0
        %v5800 = vpop.f32.mrb[0].mxu0
        %v5801 = vadd.f32 0.0, %v5800
        %v5802 = vpop.f32.mrb[0].mxu0
        %5803 = vdwg.mxu0
        %v5804 = vld [vmem:[#allocation3] sm:$0xff]
        %v5805 = vld [vmem:[#allocation3 + $0x8] sm:$0xff]
        %v5806 = vld [vmem:[#allocation3 + $0x10] sm:$0xff]
        %v5807 = vld [vmem:[#allocation3 + $0x18] sm:$0xff]
        %v5808 = vld [vmem:[#allocation3 + $0x20] sm:$0xff]
        %v5809 = vld [vmem:[#allocation3 + $0x28] sm:$0xff]
        %v5810 = vld [vmem:[#allocation3 + $0x30] sm:$0xff]
        %v5811 = vld [vmem:[#allocation3 + $0x38] sm:$0xff]
        %v5812 = vld [vmem:[#allocation3 + $0x40] sm:$0xff]
        %v5813 = vld [vmem:[#allocation3 + $0x48] sm:$0xff]
        %v5814 = vld [vmem:[#allocation3 + $0x50] sm:$0xff]
        %v5815 = vld [vmem:[#allocation3 + $0x58] sm:$0xff]
        %v5816 = vld [vmem:[#allocation3 + $0x60] sm:$0xff]
        %v5817 = vld [vmem:[#allocation3 + $0x68] sm:$0xff]
        %v5818 = vld [vmem:[#allocation3 + $0x70] sm:$0xff]
        %v5819 = vld [vmem:[#allocation3 + $0x78] sm:$0xff]
        %v5820 = vld [vmem:[#allocation3 + $0x80] sm:$0xff]
        %v5821 = vld [vmem:[#allocation3 + $0x88] sm:$0xff]
        %v5822 = vld [vmem:[#allocation3 + $0x90] sm:$0xff]
        %v5823 = vld [vmem:[#allocation3 + $0x98] sm:$0xff]
        %v5824 = vld [vmem:[#allocation3 + $0xa0] sm:$0xff]
        %v5825 = vld [vmem:[#allocation3 + $0xa8] sm:$0xff]
        %v5826 = vld [vmem:[#allocation3 + $0xb0] sm:$0xff]
        %v5827 = vld [vmem:[#allocation3 + $0xb8] sm:$0xff]
        %v5828 = vld [vmem:[#allocation3 + $0xc0] sm:$0xff]
        %v5829 = vld [vmem:[#allocation3 + $0xc8] sm:$0xff]
        %v5830 = vld [vmem:[#allocation3 + $0xd0] sm:$0xff]
        %v5831 = vld [vmem:[#allocation3 + $0xd8] sm:$0xff]
        %v5832 = vld [vmem:[#allocation3 + $0xe0] sm:$0xff]
        %v5833 = vld [vmem:[#allocation3 + $0xe8] sm:$0xff]
        %v5834 = vld [vmem:[#allocation3 + $0xf0] sm:$0xff]
        %v5835 = vld [vmem:[#allocation3 + $0xf8] sm:$0xff]
        %v5836 = vld [vmem:[#allocation3 + $0x100] sm:$0xff]
        %v5837 = vld [vmem:[#allocation3 + $0x108] sm:$0xff]
        %v5838 = vld [vmem:[#allocation3 + $0x110] sm:$0xff]
        %v5839 = vld [vmem:[#allocation3 + $0x118] sm:$0xff]
        %v5840 = vld [vmem:[#allocation3 + $0x120] sm:$0xff]
        %v5841 = vld [vmem:[#allocation3 + $0x128] sm:$0xff]
        %v5842 = vld [vmem:[#allocation3 + $0x130] sm:$0xff]
        %v5843 = vld [vmem:[#allocation3 + $0x138] sm:$0xff]
        %v5844 = vld [vmem:[#allocation3 + $0x140] sm:$0xff]
        %v5845 = vld [vmem:[#allocation3 + $0x148] sm:$0xff]
        %v5846 = vld [vmem:[#allocation3 + $0x150] sm:$0xff]
        %v5847 = vld [vmem:[#allocation3 + $0x158] sm:$0xff]
        %v5848 = vld [vmem:[#allocation3 + $0x160] sm:$0xff]
        %v5849 = vld [vmem:[#allocation3 + $0x168] sm:$0xff]
        %v5850 = vld [vmem:[#allocation3 + $0x170] sm:$0xff]
        %v5851 = vld [vmem:[#allocation3 + $0x178] sm:$0xff]
        %v5852 = vld [vmem:[#allocation3 + $0x180] sm:$0xff]
        %v5853 = vld [vmem:[#allocation3 + $0x188] sm:$0xff]
        %v5854 = vadd.f32 %v5804, %v5606
        %v5855 = vadd.f32 %v5805, %v5609
        %v5856 = vadd.f32 %v5806, %v5614
        %v5857 = vadd.f32 %v5807, %v5617
        %v5858 = vadd.f32 %v5808, %v5622
        %v5859 = vadd.f32 %v5809, %v5625
        %v5860 = vadd.f32 %v5810, %v5630
        %v5861 = vadd.f32 %v5811, %v5633
        %v5862 = vadd.f32 %v5812, %v5638
        %v5863 = vadd.f32 %v5813, %v5641
        %v5864 = vadd.f32 %v5814, %v5646
        %v5865 = vadd.f32 %v5815, %v5649
        %v5866 = vadd.f32 %v5816, %v5654
        %v5867 = vadd.f32 %v5817, %v5657
        %v5868 = vadd.f32 %v5818, %v5662
        %v5869 = vadd.f32 %v5819, %v5665
        %v5870 = vadd.f32 %v5820, %v5670
        %v5871 = vadd.f32 %v5821, %v5673
        %v5872 = vadd.f32 %v5822, %v5678
        %v5873 = vadd.f32 %v5823, %v5681
        %v5874 = vadd.f32 %v5824, %v5686
        %v5875 = vadd.f32 %v5825, %v5689
        %v5876 = vadd.f32 %v5826, %v5694
        %v5877 = vadd.f32 %v5827, %v5697
        %v5878 = vadd.f32 %v5828, %v5702
        %v5879 = vadd.f32 %v5829, %v5705
        %v5880 = vadd.f32 %v5830, %v5710
        %v5881 = vadd.f32 %v5831, %v5713
        %v5882 = vadd.f32 %v5832, %v5718
        %v5883 = vadd.f32 %v5833, %v5721
        %v5884 = vadd.f32 %v5834, %v5726
        %v5885 = vadd.f32 %v5835, %v5729
        %v5886 = vadd.f32 %v5836, %v5734
        %v5887 = vadd.f32 %v5837, %v5737
        %v5888 = vadd.f32 %v5838, %v5742
        %v5889 = vadd.f32 %v5839, %v5745
        %v5890 = vadd.f32 %v5840, %v5750
        %v5891 = vadd.f32 %v5841, %v5753
        %v5892 = vadd.f32 %v5842, %v5758
        %v5893 = vadd.f32 %v5843, %v5761
        %v5894 = vadd.f32 %v5844, %v5766
        %v5895 = vadd.f32 %v5845, %v5769
        %v5896 = vadd.f32 %v5846, %v5774
        %v5897 = vadd.f32 %v5847, %v5777
        %v5898 = vadd.f32 %v5848, %v5782
        %v5899 = vadd.f32 %v5849, %v5785
        %v5900 = vadd.f32 %v5850, %v5790
        %v5901 = vadd.f32 %v5851, %v5793
        %v5902 = vadd.f32 %v5852, %v5798
        %v5903 = vadd.f32 %v5853, %v5801
        %5904 = vst [vmem:[#allocation3] sm:$0xff] %v5854
        %5905 = vst [vmem:[#allocation3 + $0x8] sm:$0xff] %v5855
        %5906 = vst [vmem:[#allocation3 + $0x10] sm:$0xff] %v5856
        %5907 = vst [vmem:[#allocation3 + $0x18] sm:$0xff] %v5857
        %5908 = vst [vmem:[#allocation3 + $0x20] sm:$0xff] %v5858
        %5909 = vst [vmem:[#allocation3 + $0x28] sm:$0xff] %v5859
        %5910 = vst [vmem:[#allocation3 + $0x30] sm:$0xff] %v5860
        %5911 = vst [vmem:[#allocation3 + $0x38] sm:$0xff] %v5861
        %5912 = vst [vmem:[#allocation3 + $0x40] sm:$0xff] %v5862
        %5913 = vst [vmem:[#allocation3 + $0x48] sm:$0xff] %v5863
        %5914 = vst [vmem:[#allocation3 + $0x50] sm:$0xff] %v5864
        %5915 = vst [vmem:[#allocation3 + $0x58] sm:$0xff] %v5865
        %5916 = vst [vmem:[#allocation3 + $0x60] sm:$0xff] %v5866
        %5917 = vst [vmem:[#allocation3 + $0x68] sm:$0xff] %v5867
        %5918 = vst [vmem:[#allocation3 + $0x70] sm:$0xff] %v5868
        %5919 = vst [vmem:[#allocation3 + $0x78] sm:$0xff] %v5869
        %5920 = vst [vmem:[#allocation3 + $0x80] sm:$0xff] %v5870
        %5921 = vst [vmem:[#allocation3 + $0x88] sm:$0xff] %v5871
        %5922 = vst [vmem:[#allocation3 + $0x90] sm:$0xff] %v5872
        %5923 = vst [vmem:[#allocation3 + $0x98] sm:$0xff] %v5873
        %5924 = vst [vmem:[#allocation3 + $0xa0] sm:$0xff] %v5874
        %5925 = vst [vmem:[#allocation3 + $0xa8] sm:$0xff] %v5875
        %5926 = vst [vmem:[#allocation3 + $0xb0] sm:$0xff] %v5876
        %5927 = vst [vmem:[#allocation3 + $0xb8] sm:$0xff] %v5877
        %5928 = vst [vmem:[#allocation3 + $0xc0] sm:$0xff] %v5878
        %5929 = vst [vmem:[#allocation3 + $0xc8] sm:$0xff] %v5879
        %5930 = vst [vmem:[#allocation3 + $0xd0] sm:$0xff] %v5880
        %5931 = vst [vmem:[#allocation3 + $0xd8] sm:$0xff] %v5881
        %5932 = vst [vmem:[#allocation3 + $0xe0] sm:$0xff] %v5882
        %5933 = vst [vmem:[#allocation3 + $0xe8] sm:$0xff] %v5883
        %5934 = vst [vmem:[#allocation3 + $0xf0] sm:$0xff] %v5884
        %5935 = vst [vmem:[#allocation3 + $0xf8] sm:$0xff] %v5885
        %5936 = vst [vmem:[#allocation3 + $0x100] sm:$0xff] %v5886
        %5937 = vst [vmem:[#allocation3 + $0x108] sm:$0xff] %v5887
        %5938 = vst [vmem:[#allocation3 + $0x110] sm:$0xff] %v5888
        %5939 = vst [vmem:[#allocation3 + $0x118] sm:$0xff] %v5889
        %5940 = vst [vmem:[#allocation3 + $0x120] sm:$0xff] %v5890
        %5941 = vst [vmem:[#allocation3 + $0x128] sm:$0xff] %v5891
        %5942 = vst [vmem:[#allocation3 + $0x130] sm:$0xff] %v5892
        %5943 = vst [vmem:[#allocation3 + $0x138] sm:$0xff] %v5893
        %5944 = vst [vmem:[#allocation3 + $0x140] sm:$0xff] %v5894
        %5945 = vst [vmem:[#allocation3 + $0x148] sm:$0xff] %v5895
        %5946 = vst [vmem:[#allocation3 + $0x150] sm:$0xff] %v5896
        %5947 = vst [vmem:[#allocation3 + $0x158] sm:$0xff] %v5897
        %5948 = vst [vmem:[#allocation3 + $0x160] sm:$0xff] %v5898
        %5949 = vst [vmem:[#allocation3 + $0x168] sm:$0xff] %v5899
        %5950 = vst [vmem:[#allocation3 + $0x170] sm:$0xff] %v5900
        %5951 = vst [vmem:[#allocation3 + $0x178] sm:$0xff] %v5901
        %5952 = vst [vmem:[#allocation3 + $0x180] sm:$0xff] %v5902
        %5953 = vst [vmem:[#allocation3 + $0x188] sm:$0xff] %v5903
        %s5954 = scalar_lea.vmem [#allocation2], 576
        %v5955 = vld [vmem:[%s5954] sm:$0xff]
        %v5956 = vld [vmem:[%s5954 + $0x8] sm:$0xff]
        %v5957 = vld [vmem:[%s5954 + $0x10] sm:$0xff]
        %v5958 = vld [vmem:[%s5954 + $0x18] sm:$0xff]
        %v5959 = vld [vmem:[%s5954 + $0x20] sm:$0xff]
        %v5960 = vld [vmem:[%s5954 + $0x30] sm:$0xff]
        %v5961 = vld [vmem:[%s5954 + $0x38] sm:$0xff]
        %v5962 = vld [vmem:[%s5954 + $0x40] sm:$0xff]
        %v5963 = vld [vmem:[%s5954 + $0x48] sm:$0xff]
        %v5964 = vld [vmem:[%s5954 + $0x50] sm:$0xff]
        %v5965 = vld [vmem:[%s5954 + $0x60] sm:$0xff]
        %v5966 = vld [vmem:[%s5954 + $0x68] sm:$0xff]
        %v5967 = vld [vmem:[%s5954 + $0x70] sm:$0xff]
        %v5968 = vld [vmem:[%s5954 + $0x78] sm:$0xff]
        %v5969 = vld [vmem:[%s5954 + $0x80] sm:$0xff]
        %v5970 = vld [vmem:[%s5954 + $0x90] sm:$0xff]
        %v5971 = vld [vmem:[%s5954 + $0x98] sm:$0xff]
        %v5972 = vld [vmem:[%s5954 + $0xa0] sm:$0xff]
        %v5973 = vld [vmem:[%s5954 + $0xa8] sm:$0xff]
        %v5974 = vld [vmem:[%s5954 + $0xb0] sm:$0xff]
        %v5975 = vld [vmem:[%s5954 + $0xc0] sm:$0xff]
        %v5976 = vld [vmem:[%s5954 + $0xc8] sm:$0xff]
        %v5977 = vld [vmem:[%s5954 + $0xd0] sm:$0xff]
        %v5978 = vld [vmem:[%s5954 + $0xd8] sm:$0xff]
        %v5979 = vld [vmem:[%s5954 + $0xe0] sm:$0xff]
        %s5980 = scalar_lea.vmem [#allocation2], 584
        %v5981 = vld [vmem:[%s5980] sm:$0xff]
        %v5982 = vld [vmem:[%s5980 + $0x8] sm:$0xff]
        %v5983 = vld [vmem:[%s5980 + $0x10] sm:$0xff]
        %v5984 = vld [vmem:[%s5980 + $0x18] sm:$0xff]
        %v5985 = vld [vmem:[%s5980 + $0x20] sm:$0xff]
        %v5986 = vld [vmem:[%s5980 + $0x30] sm:$0xff]
        %v5987 = vld [vmem:[%s5980 + $0x38] sm:$0xff]
        %v5988 = vld [vmem:[%s5980 + $0x40] sm:$0xff]
        %v5989 = vld [vmem:[%s5980 + $0x48] sm:$0xff]
        %v5990 = vld [vmem:[%s5980 + $0x50] sm:$0xff]
        %v5991 = vld [vmem:[%s5980 + $0x60] sm:$0xff]
        %v5992 = vld [vmem:[%s5980 + $0x68] sm:$0xff]
        %v5993 = vld [vmem:[%s5980 + $0x70] sm:$0xff]
        %v5994 = vld [vmem:[%s5980 + $0x78] sm:$0xff]
        %v5995 = vld [vmem:[%s5980 + $0x80] sm:$0xff]
        %v5996 = vld [vmem:[%s5980 + $0x90] sm:$0xff]
        %v5997 = vld [vmem:[%s5980 + $0x98] sm:$0xff]
        %v5998 = vld [vmem:[%s5980 + $0xa0] sm:$0xff]
        %v5999 = vld [vmem:[%s5980 + $0xa8] sm:$0xff]
        %v6000 = vld [vmem:[%s5980 + $0xb0] sm:$0xff]
        %v6001 = vld [vmem:[%s5980 + $0xc0] sm:$0xff]
        %v6002 = vld [vmem:[%s5980 + $0xc8] sm:$0xff]
        %v6003 = vld [vmem:[%s5980 + $0xd0] sm:$0xff]
        %v6004 = vld [vmem:[%s5980 + $0xd8] sm:$0xff]
        %v6005 = vld [vmem:[%s5980 + $0xe0] sm:$0xff]
        %s6006 = scalar_lea.vmem [#allocation2], 624
        %v6007 = vld [vmem:[%s6006] sm:$0xff]
        %v6008 = vld [vmem:[%s6006 + $0x8] sm:$0xff]
        %v6009 = vld [vmem:[%s6006 + $0x10] sm:$0xff]
        %v6010 = vld [vmem:[%s6006 + $0x18] sm:$0xff]
        %v6011 = vld [vmem:[%s6006 + $0x20] sm:$0xff]
        %v6012 = vld [vmem:[%s6006 + $0x30] sm:$0xff]
        %v6013 = vld [vmem:[%s6006 + $0x38] sm:$0xff]
        %v6014 = vld [vmem:[%s6006 + $0x40] sm:$0xff]
        %v6015 = vld [vmem:[%s6006 + $0x48] sm:$0xff]
        %v6016 = vld [vmem:[%s6006 + $0x50] sm:$0xff]
        %v6017 = vld [vmem:[%s6006 + $0x60] sm:$0xff]
        %v6018 = vld [vmem:[%s6006 + $0x68] sm:$0xff]
        %v6019 = vld [vmem:[%s6006 + $0x70] sm:$0xff]
        %v6020 = vld [vmem:[%s6006 + $0x78] sm:$0xff]
        %v6021 = vld [vmem:[%s6006 + $0x80] sm:$0xff]
        %v6022 = vld [vmem:[%s6006 + $0x90] sm:$0xff]
        %v6023 = vld [vmem:[%s6006 + $0x98] sm:$0xff]
        %v6024 = vld [vmem:[%s6006 + $0xa0] sm:$0xff]
        %v6025 = vld [vmem:[%s6006 + $0xa8] sm:$0xff]
        %v6026 = vld [vmem:[%s6006 + $0xb0] sm:$0xff]
        %v6027 = vld [vmem:[%s6006 + $0xc0] sm:$0xff]
        %v6028 = vld [vmem:[%s6006 + $0xc8] sm:$0xff]
        %v6029 = vld [vmem:[%s6006 + $0xd0] sm:$0xff]
        %v6030 = vld [vmem:[%s6006 + $0xd8] sm:$0xff]
        %v6031 = vld [vmem:[%s6006 + $0xe0] sm:$0xff]
        %s6032 = scalar_lea.vmem [#allocation2], 632
        %v6033 = vld [vmem:[%s6032] sm:$0xff]
        %v6034 = vld [vmem:[%s6032 + $0x8] sm:$0xff]
        %v6035 = vld [vmem:[%s6032 + $0x10] sm:$0xff]
        %v6036 = vld [vmem:[%s6032 + $0x18] sm:$0xff]
        %v6037 = vld [vmem:[%s6032 + $0x20] sm:$0xff]
        %v6038 = vld [vmem:[%s6032 + $0x30] sm:$0xff]
        %v6039 = vld [vmem:[%s6032 + $0x38] sm:$0xff]
        %v6040 = vld [vmem:[%s6032 + $0x40] sm:$0xff]
        %v6041 = vld [vmem:[%s6032 + $0x48] sm:$0xff]
        %v6042 = vld [vmem:[%s6032 + $0x50] sm:$0xff]
        %v6043 = vld [vmem:[%s6032 + $0x60] sm:$0xff]
        %v6044 = vld [vmem:[%s6032 + $0x68] sm:$0xff]
        %v6045 = vld [vmem:[%s6032 + $0x70] sm:$0xff]
        %v6046 = vld [vmem:[%s6032 + $0x78] sm:$0xff]
        %v6047 = vld [vmem:[%s6032 + $0x80] sm:$0xff]
        %v6048 = vld [vmem:[%s6032 + $0x90] sm:$0xff]
        %v6049 = vld [vmem:[%s6032 + $0x98] sm:$0xff]
        %v6050 = vld [vmem:[%s6032 + $0xa0] sm:$0xff]
        %v6051 = vld [vmem:[%s6032 + $0xa8] sm:$0xff]
        %v6052 = vld [vmem:[%s6032 + $0xb0] sm:$0xff]
        %v6053 = vld [vmem:[%s6032 + $0xc0] sm:$0xff]
        %v6054 = vld [vmem:[%s6032 + $0xc8] sm:$0xff]
        %v6055 = vld [vmem:[%s6032 + $0xd0] sm:$0xff]
        %v6056 = vld [vmem:[%s6032 + $0xd8] sm:$0xff]
        %v6057 = vld [vmem:[%s6032 + $0xe0] sm:$0xff]
        %v6058 = vsel %vm4883, %v6007, %v6033
        %v6059 = vsel %vm4883, %v6008, %v6034
        %v6060 = vsel %vm4883, %v6009, %v6035
        %v6061 = vsel %vm4883, %v6010, %v6036
        %v6062 = vsel %vm4883, %v6011, %v6037
        %v6063 = vsel %vm4883, %v6012, %v6038
        %v6064 = vsel %vm4883, %v6013, %v6039
        %v6065 = vsel %vm4883, %v6014, %v6040
        %v6066 = vsel %vm4883, %v6015, %v6041
        %v6067 = vsel %vm4883, %v6016, %v6042
        %v6068 = vsel %vm4883, %v6017, %v6043
        %v6069 = vsel %vm4883, %v6018, %v6044
        %v6070 = vsel %vm4883, %v6019, %v6045
        %v6071 = vsel %vm4883, %v6020, %v6046
        %v6072 = vsel %vm4883, %v6021, %v6047
        %v6073 = vsel %vm4883, %v6022, %v6048
        %v6074 = vsel %vm4883, %v6023, %v6049
        %v6075 = vsel %vm4883, %v6024, %v6050
        %v6076 = vsel %vm4883, %v6025, %v6051
        %v6077 = vsel %vm4883, %v6026, %v6052
        %v6078 = vsel %vm4883, %v6027, %v6053
        %v6079 = vsel %vm4883, %v6028, %v6054
        %v6080 = vsel %vm4883, %v6029, %v6055
        %v6081 = vsel %vm4883, %v6030, %v6056
        %v6082 = vsel %vm4883, %v6031, %v6057
        %v6083 = vsel %vm4915, %v5981, %v6058
        %v6084 = vsel %vm4915, %v5982, %v6059
        %v6085 = vsel %vm4915, %v5983, %v6060
        %v6086 = vsel %vm4915, %v5984, %v6061
        %v6087 = vsel %vm4915, %v5985, %v6062
        %v6088 = vsel %vm4915, %v5986, %v6063
        %v6089 = vsel %vm4915, %v5987, %v6064
        %v6090 = vsel %vm4915, %v5988, %v6065
        %v6091 = vsel %vm4915, %v5989, %v6066
        %v6092 = vsel %vm4915, %v5990, %v6067
        %v6093 = vsel %vm4915, %v5991, %v6068
        %v6094 = vsel %vm4915, %v5992, %v6069
        %v6095 = vsel %vm4915, %v5993, %v6070
        %v6096 = vsel %vm4915, %v5994, %v6071
        %v6097 = vsel %vm4915, %v5995, %v6072
        %v6098 = vsel %vm4915, %v5996, %v6073
        %v6099 = vsel %vm4915, %v5997, %v6074
        %v6100 = vsel %vm4915, %v5998, %v6075
        %v6101 = vsel %vm4915, %v5999, %v6076
        %v6102 = vsel %vm4915, %v6000, %v6077
        %v6103 = vsel %vm4915, %v6001, %v6078
        %v6104 = vsel %vm4915, %v6002, %v6079
        %v6105 = vsel %vm4915, %v6003, %v6080
        %v6106 = vsel %vm4915, %v6004, %v6081
        %v6107 = vsel %vm4915, %v6005, %v6082
        %v6108 = vsel %vm4947, %v5955, %v6083
        %v6109 = vsel %vm4947, %v5956, %v6084
        %v6110 = vsel %vm4947, %v5957, %v6085
        %v6111 = vsel %vm4947, %v5958, %v6086
        %v6112 = vsel %vm4947, %v5959, %v6087
        %v6113 = vsel %vm4947, %v5960, %v6088
        %v6114 = vsel %vm4947, %v5961, %v6089
        %v6115 = vsel %vm4947, %v5962, %v6090
        %v6116 = vsel %vm4947, %v5963, %v6091
        %v6117 = vsel %vm4947, %v5964, %v6092
        %v6118 = vsel %vm4947, %v5965, %v6093
        %v6119 = vsel %vm4947, %v5966, %v6094
        %v6120 = vsel %vm4947, %v5967, %v6095
        %v6121 = vsel %vm4947, %v5968, %v6096
        %v6122 = vsel %vm4947, %v5969, %v6097
        %v6123 = vsel %vm4947, %v5970, %v6098
        %v6124 = vsel %vm4947, %v5971, %v6099
        %v6125 = vsel %vm4947, %v5972, %v6100
        %v6126 = vsel %vm4947, %v5973, %v6101
        %v6127 = vsel %vm4947, %v5974, %v6102
        %v6128 = vsel %vm4947, %v5975, %v6103
        %v6129 = vsel %vm4947, %v5976, %v6104
        %v6130 = vsel %vm4947, %v5977, %v6105
        %v6131 = vsel %vm4947, %v5978, %v6106
        %v6132 = vsel %vm4947, %v5979, %v6107
        %s6133 = scalar_lea.vmem %s3, 128
        %v6134 = vld [vmem:[%s6133] sm:$0xf]
        %v6135 = vld [vmem:[%s6133 + $0x4] sm:$0xf]
        %v6136 = vld [vmem:[%s6133 + $0x8] sm:$0xf]
        %v6137 = vld [vmem:[%s6133 + $0xc] sm:$0xf]
        %v6138 = vld [vmem:[%s6133 + $0x10] sm:$0xf]
        %v6139 = vld [vmem:[%s6133 + $0x14] sm:$0xf]
        %v6140 = vld [vmem:[%s6133 + $0x18] sm:$0xf]
        %v6141 = vld [vmem:[%s6133 + $0x1c] sm:$0xf]
        %v6142 = vld [vmem:[%s6133 + $0x20] sm:$0xf]
        %v6143 = vld [vmem:[%s6133 + $0x24] sm:$0xf]
        %v6144 = vld [vmem:[%s6133 + $0x28] sm:$0xf]
        %v6145 = vld [vmem:[%s6133 + $0x2c] sm:$0xf]
        %v6146 = vld [vmem:[%s6133 + $0x30] sm:$0xf]
        %v6147 = vld [vmem:[%s6133 + $0x34] sm:$0xf]
        %v6148 = vld [vmem:[%s6133 + $0x38] sm:$0xf]
        %v6149 = vld [vmem:[%s6133 + $0x3c] sm:$0xf]
        %v6166 = vunpack.c.l.b16 %v6134
        %v6167 = vunpack.c.l.b16 %v6135
        %v6168 = vunpack.c.l.b16 %v6136
        %v6169 = vunpack.c.l.b16 %v6137
        %v6170 = vunpack.c.l.b16 %v6138
        %v6171 = vunpack.c.l.b16 %v6139
        %v6172 = vunpack.c.l.b16 %v6140
        %v6173 = vunpack.c.l.b16 %v6141
        %v6174 = vunpack.c.l.b16 %v6142
        %v6175 = vunpack.c.l.b16 %v6143
        %v6176 = vunpack.c.l.b16 %v6144
        %v6177 = vunpack.c.l.b16 %v6145
        %v6178 = vunpack.c.l.b16 %v6146
        %v6179 = vunpack.c.l.b16 %v6147
        %v6180 = vunpack.c.l.b16 %v6148
        %v6181 = vunpack.c.l.b16 %v6149
        %v6182 = vpack.c.b16 %v6167, %v6166
        %v6183 = vpack.c.b16 %v6169, %v6168
        %v6184 = vpack.c.b16 %v6171, %v6170
        %v6185 = vpack.c.b16 %v6173, %v6172
        %v6186 = vpack.c.b16 %v6175, %v6174
        %v6187 = vpack.c.b16 %v6177, %v6176
        %v6188 = vpack.c.b16 %v6179, %v6178
        %v6189 = vpack.c.b16 %v6181, %v6180
        %6198 = vmatprep.subr.bf16.mxu0 0
        %6199 = vmatpush1.bf16.msra.mxu0 %v6182
        %6200 = vmatprep.subr.bf16.mxu0 0
        %6201 = vmatpush1.bf16.msra.mxu0 %v6183
        %6202 = vmatprep.subr.bf16.mxu0 0
        %6203 = vmatpush1.bf16.msra.mxu0 %v6184
        %6204 = vmatprep.subr.bf16.mxu0 0
        %6205 = vmatpush1.bf16.msra.mxu0 %v6185
        %6206 = vmatprep.subr.bf16.mxu0 0
        %6207 = vmatpush1.bf16.msra.mxu0 %v6186
        %6208 = vmatprep.subr.bf16.mxu0 0
        %6209 = vmatpush1.bf16.msra.mxu0 %v6187
        %6210 = vmatprep.subr.bf16.mxu0 0
        %6211 = vmatpush1.bf16.msra.mxu0 %v6188
        %6212 = vmatprep.subr.bf16.mxu0 0
        %6213 = vmatpush1.bf16.msra.mxu0 %v6189
        %6214 = vmatprep.subr.bf16.mxu0 0
        %6215 = vmatpush1.bf16.msra.mxu0 0
        %6216 = vmatprep.subr.bf16.mxu0 0
        %6217 = vmatpush1.bf16.msra.mxu0 0
        %6218 = vmatprep.subr.bf16.mxu0 0
        %6219 = vmatpush1.bf16.msra.mxu0 0
        %6220 = vmatprep.subr.bf16.mxu0 0
        %6221 = vmatpush1.bf16.msra.mxu0 0
        %6222 = vmatprep.subr.bf16.mxu0 0
        %6223 = vmatpush1.bf16.msra.mxu0 0
        %6224 = vmatprep.subr.bf16.mxu0 0
        %6225 = vmatpush1.bf16.msra.mxu0 0
        %6226 = vmatprep.subr.bf16.mxu0 0
        %6227 = vmatpush1.bf16.msra.mxu0 0
        %6228 = vmatprep.subr.bf16.mxu0 0
        %6229 = vmatpush1.bf16.msra.mxu0 0
        %6230 = vmatprep.mubr.bf16.mxu0 0
        %6231 = vmatmul.mubr.bf16.gmra.mrb[0].mxu0 %v6108
        %v6232 = vpop.f32.mrb[0].mxu0
        %v6233 = vadd.f32 0.0, %v6232
        %v6234 = vpop.f32.mrb[0].mxu0
        %v6235 = vpop.f32.mrb[0].mxu0
        %v6236 = vadd.f32 0.0, %v6235
        %v6237 = vpop.f32.mrb[0].mxu0
        %6238 = vmatprep.mubr.bf16.mxu0 0
        %6239 = vmatmul.mubr.bf16.gmra.mrb[0].mxu0 %v6109
        %v6240 = vpop.f32.mrb[0].mxu0
        %v6241 = vadd.f32 0.0, %v6240
        %v6242 = vpop.f32.mrb[0].mxu0
        %v6243 = vpop.f32.mrb[0].mxu0
        %v6244 = vadd.f32 0.0, %v6243
        %v6245 = vpop.f32.mrb[0].mxu0
        %6246 = vmatprep.mubr.bf16.mxu0 0
        %6247 = vmatmul.mubr.bf16.gmra.mrb[0].mxu0 %v6110
        %v6248 = vpop.f32.mrb[0].mxu0
        %v6249 = vadd.f32 0.0, %v6248
        %v6250 = vpop.f32.mrb[0].mxu0
        %v6251 = vpop.f32.mrb[0].mxu0
        %v6252 = vadd.f32 0.0, %v6251
        %v6253 = vpop.f32.mrb[0].mxu0
        %6254 = vmatprep.mubr.bf16.mxu0 0
        %6255 = vmatmul.mubr.bf16.gmra.mrb[0].mxu0 %v6111
        %v6256 = vpop.f32.mrb[0].mxu0
        %v6257 = vadd.f32 0.0, %v6256
        %v6258 = vpop.f32.mrb[0].mxu0
        %v6259 = vpop.f32.mrb[0].mxu0
        %v6260 = vadd.f32 0.0, %v6259
        %v6261 = vpop.f32.mrb[0].mxu0
        %6262 = vmatprep.mubr.bf16.mxu0 0
        %6263 = vmatmul.mubr.bf16.gmra.mrb[0].mxu0 %v6112
        %v6264 = vpop.f32.mrb[0].mxu0
        %v6265 = vadd.f32 0.0, %v6264
        %v6266 = vpop.f32.mrb[0].mxu0
        %v6267 = vpop.f32.mrb[0].mxu0
        %v6268 = vadd.f32 0.0, %v6267
        %v6269 = vpop.f32.mrb[0].mxu0
        %6270 = vmatprep.mubr.bf16.mxu0 0
        %6271 = vmatmul.mubr.bf16.gmra.mrb[0].mxu0 %v6113
        %v6272 = vpop.f32.mrb[0].mxu0
        %v6273 = vadd.f32 0.0, %v6272
        %v6274 = vpop.f32.mrb[0].mxu0
        %v6275 = vpop.f32.mrb[0].mxu0
        %v6276 = vadd.f32 0.0, %v6275
        %v6277 = vpop.f32.mrb[0].mxu0
        %6278 = vmatprep.mubr.bf16.mxu0 0
        %6279 = vmatmul.mubr.bf16.gmra.mrb[0].mxu0 %v6114
        %v6280 = vpop.f32.mrb[0].mxu0
        %v6281 = vadd.f32 0.0, %v6280
        %v6282 = vpop.f32.mrb[0].mxu0
        %v6283 = vpop.f32.mrb[0].mxu0
        %v6284 = vadd.f32 0.0, %v6283
        %v6285 = vpop.f32.mrb[0].mxu0
        %6286 = vmatprep.mubr.bf16.mxu0 0
        %6287 = vmatmul.mubr.bf16.gmra.mrb[0].mxu0 %v6115
        %v6288 = vpop.f32.mrb[0].mxu0
        %v6289 = vadd.f32 0.0, %v6288
        %v6290 = vpop.f32.mrb[0].mxu0
        %v6291 = vpop.f32.mrb[0].mxu0
        %v6292 = vadd.f32 0.0, %v6291
        %v6293 = vpop.f32.mrb[0].mxu0
        %6294 = vmatprep.mubr.bf16.mxu0 0
        %6295 = vmatmul.mubr.bf16.gmra.mrb[0].mxu0 %v6116
        %v6296 = vpop.f32.mrb[0].mxu0
        %v6297 = vadd.f32 0.0, %v6296
        %v6298 = vpop.f32.mrb[0].mxu0
        %v6299 = vpop.f32.mrb[0].mxu0
        %v6300 = vadd.f32 0.0, %v6299
        %v6301 = vpop.f32.mrb[0].mxu0
        %6302 = vmatprep.mubr.bf16.mxu0 0
        %6303 = vmatmul.mubr.bf16.gmra.mrb[0].mxu0 %v6117
        %v6304 = vpop.f32.mrb[0].mxu0
        %v6305 = vadd.f32 0.0, %v6304
        %v6306 = vpop.f32.mrb[0].mxu0
        %v6307 = vpop.f32.mrb[0].mxu0
        %v6308 = vadd.f32 0.0, %v6307
        %v6309 = vpop.f32.mrb[0].mxu0
        %6310 = vmatprep.mubr.bf16.mxu0 0
        %6311 = vmatmul.mubr.bf16.gmra.mrb[0].mxu0 %v6118
        %v6312 = vpop.f32.mrb[0].mxu0
        %v6313 = vadd.f32 0.0, %v6312
        %v6314 = vpop.f32.mrb[0].mxu0
        %v6315 = vpop.f32.mrb[0].mxu0
        %v6316 = vadd.f32 0.0, %v6315
        %v6317 = vpop.f32.mrb[0].mxu0
        %6318 = vmatprep.mubr.bf16.mxu0 0
        %6319 = vmatmul.mubr.bf16.gmra.mrb[0].mxu0 %v6119
        %v6320 = vpop.f32.mrb[0].mxu0
        %v6321 = vadd.f32 0.0, %v6320
        %v6322 = vpop.f32.mrb[0].mxu0
        %v6323 = vpop.f32.mrb[0].mxu0
        %v6324 = vadd.f32 0.0, %v6323
        %v6325 = vpop.f32.mrb[0].mxu0
        %6326 = vmatprep.mubr.bf16.mxu0 0
        %6327 = vmatmul.mubr.bf16.gmra.mrb[0].mxu0 %v6120
        %v6328 = vpop.f32.mrb[0].mxu0
        %v6329 = vadd.f32 0.0, %v6328
        %v6330 = vpop.f32.mrb[0].mxu0
        %v6331 = vpop.f32.mrb[0].mxu0
        %v6332 = vadd.f32 0.0, %v6331
        %v6333 = vpop.f32.mrb[0].mxu0
        %6334 = vmatprep.mubr.bf16.mxu0 0
        %6335 = vmatmul.mubr.bf16.gmra.mrb[0].mxu0 %v6121
        %v6336 = vpop.f32.mrb[0].mxu0
        %v6337 = vadd.f32 0.0, %v6336
        %v6338 = vpop.f32.mrb[0].mxu0
        %v6339 = vpop.f32.mrb[0].mxu0
        %v6340 = vadd.f32 0.0, %v6339
        %v6341 = vpop.f32.mrb[0].mxu0
        %6342 = vmatprep.mubr.bf16.mxu0 0
        %6343 = vmatmul.mubr.bf16.gmra.mrb[0].mxu0 %v6122
        %v6344 = vpop.f32.mrb[0].mxu0
        %v6345 = vadd.f32 0.0, %v6344
        %v6346 = vpop.f32.mrb[0].mxu0
        %v6347 = vpop.f32.mrb[0].mxu0
        %v6348 = vadd.f32 0.0, %v6347
        %v6349 = vpop.f32.mrb[0].mxu0
        %6350 = vmatprep.mubr.bf16.mxu0 0
        %6351 = vmatmul.mubr.bf16.gmra.mrb[0].mxu0 %v6123
        %v6352 = vpop.f32.mrb[0].mxu0
        %v6353 = vadd.f32 0.0, %v6352
        %v6354 = vpop.f32.mrb[0].mxu0
        %v6355 = vpop.f32.mrb[0].mxu0
        %v6356 = vadd.f32 0.0, %v6355
        %v6357 = vpop.f32.mrb[0].mxu0
        %6358 = vmatprep.mubr.bf16.mxu0 0
        %6359 = vmatmul.mubr.bf16.gmra.mrb[0].mxu0 %v6124
        %v6360 = vpop.f32.mrb[0].mxu0
        %v6361 = vadd.f32 0.0, %v6360
        %v6362 = vpop.f32.mrb[0].mxu0
        %v6363 = vpop.f32.mrb[0].mxu0
        %v6364 = vadd.f32 0.0, %v6363
        %v6365 = vpop.f32.mrb[0].mxu0
        %6366 = vmatprep.mubr.bf16.mxu0 0
        %6367 = vmatmul.mubr.bf16.gmra.mrb[0].mxu0 %v6125
        %v6368 = vpop.f32.mrb[0].mxu0
        %v6369 = vadd.f32 0.0, %v6368
        %v6370 = vpop.f32.mrb[0].mxu0
        %v6371 = vpop.f32.mrb[0].mxu0
        %v6372 = vadd.f32 0.0, %v6371
        %v6373 = vpop.f32.mrb[0].mxu0
        %6374 = vmatprep.mubr.bf16.mxu0 0
        %6375 = vmatmul.mubr.bf16.gmra.mrb[0].mxu0 %v6126
        %v6376 = vpop.f32.mrb[0].mxu0
        %v6377 = vadd.f32 0.0, %v6376
        %v6378 = vpop.f32.mrb[0].mxu0
        %v6379 = vpop.f32.mrb[0].mxu0
        %v6380 = vadd.f32 0.0, %v6379
        %v6381 = vpop.f32.mrb[0].mxu0
        %6382 = vmatprep.mubr.bf16.mxu0 0
        %6383 = vmatmul.mubr.bf16.gmra.mrb[0].mxu0 %v6127
        %v6384 = vpop.f32.mrb[0].mxu0
        %v6385 = vadd.f32 0.0, %v6384
        %v6386 = vpop.f32.mrb[0].mxu0
        %v6387 = vpop.f32.mrb[0].mxu0
        %v6388 = vadd.f32 0.0, %v6387
        %v6389 = vpop.f32.mrb[0].mxu0
        %6390 = vmatprep.mubr.bf16.mxu0 0
        %6391 = vmatmul.mubr.bf16.gmra.mrb[0].mxu0 %v6128
        %v6392 = vpop.f32.mrb[0].mxu0
        %v6393 = vadd.f32 0.0, %v6392
        %v6394 = vpop.f32.mrb[0].mxu0
        %v6395 = vpop.f32.mrb[0].mxu0
        %v6396 = vadd.f32 0.0, %v6395
        %v6397 = vpop.f32.mrb[0].mxu0
        %6398 = vmatprep.mubr.bf16.mxu0 0
        %6399 = vmatmul.mubr.bf16.gmra.mrb[0].mxu0 %v6129
        %v6400 = vpop.f32.mrb[0].mxu0
        %v6401 = vadd.f32 0.0, %v6400
        %v6402 = vpop.f32.mrb[0].mxu0
        %v6403 = vpop.f32.mrb[0].mxu0
        %v6404 = vadd.f32 0.0, %v6403
        %v6405 = vpop.f32.mrb[0].mxu0
        %6406 = vmatprep.mubr.bf16.mxu0 0
        %6407 = vmatmul.mubr.bf16.gmra.mrb[0].mxu0 %v6130
        %v6408 = vpop.f32.mrb[0].mxu0
        %v6409 = vadd.f32 0.0, %v6408
        %v6410 = vpop.f32.mrb[0].mxu0
        %v6411 = vpop.f32.mrb[0].mxu0
        %v6412 = vadd.f32 0.0, %v6411
        %v6413 = vpop.f32.mrb[0].mxu0
        %6414 = vmatprep.mubr.bf16.mxu0 0
        %6415 = vmatmul.mubr.bf16.gmra.mrb[0].mxu0 %v6131
        %v6416 = vpop.f32.mrb[0].mxu0
        %v6417 = vadd.f32 0.0, %v6416
        %v6418 = vpop.f32.mrb[0].mxu0
        %v6419 = vpop.f32.mrb[0].mxu0
        %v6420 = vadd.f32 0.0, %v6419
        %v6421 = vpop.f32.mrb[0].mxu0
        %6422 = vmatprep.mubr.bf16.mxu0 0
        %6423 = vmatmul.mubr.bf16.gmra.mrb[0].mxu0 %v6132
        %v6424 = vpop.f32.mrb[0].mxu0
        %v6425 = vadd.f32 0.0, %v6424
        %v6426 = vpop.f32.mrb[0].mxu0
        %v6427 = vpop.f32.mrb[0].mxu0
        %v6428 = vadd.f32 0.0, %v6427
        %v6429 = vpop.f32.mrb[0].mxu0
        %6430 = vdwg.mxu0
        %v6431 = vld [vmem:[#allocation3] sm:$0xff]
        %v6432 = vld [vmem:[#allocation3 + $0x8] sm:$0xff]
        %v6433 = vld [vmem:[#allocation3 + $0x10] sm:$0xff]
        %v6434 = vld [vmem:[#allocation3 + $0x18] sm:$0xff]
        %v6435 = vld [vmem:[#allocation3 + $0x20] sm:$0xff]
        %v6436 = vld [vmem:[#allocation3 + $0x28] sm:$0xff]
        %v6437 = vld [vmem:[#allocation3 + $0x30] sm:$0xff]
        %v6438 = vld [vmem:[#allocation3 + $0x38] sm:$0xff]
        %v6439 = vld [vmem:[#allocation3 + $0x40] sm:$0xff]
        %v6440 = vld [vmem:[#allocation3 + $0x48] sm:$0xff]
        %v6441 = vld [vmem:[#allocation3 + $0x50] sm:$0xff]
        %v6442 = vld [vmem:[#allocation3 + $0x58] sm:$0xff]
        %v6443 = vld [vmem:[#allocation3 + $0x60] sm:$0xff]
        %v6444 = vld [vmem:[#allocation3 + $0x68] sm:$0xff]
        %v6445 = vld [vmem:[#allocation3 + $0x70] sm:$0xff]
        %v6446 = vld [vmem:[#allocation3 + $0x78] sm:$0xff]
        %v6447 = vld [vmem:[#allocation3 + $0x80] sm:$0xff]
        %v6448 = vld [vmem:[#allocation3 + $0x88] sm:$0xff]
        %v6449 = vld [vmem:[#allocation3 + $0x90] sm:$0xff]
        %v6450 = vld [vmem:[#allocation3 + $0x98] sm:$0xff]
        %v6451 = vld [vmem:[#allocation3 + $0xa0] sm:$0xff]
        %v6452 = vld [vmem:[#allocation3 + $0xa8] sm:$0xff]
        %v6453 = vld [vmem:[#allocation3 + $0xb0] sm:$0xff]
        %v6454 = vld [vmem:[#allocation3 + $0xb8] sm:$0xff]
        %v6455 = vld [vmem:[#allocation3 + $0xc0] sm:$0xff]
        %v6456 = vld [vmem:[#allocation3 + $0xc8] sm:$0xff]
        %v6457 = vld [vmem:[#allocation3 + $0xd0] sm:$0xff]
        %v6458 = vld [vmem:[#allocation3 + $0xd8] sm:$0xff]
        %v6459 = vld [vmem:[#allocation3 + $0xe0] sm:$0xff]
        %v6460 = vld [vmem:[#allocation3 + $0xe8] sm:$0xff]
        %v6461 = vld [vmem:[#allocation3 + $0xf0] sm:$0xff]
        %v6462 = vld [vmem:[#allocation3 + $0xf8] sm:$0xff]
        %v6463 = vld [vmem:[#allocation3 + $0x100] sm:$0xff]
        %v6464 = vld [vmem:[#allocation3 + $0x108] sm:$0xff]
        %v6465 = vld [vmem:[#allocation3 + $0x110] sm:$0xff]
        %v6466 = vld [vmem:[#allocation3 + $0x118] sm:$0xff]
        %v6467 = vld [vmem:[#allocation3 + $0x120] sm:$0xff]
        %v6468 = vld [vmem:[#allocation3 + $0x128] sm:$0xff]
        %v6469 = vld [vmem:[#allocation3 + $0x130] sm:$0xff]
        %v6470 = vld [vmem:[#allocation3 + $0x138] sm:$0xff]
        %v6471 = vld [vmem:[#allocation3 + $0x140] sm:$0xff]
        %v6472 = vld [vmem:[#allocation3 + $0x148] sm:$0xff]
        %v6473 = vld [vmem:[#allocation3 + $0x150] sm:$0xff]
        %v6474 = vld [vmem:[#allocation3 + $0x158] sm:$0xff]
        %v6475 = vld [vmem:[#allocation3 + $0x160] sm:$0xff]
        %v6476 = vld [vmem:[#allocation3 + $0x168] sm:$0xff]
        %v6477 = vld [vmem:[#allocation3 + $0x170] sm:$0xff]
        %v6478 = vld [vmem:[#allocation3 + $0x178] sm:$0xff]
        %v6479 = vld [vmem:[#allocation3 + $0x180] sm:$0xff]
        %v6480 = vld [vmem:[#allocation3 + $0x188] sm:$0xff]
        %v6481 = vadd.f32 %v6431, %v6233
        %v6482 = vadd.f32 %v6432, %v6236
        %v6483 = vadd.f32 %v6433, %v6241
        %v6484 = vadd.f32 %v6434, %v6244
        %v6485 = vadd.f32 %v6435, %v6249
        %v6486 = vadd.f32 %v6436, %v6252
        %v6487 = vadd.f32 %v6437, %v6257
        %v6488 = vadd.f32 %v6438, %v6260
        %v6489 = vadd.f32 %v6439, %v6265
        %v6490 = vadd.f32 %v6440, %v6268
        %v6491 = vadd.f32 %v6441, %v6273
        %v6492 = vadd.f32 %v6442, %v6276
        %v6493 = vadd.f32 %v6443, %v6281
        %v6494 = vadd.f32 %v6444, %v6284
        %v6495 = vadd.f32 %v6445, %v6289
        %v6496 = vadd.f32 %v6446, %v6292
        %v6497 = vadd.f32 %v6447, %v6297
        %v6498 = vadd.f32 %v6448, %v6300
        %v6499 = vadd.f32 %v6449, %v6305
        %v6500 = vadd.f32 %v6450, %v6308
        %v6501 = vadd.f32 %v6451, %v6313
        %v6502 = vadd.f32 %v6452, %v6316
        %v6503 = vadd.f32 %v6453, %v6321
        %v6504 = vadd.f32 %v6454, %v6324
        %v6505 = vadd.f32 %v6455, %v6329
        %v6506 = vadd.f32 %v6456, %v6332
        %v6507 = vadd.f32 %v6457, %v6337
        %v6508 = vadd.f32 %v6458, %v6340
        %v6509 = vadd.f32 %v6459, %v6345
        %v6510 = vadd.f32 %v6460, %v6348
        %v6511 = vadd.f32 %v6461, %v6353
        %v6512 = vadd.f32 %v6462, %v6356
        %v6513 = vadd.f32 %v6463, %v6361
        %v6514 = vadd.f32 %v6464, %v6364
        %v6515 = vadd.f32 %v6465, %v6369
        %v6516 = vadd.f32 %v6466, %v6372
        %v6517 = vadd.f32 %v6467, %v6377
        %v6518 = vadd.f32 %v6468, %v6380
        %v6519 = vadd.f32 %v6469, %v6385
        %v6520 = vadd.f32 %v6470, %v6388
        %v6521 = vadd.f32 %v6471, %v6393
        %v6522 = vadd.f32 %v6472, %v6396
        %v6523 = vadd.f32 %v6473, %v6401
        %v6524 = vadd.f32 %v6474, %v6404
        %v6525 = vadd.f32 %v6475, %v6409
        %v6526 = vadd.f32 %v6476, %v6412
        %v6527 = vadd.f32 %v6477, %v6417
        %v6528 = vadd.f32 %v6478, %v6420
        %v6529 = vadd.f32 %v6479, %v6425
        %v6530 = vadd.f32 %v6480, %v6428
        %6531 = vst [vmem:[#allocation3] sm:$0xff] %v6481
        %6532 = vst [vmem:[#allocation3 + $0x8] sm:$0xff] %v6482
        %6533 = vst [vmem:[#allocation3 + $0x10] sm:$0xff] %v6483
        %6534 = vst [vmem:[#allocation3 + $0x18] sm:$0xff] %v6484
        %6535 = vst [vmem:[#allocation3 + $0x20] sm:$0xff] %v6485
        %6536 = vst [vmem:[#allocation3 + $0x28] sm:$0xff] %v6486
        %6537 = vst [vmem:[#allocation3 + $0x30] sm:$0xff] %v6487
        %6538 = vst [vmem:[#allocation3 + $0x38] sm:$0xff] %v6488
        %6539 = vst [vmem:[#allocation3 + $0x40] sm:$0xff] %v6489
        %6540 = vst [vmem:[#allocation3 + $0x48] sm:$0xff] %v6490
        %6541 = vst [vmem:[#allocation3 + $0x50] sm:$0xff] %v6491
        %6542 = vst [vmem:[#allocation3 + $0x58] sm:$0xff] %v6492
        %6543 = vst [vmem:[#allocation3 + $0x60] sm:$0xff] %v6493
        %6544 = vst [vmem:[#allocation3 + $0x68] sm:$0xff] %v6494
        %6545 = vst [vmem:[#allocation3 + $0x70] sm:$0xff] %v6495
        %6546 = vst [vmem:[#allocation3 + $0x78] sm:$0xff] %v6496
        %6547 = vst [vmem:[#allocation3 + $0x80] sm:$0xff] %v6497
        %6548 = vst [vmem:[#allocation3 + $0x88] sm:$0xff] %v6498
        %6549 = vst [vmem:[#allocation3 + $0x90] sm:$0xff] %v6499
        %6550 = vst [vmem:[#allocation3 + $0x98] sm:$0xff] %v6500
        %6551 = vst [vmem:[#allocation3 + $0xa0] sm:$0xff] %v6501
        %6552 = vst [vmem:[#allocation3 + $0xa8] sm:$0xff] %v6502
        %6553 = vst [vmem:[#allocation3 + $0xb0] sm:$0xff] %v6503
        %6554 = vst [vmem:[#allocation3 + $0xb8] sm:$0xff] %v6504
        %6555 = vst [vmem:[#allocation3 + $0xc0] sm:$0xff] %v6505
        %6556 = vst [vmem:[#allocation3 + $0xc8] sm:$0xff] %v6506
        %6557 = vst [vmem:[#allocation3 + $0xd0] sm:$0xff] %v6507
        %6558 = vst [vmem:[#allocation3 + $0xd8] sm:$0xff] %v6508
        %6559 = vst [vmem:[#allocation3 + $0xe0] sm:$0xff] %v6509
        %6560 = vst [vmem:[#allocation3 + $0xe8] sm:$0xff] %v6510
        %6561 = vst [vmem:[#allocation3 + $0xf0] sm:$0xff] %v6511
        %6562 = vst [vmem:[#allocation3 + $0xf8] sm:$0xff] %v6512
        %6563 = vst [vmem:[#allocation3 + $0x100] sm:$0xff] %v6513
        %6564 = vst [vmem:[#allocation3 + $0x108] sm:$0xff] %v6514
        %6565 = vst [vmem:[#allocation3 + $0x110] sm:$0xff] %v6515
        %6566 = vst [vmem:[#allocation3 + $0x118] sm:$0xff] %v6516
        %6567 = vst [vmem:[#allocation3 + $0x120] sm:$0xff] %v6517
        %6568 = vst [vmem:[#allocation3 + $0x128] sm:$0xff] %v6518
        %6569 = vst [vmem:[#allocation3 + $0x130] sm:$0xff] %v6519
        %6570 = vst [vmem:[#allocation3 + $0x138] sm:$0xff] %v6520
        %6571 = vst [vmem:[#allocation3 + $0x140] sm:$0xff] %v6521
        %6572 = vst [vmem:[#allocation3 + $0x148] sm:$0xff] %v6522
        %6573 = vst [vmem:[#allocation3 + $0x150] sm:$0xff] %v6523
        %6574 = vst [vmem:[#allocation3 + $0x158] sm:$0xff] %v6524
        %6575 = vst [vmem:[#allocation3 + $0x160] sm:$0xff] %v6525
        %6576 = vst [vmem:[#allocation3 + $0x168] sm:$0xff] %v6526
        %6577 = vst [vmem:[#allocation3 + $0x170] sm:$0xff] %v6527
        %6578 = vst [vmem:[#allocation3 + $0x178] sm:$0xff] %v6528
        %6579 = vst [vmem:[#allocation3 + $0x180] sm:$0xff] %v6529
        %6580 = vst [vmem:[#allocation3 + $0x188] sm:$0xff] %v6530
        %s6581 = scalar_lea.vmem [#allocation2], 864
        %v6582 = vld [vmem:[%s6581] sm:$0xff]
        %v6583 = vld [vmem:[%s6581 + $0x8] sm:$0xff]
        %v6584 = vld [vmem:[%s6581 + $0x10] sm:$0xff]
        %v6585 = vld [vmem:[%s6581 + $0x18] sm:$0xff]
        %v6586 = vld [vmem:[%s6581 + $0x20] sm:$0xff]
        %v6587 = vld [vmem:[%s6581 + $0x30] sm:$0xff]
        %v6588 = vld [vmem:[%s6581 + $0x38] sm:$0xff]
        %v6589 = vld [vmem:[%s6581 + $0x40] sm:$0xff]
        %v6590 = vld [vmem:[%s6581 + $0x48] sm:$0xff]
        %v6591 = vld [vmem:[%s6581 + $0x50] sm:$0xff]
        %v6592 = vld [vmem:[%s6581 + $0x60] sm:$0xff]
        %v6593 = vld [vmem:[%s6581 + $0x68] sm:$0xff]
        %v6594 = vld [vmem:[%s6581 + $0x70] sm:$0xff]
        %v6595 = vld [vmem:[%s6581 + $0x78] sm:$0xff]
        %v6596 = vld [vmem:[%s6581 + $0x80] sm:$0xff]
        %v6597 = vld [vmem:[%s6581 + $0x90] sm:$0xff]
        %v6598 = vld [vmem:[%s6581 + $0x98] sm:$0xff]
        %v6599 = vld [vmem:[%s6581 + $0xa0] sm:$0xff]
        %v6600 = vld [vmem:[%s6581 + $0xa8] sm:$0xff]
        %v6601 = vld [vmem:[%s6581 + $0xb0] sm:$0xff]
        %v6602 = vld [vmem:[%s6581 + $0xc0] sm:$0xff]
        %v6603 = vld [vmem:[%s6581 + $0xc8] sm:$0xff]
        %v6604 = vld [vmem:[%s6581 + $0xd0] sm:$0xff]
        %v6605 = vld [vmem:[%s6581 + $0xd8] sm:$0xff]
        %v6606 = vld [vmem:[%s6581 + $0xe0] sm:$0xff]
        %s6607 = scalar_lea.vmem [#allocation2], 872
        %v6608 = vld [vmem:[%s6607] sm:$0xff]
        %v6609 = vld [vmem:[%s6607 + $0x8] sm:$0xff]
        %v6610 = vld [vmem:[%s6607 + $0x10] sm:$0xff]
        %v6611 = vld [vmem:[%s6607 + $0x18] sm:$0xff]
        %v6612 = vld [vmem:[%s6607 + $0x20] sm:$0xff]
        %v6613 = vld [vmem:[%s6607 + $0x30] sm:$0xff]
        %v6614 = vld [vmem:[%s6607 + $0x38] sm:$0xff]
        %v6615 = vld [vmem:[%s6607 + $0x40] sm:$0xff]
        %v6616 = vld [vmem:[%s6607 + $0x48] sm:$0xff]
        %v6617 = vld [vmem:[%s6607 + $0x50] sm:$0xff]
        %v6618 = vld [vmem:[%s6607 + $0x60] sm:$0xff]
        %v6619 = vld [vmem:[%s6607 + $0x68] sm:$0xff]
        %v6620 = vld [vmem:[%s6607 + $0x70] sm:$0xff]
        %v6621 = vld [vmem:[%s6607 + $0x78] sm:$0xff]
        %v6622 = vld [vmem:[%s6607 + $0x80] sm:$0xff]
        %v6623 = vld [vmem:[%s6607 + $0x90] sm:$0xff]
        %v6624 = vld [vmem:[%s6607 + $0x98] sm:$0xff]
        %v6625 = vld [vmem:[%s6607 + $0xa0] sm:$0xff]
        %v6626 = vld [vmem:[%s6607 + $0xa8] sm:$0xff]
        %v6627 = vld [vmem:[%s6607 + $0xb0] sm:$0xff]
        %v6628 = vld [vmem:[%s6607 + $0xc0] sm:$0xff]
        %v6629 = vld [vmem:[%s6607 + $0xc8] sm:$0xff]
        %v6630 = vld [vmem:[%s6607 + $0xd0] sm:$0xff]
        %v6631 = vld [vmem:[%s6607 + $0xd8] sm:$0xff]
        %v6632 = vld [vmem:[%s6607 + $0xe0] sm:$0xff]
        %s6633 = scalar_lea.vmem [#allocation2], 912
        %v6634 = vld [vmem:[%s6633] sm:$0xff]
        %v6635 = vld [vmem:[%s6633 + $0x8] sm:$0xff]
        %v6636 = vld [vmem:[%s6633 + $0x10] sm:$0xff]
        %v6637 = vld [vmem:[%s6633 + $0x18] sm:$0xff]
        %v6638 = vld [vmem:[%s6633 + $0x20] sm:$0xff]
        %v6639 = vld [vmem:[%s6633 + $0x30] sm:$0xff]
        %v6640 = vld [vmem:[%s6633 + $0x38] sm:$0xff]
        %v6641 = vld [vmem:[%s6633 + $0x40] sm:$0xff]
        %v6642 = vld [vmem:[%s6633 + $0x48] sm:$0xff]
        %v6643 = vld [vmem:[%s6633 + $0x50] sm:$0xff]
        %v6644 = vld [vmem:[%s6633 + $0x60] sm:$0xff]
        %v6645 = vld [vmem:[%s6633 + $0x68] sm:$0xff]
        %v6646 = vld [vmem:[%s6633 + $0x70] sm:$0xff]
        %v6647 = vld [vmem:[%s6633 + $0x78] sm:$0xff]
        %v6648 = vld [vmem:[%s6633 + $0x80] sm:$0xff]
        %v6649 = vld [vmem:[%s6633 + $0x90] sm:$0xff]
        %v6650 = vld [vmem:[%s6633 + $0x98] sm:$0xff]
        %v6651 = vld [vmem:[%s6633 + $0xa0] sm:$0xff]
        %v6652 = vld [vmem:[%s6633 + $0xa8] sm:$0xff]
        %v6653 = vld [vmem:[%s6633 + $0xb0] sm:$0xff]
        %v6654 = vld [vmem:[%s6633 + $0xc0] sm:$0xff]
        %v6655 = vld [vmem:[%s6633 + $0xc8] sm:$0xff]
        %v6656 = vld [vmem:[%s6633 + $0xd0] sm:$0xff]
        %v6657 = vld [vmem:[%s6633 + $0xd8] sm:$0xff]
        %v6658 = vld [vmem:[%s6633 + $0xe0] sm:$0xff]
        %s6659 = scalar_lea.vmem [#allocation2], 920
        %v6660 = vld [vmem:[%s6659] sm:$0xff]
        %v6661 = vld [vmem:[%s6659 + $0x8] sm:$0xff]
        %v6662 = vld [vmem:[%s6659 + $0x10] sm:$0xff]
        %v6663 = vld [vmem:[%s6659 + $0x18] sm:$0xff]
        %v6664 = vld [vmem:[%s6659 + $0x20] sm:$0xff]
        %v6665 = vld [vmem:[%s6659 + $0x30] sm:$0xff]
        %v6666 = vld [vmem:[%s6659 + $0x38] sm:$0xff]
        %v6667 = vld [vmem:[%s6659 + $0x40] sm:$0xff]
        %v6668 = vld [vmem:[%s6659 + $0x48] sm:$0xff]
        %v6669 = vld [vmem:[%s6659 + $0x50] sm:$0xff]
        %v6670 = vld [vmem:[%s6659 + $0x60] sm:$0xff]
        %v6671 = vld [vmem:[%s6659 + $0x68] sm:$0xff]
        %v6672 = vld [vmem:[%s6659 + $0x70] sm:$0xff]
        %v6673 = vld [vmem:[%s6659 + $0x78] sm:$0xff]
        %v6674 = vld [vmem:[%s6659 + $0x80] sm:$0xff]
        %v6675 = vld [vmem:[%s6659 + $0x90] sm:$0xff]
        %v6676 = vld [vmem:[%s6659 + $0x98] sm:$0xff]
        %v6677 = vld [vmem:[%s6659 + $0xa0] sm:$0xff]
        %v6678 = vld [vmem:[%s6659 + $0xa8] sm:$0xff]
        %v6679 = vld [vmem:[%s6659 + $0xb0] sm:$0xff]
        %v6680 = vld [vmem:[%s6659 + $0xc0] sm:$0xff]
        %v6681 = vld [vmem:[%s6659 + $0xc8] sm:$0xff]
        %v6682 = vld [vmem:[%s6659 + $0xd0] sm:$0xff]
        %v6683 = vld [vmem:[%s6659 + $0xd8] sm:$0xff]
        %v6684 = vld [vmem:[%s6659 + $0xe0] sm:$0xff]
        %v6685 = vsel %vm4883, %v6634, %v6660
        %v6686 = vsel %vm4883, %v6635, %v6661
        %v6687 = vsel %vm4883, %v6636, %v6662
        %v6688 = vsel %vm4883, %v6637, %v6663
        %v6689 = vsel %vm4883, %v6638, %v6664
        %v6690 = vsel %vm4883, %v6639, %v6665
        %v6691 = vsel %vm4883, %v6640, %v6666
        %v6692 = vsel %vm4883, %v6641, %v6667
        %v6693 = vsel %vm4883, %v6642, %v6668
        %v6694 = vsel %vm4883, %v6643, %v6669
        %v6695 = vsel %vm4883, %v6644, %v6670
        %v6696 = vsel %vm4883, %v6645, %v6671
        %v6697 = vsel %vm4883, %v6646, %v6672
        %v6698 = vsel %vm4883, %v6647, %v6673
        %v6699 = vsel %vm4883, %v6648, %v6674
        %v6700 = vsel %vm4883, %v6649, %v6675
        %v6701 = vsel %vm4883, %v6650, %v6676
        %v6702 = vsel %vm4883, %v6651, %v6677
        %v6703 = vsel %vm4883, %v6652, %v6678
        %v6704 = vsel %vm4883, %v6653, %v6679
        %v6705 = vsel %vm4883, %v6654, %v6680
        %v6706 = vsel %vm4883, %v6655, %v6681
        %v6707 = vsel %vm4883, %v6656, %v6682
        %v6708 = vsel %vm4883, %v6657, %v6683
        %v6709 = vsel %vm4883, %v6658, %v6684
        %v6710 = vsel %vm4915, %v6608, %v6685
        %v6711 = vsel %vm4915, %v6609, %v6686
        %v6712 = vsel %vm4915, %v6610, %v6687
        %v6713 = vsel %vm4915, %v6611, %v6688
        %v6714 = vsel %vm4915, %v6612, %v6689
        %v6715 = vsel %vm4915, %v6613, %v6690
        %v6716 = vsel %vm4915, %v6614, %v6691
        %v6717 = vsel %vm4915, %v6615, %v6692
        %v6718 = vsel %vm4915, %v6616, %v6693
        %v6719 = vsel %vm4915, %v6617, %v6694
        %v6720 = vsel %vm4915, %v6618, %v6695
        %v6721 = vsel %vm4915, %v6619, %v6696
        %v6722 = vsel %vm4915, %v6620, %v6697
        %v6723 = vsel %vm4915, %v6621, %v6698
        %v6724 = vsel %vm4915, %v6622, %v6699
        %v6725 = vsel %vm4915, %v6623, %v6700
        %v6726 = vsel %vm4915, %v6624, %v6701
        %v6727 = vsel %vm4915, %v6625, %v6702
        %v6728 = vsel %vm4915, %v6626, %v6703
        %v6729 = vsel %vm4915, %v6627, %v6704
        %v6730 = vsel %vm4915, %v6628, %v6705
        %v6731 = vsel %vm4915, %v6629, %v6706
        %v6732 = vsel %vm4915, %v6630, %v6707
        %v6733 = vsel %vm4915, %v6631, %v6708
        %v6734 = vsel %vm4915, %v6632, %v6709
        %v6735 = vsel %vm4947, %v6582, %v6710
        %v6736 = vsel %vm4947, %v6583, %v6711
        %v6737 = vsel %vm4947, %v6584, %v6712
        %v6738 = vsel %vm4947, %v6585, %v6713
        %v6739 = vsel %vm4947, %v6586, %v6714
        %v6740 = vsel %vm4947, %v6587, %v6715
        %v6741 = vsel %vm4947, %v6588, %v6716
        %v6742 = vsel %vm4947, %v6589, %v6717
        %v6743 = vsel %vm4947, %v6590, %v6718
        %v6744 = vsel %vm4947, %v6591, %v6719
        %v6745 = vsel %vm4947, %v6592, %v6720
        %v6746 = vsel %vm4947, %v6593, %v6721
        %v6747 = vsel %vm4947, %v6594, %v6722
        %v6748 = vsel %vm4947, %v6595, %v6723
        %v6749 = vsel %vm4947, %v6596, %v6724
        %v6750 = vsel %vm4947, %v6597, %v6725
        %v6751 = vsel %vm4947, %v6598, %v6726
        %v6752 = vsel %vm4947, %v6599, %v6727
        %v6753 = vsel %vm4947, %v6600, %v6728
        %v6754 = vsel %vm4947, %v6601, %v6729
        %v6755 = vsel %vm4947, %v6602, %v6730
        %v6756 = vsel %vm4947, %v6603, %v6731
        %v6757 = vsel %vm4947, %v6604, %v6732
        %v6758 = vsel %vm4947, %v6605, %v6733
        %v6759 = vsel %vm4947, %v6606, %v6734
        %s6760 = scalar_lea.vmem %s3, 192
        %v6761 = vld [vmem:[%s6760] sm:$0xf]
        %v6762 = vld [vmem:[%s6760 + $0x4] sm:$0xf]
        %v6763 = vld [vmem:[%s6760 + $0x8] sm:$0xf]
        %v6764 = vld [vmem:[%s6760 + $0xc] sm:$0xf]
        %v6765 = vld [vmem:[%s6760 + $0x10] sm:$0xf]
        %v6766 = vld [vmem:[%s6760 + $0x14] sm:$0xf]
        %v6767 = vld [vmem:[%s6760 + $0x18] sm:$0xf]
        %v6768 = vld [vmem:[%s6760 + $0x1c] sm:$0xf]
        %v6769 = vld [vmem:[%s6760 + $0x20] sm:$0xf]
        %v6770 = vld [vmem:[%s6760 + $0x24] sm:$0xf]
        %v6771 = vld [vmem:[%s6760 + $0x28] sm:$0xf]
        %v6772 = vld [vmem:[%s6760 + $0x2c] sm:$0xf]
        %v6773 = vld [vmem:[%s6760 + $0x30] sm:$0xf]
        %v6774 = vld [vmem:[%s6760 + $0x34] sm:$0xf]
        %v6775 = vld [vmem:[%s6760 + $0x38] sm:$0xf]
        %v6776 = vld [vmem:[%s6760 + $0x3c] sm:$0xf]
        %v6793 = vunpack.c.l.b16 %v6761
        %v6794 = vunpack.c.l.b16 %v6762
        %v6795 = vunpack.c.l.b16 %v6763
        %v6796 = vunpack.c.l.b16 %v6764
        %v6797 = vunpack.c.l.b16 %v6765
        %v6798 = vunpack.c.l.b16 %v6766
        %v6799 = vunpack.c.l.b16 %v6767
        %v6800 = vunpack.c.l.b16 %v6768
        %v6801 = vunpack.c.l.b16 %v6769
        %v6802 = vunpack.c.l.b16 %v6770
        %v6803 = vunpack.c.l.b16 %v6771
        %v6804 = vunpack.c.l.b16 %v6772
        %v6805 = vunpack.c.l.b16 %v6773
        %v6806 = vunpack.c.l.b16 %v6774
        %v6807 = vunpack.c.l.b16 %v6775
        %v6808 = vunpack.c.l.b16 %v6776
        %v6809 = vpack.c.b16 %v6794, %v6793
        %v6810 = vpack.c.b16 %v6796, %v6795
        %v6811 = vpack.c.b16 %v6798, %v6797
        %v6812 = vpack.c.b16 %v6800, %v6799
        %v6813 = vpack.c.b16 %v6802, %v6801
        %v6814 = vpack.c.b16 %v6804, %v6803
        %v6815 = vpack.c.b16 %v6806, %v6805
        %v6816 = vpack.c.b16 %v6808, %v6807
        %6825 = vmatprep.subr.bf16.mxu0 0
        %6826 = vmatpush1.bf16.msra.mxu0 %v6809
        %6827 = vmatprep.subr.bf16.mxu0 0
        %6828 = vmatpush1.bf16.msra.mxu0 %v6810
        %6829 = vmatprep.subr.bf16.mxu0 0
        %6830 = vmatpush1.bf16.msra.mxu0 %v6811
        %6831 = vmatprep.subr.bf16.mxu0 0
        %6832 = vmatpush1.bf16.msra.mxu0 %v6812
        %6833 = vmatprep.subr.bf16.mxu0 0
        %6834 = vmatpush1.bf16.msra.mxu0 %v6813
        %6835 = vmatprep.subr.bf16.mxu0 0
        %6836 = vmatpush1.bf16.msra.mxu0 %v6814
        %6837 = vmatprep.subr.bf16.mxu0 0
        %6838 = vmatpush1.bf16.msra.mxu0 %v6815
        %6839 = vmatprep.subr.bf16.mxu0 0
        %6840 = vmatpush1.bf16.msra.mxu0 %v6816
        %6841 = vmatprep.subr.bf16.mxu0 0
        %6842 = vmatpush1.bf16.msra.mxu0 0
        %6843 = vmatprep.subr.bf16.mxu0 0
        %6844 = vmatpush1.bf16.msra.mxu0 0
        %6845 = vmatprep.subr.bf16.mxu0 0
        %6846 = vmatpush1.bf16.msra.mxu0 0
        %6847 = vmatprep.subr.bf16.mxu0 0
        %6848 = vmatpush1.bf16.msra.mxu0 0
        %6849 = vmatprep.subr.bf16.mxu0 0
        %6850 = vmatpush1.bf16.msra.mxu0 0
        %6851 = vmatprep.subr.bf16.mxu0 0
        %6852 = vmatpush1.bf16.msra.mxu0 0
        %6853 = vmatprep.subr.bf16.mxu0 0
        %6854 = vmatpush1.bf16.msra.mxu0 0
        %6855 = vmatprep.subr.bf16.mxu0 0
        %6856 = vmatpush1.bf16.msra.mxu0 0
        %6857 = vmatprep.mubr.bf16.mxu0 0
        %6858 = vmatmul.mubr.bf16.gmra.mrb[0].mxu0 %v6735
        %v6859 = vpop.f32.mrb[0].mxu0
        %v6860 = vadd.f32 0.0, %v6859
        %v6861 = vpop.f32.mrb[0].mxu0
        %v6862 = vpop.f32.mrb[0].mxu0
        %v6863 = vadd.f32 0.0, %v6862
        %v6864 = vpop.f32.mrb[0].mxu0
        %6865 = vmatprep.mubr.bf16.mxu0 0
        %6866 = vmatmul.mubr.bf16.gmra.mrb[0].mxu0 %v6736
        %v6867 = vpop.f32.mrb[0].mxu0
        %v6868 = vadd.f32 0.0, %v6867
        %v6869 = vpop.f32.mrb[0].mxu0
        %v6870 = vpop.f32.mrb[0].mxu0
        %v6871 = vadd.f32 0.0, %v6870
        %v6872 = vpop.f32.mrb[0].mxu0
        %6873 = vmatprep.mubr.bf16.mxu0 0
        %6874 = vmatmul.mubr.bf16.gmra.mrb[0].mxu0 %v6737
        %v6875 = vpop.f32.mrb[0].mxu0
        %v6876 = vadd.f32 0.0, %v6875
        %v6877 = vpop.f32.mrb[0].mxu0
        %v6878 = vpop.f32.mrb[0].mxu0
        %v6879 = vadd.f32 0.0, %v6878
        %v6880 = vpop.f32.mrb[0].mxu0
        %6881 = vmatprep.mubr.bf16.mxu0 0
        %6882 = vmatmul.mubr.bf16.gmra.mrb[0].mxu0 %v6738
        %v6883 = vpop.f32.mrb[0].mxu0
        %v6884 = vadd.f32 0.0, %v6883
        %v6885 = vpop.f32.mrb[0].mxu0
        %v6886 = vpop.f32.mrb[0].mxu0
        %v6887 = vadd.f32 0.0, %v6886
        %v6888 = vpop.f32.mrb[0].mxu0
        %6889 = vmatprep.mubr.bf16.mxu0 0
        %6890 = vmatmul.mubr.bf16.gmra.mrb[0].mxu0 %v6739
        %v6891 = vpop.f32.mrb[0].mxu0
        %v6892 = vadd.f32 0.0, %v6891
        %v6893 = vpop.f32.mrb[0].mxu0
        %v6894 = vpop.f32.mrb[0].mxu0
        %v6895 = vadd.f32 0.0, %v6894
        %v6896 = vpop.f32.mrb[0].mxu0
        %6897 = vmatprep.mubr.bf16.mxu0 0
        %6898 = vmatmul.mubr.bf16.gmra.mrb[0].mxu0 %v6740
        %v6899 = vpop.f32.mrb[0].mxu0
        %v6900 = vadd.f32 0.0, %v6899
        %v6901 = vpop.f32.mrb[0].mxu0
        %v6902 = vpop.f32.mrb[0].mxu0
        %v6903 = vadd.f32 0.0, %v6902
        %v6904 = vpop.f32.mrb[0].mxu0
        %6905 = vmatprep.mubr.bf16.mxu0 0
        %6906 = vmatmul.mubr.bf16.gmra.mrb[0].mxu0 %v6741
        %v6907 = vpop.f32.mrb[0].mxu0
        %v6908 = vadd.f32 0.0, %v6907
        %v6909 = vpop.f32.mrb[0].mxu0
        %v6910 = vpop.f32.mrb[0].mxu0
        %v6911 = vadd.f32 0.0, %v6910
        %v6912 = vpop.f32.mrb[0].mxu0
        %6913 = vmatprep.mubr.bf16.mxu0 0
        %6914 = vmatmul.mubr.bf16.gmra.mrb[0].mxu0 %v6742
        %v6915 = vpop.f32.mrb[0].mxu0
        %v6916 = vadd.f32 0.0, %v6915
        %v6917 = vpop.f32.mrb[0].mxu0
        %v6918 = vpop.f32.mrb[0].mxu0
        %v6919 = vadd.f32 0.0, %v6918
        %v6920 = vpop.f32.mrb[0].mxu0
        %6921 = vmatprep.mubr.bf16.mxu0 0
        %6922 = vmatmul.mubr.bf16.gmra.mrb[0].mxu0 %v6743
        %v6923 = vpop.f32.mrb[0].mxu0
        %v6924 = vadd.f32 0.0, %v6923
        %v6925 = vpop.f32.mrb[0].mxu0
        %v6926 = vpop.f32.mrb[0].mxu0
        %v6927 = vadd.f32 0.0, %v6926
        %v6928 = vpop.f32.mrb[0].mxu0
        %6929 = vmatprep.mubr.bf16.mxu0 0
        %6930 = vmatmul.mubr.bf16.gmra.mrb[0].mxu0 %v6744
        %v6931 = vpop.f32.mrb[0].mxu0
        %v6932 = vadd.f32 0.0, %v6931
        %v6933 = vpop.f32.mrb[0].mxu0
        %v6934 = vpop.f32.mrb[0].mxu0
        %v6935 = vadd.f32 0.0, %v6934
        %v6936 = vpop.f32.mrb[0].mxu0
        %6937 = vmatprep.mubr.bf16.mxu0 0
        %6938 = vmatmul.mubr.bf16.gmra.mrb[0].mxu0 %v6745
        %v6939 = vpop.f32.mrb[0].mxu0
        %v6940 = vadd.f32 0.0, %v6939
        %v6941 = vpop.f32.mrb[0].mxu0
        %v6942 = vpop.f32.mrb[0].mxu0
        %v6943 = vadd.f32 0.0, %v6942
        %v6944 = vpop.f32.mrb[0].mxu0
        %6945 = vmatprep.mubr.bf16.mxu0 0
        %6946 = vmatmul.mubr.bf16.gmra.mrb[0].mxu0 %v6746
        %v6947 = vpop.f32.mrb[0].mxu0
        %v6948 = vadd.f32 0.0, %v6947
        %v6949 = vpop.f32.mrb[0].mxu0
        %v6950 = vpop.f32.mrb[0].mxu0
        %v6951 = vadd.f32 0.0, %v6950
        %v6952 = vpop.f32.mrb[0].mxu0
        %6953 = vmatprep.mubr.bf16.mxu0 0
        %6954 = vmatmul.mubr.bf16.gmra.mrb[0].mxu0 %v6747
        %v6955 = vpop.f32.mrb[0].mxu0
        %v6956 = vadd.f32 0.0, %v6955
        %v6957 = vpop.f32.mrb[0].mxu0
        %v6958 = vpop.f32.mrb[0].mxu0
        %v6959 = vadd.f32 0.0, %v6958
        %v6960 = vpop.f32.mrb[0].mxu0
        %6961 = vmatprep.mubr.bf16.mxu0 0
        %6962 = vmatmul.mubr.bf16.gmra.mrb[0].mxu0 %v6748
        %v6963 = vpop.f32.mrb[0].mxu0
        %v6964 = vadd.f32 0.0, %v6963
        %v6965 = vpop.f32.mrb[0].mxu0
        %v6966 = vpop.f32.mrb[0].mxu0
        %v6967 = vadd.f32 0.0, %v6966
        %v6968 = vpop.f32.mrb[0].mxu0
        %6969 = vmatprep.mubr.bf16.mxu0 0
        %6970 = vmatmul.mubr.bf16.gmra.mrb[0].mxu0 %v6749
        %v6971 = vpop.f32.mrb[0].mxu0
        %v6972 = vadd.f32 0.0, %v6971
        %v6973 = vpop.f32.mrb[0].mxu0
        %v6974 = vpop.f32.mrb[0].mxu0
        %v6975 = vadd.f32 0.0, %v6974
        %v6976 = vpop.f32.mrb[0].mxu0
        %6977 = vmatprep.mubr.bf16.mxu0 0
        %6978 = vmatmul.mubr.bf16.gmra.mrb[0].mxu0 %v6750
        %v6979 = vpop.f32.mrb[0].mxu0
        %v6980 = vadd.f32 0.0, %v6979
        %v6981 = vpop.f32.mrb[0].mxu0
        %v6982 = vpop.f32.mrb[0].mxu0
        %v6983 = vadd.f32 0.0, %v6982
        %v6984 = vpop.f32.mrb[0].mxu0
        %6985 = vmatprep.mubr.bf16.mxu0 0
        %6986 = vmatmul.mubr.bf16.gmra.mrb[0].mxu0 %v6751
        %v6987 = vpop.f32.mrb[0].mxu0
        %v6988 = vadd.f32 0.0, %v6987
        %v6989 = vpop.f32.mrb[0].mxu0
        %v6990 = vpop.f32.mrb[0].mxu0
        %v6991 = vadd.f32 0.0, %v6990
        %v6992 = vpop.f32.mrb[0].mxu0
        %6993 = vmatprep.mubr.bf16.mxu0 0
        %6994 = vmatmul.mubr.bf16.gmra.mrb[0].mxu0 %v6752
        %v6995 = vpop.f32.mrb[0].mxu0
        %v6996 = vadd.f32 0.0, %v6995
        %v6997 = vpop.f32.mrb[0].mxu0
        %v6998 = vpop.f32.mrb[0].mxu0
        %v6999 = vadd.f32 0.0, %v6998
        %v7000 = vpop.f32.mrb[0].mxu0
        %7001 = vmatprep.mubr.bf16.mxu0 0
        %7002 = vmatmul.mubr.bf16.gmra.mrb[0].mxu0 %v6753
        %v7003 = vpop.f32.mrb[0].mxu0
        %v7004 = vadd.f32 0.0, %v7003
        %v7005 = vpop.f32.mrb[0].mxu0
        %v7006 = vpop.f32.mrb[0].mxu0
        %v7007 = vadd.f32 0.0, %v7006
        %v7008 = vpop.f32.mrb[0].mxu0
        %7009 = vmatprep.mubr.bf16.mxu0 0
        %7010 = vmatmul.mubr.bf16.gmra.mrb[0].mxu0 %v6754
        %v7011 = vpop.f32.mrb[0].mxu0
        %v7012 = vadd.f32 0.0, %v7011
        %v7013 = vpop.f32.mrb[0].mxu0
        %v7014 = vpop.f32.mrb[0].mxu0
        %v7015 = vadd.f32 0.0, %v7014
        %v7016 = vpop.f32.mrb[0].mxu0
        %7017 = vmatprep.mubr.bf16.mxu0 0
        %7018 = vmatmul.mubr.bf16.gmra.mrb[0].mxu0 %v6755
        %v7019 = vpop.f32.mrb[0].mxu0
        %v7020 = vadd.f32 0.0, %v7019
        %v7021 = vpop.f32.mrb[0].mxu0
        %v7022 = vpop.f32.mrb[0].mxu0
        %v7023 = vadd.f32 0.0, %v7022
        %v7024 = vpop.f32.mrb[0].mxu0
        %7025 = vmatprep.mubr.bf16.mxu0 0
        %7026 = vmatmul.mubr.bf16.gmra.mrb[0].mxu0 %v6756
        %v7027 = vpop.f32.mrb[0].mxu0
        %v7028 = vadd.f32 0.0, %v7027
        %v7029 = vpop.f32.mrb[0].mxu0
        %v7030 = vpop.f32.mrb[0].mxu0
        %v7031 = vadd.f32 0.0, %v7030
        %v7032 = vpop.f32.mrb[0].mxu0
        %7033 = vmatprep.mubr.bf16.mxu0 0
        %7034 = vmatmul.mubr.bf16.gmra.mrb[0].mxu0 %v6757
        %v7035 = vpop.f32.mrb[0].mxu0
        %v7036 = vadd.f32 0.0, %v7035
        %v7037 = vpop.f32.mrb[0].mxu0
        %v7038 = vpop.f32.mrb[0].mxu0
        %v7039 = vadd.f32 0.0, %v7038
        %v7040 = vpop.f32.mrb[0].mxu0
        %7041 = vmatprep.mubr.bf16.mxu0 0
        %7042 = vmatmul.mubr.bf16.gmra.mrb[0].mxu0 %v6758
        %v7043 = vpop.f32.mrb[0].mxu0
        %v7044 = vadd.f32 0.0, %v7043
        %v7045 = vpop.f32.mrb[0].mxu0
        %v7046 = vpop.f32.mrb[0].mxu0
        %v7047 = vadd.f32 0.0, %v7046
        %v7048 = vpop.f32.mrb[0].mxu0
        %7049 = vmatprep.mubr.bf16.mxu0 0
        %7050 = vmatmul.mubr.bf16.gmra.mrb[0].mxu0 %v6759
        %v7051 = vpop.f32.mrb[0].mxu0
        %v7052 = vadd.f32 0.0, %v7051
        %v7053 = vpop.f32.mrb[0].mxu0
        %v7054 = vpop.f32.mrb[0].mxu0
        %v7055 = vadd.f32 0.0, %v7054
        %v7056 = vpop.f32.mrb[0].mxu0
        %7057 = vdwg.mxu0
        %v7058 = vld [vmem:[#allocation3] sm:$0xff]
        %v7059 = vld [vmem:[#allocation3 + $0x8] sm:$0xff]
        %v7060 = vld [vmem:[#allocation3 + $0x10] sm:$0xff]
        %v7061 = vld [vmem:[#allocation3 + $0x18] sm:$0xff]
        %v7062 = vld [vmem:[#allocation3 + $0x20] sm:$0xff]
        %v7063 = vld [vmem:[#allocation3 + $0x28] sm:$0xff]
        %v7064 = vld [vmem:[#allocation3 + $0x30] sm:$0xff]
        %v7065 = vld [vmem:[#allocation3 + $0x38] sm:$0xff]
        %v7066 = vld [vmem:[#allocation3 + $0x40] sm:$0xff]
        %v7067 = vld [vmem:[#allocation3 + $0x48] sm:$0xff]
        %v7068 = vld [vmem:[#allocation3 + $0x50] sm:$0xff]
        %v7069 = vld [vmem:[#allocation3 + $0x58] sm:$0xff]
        %v7070 = vld [vmem:[#allocation3 + $0x60] sm:$0xff]
        %v7071 = vld [vmem:[#allocation3 + $0x68] sm:$0xff]
        %v7072 = vld [vmem:[#allocation3 + $0x70] sm:$0xff]
        %v7073 = vld [vmem:[#allocation3 + $0x78] sm:$0xff]
        %v7074 = vld [vmem:[#allocation3 + $0x80] sm:$0xff]
        %v7075 = vld [vmem:[#allocation3 + $0x88] sm:$0xff]
        %v7076 = vld [vmem:[#allocation3 + $0x90] sm:$0xff]
        %v7077 = vld [vmem:[#allocation3 + $0x98] sm:$0xff]
        %v7078 = vld [vmem:[#allocation3 + $0xa0] sm:$0xff]
        %v7079 = vld [vmem:[#allocation3 + $0xa8] sm:$0xff]
        %v7080 = vld [vmem:[#allocation3 + $0xb0] sm:$0xff]
        %v7081 = vld [vmem:[#allocation3 + $0xb8] sm:$0xff]
        %v7082 = vld [vmem:[#allocation3 + $0xc0] sm:$0xff]
        %v7083 = vld [vmem:[#allocation3 + $0xc8] sm:$0xff]
        %v7084 = vld [vmem:[#allocation3 + $0xd0] sm:$0xff]
        %v7085 = vld [vmem:[#allocation3 + $0xd8] sm:$0xff]
        %v7086 = vld [vmem:[#allocation3 + $0xe0] sm:$0xff]
        %v7087 = vld [vmem:[#allocation3 + $0xe8] sm:$0xff]
        %v7088 = vld [vmem:[#allocation3 + $0xf0] sm:$0xff]
        %v7089 = vld [vmem:[#allocation3 + $0xf8] sm:$0xff]
        %v7090 = vld [vmem:[#allocation3 + $0x100] sm:$0xff]
        %v7091 = vld [vmem:[#allocation3 + $0x108] sm:$0xff]
        %v7092 = vld [vmem:[#allocation3 + $0x110] sm:$0xff]
        %v7093 = vld [vmem:[#allocation3 + $0x118] sm:$0xff]
        %v7094 = vld [vmem:[#allocation3 + $0x120] sm:$0xff]
        %v7095 = vld [vmem:[#allocation3 + $0x128] sm:$0xff]
        %v7096 = vld [vmem:[#allocation3 + $0x130] sm:$0xff]
        %v7097 = vld [vmem:[#allocation3 + $0x138] sm:$0xff]
        %v7098 = vld [vmem:[#allocation3 + $0x140] sm:$0xff]
        %v7099 = vld [vmem:[#allocation3 + $0x148] sm:$0xff]
        %v7100 = vld [vmem:[#allocation3 + $0x150] sm:$0xff]
        %v7101 = vld [vmem:[#allocation3 + $0x158] sm:$0xff]
        %v7102 = vld [vmem:[#allocation3 + $0x160] sm:$0xff]
        %v7103 = vld [vmem:[#allocation3 + $0x168] sm:$0xff]
        %v7104 = vld [vmem:[#allocation3 + $0x170] sm:$0xff]
        %v7105 = vld [vmem:[#allocation3 + $0x178] sm:$0xff]
        %v7106 = vld [vmem:[#allocation3 + $0x180] sm:$0xff]
        %v7107 = vld [vmem:[#allocation3 + $0x188] sm:$0xff]
        %v7108 = vadd.f32 %v7058, %v6860
        %v7109 = vadd.f32 %v7059, %v6863
        %v7110 = vadd.f32 %v7060, %v6868
        %v7111 = vadd.f32 %v7061, %v6871
        %v7112 = vadd.f32 %v7062, %v6876
        %v7113 = vadd.f32 %v7063, %v6879
        %v7114 = vadd.f32 %v7064, %v6884
        %v7115 = vadd.f32 %v7065, %v6887
        %v7116 = vadd.f32 %v7066, %v6892
        %v7117 = vadd.f32 %v7067, %v6895
        %v7118 = vadd.f32 %v7068, %v6900
        %v7119 = vadd.f32 %v7069, %v6903
        %v7120 = vadd.f32 %v7070, %v6908
        %v7121 = vadd.f32 %v7071, %v6911
        %v7122 = vadd.f32 %v7072, %v6916
        %v7123 = vadd.f32 %v7073, %v6919
        %v7124 = vadd.f32 %v7074, %v6924
        %v7125 = vadd.f32 %v7075, %v6927
        %v7126 = vadd.f32 %v7076, %v6932
        %v7127 = vadd.f32 %v7077, %v6935
        %v7128 = vadd.f32 %v7078, %v6940
        %v7129 = vadd.f32 %v7079, %v6943
        %v7130 = vadd.f32 %v7080, %v6948
        %v7131 = vadd.f32 %v7081, %v6951
        %v7132 = vadd.f32 %v7082, %v6956
        %v7133 = vadd.f32 %v7083, %v6959
        %v7134 = vadd.f32 %v7084, %v6964
        %v7135 = vadd.f32 %v7085, %v6967
        %v7136 = vadd.f32 %v7086, %v6972
        %v7137 = vadd.f32 %v7087, %v6975
        %v7138 = vadd.f32 %v7088, %v6980
        %v7139 = vadd.f32 %v7089, %v6983
        %v7140 = vadd.f32 %v7090, %v6988
        %v7141 = vadd.f32 %v7091, %v6991
        %v7142 = vadd.f32 %v7092, %v6996
        %v7143 = vadd.f32 %v7093, %v6999
        %v7144 = vadd.f32 %v7094, %v7004
        %v7145 = vadd.f32 %v7095, %v7007
        %v7146 = vadd.f32 %v7096, %v7012
        %v7147 = vadd.f32 %v7097, %v7015
        %v7148 = vadd.f32 %v7098, %v7020
        %v7149 = vadd.f32 %v7099, %v7023
        %v7150 = vadd.f32 %v7100, %v7028
        %v7151 = vadd.f32 %v7101, %v7031
        %v7152 = vadd.f32 %v7102, %v7036
        %v7153 = vadd.f32 %v7103, %v7039
        %v7154 = vadd.f32 %v7104, %v7044
        %v7155 = vadd.f32 %v7105, %v7047
        %v7156 = vadd.f32 %v7106, %v7052
        %v7157 = vadd.f32 %v7107, %v7055
        %7158 = vst [vmem:[#allocation3] sm:$0xff] %v7108
        %7159 = vst [vmem:[#allocation3 + $0x8] sm:$0xff] %v7109
        %7160 = vst [vmem:[#allocation3 + $0x10] sm:$0xff] %v7110
        %7161 = vst [vmem:[#allocation3 + $0x18] sm:$0xff] %v7111
        %7162 = vst [vmem:[#allocation3 + $0x20] sm:$0xff] %v7112
        %7163 = vst [vmem:[#allocation3 + $0x28] sm:$0xff] %v7113
        %7164 = vst [vmem:[#allocation3 + $0x30] sm:$0xff] %v7114
        %7165 = vst [vmem:[#allocation3 + $0x38] sm:$0xff] %v7115
        %7166 = vst [vmem:[#allocation3 + $0x40] sm:$0xff] %v7116
        %7167 = vst [vmem:[#allocation3 + $0x48] sm:$0xff] %v7117
        %7168 = vst [vmem:[#allocation3 + $0x50] sm:$0xff] %v7118
        %7169 = vst [vmem:[#allocation3 + $0x58] sm:$0xff] %v7119
        %7170 = vst [vmem:[#allocation3 + $0x60] sm:$0xff] %v7120
        %7171 = vst [vmem:[#allocation3 + $0x68] sm:$0xff] %v7121
        %7172 = vst [vmem:[#allocation3 + $0x70] sm:$0xff] %v7122
        %7173 = vst [vmem:[#allocation3 + $0x78] sm:$0xff] %v7123
        %7174 = vst [vmem:[#allocation3 + $0x80] sm:$0xff] %v7124
        %7175 = vst [vmem:[#allocation3 + $0x88] sm:$0xff] %v7125
        %7176 = vst [vmem:[#allocation3 + $0x90] sm:$0xff] %v7126
        %7177 = vst [vmem:[#allocation3 + $0x98] sm:$0xff] %v7127
        %7178 = vst [vmem:[#allocation3 + $0xa0] sm:$0xff] %v7128
        %7179 = vst [vmem:[#allocation3 + $0xa8] sm:$0xff] %v7129
        %7180 = vst [vmem:[#allocation3 + $0xb0] sm:$0xff] %v7130
        %7181 = vst [vmem:[#allocation3 + $0xb8] sm:$0xff] %v7131
        %7182 = vst [vmem:[#allocation3 + $0xc0] sm:$0xff] %v7132
        %7183 = vst [vmem:[#allocation3 + $0xc8] sm:$0xff] %v7133
        %7184 = vst [vmem:[#allocation3 + $0xd0] sm:$0xff] %v7134
        %7185 = vst [vmem:[#allocation3 + $0xd8] sm:$0xff] %v7135
        %7186 = vst [vmem:[#allocation3 + $0xe0] sm:$0xff] %v7136
        %7187 = vst [vmem:[#allocation3 + $0xe8] sm:$0xff] %v7137
        %7188 = vst [vmem:[#allocation3 + $0xf0] sm:$0xff] %v7138
        %7189 = vst [vmem:[#allocation3 + $0xf8] sm:$0xff] %v7139
        %7190 = vst [vmem:[#allocation3 + $0x100] sm:$0xff] %v7140
        %7191 = vst [vmem:[#allocation3 + $0x108] sm:$0xff] %v7141
        %7192 = vst [vmem:[#allocation3 + $0x110] sm:$0xff] %v7142
        %7193 = vst [vmem:[#allocation3 + $0x118] sm:$0xff] %v7143
        %7194 = vst [vmem:[#allocation3 + $0x120] sm:$0xff] %v7144
        %7195 = vst [vmem:[#allocation3 + $0x128] sm:$0xff] %v7145
        %7196 = vst [vmem:[#allocation3 + $0x130] sm:$0xff] %v7146
        %7197 = vst [vmem:[#allocation3 + $0x138] sm:$0xff] %v7147
        %7198 = vst [vmem:[#allocation3 + $0x140] sm:$0xff] %v7148
        %7199 = vst [vmem:[#allocation3 + $0x148] sm:$0xff] %v7149
        %7200 = vst [vmem:[#allocation3 + $0x150] sm:$0xff] %v7150
        %7201 = vst [vmem:[#allocation3 + $0x158] sm:$0xff] %v7151
        %7202 = vst [vmem:[#allocation3 + $0x160] sm:$0xff] %v7152
        %7203 = vst [vmem:[#allocation3 + $0x168] sm:$0xff] %v7153
        %7204 = vst [vmem:[#allocation3 + $0x170] sm:$0xff] %v7154
        %7205 = vst [vmem:[#allocation3 + $0x178] sm:$0xff] %v7155
        %7206 = vst [vmem:[#allocation3 + $0x180] sm:$0xff] %v7156
        %7207 = vst [vmem:[#allocation3 + $0x188] sm:$0xff] %v7157
        %v7208 = vld [vmem:[#allocation3] sm:$0xff]
        %v7209 = vld [vmem:[#allocation3 + $0x8] sm:$0xff]
        %v7210 = vld [vmem:[#allocation3 + $0x10] sm:$0xff]
        %v7211 = vld [vmem:[#allocation3 + $0x18] sm:$0xff]
        %v7212 = vld [vmem:[#allocation3 + $0x20] sm:$0xff]
        %v7213 = vld [vmem:[#allocation3 + $0x28] sm:$0xff]
        %v7214 = vld [vmem:[#allocation3 + $0x30] sm:$0xff]
        %v7215 = vld [vmem:[#allocation3 + $0x38] sm:$0xff]
        %v7216 = vld [vmem:[#allocation3 + $0x40] sm:$0xff]
        %v7217 = vld [vmem:[#allocation3 + $0x48] sm:$0xff]
        %v7218 = vld [vmem:[#allocation3 + $0x50] sm:$0xff]
        %v7219 = vld [vmem:[#allocation3 + $0x58] sm:$0xff]
        %v7220 = vld [vmem:[#allocation3 + $0x60] sm:$0xff]
        %v7221 = vld [vmem:[#allocation3 + $0x68] sm:$0xff]
        %v7222 = vld [vmem:[#allocation3 + $0x70] sm:$0xff]
        %v7223 = vld [vmem:[#allocation3 + $0x78] sm:$0xff]
        %v7224 = vld [vmem:[#allocation3 + $0x80] sm:$0xff]
        %v7225 = vld [vmem:[#allocation3 + $0x88] sm:$0xff]
        %v7226 = vld [vmem:[#allocation3 + $0x90] sm:$0xff]
        %v7227 = vld [vmem:[#allocation3 + $0x98] sm:$0xff]
        %v7228 = vld [vmem:[#allocation3 + $0xa0] sm:$0xff]
        %v7229 = vld [vmem:[#allocation3 + $0xa8] sm:$0xff]
        %v7230 = vld [vmem:[#allocation3 + $0xb0] sm:$0xff]
        %v7231 = vld [vmem:[#allocation3 + $0xb8] sm:$0xff]
        %v7232 = vld [vmem:[#allocation3 + $0xc0] sm:$0xff]
        %v7233 = vld [vmem:[#allocation3 + $0xc8] sm:$0xff]
        %v7234 = vld [vmem:[#allocation3 + $0xd0] sm:$0xff]
        %v7235 = vld [vmem:[#allocation3 + $0xd8] sm:$0xff]
        %v7236 = vld [vmem:[#allocation3 + $0xe0] sm:$0xff]
        %v7237 = vld [vmem:[#allocation3 + $0xe8] sm:$0xff]
        %v7238 = vld [vmem:[#allocation3 + $0xf0] sm:$0xff]
        %v7239 = vld [vmem:[#allocation3 + $0xf8] sm:$0xff]
        %v7240 = vld [vmem:[#allocation3 + $0x100] sm:$0xff]
        %v7241 = vld [vmem:[#allocation3 + $0x108] sm:$0xff]
        %v7242 = vld [vmem:[#allocation3 + $0x110] sm:$0xff]
        %v7243 = vld [vmem:[#allocation3 + $0x118] sm:$0xff]
        %v7244 = vld [vmem:[#allocation3 + $0x120] sm:$0xff]
        %v7245 = vld [vmem:[#allocation3 + $0x128] sm:$0xff]
        %v7246 = vld [vmem:[#allocation3 + $0x130] sm:$0xff]
        %v7247 = vld [vmem:[#allocation3 + $0x138] sm:$0xff]
        %v7248 = vld [vmem:[#allocation3 + $0x140] sm:$0xff]
        %v7249 = vld [vmem:[#allocation3 + $0x148] sm:$0xff]
        %v7250 = vld [vmem:[#allocation3 + $0x150] sm:$0xff]
        %v7251 = vld [vmem:[#allocation3 + $0x158] sm:$0xff]
        %v7252 = vld [vmem:[#allocation3 + $0x160] sm:$0xff]
        %v7253 = vld [vmem:[#allocation3 + $0x168] sm:$0xff]
        %v7254 = vld [vmem:[#allocation3 + $0x170] sm:$0xff]
        %v7255 = vld [vmem:[#allocation3 + $0x178] sm:$0xff]
        %v7256 = vld [vmem:[#allocation3 + $0x180] sm:$0xff]
        %v7257 = vld [vmem:[#allocation3 + $0x188] sm:$0xff]
        %v7258 = vmax.f32 %v7208, 0.0
        %v7259 = vmax.f32 %v7209, 0.0
        %v7260 = vmax.f32 %v7210, 0.0
        %v7261 = vmax.f32 %v7211, 0.0
        %v7262 = vmax.f32 %v7212, 0.0
        %v7263 = vmax.f32 %v7213, 0.0
        %v7264 = vmax.f32 %v7214, 0.0
        %v7265 = vmax.f32 %v7215, 0.0
        %v7266 = vmax.f32 %v7216, 0.0
        %v7267 = vmax.f32 %v7217, 0.0
        %v7268 = vmax.f32 %v7218, 0.0
        %v7269 = vmax.f32 %v7219, 0.0
        %v7270 = vmax.f32 %v7220, 0.0
        %v7271 = vmax.f32 %v7221, 0.0
        %v7272 = vmax.f32 %v7222, 0.0
        %v7273 = vmax.f32 %v7223, 0.0
        %v7274 = vmax.f32 %v7224, 0.0
        %v7275 = vmax.f32 %v7225, 0.0
        %v7276 = vmax.f32 %v7226, 0.0
        %v7277 = vmax.f32 %v7227, 0.0
        %v7278 = vmax.f32 %v7228, 0.0
        %v7279 = vmax.f32 %v7229, 0.0
        %v7280 = vmax.f32 %v7230, 0.0
        %v7281 = vmax.f32 %v7231, 0.0
        %v7282 = vmax.f32 %v7232, 0.0
        %v7283 = vmax.f32 %v7233, 0.0
        %v7284 = vmax.f32 %v7234, 0.0
        %v7285 = vmax.f32 %v7235, 0.0
        %v7286 = vmax.f32 %v7236, 0.0
        %v7287 = vmax.f32 %v7237, 0.0
        %v7288 = vmax.f32 %v7238, 0.0
        %v7289 = vmax.f32 %v7239, 0.0
        %v7290 = vmax.f32 %v7240, 0.0
        %v7291 = vmax.f32 %v7241, 0.0
        %v7292 = vmax.f32 %v7242, 0.0
        %v7293 = vmax.f32 %v7243, 0.0
        %v7294 = vmax.f32 %v7244, 0.0
        %v7295 = vmax.f32 %v7245, 0.0
        %v7296 = vmax.f32 %v7246, 0.0
        %v7297 = vmax.f32 %v7247, 0.0
        %v7298 = vmax.f32 %v7248, 0.0
        %v7299 = vmax.f32 %v7249, 0.0
        %v7300 = vmax.f32 %v7250, 0.0
        %v7301 = vmax.f32 %v7251, 0.0
        %v7302 = vmax.f32 %v7252, 0.0
        %v7303 = vmax.f32 %v7253, 0.0
        %v7304 = vmax.f32 %v7254, 0.0
        %v7305 = vmax.f32 %v7255, 0.0
        %v7306 = vmax.f32 %v7256, 0.0
        %v7307 = vmax.f32 %v7257, 0.0
        %7308 = vst [vmem:[#allocation3] sm:$0xff] %v7258
        %7309 = vst [vmem:[#allocation3 + $0x8] sm:$0xff] %v7259
        %7310 = vst [vmem:[#allocation3 + $0x10] sm:$0xff] %v7260
        %7311 = vst [vmem:[#allocation3 + $0x18] sm:$0xff] %v7261
        %7312 = vst [vmem:[#allocation3 + $0x20] sm:$0xff] %v7262
        %7313 = vst [vmem:[#allocation3 + $0x28] sm:$0xff] %v7263
        %7314 = vst [vmem:[#allocation3 + $0x30] sm:$0xff] %v7264
        %7315 = vst [vmem:[#allocation3 + $0x38] sm:$0xff] %v7265
        %7316 = vst [vmem:[#allocation3 + $0x40] sm:$0xff] %v7266
        %7317 = vst [vmem:[#allocation3 + $0x48] sm:$0xff] %v7267
        %7318 = vst [vmem:[#allocation3 + $0x50] sm:$0xff] %v7268
        %7319 = vst [vmem:[#allocation3 + $0x58] sm:$0xff] %v7269
        %7320 = vst [vmem:[#allocation3 + $0x60] sm:$0xff] %v7270
        %7321 = vst [vmem:[#allocation3 + $0x68] sm:$0xff] %v7271
        %7322 = vst [vmem:[#allocation3 + $0x70] sm:$0xff] %v7272
        %7323 = vst [vmem:[#allocation3 + $0x78] sm:$0xff] %v7273
        %7324 = vst [vmem:[#allocation3 + $0x80] sm:$0xff] %v7274
        %7325 = vst [vmem:[#allocation3 + $0x88] sm:$0xff] %v7275
        %7326 = vst [vmem:[#allocation3 + $0x90] sm:$0xff] %v7276
        %7327 = vst [vmem:[#allocation3 + $0x98] sm:$0xff] %v7277
        %7328 = vst [vmem:[#allocation3 + $0xa0] sm:$0xff] %v7278
        %7329 = vst [vmem:[#allocation3 + $0xa8] sm:$0xff] %v7279
        %7330 = vst [vmem:[#allocation3 + $0xb0] sm:$0xff] %v7280
        %7331 = vst [vmem:[#allocation3 + $0xb8] sm:$0xff] %v7281
        %7332 = vst [vmem:[#allocation3 + $0xc0] sm:$0xff] %v7282
        %7333 = vst [vmem:[#allocation3 + $0xc8] sm:$0xff] %v7283
        %7334 = vst [vmem:[#allocation3 + $0xd0] sm:$0xff] %v7284
        %7335 = vst [vmem:[#allocation3 + $0xd8] sm:$0xff] %v7285
        %7336 = vst [vmem:[#allocation3 + $0xe0] sm:$0xff] %v7286
        %7337 = vst [vmem:[#allocation3 + $0xe8] sm:$0xff] %v7287
        %7338 = vst [vmem:[#allocation3 + $0xf0] sm:$0xff] %v7288
        %7339 = vst [vmem:[#allocation3 + $0xf8] sm:$0xff] %v7289
        %7340 = vst [vmem:[#allocation3 + $0x100] sm:$0xff] %v7290
        %7341 = vst [vmem:[#allocation3 + $0x108] sm:$0xff] %v7291
        %7342 = vst [vmem:[#allocation3 + $0x110] sm:$0xff] %v7292
        %7343 = vst [vmem:[#allocation3 + $0x118] sm:$0xff] %v7293
        %7344 = vst [vmem:[#allocation3 + $0x120] sm:$0xff] %v7294
        %7345 = vst [vmem:[#allocation3 + $0x128] sm:$0xff] %v7295
        %7346 = vst [vmem:[#allocation3 + $0x130] sm:$0xff] %v7296
        %7347 = vst [vmem:[#allocation3 + $0x138] sm:$0xff] %v7297
        %7348 = vst [vmem:[#allocation3 + $0x140] sm:$0xff] %v7298
        %7349 = vst [vmem:[#allocation3 + $0x148] sm:$0xff] %v7299
        %7350 = vst [vmem:[#allocation3 + $0x150] sm:$0xff] %v7300
        %7351 = vst [vmem:[#allocation3 + $0x158] sm:$0xff] %v7301
        %7352 = vst [vmem:[#allocation3 + $0x160] sm:$0xff] %v7302
        %7353 = vst [vmem:[#allocation3 + $0x168] sm:$0xff] %v7303
        %7354 = vst [vmem:[#allocation3 + $0x170] sm:$0xff] %v7304
        %7355 = vst [vmem:[#allocation3 + $0x178] sm:$0xff] %v7305
        %7356 = vst [vmem:[#allocation3 + $0x180] sm:$0xff] %v7306
        %7357 = vst [vmem:[#allocation3 + $0x188] sm:$0xff] %v7307
        %v7358 = vld [vmem:[#allocation3] sm:$0xff]
        %v7359 = vld [vmem:[#allocation3 + $0x8] sm:$0xff]
        %v7360 = vld [vmem:[#allocation3 + $0x10] sm:$0xff]
        %v7361 = vld [vmem:[#allocation3 + $0x18] sm:$0xff]
        %v7362 = vld [vmem:[#allocation3 + $0x20] sm:$0xff]
        %v7363 = vld [vmem:[#allocation3 + $0x28] sm:$0xff]
        %v7364 = vld [vmem:[#allocation3 + $0x50] sm:$0xff]
        %v7365 = vld [vmem:[#allocation3 + $0x58] sm:$0xff]
        %v7366 = vld [vmem:[#allocation3 + $0x60] sm:$0xff]
        %v7367 = vld [vmem:[#allocation3 + $0x68] sm:$0xff]
        %v7368 = vld [vmem:[#allocation3 + $0x70] sm:$0xff]
        %v7369 = vld [vmem:[#allocation3 + $0x78] sm:$0xff]
        %v7370 = vld [vmem:[#allocation3 + $0xa0] sm:$0xff]
        %v7371 = vld [vmem:[#allocation3 + $0xa8] sm:$0xff]
        %v7372 = vld [vmem:[#allocation3 + $0xb0] sm:$0xff]
        %v7373 = vld [vmem:[#allocation3 + $0xb8] sm:$0xff]
        %v7374 = vld [vmem:[#allocation3 + $0xc0] sm:$0xff]
        %v7375 = vld [vmem:[#allocation3 + $0xc8] sm:$0xff]
        %s7376 = scalar_lea.vmem [#allocation3], 16
        %v7377 = vld [vmem:[%s7376] sm:$0xff]
        %v7378 = vld [vmem:[%s7376 + $0x8] sm:$0xff]
        %v7379 = vld [vmem:[%s7376 + $0x10] sm:$0xff]
        %v7380 = vld [vmem:[%s7376 + $0x18] sm:$0xff]
        %v7381 = vld [vmem:[%s7376 + $0x20] sm:$0xff]
        %v7382 = vld [vmem:[%s7376 + $0x28] sm:$0xff]
        %v7383 = vld [vmem:[%s7376 + $0x50] sm:$0xff]
        %v7384 = vld [vmem:[%s7376 + $0x58] sm:$0xff]
        %v7385 = vld [vmem:[%s7376 + $0x60] sm:$0xff]
        %v7386 = vld [vmem:[%s7376 + $0x68] sm:$0xff]
        %v7387 = vld [vmem:[%s7376 + $0x70] sm:$0xff]
        %v7388 = vld [vmem:[%s7376 + $0x78] sm:$0xff]
        %v7389 = vld [vmem:[%s7376 + $0xa0] sm:$0xff]
        %v7390 = vld [vmem:[%s7376 + $0xa8] sm:$0xff]
        %v7391 = vld [vmem:[%s7376 + $0xb0] sm:$0xff]
        %v7392 = vld [vmem:[%s7376 + $0xb8] sm:$0xff]
        %v7393 = vld [vmem:[%s7376 + $0xc0] sm:$0xff]
        %v7394 = vld [vmem:[%s7376 + $0xc8] sm:$0xff]
        %v7395 = vsel %vm4772, %v7358, %v7377
        %v7396 = vsel %vm4772, %v7359, %v7378
        %v7397 = vsel %vm4772, %v7360, %v7379
        %v7398 = vsel %vm4772, %v7361, %v7380
        %v7399 = vsel %vm4772, %v7362, %v7381
        %v7400 = vsel %vm4772, %v7363, %v7382
        %v7401 = vsel %vm4772, %v7364, %v7383
        %v7402 = vsel %vm4772, %v7365, %v7384
        %v7403 = vsel %vm4772, %v7366, %v7385
        %v7404 = vsel %vm4772, %v7367, %v7386
        %v7405 = vsel %vm4772, %v7368, %v7387
        %v7406 = vsel %vm4772, %v7369, %v7388
        %v7407 = vsel %vm4772, %v7370, %v7389
        %v7408 = vsel %vm4772, %v7371, %v7390
        %v7409 = vsel %vm4772, %v7372, %v7391
        %v7410 = vsel %vm4772, %v7373, %v7392
        %v7411 = vsel %vm4772, %v7374, %v7393
        %v7412 = vsel %vm4772, %v7375, %v7394
        %v7413 = vpack.c.bf16 %v7396, %v7395
        %v7414 = vpack.c.bf16 %v7398, %v7397
        %v7415 = vpack.c.bf16 %v7400, %v7399
        %v7416 = vpack.c.bf16 %v7402, %v7401
        %v7417 = vpack.c.bf16 %v7404, %v7403
        %v7418 = vpack.c.bf16 %v7406, %v7405
        %v7419 = vpack.c.bf16 %v7408, %v7407
        %v7420 = vpack.c.bf16 %v7410, %v7409
        %v7421 = vpack.c.bf16 %v7412, %v7411
        %v7422 = vld [vmem:[%s5] sm:$0xf]
        %v7423 = vld [vmem:[%s5 + $0x4] sm:$0xf]
        %v7424 = vld [vmem:[%s5 + $0x8] sm:$0xf]
        %v7425 = vld [vmem:[%s5 + $0xc] sm:$0xf]
        %v7426 = vld [vmem:[%s5 + $0x10] sm:$0xf]
        %v7427 = vld [vmem:[%s5 + $0x14] sm:$0xf]
        %v7428 = vld [vmem:[%s5 + $0x18] sm:$0xf]
        %v7429 = vld [vmem:[%s5 + $0x1c] sm:$0xf]
        %v7430 = vld [vmem:[%s5 + $0x20] sm:$0xf]
        %v7431 = vld [vmem:[%s5 + $0x24] sm:$0xf]
        %v7432 = vld [vmem:[%s5 + $0x28] sm:$0xf]
        %v7433 = vld [vmem:[%s5 + $0x2c] sm:$0xf]
        %v7434 = vld [vmem:[%s5 + $0x30] sm:$0xf]
        %v7435 = vld [vmem:[%s5 + $0x34] sm:$0xf]
        %v7436 = vld [vmem:[%s5 + $0x38] sm:$0xf]
        %v7437 = vld [vmem:[%s5 + $0x3c] sm:$0xf]
        %v7438 = vld [vmem:[%s6] sm:$0x1]
        %v7440 = vlaneseq
        %v7441 = vshrl.u32 %v7440, 7
        %v7442 = vsub.s32 0, %v7441
        %v7443 = vrot.slane %v7438, %v7442
        %v7461 = vunpack.c.l.b16 %v7422
        %v7462 = vunpack.c.l.b16 %v7423
        %v7463 = vunpack.c.l.b16 %v7424
        %v7464 = vunpack.c.l.b16 %v7425
        %v7465 = vunpack.c.l.b16 %v7426
        %v7466 = vunpack.c.l.b16 %v7427
        %v7467 = vunpack.c.l.b16 %v7428
        %v7468 = vunpack.c.l.b16 %v7429
        %v7469 = vunpack.c.l.b16 %v7430
        %v7470 = vunpack.c.l.b16 %v7431
        %v7471 = vunpack.c.l.b16 %v7432
        %v7472 = vunpack.c.l.b16 %v7433
        %v7473 = vunpack.c.l.b16 %v7434
        %v7474 = vunpack.c.l.b16 %v7435
        %v7475 = vunpack.c.l.b16 %v7436
        %v7476 = vunpack.c.l.b16 %v7437
        %v7477 = vpack.c.b16 %v7462, %v7461
        %v7478 = vpack.c.b16 %v7464, %v7463
        %v7479 = vpack.c.b16 %v7466, %v7465
        %v7480 = vpack.c.b16 %v7468, %v7467
        %v7481 = vpack.c.b16 %v7470, %v7469
        %v7482 = vpack.c.b16 %v7472, %v7471
        %v7483 = vpack.c.b16 %v7474, %v7473
        %v7484 = vpack.c.b16 %v7476, %v7475
        %7493 = vmatprep.subr.bf16.mxu0 0
        %7494 = vmatpush1.bf16.msra.mxu0 %v7477
        %7495 = vmatprep.subr.bf16.mxu0 0
        %7496 = vmatpush1.bf16.msra.mxu0 %v7478
        %7497 = vmatprep.subr.bf16.mxu0 0
        %7498 = vmatpush1.bf16.msra.mxu0 %v7479
        %7499 = vmatprep.subr.bf16.mxu0 0
        %7500 = vmatpush1.bf16.msra.mxu0 %v7480
        %7501 = vmatprep.subr.bf16.mxu0 0
        %7502 = vmatpush1.bf16.msra.mxu0 %v7481
        %7503 = vmatprep.subr.bf16.mxu0 0
        %7504 = vmatpush1.bf16.msra.mxu0 %v7482
        %7505 = vmatprep.subr.bf16.mxu0 0
        %7506 = vmatpush1.bf16.msra.mxu0 %v7483
        %7507 = vmatprep.subr.bf16.mxu0 0
        %7508 = vmatpush1.bf16.msra.mxu0 %v7484
        %7509 = vmatprep.subr.bf16.mxu0 0
        %7510 = vmatpush1.bf16.msra.mxu0 0
        %7511 = vmatprep.subr.bf16.mxu0 0
        %7512 = vmatpush1.bf16.msra.mxu0 0
        %7513 = vmatprep.subr.bf16.mxu0 0
        %7514 = vmatpush1.bf16.msra.mxu0 0
        %7515 = vmatprep.subr.bf16.mxu0 0
        %7516 = vmatpush1.bf16.msra.mxu0 0
        %7517 = vmatprep.subr.bf16.mxu0 0
        %7518 = vmatpush1.bf16.msra.mxu0 0
        %7519 = vmatprep.subr.bf16.mxu0 0
        %7520 = vmatpush1.bf16.msra.mxu0 0
        %7521 = vmatprep.subr.bf16.mxu0 0
        %7522 = vmatpush1.bf16.msra.mxu0 0
        %7523 = vmatprep.subr.bf16.mxu0 0
        %7524 = vmatpush1.bf16.msra.mxu0 0
        %7525 = vmatprep.mubr.bf16.mxu0 0
        %7526 = vmatmul.mubr.bf16.gmra.mrb[0].mxu0 %v7413
        %v7527 = vpop.f32.mrb[0].mxu0
        %v7528 = vadd.f32 %v7443, %v7527
        %v7529 = vpop.f32.mrb[0].mxu0
        %v7530 = vpop.f32.mrb[0].mxu0
        %v7531 = vadd.f32 %v7443, %v7530
        %v7532 = vpop.f32.mrb[0].mxu0
        %7533 = vmatprep.mubr.bf16.mxu0 0
        %7534 = vmatmul.mubr.bf16.gmra.mrb[0].mxu0 %v7414
        %v7535 = vpop.f32.mrb[0].mxu0
        %v7536 = vadd.f32 %v7443, %v7535
        %v7537 = vpop.f32.mrb[0].mxu0
        %v7538 = vpop.f32.mrb[0].mxu0
        %v7539 = vadd.f32 %v7443, %v7538
        %v7540 = vpop.f32.mrb[0].mxu0
        %7541 = vmatprep.mubr.bf16.mxu0 0
        %7542 = vmatmul.mubr.bf16.gmra.mrb[0].mxu0 %v7415
        %v7543 = vpop.f32.mrb[0].mxu0
        %v7544 = vadd.f32 %v7443, %v7543
        %v7545 = vpop.f32.mrb[0].mxu0
        %v7546 = vpop.f32.mrb[0].mxu0
        %v7547 = vadd.f32 %v7443, %v7546
        %v7548 = vpop.f32.mrb[0].mxu0
        %7549 = vmatprep.mubr.bf16.mxu0 0
        %7550 = vmatmul.mubr.bf16.gmra.mrb[0].mxu0 %v7416
        %v7551 = vpop.f32.mrb[0].mxu0
        %v7552 = vadd.f32 %v7443, %v7551
        %v7553 = vpop.f32.mrb[0].mxu0
        %v7554 = vpop.f32.mrb[0].mxu0
        %v7555 = vadd.f32 %v7443, %v7554
        %v7556 = vpop.f32.mrb[0].mxu0
        %7557 = vmatprep.mubr.bf16.mxu0 0
        %7558 = vmatmul.mubr.bf16.gmra.mrb[0].mxu0 %v7417
        %v7559 = vpop.f32.mrb[0].mxu0
        %v7560 = vadd.f32 %v7443, %v7559
        %v7561 = vpop.f32.mrb[0].mxu0
        %v7562 = vpop.f32.mrb[0].mxu0
        %v7563 = vadd.f32 %v7443, %v7562
        %v7564 = vpop.f32.mrb[0].mxu0
        %7565 = vmatprep.mubr.bf16.mxu0 0
        %7566 = vmatmul.mubr.bf16.gmra.mrb[0].mxu0 %v7418
        %v7567 = vpop.f32.mrb[0].mxu0
        %v7568 = vadd.f32 %v7443, %v7567
        %v7569 = vpop.f32.mrb[0].mxu0
        %v7570 = vpop.f32.mrb[0].mxu0
        %v7571 = vadd.f32 %v7443, %v7570
        %v7572 = vpop.f32.mrb[0].mxu0
        %7573 = vmatprep.mubr.bf16.mxu0 0
        %7574 = vmatmul.mubr.bf16.gmra.mrb[0].mxu0 %v7419
        %v7575 = vpop.f32.mrb[0].mxu0
        %v7576 = vadd.f32 %v7443, %v7575
        %v7577 = vpop.f32.mrb[0].mxu0
        %v7578 = vpop.f32.mrb[0].mxu0
        %v7579 = vadd.f32 %v7443, %v7578
        %v7580 = vpop.f32.mrb[0].mxu0
        %7581 = vmatprep.mubr.bf16.mxu0 0
        %7582 = vmatmul.mubr.bf16.gmra.mrb[0].mxu0 %v7420
        %v7583 = vpop.f32.mrb[0].mxu0
        %v7584 = vadd.f32 %v7443, %v7583
        %v7585 = vpop.f32.mrb[0].mxu0
        %v7586 = vpop.f32.mrb[0].mxu0
        %v7587 = vadd.f32 %v7443, %v7586
        %v7588 = vpop.f32.mrb[0].mxu0
        %7589 = vmatprep.mubr.bf16.mxu0 0
        %7590 = vmatmul.mubr.bf16.gmra.mrb[0].mxu0 %v7421
        %v7591 = vpop.f32.mrb[0].mxu0
        %v7592 = vadd.f32 %v7443, %v7591
        %v7593 = vpop.f32.mrb[0].mxu0
        %v7594 = vpop.f32.mrb[0].mxu0
        %v7595 = vadd.f32 %v7443, %v7594
        %v7596 = vpop.f32.mrb[0].mxu0
        %7597 = vdwg.mxu0
        %7598 = vst [vmem:[#allocation4] sm:$0xff] %v7528
        %7599 = vst [vmem:[#allocation4 + $0x8] sm:$0xff] %v7531
        %7600 = vst [vmem:[#allocation4 + $0x10] sm:$0xff] %v7536
        %7601 = vst [vmem:[#allocation4 + $0x18] sm:$0xff] %v7539
        %7602 = vst [vmem:[#allocation4 + $0x20] sm:$0xff] %v7544
        %7603 = vst [vmem:[#allocation4 + $0x28] sm:$0xff] %v7547
        %7604 = vst [vmem:[#allocation4 + $0x30] sm:$0xff] %v7552
        %7605 = vst [vmem:[#allocation4 + $0x38] sm:$0xff] %v7555
        %7606 = vst [vmem:[#allocation4 + $0x40] sm:$0xff] %v7560
        %7607 = vst [vmem:[#allocation4 + $0x48] sm:$0xff] %v7563
        %7608 = vst [vmem:[#allocation4 + $0x50] sm:$0xff] %v7568
        %7609 = vst [vmem:[#allocation4 + $0x58] sm:$0xff] %v7571
        %7610 = vst [vmem:[#allocation4 + $0x60] sm:$0xff] %v7576
        %7611 = vst [vmem:[#allocation4 + $0x68] sm:$0xff] %v7579
        %7612 = vst [vmem:[#allocation4 + $0x70] sm:$0xff] %v7584
        %7613 = vst [vmem:[#allocation4 + $0x78] sm:$0xff] %v7587
        %7614 = vst [vmem:[#allocation4 + $0x80] sm:$0xff] %v7592
        %7615 = vst [vmem:[#allocation4 + $0x88] sm:$0xff] %v7595
        %s7616 = scalar_lea.vmem [#allocation3], 32
        %v7617 = vld [vmem:[%s7616] sm:$0xff]
        %v7618 = vld [vmem:[%s7616 + $0x8] sm:$0xff]
        %v7619 = vld [vmem:[%s7616 + $0x10] sm:$0xff]
        %v7620 = vld [vmem:[%s7616 + $0x18] sm:$0xff]
        %v7621 = vld [vmem:[%s7616 + $0x20] sm:$0xff]
        %v7622 = vld [vmem:[%s7616 + $0x28] sm:$0xff]
        %v7623 = vld [vmem:[%s7616 + $0x50] sm:$0xff]
        %v7624 = vld [vmem:[%s7616 + $0x58] sm:$0xff]
        %v7625 = vld [vmem:[%s7616 + $0x60] sm:$0xff]
        %v7626 = vld [vmem:[%s7616 + $0x68] sm:$0xff]
        %v7627 = vld [vmem:[%s7616 + $0x70] sm:$0xff]
        %v7628 = vld [vmem:[%s7616 + $0x78] sm:$0xff]
        %v7629 = vld [vmem:[%s7616 + $0xa0] sm:$0xff]
        %v7630 = vld [vmem:[%s7616 + $0xa8] sm:$0xff]
        %v7631 = vld [vmem:[%s7616 + $0xb0] sm:$0xff]
        %v7632 = vld [vmem:[%s7616 + $0xb8] sm:$0xff]
        %v7633 = vld [vmem:[%s7616 + $0xc0] sm:$0xff]
        %v7634 = vld [vmem:[%s7616 + $0xc8] sm:$0xff]
        %s7635 = scalar_lea.vmem [#allocation3], 80
        %v7636 = vld [vmem:[%s7635] sm:$0xff]
        %v7637 = vld [vmem:[%s7635 + $0x8] sm:$0xff]
        %v7638 = vld [vmem:[%s7635 + $0x10] sm:$0xff]
        %v7639 = vld [vmem:[%s7635 + $0x18] sm:$0xff]
        %v7640 = vld [vmem:[%s7635 + $0x20] sm:$0xff]
        %v7641 = vld [vmem:[%s7635 + $0x28] sm:$0xff]
        %v7642 = vld [vmem:[%s7635 + $0x50] sm:$0xff]
        %v7643 = vld [vmem:[%s7635 + $0x58] sm:$0xff]
        %v7644 = vld [vmem:[%s7635 + $0x60] sm:$0xff]
        %v7645 = vld [vmem:[%s7635 + $0x68] sm:$0xff]
        %v7646 = vld [vmem:[%s7635 + $0x70] sm:$0xff]
        %v7647 = vld [vmem:[%s7635 + $0x78] sm:$0xff]
        %v7648 = vld [vmem:[%s7635 + $0xa0] sm:$0xff]
        %v7649 = vld [vmem:[%s7635 + $0xa8] sm:$0xff]
        %v7650 = vld [vmem:[%s7635 + $0xb0] sm:$0xff]
        %v7651 = vld [vmem:[%s7635 + $0xb8] sm:$0xff]
        %v7652 = vld [vmem:[%s7635 + $0xc0] sm:$0xff]
        %v7653 = vld [vmem:[%s7635 + $0xc8] sm:$0xff]
        %v7654 = vsel %vm4772, %v7617, %v7636
        %v7655 = vsel %vm4772, %v7618, %v7637
        %v7656 = vsel %vm4772, %v7619, %v7638
        %v7657 = vsel %vm4772, %v7620, %v7639
        %v7658 = vsel %vm4772, %v7621, %v7640
        %v7659 = vsel %vm4772, %v7622, %v7641
        %v7660 = vsel %vm4772, %v7623, %v7642
        %v7661 = vsel %vm4772, %v7624, %v7643
        %v7662 = vsel %vm4772, %v7625, %v7644
        %v7663 = vsel %vm4772, %v7626, %v7645
        %v7664 = vsel %vm4772, %v7627, %v7646
        %v7665 = vsel %vm4772, %v7628, %v7647
        %v7666 = vsel %vm4772, %v7629, %v7648
        %v7667 = vsel %vm4772, %v7630, %v7649
        %v7668 = vsel %vm4772, %v7631, %v7650
        %v7669 = vsel %vm4772, %v7632, %v7651
        %v7670 = vsel %vm4772, %v7633, %v7652
        %v7671 = vsel %vm4772, %v7634, %v7653
        %v7672 = vpack.c.bf16 %v7655, %v7654
        %v7673 = vpack.c.bf16 %v7657, %v7656
        %v7674 = vpack.c.bf16 %v7659, %v7658
        %v7675 = vpack.c.bf16 %v7661, %v7660
        %v7676 = vpack.c.bf16 %v7663, %v7662
        %v7677 = vpack.c.bf16 %v7665, %v7664
        %v7678 = vpack.c.bf16 %v7667, %v7666
        %v7679 = vpack.c.bf16 %v7669, %v7668
        %v7680 = vpack.c.bf16 %v7671, %v7670
        %s7681 = scalar_lea.vmem %s5, 64
        %v7682 = vld [vmem:[%s7681] sm:$0xf]
        %v7683 = vld [vmem:[%s7681 + $0x4] sm:$0xf]
        %v7684 = vld [vmem:[%s7681 + $0x8] sm:$0xf]
        %v7685 = vld [vmem:[%s7681 + $0xc] sm:$0xf]
        %v7686 = vld [vmem:[%s7681 + $0x10] sm:$0xf]
        %v7687 = vld [vmem:[%s7681 + $0x14] sm:$0xf]
        %v7688 = vld [vmem:[%s7681 + $0x18] sm:$0xf]
        %v7689 = vld [vmem:[%s7681 + $0x1c] sm:$0xf]
        %v7690 = vld [vmem:[%s7681 + $0x20] sm:$0xf]
        %v7691 = vld [vmem:[%s7681 + $0x24] sm:$0xf]
        %v7692 = vld [vmem:[%s7681 + $0x28] sm:$0xf]
        %v7693 = vld [vmem:[%s7681 + $0x2c] sm:$0xf]
        %v7694 = vld [vmem:[%s7681 + $0x30] sm:$0xf]
        %v7695 = vld [vmem:[%s7681 + $0x34] sm:$0xf]
        %v7696 = vld [vmem:[%s7681 + $0x38] sm:$0xf]
        %v7697 = vld [vmem:[%s7681 + $0x3c] sm:$0xf]
        %v7714 = vunpack.c.l.b16 %v7682
        %v7715 = vunpack.c.l.b16 %v7683
        %v7716 = vunpack.c.l.b16 %v7684
        %v7717 = vunpack.c.l.b16 %v7685
        %v7718 = vunpack.c.l.b16 %v7686
        %v7719 = vunpack.c.l.b16 %v7687
        %v7720 = vunpack.c.l.b16 %v7688
        %v7721 = vunpack.c.l.b16 %v7689
        %v7722 = vunpack.c.l.b16 %v7690
        %v7723 = vunpack.c.l.b16 %v7691
        %v7724 = vunpack.c.l.b16 %v7692
        %v7725 = vunpack.c.l.b16 %v7693
        %v7726 = vunpack.c.l.b16 %v7694
        %v7727 = vunpack.c.l.b16 %v7695
        %v7728 = vunpack.c.l.b16 %v7696
        %v7729 = vunpack.c.l.b16 %v7697
        %v7730 = vpack.c.b16 %v7715, %v7714
        %v7731 = vpack.c.b16 %v7717, %v7716
        %v7732 = vpack.c.b16 %v7719, %v7718
        %v7733 = vpack.c.b16 %v7721, %v7720
        %v7734 = vpack.c.b16 %v7723, %v7722
        %v7735 = vpack.c.b16 %v7725, %v7724
        %v7736 = vpack.c.b16 %v7727, %v7726
        %v7737 = vpack.c.b16 %v7729, %v7728
        %7746 = vmatprep.subr.bf16.mxu0 0
        %7747 = vmatpush1.bf16.msra.mxu0 %v7730
        %7748 = vmatprep.subr.bf16.mxu0 0
        %7749 = vmatpush1.bf16.msra.mxu0 %v7731
        %7750 = vmatprep.subr.bf16.mxu0 0
        %7751 = vmatpush1.bf16.msra.mxu0 %v7732
        %7752 = vmatprep.subr.bf16.mxu0 0
        %7753 = vmatpush1.bf16.msra.mxu0 %v7733
        %7754 = vmatprep.subr.bf16.mxu0 0
        %7755 = vmatpush1.bf16.msra.mxu0 %v7734
        %7756 = vmatprep.subr.bf16.mxu0 0
        %7757 = vmatpush1.bf16.msra.mxu0 %v7735
        %7758 = vmatprep.subr.bf16.mxu0 0
        %7759 = vmatpush1.bf16.msra.mxu0 %v7736
        %7760 = vmatprep.subr.bf16.mxu0 0
        %7761 = vmatpush1.bf16.msra.mxu0 %v7737
        %7762 = vmatprep.subr.bf16.mxu0 0
        %7763 = vmatpush1.bf16.msra.mxu0 0
        %7764 = vmatprep.subr.bf16.mxu0 0
        %7765 = vmatpush1.bf16.msra.mxu0 0
        %7766 = vmatprep.subr.bf16.mxu0 0
        %7767 = vmatpush1.bf16.msra.mxu0 0
        %7768 = vmatprep.subr.bf16.mxu0 0
        %7769 = vmatpush1.bf16.msra.mxu0 0
        %7770 = vmatprep.subr.bf16.mxu0 0
        %7771 = vmatpush1.bf16.msra.mxu0 0
        %7772 = vmatprep.subr.bf16.mxu0 0
        %7773 = vmatpush1.bf16.msra.mxu0 0
        %7774 = vmatprep.subr.bf16.mxu0 0
        %7775 = vmatpush1.bf16.msra.mxu0 0
        %7776 = vmatprep.subr.bf16.mxu0 0
        %7777 = vmatpush1.bf16.msra.mxu0 0
        %7778 = vmatprep.mubr.bf16.mxu0 0
        %7779 = vmatmul.mubr.bf16.gmra.mrb[0].mxu0 %v7672
        %v7780 = vpop.f32.mrb[0].mxu0
        %v7781 = vadd.f32 0.0, %v7780
        %v7782 = vpop.f32.mrb[0].mxu0
        %v7783 = vpop.f32.mrb[0].mxu0
        %v7784 = vadd.f32 0.0, %v7783
        %v7785 = vpop.f32.mrb[0].mxu0
        %7786 = vmatprep.mubr.bf16.mxu0 0
        %7787 = vmatmul.mubr.bf16.gmra.mrb[0].mxu0 %v7673
        %v7788 = vpop.f32.mrb[0].mxu0
        %v7789 = vadd.f32 0.0, %v7788
        %v7790 = vpop.f32.mrb[0].mxu0
        %v7791 = vpop.f32.mrb[0].mxu0
        %v7792 = vadd.f32 0.0, %v7791
        %v7793 = vpop.f32.mrb[0].mxu0
        %7794 = vmatprep.mubr.bf16.mxu0 0
        %7795 = vmatmul.mubr.bf16.gmra.mrb[0].mxu0 %v7674
        %v7796 = vpop.f32.mrb[0].mxu0
        %v7797 = vadd.f32 0.0, %v7796
        %v7798 = vpop.f32.mrb[0].mxu0
        %v7799 = vpop.f32.mrb[0].mxu0
        %v7800 = vadd.f32 0.0, %v7799
        %v7801 = vpop.f32.mrb[0].mxu0
        %7802 = vmatprep.mubr.bf16.mxu0 0
        %7803 = vmatmul.mubr.bf16.gmra.mrb[0].mxu0 %v7675
        %v7804 = vpop.f32.mrb[0].mxu0
        %v7805 = vadd.f32 0.0, %v7804
        %v7806 = vpop.f32.mrb[0].mxu0
        %v7807 = vpop.f32.mrb[0].mxu0
        %v7808 = vadd.f32 0.0, %v7807
        %v7809 = vpop.f32.mrb[0].mxu0
        %7810 = vmatprep.mubr.bf16.mxu0 0
        %7811 = vmatmul.mubr.bf16.gmra.mrb[0].mxu0 %v7676
        %v7812 = vpop.f32.mrb[0].mxu0
        %v7813 = vadd.f32 0.0, %v7812
        %v7814 = vpop.f32.mrb[0].mxu0
        %v7815 = vpop.f32.mrb[0].mxu0
        %v7816 = vadd.f32 0.0, %v7815
        %v7817 = vpop.f32.mrb[0].mxu0
        %7818 = vmatprep.mubr.bf16.mxu0 0
        %7819 = vmatmul.mubr.bf16.gmra.mrb[0].mxu0 %v7677
        %v7820 = vpop.f32.mrb[0].mxu0
        %v7821 = vadd.f32 0.0, %v7820
        %v7822 = vpop.f32.mrb[0].mxu0
        %v7823 = vpop.f32.mrb[0].mxu0
        %v7824 = vadd.f32 0.0, %v7823
        %v7825 = vpop.f32.mrb[0].mxu0
        %7826 = vmatprep.mubr.bf16.mxu0 0
        %7827 = vmatmul.mubr.bf16.gmra.mrb[0].mxu0 %v7678
        %v7828 = vpop.f32.mrb[0].mxu0
        %v7829 = vadd.f32 0.0, %v7828
        %v7830 = vpop.f32.mrb[0].mxu0
        %v7831 = vpop.f32.mrb[0].mxu0
        %v7832 = vadd.f32 0.0, %v7831
        %v7833 = vpop.f32.mrb[0].mxu0
        %7834 = vmatprep.mubr.bf16.mxu0 0
        %7835 = vmatmul.mubr.bf16.gmra.mrb[0].mxu0 %v7679
        %v7836 = vpop.f32.mrb[0].mxu0
        %v7837 = vadd.f32 0.0, %v7836
        %v7838 = vpop.f32.mrb[0].mxu0
        %v7839 = vpop.f32.mrb[0].mxu0
        %v7840 = vadd.f32 0.0, %v7839
        %v7841 = vpop.f32.mrb[0].mxu0
        %7842 = vmatprep.mubr.bf16.mxu0 0
        %7843 = vmatmul.mubr.bf16.gmra.mrb[0].mxu0 %v7680
        %v7844 = vpop.f32.mrb[0].mxu0
        %v7845 = vadd.f32 0.0, %v7844
        %v7846 = vpop.f32.mrb[0].mxu0
        %v7847 = vpop.f32.mrb[0].mxu0
        %v7848 = vadd.f32 0.0, %v7847
        %v7849 = vpop.f32.mrb[0].mxu0
        %7850 = vdwg.mxu0
        %v7851 = vld [vmem:[#allocation4] sm:$0xff]
        %v7852 = vld [vmem:[#allocation4 + $0x8] sm:$0xff]
        %v7853 = vld [vmem:[#allocation4 + $0x10] sm:$0xff]
        %v7854 = vld [vmem:[#allocation4 + $0x18] sm:$0xff]
        %v7855 = vld [vmem:[#allocation4 + $0x20] sm:$0xff]
        %v7856 = vld [vmem:[#allocation4 + $0x28] sm:$0xff]
        %v7857 = vld [vmem:[#allocation4 + $0x30] sm:$0xff]
        %v7858 = vld [vmem:[#allocation4 + $0x38] sm:$0xff]
        %v7859 = vld [vmem:[#allocation4 + $0x40] sm:$0xff]
        %v7860 = vld [vmem:[#allocation4 + $0x48] sm:$0xff]
        %v7861 = vld [vmem:[#allocation4 + $0x50] sm:$0xff]
        %v7862 = vld [vmem:[#allocation4 + $0x58] sm:$0xff]
        %v7863 = vld [vmem:[#allocation4 + $0x60] sm:$0xff]
        %v7864 = vld [vmem:[#allocation4 + $0x68] sm:$0xff]
        %v7865 = vld [vmem:[#allocation4 + $0x70] sm:$0xff]
        %v7866 = vld [vmem:[#allocation4 + $0x78] sm:$0xff]
        %v7867 = vld [vmem:[#allocation4 + $0x80] sm:$0xff]
        %v7868 = vld [vmem:[#allocation4 + $0x88] sm:$0xff]
        %v7869 = vadd.f32 %v7851, %v7781
        %v7870 = vadd.f32 %v7852, %v7784
        %v7871 = vadd.f32 %v7853, %v7789
        %v7872 = vadd.f32 %v7854, %v7792
        %v7873 = vadd.f32 %v7855, %v7797
        %v7874 = vadd.f32 %v7856, %v7800
        %v7875 = vadd.f32 %v7857, %v7805
        %v7876 = vadd.f32 %v7858, %v7808
        %v7877 = vadd.f32 %v7859, %v7813
        %v7878 = vadd.f32 %v7860, %v7816
        %v7879 = vadd.f32 %v7861, %v7821
        %v7880 = vadd.f32 %v7862, %v7824
        %v7881 = vadd.f32 %v7863, %v7829
        %v7882 = vadd.f32 %v7864, %v7832
        %v7883 = vadd.f32 %v7865, %v7837
        %v7884 = vadd.f32 %v7866, %v7840
        %v7885 = vadd.f32 %v7867, %v7845
        %v7886 = vadd.f32 %v7868, %v7848
        %7887 = vst [vmem:[#allocation4] sm:$0xff] %v7869
        %7888 = vst [vmem:[#allocation4 + $0x8] sm:$0xff] %v7870
        %7889 = vst [vmem:[#allocation4 + $0x10] sm:$0xff] %v7871
        %7890 = vst [vmem:[#allocation4 + $0x18] sm:$0xff] %v7872
        %7891 = vst [vmem:[#allocation4 + $0x20] sm:$0xff] %v7873
        %7892 = vst [vmem:[#allocation4 + $0x28] sm:$0xff] %v7874
        %7893 = vst [vmem:[#allocation4 + $0x30] sm:$0xff] %v7875
        %7894 = vst [vmem:[#allocation4 + $0x38] sm:$0xff] %v7876
        %7895 = vst [vmem:[#allocation4 + $0x40] sm:$0xff] %v7877
        %7896 = vst [vmem:[#allocation4 + $0x48] sm:$0xff] %v7878
        %7897 = vst [vmem:[#allocation4 + $0x50] sm:$0xff] %v7879
        %7898 = vst [vmem:[#allocation4 + $0x58] sm:$0xff] %v7880
        %7899 = vst [vmem:[#allocation4 + $0x60] sm:$0xff] %v7881
        %7900 = vst [vmem:[#allocation4 + $0x68] sm:$0xff] %v7882
        %7901 = vst [vmem:[#allocation4 + $0x70] sm:$0xff] %v7883
        %7902 = vst [vmem:[#allocation4 + $0x78] sm:$0xff] %v7884
        %7903 = vst [vmem:[#allocation4 + $0x80] sm:$0xff] %v7885
        %7904 = vst [vmem:[#allocation4 + $0x88] sm:$0xff] %v7886
        %s7905 = scalar_lea.vmem [#allocation3], 96
        %v7906 = vld [vmem:[%s7905] sm:$0xff]
        %v7907 = vld [vmem:[%s7905 + $0x8] sm:$0xff]
        %v7908 = vld [vmem:[%s7905 + $0x10] sm:$0xff]
        %v7909 = vld [vmem:[%s7905 + $0x18] sm:$0xff]
        %v7910 = vld [vmem:[%s7905 + $0x20] sm:$0xff]
        %v7911 = vld [vmem:[%s7905 + $0x28] sm:$0xff]
        %v7912 = vld [vmem:[%s7905 + $0x50] sm:$0xff]
        %v7913 = vld [vmem:[%s7905 + $0x58] sm:$0xff]
        %v7914 = vld [vmem:[%s7905 + $0x60] sm:$0xff]
        %v7915 = vld [vmem:[%s7905 + $0x68] sm:$0xff]
        %v7916 = vld [vmem:[%s7905 + $0x70] sm:$0xff]
        %v7917 = vld [vmem:[%s7905 + $0x78] sm:$0xff]
        %v7918 = vld [vmem:[%s7905 + $0xa0] sm:$0xff]
        %v7919 = vld [vmem:[%s7905 + $0xa8] sm:$0xff]
        %v7920 = vld [vmem:[%s7905 + $0xb0] sm:$0xff]
        %v7921 = vld [vmem:[%s7905 + $0xb8] sm:$0xff]
        %v7922 = vld [vmem:[%s7905 + $0xc0] sm:$0xff]
        %v7923 = vld [vmem:[%s7905 + $0xc8] sm:$0xff]
        %s7924 = scalar_lea.vmem [#allocation3], 112
        %v7925 = vld [vmem:[%s7924] sm:$0xff]
        %v7926 = vld [vmem:[%s7924 + $0x8] sm:$0xff]
        %v7927 = vld [vmem:[%s7924 + $0x10] sm:$0xff]
        %v7928 = vld [vmem:[%s7924 + $0x18] sm:$0xff]
        %v7929 = vld [vmem:[%s7924 + $0x20] sm:$0xff]
        %v7930 = vld [vmem:[%s7924 + $0x28] sm:$0xff]
        %v7931 = vld [vmem:[%s7924 + $0x50] sm:$0xff]
        %v7932 = vld [vmem:[%s7924 + $0x58] sm:$0xff]
        %v7933 = vld [vmem:[%s7924 + $0x60] sm:$0xff]
        %v7934 = vld [vmem:[%s7924 + $0x68] sm:$0xff]
        %v7935 = vld [vmem:[%s7924 + $0x70] sm:$0xff]
        %v7936 = vld [vmem:[%s7924 + $0x78] sm:$0xff]
        %v7937 = vld [vmem:[%s7924 + $0xa0] sm:$0xff]
        %v7938 = vld [vmem:[%s7924 + $0xa8] sm:$0xff]
        %v7939 = vld [vmem:[%s7924 + $0xb0] sm:$0xff]
        %v7940 = vld [vmem:[%s7924 + $0xb8] sm:$0xff]
        %v7941 = vld [vmem:[%s7924 + $0xc0] sm:$0xff]
        %v7942 = vld [vmem:[%s7924 + $0xc8] sm:$0xff]
        %v7943 = vsel %vm4772, %v7906, %v7925
        %v7944 = vsel %vm4772, %v7907, %v7926
        %v7945 = vsel %vm4772, %v7908, %v7927
        %v7946 = vsel %vm4772, %v7909, %v7928
        %v7947 = vsel %vm4772, %v7910, %v7929
        %v7948 = vsel %vm4772, %v7911, %v7930
        %v7949 = vsel %vm4772, %v7912, %v7931
        %v7950 = vsel %vm4772, %v7913, %v7932
        %v7951 = vsel %vm4772, %v7914, %v7933
        %v7952 = vsel %vm4772, %v7915, %v7934
        %v7953 = vsel %vm4772, %v7916, %v7935
        %v7954 = vsel %vm4772, %v7917, %v7936
        %v7955 = vsel %vm4772, %v7918, %v7937
        %v7956 = vsel %vm4772, %v7919, %v7938
        %v7957 = vsel %vm4772, %v7920, %v7939
        %v7958 = vsel %vm4772, %v7921, %v7940
        %v7959 = vsel %vm4772, %v7922, %v7941
        %v7960 = vsel %vm4772, %v7923, %v7942
        %v7961 = vpack.c.bf16 %v7944, %v7943
        %v7962 = vpack.c.bf16 %v7946, %v7945
        %v7963 = vpack.c.bf16 %v7948, %v7947
        %v7964 = vpack.c.bf16 %v7950, %v7949
        %v7965 = vpack.c.bf16 %v7952, %v7951
        %v7966 = vpack.c.bf16 %v7954, %v7953
        %v7967 = vpack.c.bf16 %v7956, %v7955
        %v7968 = vpack.c.bf16 %v7958, %v7957
        %v7969 = vpack.c.bf16 %v7960, %v7959
        %s7970 = scalar_lea.vmem %s5, 128
        %v7971 = vld [vmem:[%s7970] sm:$0xf]
        %v7972 = vld [vmem:[%s7970 + $0x4] sm:$0xf]
        %v7973 = vld [vmem:[%s7970 + $0x8] sm:$0xf]
        %v7974 = vld [vmem:[%s7970 + $0xc] sm:$0xf]
        %v7975 = vld [vmem:[%s7970 + $0x10] sm:$0xf]
        %v7976 = vld [vmem:[%s7970 + $0x14] sm:$0xf]
        %v7977 = vld [vmem:[%s7970 + $0x18] sm:$0xf]
        %v7978 = vld [vmem:[%s7970 + $0x1c] sm:$0xf]
        %v7979 = vld [vmem:[%s7970 + $0x20] sm:$0xf]
        %v7980 = vld [vmem:[%s7970 + $0x24] sm:$0xf]
        %v7981 = vld [vmem:[%s7970 + $0x28] sm:$0xf]
        %v7982 = vld [vmem:[%s7970 + $0x2c] sm:$0xf]
        %v7983 = vld [vmem:[%s7970 + $0x30] sm:$0xf]
        %v7984 = vld [vmem:[%s7970 + $0x34] sm:$0xf]
        %v7985 = vld [vmem:[%s7970 + $0x38] sm:$0xf]
        %v7986 = vld [vmem:[%s7970 + $0x3c] sm:$0xf]
        %v8003 = vunpack.c.l.b16 %v7971
        %v8004 = vunpack.c.l.b16 %v7972
        %v8005 = vunpack.c.l.b16 %v7973
        %v8006 = vunpack.c.l.b16 %v7974
        %v8007 = vunpack.c.l.b16 %v7975
        %v8008 = vunpack.c.l.b16 %v7976
        %v8009 = vunpack.c.l.b16 %v7977
        %v8010 = vunpack.c.l.b16 %v7978
        %v8011 = vunpack.c.l.b16 %v7979
        %v8012 = vunpack.c.l.b16 %v7980
        %v8013 = vunpack.c.l.b16 %v7981
        %v8014 = vunpack.c.l.b16 %v7982
        %v8015 = vunpack.c.l.b16 %v7983
        %v8016 = vunpack.c.l.b16 %v7984
        %v8017 = vunpack.c.l.b16 %v7985
        %v8018 = vunpack.c.l.b16 %v7986
        %v8019 = vpack.c.b16 %v8004, %v8003
        %v8020 = vpack.c.b16 %v8006, %v8005
        %v8021 = vpack.c.b16 %v8008, %v8007
        %v8022 = vpack.c.b16 %v8010, %v8009
        %v8023 = vpack.c.b16 %v8012, %v8011
        %v8024 = vpack.c.b16 %v8014, %v8013
        %v8025 = vpack.c.b16 %v8016, %v8015
        %v8026 = vpack.c.b16 %v8018, %v8017
        %8035 = vmatprep.subr.bf16.mxu0 0
        %8036 = vmatpush1.bf16.msra.mxu0 %v8019
        %8037 = vmatprep.subr.bf16.mxu0 0
        %8038 = vmatpush1.bf16.msra.mxu0 %v8020
        %8039 = vmatprep.subr.bf16.mxu0 0
        %8040 = vmatpush1.bf16.msra.mxu0 %v8021
        %8041 = vmatprep.subr.bf16.mxu0 0
        %8042 = vmatpush1.bf16.msra.mxu0 %v8022
        %8043 = vmatprep.subr.bf16.mxu0 0
        %8044 = vmatpush1.bf16.msra.mxu0 %v8023
        %8045 = vmatprep.subr.bf16.mxu0 0
        %8046 = vmatpush1.bf16.msra.mxu0 %v8024
        %8047 = vmatprep.subr.bf16.mxu0 0
        %8048 = vmatpush1.bf16.msra.mxu0 %v8025
        %8049 = vmatprep.subr.bf16.mxu0 0
        %8050 = vmatpush1.bf16.msra.mxu0 %v8026
        %8051 = vmatprep.subr.bf16.mxu0 0
        %8052 = vmatpush1.bf16.msra.mxu0 0
        %8053 = vmatprep.subr.bf16.mxu0 0
        %8054 = vmatpush1.bf16.msra.mxu0 0
        %8055 = vmatprep.subr.bf16.mxu0 0
        %8056 = vmatpush1.bf16.msra.mxu0 0
        %8057 = vmatprep.subr.bf16.mxu0 0
        %8058 = vmatpush1.bf16.msra.mxu0 0
        %8059 = vmatprep.subr.bf16.mxu0 0
        %8060 = vmatpush1.bf16.msra.mxu0 0
        %8061 = vmatprep.subr.bf16.mxu0 0
        %8062 = vmatpush1.bf16.msra.mxu0 0
        %8063 = vmatprep.subr.bf16.mxu0 0
        %8064 = vmatpush1.bf16.msra.mxu0 0
        %8065 = vmatprep.subr.bf16.mxu0 0
        %8066 = vmatpush1.bf16.msra.mxu0 0
        %8067 = vmatprep.mubr.bf16.mxu0 0
        %8068 = vmatmul.mubr.bf16.gmra.mrb[0].mxu0 %v7961
        %v8069 = vpop.f32.mrb[0].mxu0
        %v8070 = vadd.f32 0.0, %v8069
        %v8071 = vpop.f32.mrb[0].mxu0
        %v8072 = vpop.f32.mrb[0].mxu0
        %v8073 = vadd.f32 0.0, %v8072
        %v8074 = vpop.f32.mrb[0].mxu0
        %8075 = vmatprep.mubr.bf16.mxu0 0
        %8076 = vmatmul.mubr.bf16.gmra.mrb[0].mxu0 %v7962
        %v8077 = vpop.f32.mrb[0].mxu0
        %v8078 = vadd.f32 0.0, %v8077
        %v8079 = vpop.f32.mrb[0].mxu0
        %v8080 = vpop.f32.mrb[0].mxu0
        %v8081 = vadd.f32 0.0, %v8080
        %v8082 = vpop.f32.mrb[0].mxu0
        %8083 = vmatprep.mubr.bf16.mxu0 0
        %8084 = vmatmul.mubr.bf16.gmra.mrb[0].mxu0 %v7963
        %v8085 = vpop.f32.mrb[0].mxu0
        %v8086 = vadd.f32 0.0, %v8085
        %v8087 = vpop.f32.mrb[0].mxu0
        %v8088 = vpop.f32.mrb[0].mxu0
        %v8089 = vadd.f32 0.0, %v8088
        %v8090 = vpop.f32.mrb[0].mxu0
        %8091 = vmatprep.mubr.bf16.mxu0 0
        %8092 = vmatmul.mubr.bf16.gmra.mrb[0].mxu0 %v7964
        %v8093 = vpop.f32.mrb[0].mxu0
        %v8094 = vadd.f32 0.0, %v8093
        %v8095 = vpop.f32.mrb[0].mxu0
        %v8096 = vpop.f32.mrb[0].mxu0
        %v8097 = vadd.f32 0.0, %v8096
        %v8098 = vpop.f32.mrb[0].mxu0
        %8099 = vmatprep.mubr.bf16.mxu0 0
        %8100 = vmatmul.mubr.bf16.gmra.mrb[0].mxu0 %v7965
        %v8101 = vpop.f32.mrb[0].mxu0
        %v8102 = vadd.f32 0.0, %v8101
        %v8103 = vpop.f32.mrb[0].mxu0
        %v8104 = vpop.f32.mrb[0].mxu0
        %v8105 = vadd.f32 0.0, %v8104
        %v8106 = vpop.f32.mrb[0].mxu0
        %8107 = vmatprep.mubr.bf16.mxu0 0
        %8108 = vmatmul.mubr.bf16.gmra.mrb[0].mxu0 %v7966
        %v8109 = vpop.f32.mrb[0].mxu0
        %v8110 = vadd.f32 0.0, %v8109
        %v8111 = vpop.f32.mrb[0].mxu0
        %v8112 = vpop.f32.mrb[0].mxu0
        %v8113 = vadd.f32 0.0, %v8112
        %v8114 = vpop.f32.mrb[0].mxu0
        %8115 = vmatprep.mubr.bf16.mxu0 0
        %8116 = vmatmul.mubr.bf16.gmra.mrb[0].mxu0 %v7967
        %v8117 = vpop.f32.mrb[0].mxu0
        %v8118 = vadd.f32 0.0, %v8117
        %v8119 = vpop.f32.mrb[0].mxu0
        %v8120 = vpop.f32.mrb[0].mxu0
        %v8121 = vadd.f32 0.0, %v8120
        %v8122 = vpop.f32.mrb[0].mxu0
        %8123 = vmatprep.mubr.bf16.mxu0 0
        %8124 = vmatmul.mubr.bf16.gmra.mrb[0].mxu0 %v7968
        %v8125 = vpop.f32.mrb[0].mxu0
        %v8126 = vadd.f32 0.0, %v8125
        %v8127 = vpop.f32.mrb[0].mxu0
        %v8128 = vpop.f32.mrb[0].mxu0
        %v8129 = vadd.f32 0.0, %v8128
        %v8130 = vpop.f32.mrb[0].mxu0
        %8131 = vmatprep.mubr.bf16.mxu0 0
        %8132 = vmatmul.mubr.bf16.gmra.mrb[0].mxu0 %v7969
        %v8133 = vpop.f32.mrb[0].mxu0
        %v8134 = vadd.f32 0.0, %v8133
        %v8135 = vpop.f32.mrb[0].mxu0
        %v8136 = vpop.f32.mrb[0].mxu0
        %v8137 = vadd.f32 0.0, %v8136
        %v8138 = vpop.f32.mrb[0].mxu0
        %8139 = vdwg.mxu0
        %v8140 = vld [vmem:[#allocation4] sm:$0xff]
        %v8141 = vld [vmem:[#allocation4 + $0x8] sm:$0xff]
        %v8142 = vld [vmem:[#allocation4 + $0x10] sm:$0xff]
        %v8143 = vld [vmem:[#allocation4 + $0x18] sm:$0xff]
        %v8144 = vld [vmem:[#allocation4 + $0x20] sm:$0xff]
        %v8145 = vld [vmem:[#allocation4 + $0x28] sm:$0xff]
        %v8146 = vld [vmem:[#allocation4 + $0x30] sm:$0xff]
        %v8147 = vld [vmem:[#allocation4 + $0x38] sm:$0xff]
        %v8148 = vld [vmem:[#allocation4 + $0x40] sm:$0xff]
        %v8149 = vld [vmem:[#allocation4 + $0x48] sm:$0xff]
        %v8150 = vld [vmem:[#allocation4 + $0x50] sm:$0xff]
        %v8151 = vld [vmem:[#allocation4 + $0x58] sm:$0xff]
        %v8152 = vld [vmem:[#allocation4 + $0x60] sm:$0xff]
        %v8153 = vld [vmem:[#allocation4 + $0x68] sm:$0xff]
        %v8154 = vld [vmem:[#allocation4 + $0x70] sm:$0xff]
        %v8155 = vld [vmem:[#allocation4 + $0x78] sm:$0xff]
        %v8156 = vld [vmem:[#allocation4 + $0x80] sm:$0xff]
        %v8157 = vld [vmem:[#allocation4 + $0x88] sm:$0xff]
        %v8158 = vadd.f32 %v8140, %v8070
        %v8159 = vadd.f32 %v8141, %v8073
        %v8160 = vadd.f32 %v8142, %v8078
        %v8161 = vadd.f32 %v8143, %v8081
        %v8162 = vadd.f32 %v8144, %v8086
        %v8163 = vadd.f32 %v8145, %v8089
        %v8164 = vadd.f32 %v8146, %v8094
        %v8165 = vadd.f32 %v8147, %v8097
        %v8166 = vadd.f32 %v8148, %v8102
        %v8167 = vadd.f32 %v8149, %v8105
        %v8168 = vadd.f32 %v8150, %v8110
        %v8169 = vadd.f32 %v8151, %v8113
        %v8170 = vadd.f32 %v8152, %v8118
        %v8171 = vadd.f32 %v8153, %v8121
        %v8172 = vadd.f32 %v8154, %v8126
        %v8173 = vadd.f32 %v8155, %v8129
        %v8174 = vadd.f32 %v8156, %v8134
        %v8175 = vadd.f32 %v8157, %v8137
        %8176 = vst [vmem:[#allocation4] sm:$0xff] %v8158
        %8177 = vst [vmem:[#allocation4 + $0x8] sm:$0xff] %v8159
        %8178 = vst [vmem:[#allocation4 + $0x10] sm:$0xff] %v8160
        %8179 = vst [vmem:[#allocation4 + $0x18] sm:$0xff] %v8161
        %8180 = vst [vmem:[#allocation4 + $0x20] sm:$0xff] %v8162
        %8181 = vst [vmem:[#allocation4 + $0x28] sm:$0xff] %v8163
        %8182 = vst [vmem:[#allocation4 + $0x30] sm:$0xff] %v8164
        %8183 = vst [vmem:[#allocation4 + $0x38] sm:$0xff] %v8165
        %8184 = vst [vmem:[#allocation4 + $0x40] sm:$0xff] %v8166
        %8185 = vst [vmem:[#allocation4 + $0x48] sm:$0xff] %v8167
        %8186 = vst [vmem:[#allocation4 + $0x50] sm:$0xff] %v8168
        %8187 = vst [vmem:[#allocation4 + $0x58] sm:$0xff] %v8169
        %8188 = vst [vmem:[#allocation4 + $0x60] sm:$0xff] %v8170
        %8189 = vst [vmem:[#allocation4 + $0x68] sm:$0xff] %v8171
        %8190 = vst [vmem:[#allocation4 + $0x70] sm:$0xff] %v8172
        %8191 = vst [vmem:[#allocation4 + $0x78] sm:$0xff] %v8173
        %8192 = vst [vmem:[#allocation4 + $0x80] sm:$0xff] %v8174
        %8193 = vst [vmem:[#allocation4 + $0x88] sm:$0xff] %v8175
        %s8194 = scalar_lea.vmem [#allocation3], 160
        %v8195 = vld [vmem:[%s8194] sm:$0xff]
        %v8196 = vld [vmem:[%s8194 + $0x8] sm:$0xff]
        %v8197 = vld [vmem:[%s8194 + $0x10] sm:$0xff]
        %v8198 = vld [vmem:[%s8194 + $0x18] sm:$0xff]
        %v8199 = vld [vmem:[%s8194 + $0x20] sm:$0xff]
        %v8200 = vld [vmem:[%s8194 + $0x28] sm:$0xff]
        %v8201 = vld [vmem:[%s8194 + $0x50] sm:$0xff]
        %v8202 = vld [vmem:[%s8194 + $0x58] sm:$0xff]
        %v8203 = vld [vmem:[%s8194 + $0x60] sm:$0xff]
        %v8204 = vld [vmem:[%s8194 + $0x68] sm:$0xff]
        %v8205 = vld [vmem:[%s8194 + $0x70] sm:$0xff]
        %v8206 = vld [vmem:[%s8194 + $0x78] sm:$0xff]
        %v8207 = vld [vmem:[%s8194 + $0xa0] sm:$0xff]
        %v8208 = vld [vmem:[%s8194 + $0xa8] sm:$0xff]
        %v8209 = vld [vmem:[%s8194 + $0xb0] sm:$0xff]
        %v8210 = vld [vmem:[%s8194 + $0xb8] sm:$0xff]
        %v8211 = vld [vmem:[%s8194 + $0xc0] sm:$0xff]
        %v8212 = vld [vmem:[%s8194 + $0xc8] sm:$0xff]
        %s8213 = scalar_lea.vmem [#allocation3], 176
        %v8214 = vld [vmem:[%s8213] sm:$0xff]
        %v8215 = vld [vmem:[%s8213 + $0x8] sm:$0xff]
        %v8216 = vld [vmem:[%s8213 + $0x10] sm:$0xff]
        %v8217 = vld [vmem:[%s8213 + $0x18] sm:$0xff]
        %v8218 = vld [vmem:[%s8213 + $0x20] sm:$0xff]
        %v8219 = vld [vmem:[%s8213 + $0x28] sm:$0xff]
        %v8220 = vld [vmem:[%s8213 + $0x50] sm:$0xff]
        %v8221 = vld [vmem:[%s8213 + $0x58] sm:$0xff]
        %v8222 = vld [vmem:[%s8213 + $0x60] sm:$0xff]
        %v8223 = vld [vmem:[%s8213 + $0x68] sm:$0xff]
        %v8224 = vld [vmem:[%s8213 + $0x70] sm:$0xff]
        %v8225 = vld [vmem:[%s8213 + $0x78] sm:$0xff]
        %v8226 = vld [vmem:[%s8213 + $0xa0] sm:$0xff]
        %v8227 = vld [vmem:[%s8213 + $0xa8] sm:$0xff]
        %v8228 = vld [vmem:[%s8213 + $0xb0] sm:$0xff]
        %v8229 = vld [vmem:[%s8213 + $0xb8] sm:$0xff]
        %v8230 = vld [vmem:[%s8213 + $0xc0] sm:$0xff]
        %v8231 = vld [vmem:[%s8213 + $0xc8] sm:$0xff]
        %v8232 = vsel %vm4772, %v8195, %v8214
        %v8233 = vsel %vm4772, %v8196, %v8215
        %v8234 = vsel %vm4772, %v8197, %v8216
        %v8235 = vsel %vm4772, %v8198, %v8217
        %v8236 = vsel %vm4772, %v8199, %v8218
        %v8237 = vsel %vm4772, %v8200, %v8219
        %v8238 = vsel %vm4772, %v8201, %v8220
        %v8239 = vsel %vm4772, %v8202, %v8221
        %v8240 = vsel %vm4772, %v8203, %v8222
        %v8241 = vsel %vm4772, %v8204, %v8223
        %v8242 = vsel %vm4772, %v8205, %v8224
        %v8243 = vsel %vm4772, %v8206, %v8225
        %v8244 = vsel %vm4772, %v8207, %v8226
        %v8245 = vsel %vm4772, %v8208, %v8227
        %v8246 = vsel %vm4772, %v8209, %v8228
        %v8247 = vsel %vm4772, %v8210, %v8229
        %v8248 = vsel %vm4772, %v8211, %v8230
        %v8249 = vsel %vm4772, %v8212, %v8231
        %v8250 = vpack.c.bf16 %v8233, %v8232
        %v8251 = vpack.c.bf16 %v8235, %v8234
        %v8252 = vpack.c.bf16 %v8237, %v8236
        %v8253 = vpack.c.bf16 %v8239, %v8238
        %v8254 = vpack.c.bf16 %v8241, %v8240
        %v8255 = vpack.c.bf16 %v8243, %v8242
        %v8256 = vpack.c.bf16 %v8245, %v8244
        %v8257 = vpack.c.bf16 %v8247, %v8246
        %v8258 = vpack.c.bf16 %v8249, %v8248
        %s8259 = scalar_lea.vmem %s5, 192
        %v8260 = vld [vmem:[%s8259] sm:$0xf]
        %v8261 = vld [vmem:[%s8259 + $0x4] sm:$0xf]
        %v8262 = vld [vmem:[%s8259 + $0x8] sm:$0xf]
        %v8263 = vld [vmem:[%s8259 + $0xc] sm:$0xf]
        %v8264 = vld [vmem:[%s8259 + $0x10] sm:$0xf]
        %v8265 = vld [vmem:[%s8259 + $0x14] sm:$0xf]
        %v8266 = vld [vmem:[%s8259 + $0x18] sm:$0xf]
        %v8267 = vld [vmem:[%s8259 + $0x1c] sm:$0xf]
        %v8268 = vld [vmem:[%s8259 + $0x20] sm:$0xf]
        %v8269 = vld [vmem:[%s8259 + $0x24] sm:$0xf]
        %v8270 = vld [vmem:[%s8259 + $0x28] sm:$0xf]
        %v8271 = vld [vmem:[%s8259 + $0x2c] sm:$0xf]
        %v8272 = vld [vmem:[%s8259 + $0x30] sm:$0xf]
        %v8273 = vld [vmem:[%s8259 + $0x34] sm:$0xf]
        %v8274 = vld [vmem:[%s8259 + $0x38] sm:$0xf]
        %v8275 = vld [vmem:[%s8259 + $0x3c] sm:$0xf]
        %v8292 = vunpack.c.l.b16 %v8260
        %v8293 = vunpack.c.l.b16 %v8261
        %v8294 = vunpack.c.l.b16 %v8262
        %v8295 = vunpack.c.l.b16 %v8263
        %v8296 = vunpack.c.l.b16 %v8264
        %v8297 = vunpack.c.l.b16 %v8265
        %v8298 = vunpack.c.l.b16 %v8266
        %v8299 = vunpack.c.l.b16 %v8267
        %v8300 = vunpack.c.l.b16 %v8268
        %v8301 = vunpack.c.l.b16 %v8269
        %v8302 = vunpack.c.l.b16 %v8270
        %v8303 = vunpack.c.l.b16 %v8271
        %v8304 = vunpack.c.l.b16 %v8272
        %v8305 = vunpack.c.l.b16 %v8273
        %v8306 = vunpack.c.l.b16 %v8274
        %v8307 = vunpack.c.l.b16 %v8275
        %v8308 = vpack.c.b16 %v8293, %v8292
        %v8309 = vpack.c.b16 %v8295, %v8294
        %v8310 = vpack.c.b16 %v8297, %v8296
        %v8311 = vpack.c.b16 %v8299, %v8298
        %v8312 = vpack.c.b16 %v8301, %v8300
        %v8313 = vpack.c.b16 %v8303, %v8302
        %v8314 = vpack.c.b16 %v8305, %v8304
        %v8315 = vpack.c.b16 %v8307, %v8306
        %8324 = vmatprep.subr.bf16.mxu0 0
        %8325 = vmatpush1.bf16.msra.mxu0 %v8308
        %8326 = vmatprep.subr.bf16.mxu0 0
        %8327 = vmatpush1.bf16.msra.mxu0 %v8309
        %8328 = vmatprep.subr.bf16.mxu0 0
        %8329 = vmatpush1.bf16.msra.mxu0 %v8310
        %8330 = vmatprep.subr.bf16.mxu0 0
        %8331 = vmatpush1.bf16.msra.mxu0 %v8311
        %8332 = vmatprep.subr.bf16.mxu0 0
        %8333 = vmatpush1.bf16.msra.mxu0 %v8312
        %8334 = vmatprep.subr.bf16.mxu0 0
        %8335 = vmatpush1.bf16.msra.mxu0 %v8313
        %8336 = vmatprep.subr.bf16.mxu0 0
        %8337 = vmatpush1.bf16.msra.mxu0 %v8314
        %8338 = vmatprep.subr.bf16.mxu0 0
        %8339 = vmatpush1.bf16.msra.mxu0 %v8315
        %8340 = vmatprep.subr.bf16.mxu0 0
        %8341 = vmatpush1.bf16.msra.mxu0 0
        %8342 = vmatprep.subr.bf16.mxu0 0
        %8343 = vmatpush1.bf16.msra.mxu0 0
        %8344 = vmatprep.subr.bf16.mxu0 0
        %8345 = vmatpush1.bf16.msra.mxu0 0
        %8346 = vmatprep.subr.bf16.mxu0 0
        %8347 = vmatpush1.bf16.msra.mxu0 0
        %8348 = vmatprep.subr.bf16.mxu0 0
        %8349 = vmatpush1.bf16.msra.mxu0 0
        %8350 = vmatprep.subr.bf16.mxu0 0
        %8351 = vmatpush1.bf16.msra.mxu0 0
        %8352 = vmatprep.subr.bf16.mxu0 0
        %8353 = vmatpush1.bf16.msra.mxu0 0
        %8354 = vmatprep.subr.bf16.mxu0 0
        %8355 = vmatpush1.bf16.msra.mxu0 0
        %8356 = vmatprep.mubr.bf16.mxu0 0
        %8357 = vmatmul.mubr.bf16.gmra.mrb[0].mxu0 %v8250
        %v8358 = vpop.f32.mrb[0].mxu0
        %v8359 = vadd.f32 0.0, %v8358
        %v8360 = vpop.f32.mrb[0].mxu0
        %v8361 = vpop.f32.mrb[0].mxu0
        %v8362 = vadd.f32 0.0, %v8361
        %v8363 = vpop.f32.mrb[0].mxu0
        %8364 = vmatprep.mubr.bf16.mxu0 0
        %8365 = vmatmul.mubr.bf16.gmra.mrb[0].mxu0 %v8251
        %v8366 = vpop.f32.mrb[0].mxu0
        %v8367 = vadd.f32 0.0, %v8366
        %v8368 = vpop.f32.mrb[0].mxu0
        %v8369 = vpop.f32.mrb[0].mxu0
        %v8370 = vadd.f32 0.0, %v8369
        %v8371 = vpop.f32.mrb[0].mxu0
        %8372 = vmatprep.mubr.bf16.mxu0 0
        %8373 = vmatmul.mubr.bf16.gmra.mrb[0].mxu0 %v8252
        %v8374 = vpop.f32.mrb[0].mxu0
        %v8375 = vadd.f32 0.0, %v8374
        %v8376 = vpop.f32.mrb[0].mxu0
        %v8377 = vpop.f32.mrb[0].mxu0
        %v8378 = vadd.f32 0.0, %v8377
        %v8379 = vpop.f32.mrb[0].mxu0
        %8380 = vmatprep.mubr.bf16.mxu0 0
        %8381 = vmatmul.mubr.bf16.gmra.mrb[0].mxu0 %v8253
        %v8382 = vpop.f32.mrb[0].mxu0
        %v8383 = vadd.f32 0.0, %v8382
        %v8384 = vpop.f32.mrb[0].mxu0
        %v8385 = vpop.f32.mrb[0].mxu0
        %v8386 = vadd.f32 0.0, %v8385
        %v8387 = vpop.f32.mrb[0].mxu0
        %8388 = vmatprep.mubr.bf16.mxu0 0
        %8389 = vmatmul.mubr.bf16.gmra.mrb[0].mxu0 %v8254
        %v8390 = vpop.f32.mrb[0].mxu0
        %v8391 = vadd.f32 0.0, %v8390
        %v8392 = vpop.f32.mrb[0].mxu0
        %v8393 = vpop.f32.mrb[0].mxu0
        %v8394 = vadd.f32 0.0, %v8393
        %v8395 = vpop.f32.mrb[0].mxu0
        %8396 = vmatprep.mubr.bf16.mxu0 0
        %8397 = vmatmul.mubr.bf16.gmra.mrb[0].mxu0 %v8255
        %v8398 = vpop.f32.mrb[0].mxu0
        %v8399 = vadd.f32 0.0, %v8398
        %v8400 = vpop.f32.mrb[0].mxu0
        %v8401 = vpop.f32.mrb[0].mxu0
        %v8402 = vadd.f32 0.0, %v8401
        %v8403 = vpop.f32.mrb[0].mxu0
        %8404 = vmatprep.mubr.bf16.mxu0 0
        %8405 = vmatmul.mubr.bf16.gmra.mrb[0].mxu0 %v8256
        %v8406 = vpop.f32.mrb[0].mxu0
        %v8407 = vadd.f32 0.0, %v8406
        %v8408 = vpop.f32.mrb[0].mxu0
        %v8409 = vpop.f32.mrb[0].mxu0
        %v8410 = vadd.f32 0.0, %v8409
        %v8411 = vpop.f32.mrb[0].mxu0
        %8412 = vmatprep.mubr.bf16.mxu0 0
        %8413 = vmatmul.mubr.bf16.gmra.mrb[0].mxu0 %v8257
        %v8414 = vpop.f32.mrb[0].mxu0
        %v8415 = vadd.f32 0.0, %v8414
        %v8416 = vpop.f32.mrb[0].mxu0
        %v8417 = vpop.f32.mrb[0].mxu0
        %v8418 = vadd.f32 0.0, %v8417
        %v8419 = vpop.f32.mrb[0].mxu0
        %8420 = vmatprep.mubr.bf16.mxu0 0
        %8421 = vmatmul.mubr.bf16.gmra.mrb[0].mxu0 %v8258
        %v8422 = vpop.f32.mrb[0].mxu0
        %v8423 = vadd.f32 0.0, %v8422
        %v8424 = vpop.f32.mrb[0].mxu0
        %v8425 = vpop.f32.mrb[0].mxu0
        %v8426 = vadd.f32 0.0, %v8425
        %v8427 = vpop.f32.mrb[0].mxu0
        %8428 = vdwg.mxu0
        %v8429 = vld [vmem:[#allocation4] sm:$0xff]
        %v8430 = vld [vmem:[#allocation4 + $0x8] sm:$0xff]
        %v8431 = vld [vmem:[#allocation4 + $0x10] sm:$0xff]
        %v8432 = vld [vmem:[#allocation4 + $0x18] sm:$0xff]
        %v8433 = vld [vmem:[#allocation4 + $0x20] sm:$0xff]
        %v8434 = vld [vmem:[#allocation4 + $0x28] sm:$0xff]
        %v8435 = vld [vmem:[#allocation4 + $0x30] sm:$0xff]
        %v8436 = vld [vmem:[#allocation4 + $0x38] sm:$0xff]
        %v8437 = vld [vmem:[#allocation4 + $0x40] sm:$0xff]
        %v8438 = vld [vmem:[#allocation4 + $0x48] sm:$0xff]
        %v8439 = vld [vmem:[#allocation4 + $0x50] sm:$0xff]
        %v8440 = vld [vmem:[#allocation4 + $0x58] sm:$0xff]
        %v8441 = vld [vmem:[#allocation4 + $0x60] sm:$0xff]
        %v8442 = vld [vmem:[#allocation4 + $0x68] sm:$0xff]
        %v8443 = vld [vmem:[#allocation4 + $0x70] sm:$0xff]
        %v8444 = vld [vmem:[#allocation4 + $0x78] sm:$0xff]
        %v8445 = vld [vmem:[#allocation4 + $0x80] sm:$0xff]
        %v8446 = vld [vmem:[#allocation4 + $0x88] sm:$0xff]
        %v8447 = vadd.f32 %v8429, %v8359
        %v8448 = vadd.f32 %v8430, %v8362
        %v8449 = vadd.f32 %v8431, %v8367
        %v8450 = vadd.f32 %v8432, %v8370
        %v8451 = vadd.f32 %v8433, %v8375
        %v8452 = vadd.f32 %v8434, %v8378
        %v8453 = vadd.f32 %v8435, %v8383
        %v8454 = vadd.f32 %v8436, %v8386
        %v8455 = vadd.f32 %v8437, %v8391
        %v8456 = vadd.f32 %v8438, %v8394
        %v8457 = vadd.f32 %v8439, %v8399
        %v8458 = vadd.f32 %v8440, %v8402
        %v8459 = vadd.f32 %v8441, %v8407
        %v8460 = vadd.f32 %v8442, %v8410
        %v8461 = vadd.f32 %v8443, %v8415
        %v8462 = vadd.f32 %v8444, %v8418
        %v8463 = vadd.f32 %v8445, %v8423
        %v8464 = vadd.f32 %v8446, %v8426
        %8465 = vst [vmem:[#allocation4] sm:$0xff] %v8447
        %8466 = vst [vmem:[#allocation4 + $0x8] sm:$0xff] %v8448
        %8467 = vst [vmem:[#allocation4 + $0x10] sm:$0xff] %v8449
        %8468 = vst [vmem:[#allocation4 + $0x18] sm:$0xff] %v8450
        %8469 = vst [vmem:[#allocation4 + $0x20] sm:$0xff] %v8451
        %8470 = vst [vmem:[#allocation4 + $0x28] sm:$0xff] %v8452
        %8471 = vst [vmem:[#allocation4 + $0x30] sm:$0xff] %v8453
        %8472 = vst [vmem:[#allocation4 + $0x38] sm:$0xff] %v8454
        %8473 = vst [vmem:[#allocation4 + $0x40] sm:$0xff] %v8455
        %8474 = vst [vmem:[#allocation4 + $0x48] sm:$0xff] %v8456
        %8475 = vst [vmem:[#allocation4 + $0x50] sm:$0xff] %v8457
        %8476 = vst [vmem:[#allocation4 + $0x58] sm:$0xff] %v8458
        %8477 = vst [vmem:[#allocation4 + $0x60] sm:$0xff] %v8459
        %8478 = vst [vmem:[#allocation4 + $0x68] sm:$0xff] %v8460
        %8479 = vst [vmem:[#allocation4 + $0x70] sm:$0xff] %v8461
        %8480 = vst [vmem:[#allocation4 + $0x78] sm:$0xff] %v8462
        %8481 = vst [vmem:[#allocation4 + $0x80] sm:$0xff] %v8463
        %8482 = vst [vmem:[#allocation4 + $0x88] sm:$0xff] %v8464
        %s8483 = scalar_lea.vmem [#allocation3], 192
        %v8484 = vld [vmem:[%s8483] sm:$0xff]
        %v8485 = vld [vmem:[%s8483 + $0x8] sm:$0xff]
        %v8486 = vld [vmem:[%s8483 + $0x10] sm:$0xff]
        %v8487 = vld [vmem:[%s8483 + $0x18] sm:$0xff]
        %v8488 = vld [vmem:[%s8483 + $0x20] sm:$0xff]
        %v8489 = vld [vmem:[%s8483 + $0x28] sm:$0xff]
        %v8490 = vld [vmem:[%s8483 + $0x50] sm:$0xff]
        %v8491 = vld [vmem:[%s8483 + $0x58] sm:$0xff]
        %v8492 = vld [vmem:[%s8483 + $0x60] sm:$0xff]
        %v8493 = vld [vmem:[%s8483 + $0x68] sm:$0xff]
        %v8494 = vld [vmem:[%s8483 + $0x70] sm:$0xff]
        %v8495 = vld [vmem:[%s8483 + $0x78] sm:$0xff]
        %v8496 = vld [vmem:[%s8483 + $0xa0] sm:$0xff]
        %v8497 = vld [vmem:[%s8483 + $0xa8] sm:$0xff]
        %v8498 = vld [vmem:[%s8483 + $0xb0] sm:$0xff]
        %v8499 = vld [vmem:[%s8483 + $0xb8] sm:$0xff]
        %v8500 = vld [vmem:[%s8483 + $0xc0] sm:$0xff]
        %v8501 = vld [vmem:[%s8483 + $0xc8] sm:$0xff]
        %v8502 = vpack.c.bf16 %v8485, %v8484
        %v8503 = vpack.c.bf16 %v8487, %v8486
        %v8504 = vpack.c.bf16 %v8489, %v8488
        %v8505 = vpack.c.bf16 %v8491, %v8490
        %v8506 = vpack.c.bf16 %v8493, %v8492
        %v8507 = vpack.c.bf16 %v8495, %v8494
        %v8508 = vpack.c.bf16 %v8497, %v8496
        %v8509 = vpack.c.bf16 %v8499, %v8498
        %v8510 = vpack.c.bf16 %v8501, %v8500
        %s8511 = scalar_lea.vmem %s5, 256
        %v8512 = vld [vmem:[%s8511] sm:$0xf]
        %v8513 = vld [vmem:[%s8511 + $0x4] sm:$0xf]
        %v8514 = vld [vmem:[%s8511 + $0x8] sm:$0xf]
        %v8515 = vld [vmem:[%s8511 + $0xc] sm:$0xf]
        %v8516 = vld [vmem:[%s8511 + $0x10] sm:$0xf]
        %v8517 = vld [vmem:[%s8511 + $0x14] sm:$0xf]
        %v8518 = vld [vmem:[%s8511 + $0x18] sm:$0xf]
        %v8519 = vld [vmem:[%s8511 + $0x1c] sm:$0xf]
        %v8520 = vld [vmem:[%s8511 + $0x20] sm:$0xf]
        %v8521 = vld [vmem:[%s8511 + $0x24] sm:$0xf]
        %v8522 = vld [vmem:[%s8511 + $0x28] sm:$0xf]
        %v8523 = vld [vmem:[%s8511 + $0x2c] sm:$0xf]
        %v8524 = vld [vmem:[%s8511 + $0x30] sm:$0xf]
        %v8525 = vld [vmem:[%s8511 + $0x34] sm:$0xf]
        %v8526 = vld [vmem:[%s8511 + $0x38] sm:$0xf]
        %v8527 = vld [vmem:[%s8511 + $0x3c] sm:$0xf]
        %v8544 = vunpack.c.l.b16 %v8512
        %v8545 = vunpack.c.l.b16 %v8513
        %v8546 = vunpack.c.l.b16 %v8514
        %v8547 = vunpack.c.l.b16 %v8515
        %v8548 = vunpack.c.l.b16 %v8516
        %v8549 = vunpack.c.l.b16 %v8517
        %v8550 = vunpack.c.l.b16 %v8518
        %v8551 = vunpack.c.l.b16 %v8519
        %v8552 = vunpack.c.l.b16 %v8520
        %v8553 = vunpack.c.l.b16 %v8521
        %v8554 = vunpack.c.l.b16 %v8522
        %v8555 = vunpack.c.l.b16 %v8523
        %v8556 = vunpack.c.l.b16 %v8524
        %v8557 = vunpack.c.l.b16 %v8525
        %v8558 = vunpack.c.l.b16 %v8526
        %v8559 = vunpack.c.l.b16 %v8527
        %v8560 = vpack.c.b16 %v8545, %v8544
        %v8561 = vpack.c.b16 %v8547, %v8546
        %v8562 = vpack.c.b16 %v8549, %v8548
        %v8563 = vpack.c.b16 %v8551, %v8550
        %v8564 = vpack.c.b16 %v8553, %v8552
        %v8565 = vpack.c.b16 %v8555, %v8554
        %v8566 = vpack.c.b16 %v8557, %v8556
        %v8567 = vpack.c.b16 %v8559, %v8558
        %8576 = vmatprep.subr.bf16.mxu0 0
        %8577 = vmatpush1.bf16.msra.mxu0 %v8560
        %8578 = vmatprep.subr.bf16.mxu0 0
        %8579 = vmatpush1.bf16.msra.mxu0 %v8561
        %8580 = vmatprep.subr.bf16.mxu0 0
        %8581 = vmatpush1.bf16.msra.mxu0 %v8562
        %8582 = vmatprep.subr.bf16.mxu0 0
        %8583 = vmatpush1.bf16.msra.mxu0 %v8563
        %8584 = vmatprep.subr.bf16.mxu0 0
        %8585 = vmatpush1.bf16.msra.mxu0 %v8564
        %8586 = vmatprep.subr.bf16.mxu0 0
        %8587 = vmatpush1.bf16.msra.mxu0 %v8565
        %8588 = vmatprep.subr.bf16.mxu0 0
        %8589 = vmatpush1.bf16.msra.mxu0 %v8566
        %8590 = vmatprep.subr.bf16.mxu0 0
        %8591 = vmatpush1.bf16.msra.mxu0 %v8567
        %8592 = vmatprep.subr.bf16.mxu0 0
        %8593 = vmatpush1.bf16.msra.mxu0 0
        %8594 = vmatprep.subr.bf16.mxu0 0
        %8595 = vmatpush1.bf16.msra.mxu0 0
        %8596 = vmatprep.subr.bf16.mxu0 0
        %8597 = vmatpush1.bf16.msra.mxu0 0
        %8598 = vmatprep.subr.bf16.mxu0 0
        %8599 = vmatpush1.bf16.msra.mxu0 0
        %8600 = vmatprep.subr.bf16.mxu0 0
        %8601 = vmatpush1.bf16.msra.mxu0 0
        %8602 = vmatprep.subr.bf16.mxu0 0
        %8603 = vmatpush1.bf16.msra.mxu0 0
        %8604 = vmatprep.subr.bf16.mxu0 0
        %8605 = vmatpush1.bf16.msra.mxu0 0
        %8606 = vmatprep.subr.bf16.mxu0 0
        %8607 = vmatpush1.bf16.msra.mxu0 0
        %8608 = vmatprep.mubr.bf16.mxu0 0
        %8609 = vmatmul.mubr.bf16.gmra.mrb[0].mxu0 %v8502
        %v8610 = vpop.f32.mrb[0].mxu0
        %v8611 = vadd.f32 0.0, %v8610
        %v8612 = vpop.f32.mrb[0].mxu0
        %v8613 = vpop.f32.mrb[0].mxu0
        %v8614 = vadd.f32 0.0, %v8613
        %v8615 = vpop.f32.mrb[0].mxu0
        %8616 = vmatprep.mubr.bf16.mxu0 0
        %8617 = vmatmul.mubr.bf16.gmra.mrb[0].mxu0 %v8503
        %v8618 = vpop.f32.mrb[0].mxu0
        %v8619 = vadd.f32 0.0, %v8618
        %v8620 = vpop.f32.mrb[0].mxu0
        %v8621 = vpop.f32.mrb[0].mxu0
        %v8622 = vadd.f32 0.0, %v8621
        %v8623 = vpop.f32.mrb[0].mxu0
        %8624 = vmatprep.mubr.bf16.mxu0 0
        %8625 = vmatmul.mubr.bf16.gmra.mrb[0].mxu0 %v8504
        %v8626 = vpop.f32.mrb[0].mxu0
        %v8627 = vadd.f32 0.0, %v8626
        %v8628 = vpop.f32.mrb[0].mxu0
        %v8629 = vpop.f32.mrb[0].mxu0
        %v8630 = vadd.f32 0.0, %v8629
        %v8631 = vpop.f32.mrb[0].mxu0
        %8632 = vmatprep.mubr.bf16.mxu0 0
        %8633 = vmatmul.mubr.bf16.gmra.mrb[0].mxu0 %v8505
        %v8634 = vpop.f32.mrb[0].mxu0
        %v8635 = vadd.f32 0.0, %v8634
        %v8636 = vpop.f32.mrb[0].mxu0
        %v8637 = vpop.f32.mrb[0].mxu0
        %v8638 = vadd.f32 0.0, %v8637
        %v8639 = vpop.f32.mrb[0].mxu0
        %8640 = vmatprep.mubr.bf16.mxu0 0
        %8641 = vmatmul.mubr.bf16.gmra.mrb[0].mxu0 %v8506
        %v8642 = vpop.f32.mrb[0].mxu0
        %v8643 = vadd.f32 0.0, %v8642
        %v8644 = vpop.f32.mrb[0].mxu0
        %v8645 = vpop.f32.mrb[0].mxu0
        %v8646 = vadd.f32 0.0, %v8645
        %v8647 = vpop.f32.mrb[0].mxu0
        %8648 = vmatprep.mubr.bf16.mxu0 0
        %8649 = vmatmul.mubr.bf16.gmra.mrb[0].mxu0 %v8507
        %v8650 = vpop.f32.mrb[0].mxu0
        %v8651 = vadd.f32 0.0, %v8650
        %v8652 = vpop.f32.mrb[0].mxu0
        %v8653 = vpop.f32.mrb[0].mxu0
        %v8654 = vadd.f32 0.0, %v8653
        %v8655 = vpop.f32.mrb[0].mxu0
        %8656 = vmatprep.mubr.bf16.mxu0 0
        %8657 = vmatmul.mubr.bf16.gmra.mrb[0].mxu0 %v8508
        %v8658 = vpop.f32.mrb[0].mxu0
        %v8659 = vadd.f32 0.0, %v8658
        %v8660 = vpop.f32.mrb[0].mxu0
        %v8661 = vpop.f32.mrb[0].mxu0
        %v8662 = vadd.f32 0.0, %v8661
        %v8663 = vpop.f32.mrb[0].mxu0
        %8664 = vmatprep.mubr.bf16.mxu0 0
        %8665 = vmatmul.mubr.bf16.gmra.mrb[0].mxu0 %v8509
        %v8666 = vpop.f32.mrb[0].mxu0
        %v8667 = vadd.f32 0.0, %v8666
        %v8668 = vpop.f32.mrb[0].mxu0
        %v8669 = vpop.f32.mrb[0].mxu0
        %v8670 = vadd.f32 0.0, %v8669
        %v8671 = vpop.f32.mrb[0].mxu0
        %8672 = vmatprep.mubr.bf16.mxu0 0
        %8673 = vmatmul.mubr.bf16.gmra.mrb[0].mxu0 %v8510
        %v8674 = vpop.f32.mrb[0].mxu0
        %v8675 = vadd.f32 0.0, %v8674
        %v8676 = vpop.f32.mrb[0].mxu0
        %v8677 = vpop.f32.mrb[0].mxu0
        %v8678 = vadd.f32 0.0, %v8677
        %v8679 = vpop.f32.mrb[0].mxu0
        %8680 = vdwg.mxu0
        %v8681 = vld [vmem:[#allocation4] sm:$0xff]
        %v8682 = vld [vmem:[#allocation4 + $0x8] sm:$0xff]
        %v8683 = vld [vmem:[#allocation4 + $0x10] sm:$0xff]
        %v8684 = vld [vmem:[#allocation4 + $0x18] sm:$0xff]
        %v8685 = vld [vmem:[#allocation4 + $0x20] sm:$0xff]
        %v8686 = vld [vmem:[#allocation4 + $0x28] sm:$0xff]
        %v8687 = vld [vmem:[#allocation4 + $0x30] sm:$0xff]
        %v8688 = vld [vmem:[#allocation4 + $0x38] sm:$0xff]
        %v8689 = vld [vmem:[#allocation4 + $0x40] sm:$0xff]
        %v8690 = vld [vmem:[#allocation4 + $0x48] sm:$0xff]
        %v8691 = vld [vmem:[#allocation4 + $0x50] sm:$0xff]
        %v8692 = vld [vmem:[#allocation4 + $0x58] sm:$0xff]
        %v8693 = vld [vmem:[#allocation4 + $0x60] sm:$0xff]
        %v8694 = vld [vmem:[#allocation4 + $0x68] sm:$0xff]
        %v8695 = vld [vmem:[#allocation4 + $0x70] sm:$0xff]
        %v8696 = vld [vmem:[#allocation4 + $0x78] sm:$0xff]
        %v8697 = vld [vmem:[#allocation4 + $0x80] sm:$0xff]
        %v8698 = vld [vmem:[#allocation4 + $0x88] sm:$0xff]
        %v8699 = vadd.f32 %v8681, %v8611
        %v8700 = vadd.f32 %v8682, %v8614
        %v8701 = vadd.f32 %v8683, %v8619
        %v8702 = vadd.f32 %v8684, %v8622
        %v8703 = vadd.f32 %v8685, %v8627
        %v8704 = vadd.f32 %v8686, %v8630
        %v8705 = vadd.f32 %v8687, %v8635
        %v8706 = vadd.f32 %v8688, %v8638
        %v8707 = vadd.f32 %v8689, %v8643
        %v8708 = vadd.f32 %v8690, %v8646
        %v8709 = vadd.f32 %v8691, %v8651
        %v8710 = vadd.f32 %v8692, %v8654
        %v8711 = vadd.f32 %v8693, %v8659
        %v8712 = vadd.f32 %v8694, %v8662
        %v8713 = vadd.f32 %v8695, %v8667
        %v8714 = vadd.f32 %v8696, %v8670
        %v8715 = vadd.f32 %v8697, %v8675
        %v8716 = vadd.f32 %v8698, %v8678
        %8717 = vst [vmem:[#allocation4] sm:$0xff] %v8699
        %8718 = vst [vmem:[#allocation4 + $0x8] sm:$0xff] %v8700
        %8719 = vst [vmem:[#allocation4 + $0x10] sm:$0xff] %v8701
        %8720 = vst [vmem:[#allocation4 + $0x18] sm:$0xff] %v8702
        %8721 = vst [vmem:[#allocation4 + $0x20] sm:$0xff] %v8703
        %8722 = vst [vmem:[#allocation4 + $0x28] sm:$0xff] %v8704
        %8723 = vst [vmem:[#allocation4 + $0x30] sm:$0xff] %v8705
        %8724 = vst [vmem:[#allocation4 + $0x38] sm:$0xff] %v8706
        %8725 = vst [vmem:[#allocation4 + $0x40] sm:$0xff] %v8707
        %8726 = vst [vmem:[#allocation4 + $0x48] sm:$0xff] %v8708
        %8727 = vst [vmem:[#allocation4 + $0x50] sm:$0xff] %v8709
        %8728 = vst [vmem:[#allocation4 + $0x58] sm:$0xff] %v8710
        %8729 = vst [vmem:[#allocation4 + $0x60] sm:$0xff] %v8711
        %8730 = vst [vmem:[#allocation4 + $0x68] sm:$0xff] %v8712
        %8731 = vst [vmem:[#allocation4 + $0x70] sm:$0xff] %v8713
        %8732 = vst [vmem:[#allocation4 + $0x78] sm:$0xff] %v8714
        %8733 = vst [vmem:[#allocation4 + $0x80] sm:$0xff] %v8715
        %8734 = vst [vmem:[#allocation4 + $0x88] sm:$0xff] %v8716
        %v8735 = vld [vmem:[#allocation4] sm:$0xff]
        %v8736 = vld [vmem:[#allocation4 + $0x8] sm:$0xff]
        %v8737 = vld [vmem:[#allocation4 + $0x10] sm:$0xff]
        %v8738 = vld [vmem:[#allocation4 + $0x18] sm:$0xff]
        %v8739 = vld [vmem:[#allocation4 + $0x20] sm:$0xff]
        %v8740 = vld [vmem:[#allocation4 + $0x28] sm:$0xff]
        %v8741 = vld [vmem:[#allocation4 + $0x30] sm:$0xff]
        %v8742 = vld [vmem:[#allocation4 + $0x38] sm:$0xff]
        %v8743 = vld [vmem:[#allocation4 + $0x40] sm:$0xff]
        %v8744 = vld [vmem:[#allocation4 + $0x48] sm:$0xff]
        %v8745 = vld [vmem:[#allocation4 + $0x50] sm:$0xff]
        %v8746 = vld [vmem:[#allocation4 + $0x58] sm:$0xff]
        %v8747 = vld [vmem:[#allocation4 + $0x60] sm:$0xff]
        %v8748 = vld [vmem:[#allocation4 + $0x68] sm:$0xff]
        %v8749 = vld [vmem:[#allocation4 + $0x70] sm:$0xff]
        %v8750 = vld [vmem:[#allocation4 + $0x78] sm:$0xff]
        %v8751 = vld [vmem:[#allocation4 + $0x80] sm:$0xff]
        %v8752 = vld [vmem:[#allocation4 + $0x88] sm:$0xff]
        %v8753 = vmax.f32 %v8735, 0.0
        %v8754 = vmax.f32 %v8736, 0.0
        %v8755 = vmax.f32 %v8737, 0.0
        %v8756 = vmax.f32 %v8738, 0.0
        %v8757 = vmax.f32 %v8739, 0.0
        %v8758 = vmax.f32 %v8740, 0.0
        %v8759 = vmax.f32 %v8741, 0.0
        %v8760 = vmax.f32 %v8742, 0.0
        %v8761 = vmax.f32 %v8743, 0.0
        %v8762 = vmax.f32 %v8744, 0.0
        %v8763 = vmax.f32 %v8745, 0.0
        %v8764 = vmax.f32 %v8746, 0.0
        %v8765 = vmax.f32 %v8747, 0.0
        %v8766 = vmax.f32 %v8748, 0.0
        %v8767 = vmax.f32 %v8749, 0.0
        %v8768 = vmax.f32 %v8750, 0.0
        %v8769 = vmax.f32 %v8751, 0.0
        %v8770 = vmax.f32 %v8752, 0.0
        %8771 = vst [vmem:[#allocation4] sm:$0xff] %v8753
        %8772 = vst [vmem:[#allocation4 + $0x8] sm:$0xff] %v8754
        %8773 = vst [vmem:[#allocation4 + $0x10] sm:$0xff] %v8755
        %8774 = vst [vmem:[#allocation4 + $0x18] sm:$0xff] %v8756
        %8775 = vst [vmem:[#allocation4 + $0x20] sm:$0xff] %v8757
        %8776 = vst [vmem:[#allocation4 + $0x28] sm:$0xff] %v8758
        %8777 = vst [vmem:[#allocation4 + $0x30] sm:$0xff] %v8759
        %8778 = vst [vmem:[#allocation4 + $0x38] sm:$0xff] %v8760
        %8779 = vst [vmem:[#allocation4 + $0x40] sm:$0xff] %v8761
        %8780 = vst [vmem:[#allocation4 + $0x48] sm:$0xff] %v8762
        %8781 = vst [vmem:[#allocation4 + $0x50] sm:$0xff] %v8763
        %8782 = vst [vmem:[#allocation4 + $0x58] sm:$0xff] %v8764
        %8783 = vst [vmem:[#allocation4 + $0x60] sm:$0xff] %v8765
        %8784 = vst [vmem:[#allocation4 + $0x68] sm:$0xff] %v8766
        %8785 = vst [vmem:[#allocation4 + $0x70] sm:$0xff] %v8767
        %8786 = vst [vmem:[#allocation4 + $0x78] sm:$0xff] %v8768
        %8787 = vst [vmem:[#allocation4 + $0x80] sm:$0xff] %v8769
        %8788 = vst [vmem:[#allocation4 + $0x88] sm:$0xff] %v8770
        %v8789 = vld [vmem:[#allocation4] sm:$0xff]
        %v8790 = vld [vmem:[#allocation4 + $0x8] sm:$0xff]
        %s8791 = scalar_lea.vmem [#allocation4], 16
        %v8792 = vld [vmem:[%s8791] sm:$0xff]
        %v8793 = vld [vmem:[%s8791 + $0x8] sm:$0xff]
        %v8794 = vsel %vm4772, %v8789, %v8792
        %v8795 = vsel %vm4772, %v8790, %v8793
        %v8796 = vpack.c.bf16 %v8795, %v8794
        %v8797 = vld [vmem:[%s7] sm:$0xf]
        %v8798 = vld [vmem:[%s7 + $0x4] sm:$0xf]
        %v8799 = vld [vmem:[%s7 + $0x8] sm:$0xf]
        %v8800 = vld [vmem:[%s7 + $0xc] sm:$0xf]
        %v8801 = vld [vmem:[%s7 + $0x10] sm:$0xf]
        %v8802 = vld [vmem:[%s7 + $0x14] sm:$0xf]
        %v8803 = vld [vmem:[%s7 + $0x18] sm:$0xf]
        %v8804 = vld [vmem:[%s7 + $0x1c] sm:$0xf]
        %v8805 = vld [vmem:[%s7 + $0x20] sm:$0xf]
        %v8806 = vld [vmem:[%s7 + $0x24] sm:$0xf]
        %v8807 = vld [vmem:[%s7 + $0x28] sm:$0xf]
        %v8808 = vld [vmem:[%s7 + $0x2c] sm:$0xf]
        %v8809 = vld [vmem:[%s7 + $0x30] sm:$0xf]
        %v8810 = vld [vmem:[%s7 + $0x34] sm:$0xf]
        %v8811 = vld [vmem:[%s7 + $0x38] sm:$0xf]
        %v8812 = vld [vmem:[%s7 + $0x3c] sm:$0xf]
        %s8813 = scalar_lea.vmem [#allocation4], 32
        %v8814 = vld [vmem:[%s8813] sm:$0xff]
        %v8815 = vld [vmem:[%s8813 + $0x8] sm:$0xff]
        %s8816 = scalar_lea.vmem [#allocation4], 48
        %v8817 = vld [vmem:[%s8816] sm:$0xff]
        %v8818 = vld [vmem:[%s8816 + $0x8] sm:$0xff]
        %v8819 = vsel %vm4772, %v8814, %v8817
        %v8820 = vsel %vm4772, %v8815, %v8818
        %v8821 = vpack.c.bf16 %v8820, %v8819
        %s8822 = scalar_lea.vmem %s7, 64
        %v8823 = vld [vmem:[%s8822] sm:$0xf]
        %v8824 = vld [vmem:[%s8822 + $0x4] sm:$0xf]
        %v8825 = vld [vmem:[%s8822 + $0x8] sm:$0xf]
        %v8826 = vld [vmem:[%s8822 + $0xc] sm:$0xf]
        %v8827 = vld [vmem:[%s8822 + $0x10] sm:$0xf]
        %v8828 = vld [vmem:[%s8822 + $0x14] sm:$0xf]
        %v8829 = vld [vmem:[%s8822 + $0x18] sm:$0xf]
        %v8830 = vld [vmem:[%s8822 + $0x1c] sm:$0xf]
        %v8831 = vld [vmem:[%s8822 + $0x20] sm:$0xf]
        %v8832 = vld [vmem:[%s8822 + $0x24] sm:$0xf]
        %v8833 = vld [vmem:[%s8822 + $0x28] sm:$0xf]
        %v8834 = vld [vmem:[%s8822 + $0x2c] sm:$0xf]
        %v8835 = vld [vmem:[%s8822 + $0x30] sm:$0xf]
        %v8836 = vld [vmem:[%s8822 + $0x34] sm:$0xf]
        %v8837 = vld [vmem:[%s8822 + $0x38] sm:$0xf]
        %v8838 = vld [vmem:[%s8822 + $0x3c] sm:$0xf]
        %v8855 = vunpack.c.l.b16 %v8823
        %v8856 = vunpack.c.l.b16 %v8824
        %v8857 = vunpack.c.l.b16 %v8825
        %v8858 = vunpack.c.l.b16 %v8826
        %v8859 = vunpack.c.l.b16 %v8827
        %v8860 = vunpack.c.l.b16 %v8828
        %v8861 = vunpack.c.l.b16 %v8829
        %v8862 = vunpack.c.l.b16 %v8830
        %v8863 = vunpack.c.l.b16 %v8831
        %v8864 = vunpack.c.l.b16 %v8832
        %v8865 = vunpack.c.l.b16 %v8833
        %v8866 = vunpack.c.l.b16 %v8834
        %v8867 = vunpack.c.l.b16 %v8835
        %v8868 = vunpack.c.l.b16 %v8836
        %v8869 = vunpack.c.l.b16 %v8837
        %v8870 = vunpack.c.l.b16 %v8838
        %v8871 = vpack.c.b16 %v8856, %v8855
        %v8872 = vpack.c.b16 %v8858, %v8857
        %v8873 = vpack.c.b16 %v8860, %v8859
        %v8874 = vpack.c.b16 %v8862, %v8861
        %v8875 = vpack.c.b16 %v8864, %v8863
        %v8876 = vpack.c.b16 %v8866, %v8865
        %v8877 = vpack.c.b16 %v8868, %v8867
        %v8878 = vpack.c.b16 %v8870, %v8869
        %8887 = vmatprep.subr.bf16.mxu0 0
        %8888 = vmatpush1.bf16.msra.mxu0 %v8871
        %8889 = vmatprep.subr.bf16.mxu0 0
        %8890 = vmatpush1.bf16.msra.mxu0 %v8872
        %8891 = vmatprep.subr.bf16.mxu0 0
        %8892 = vmatpush1.bf16.msra.mxu0 %v8873
        %8893 = vmatprep.subr.bf16.mxu0 0
        %8894 = vmatpush1.bf16.msra.mxu0 %v8874
        %8895 = vmatprep.subr.bf16.mxu0 0
        %8896 = vmatpush1.bf16.msra.mxu0 %v8875
        %8897 = vmatprep.subr.bf16.mxu0 0
        %8898 = vmatpush1.bf16.msra.mxu0 %v8876
        %8899 = vmatprep.subr.bf16.mxu0 0
        %8900 = vmatpush1.bf16.msra.mxu0 %v8877
        %8901 = vmatprep.subr.bf16.mxu0 0
        %8902 = vmatpush1.bf16.msra.mxu0 %v8878
        %8903 = vmatprep.subr.bf16.mxu0 0
        %8904 = vmatpush1.bf16.msra.mxu0 0
        %8905 = vmatprep.subr.bf16.mxu0 0
        %8906 = vmatpush1.bf16.msra.mxu0 0
        %8907 = vmatprep.subr.bf16.mxu0 0
        %8908 = vmatpush1.bf16.msra.mxu0 0
        %8909 = vmatprep.subr.bf16.mxu0 0
        %8910 = vmatpush1.bf16.msra.mxu0 0
        %8911 = vmatprep.subr.bf16.mxu0 0
        %8912 = vmatpush1.bf16.msra.mxu0 0
        %8913 = vmatprep.subr.bf16.mxu0 0
        %8914 = vmatpush1.bf16.msra.mxu0 0
        %8915 = vmatprep.subr.bf16.mxu0 0
        %8916 = vmatpush1.bf16.msra.mxu0 0
        %8917 = vmatprep.subr.bf16.mxu0 0
        %8918 = vmatpush1.bf16.msra.mxu0 0
        %8919 = vmatprep.mubr.bf16.mxu0 0
        %8920 = vmatmul.mubr.bf16.gmra.mrb[0].mxu0 %v8821
        %v8921 = vpop.f32.mrb[0].mxu0
        %v8922 = vadd.f32 0.0, %v8921
        %v8923 = vpop.f32.mrb[0].mxu0
        %v8924 = vpop.f32.mrb[0].mxu0
        %v8925 = vadd.f32 0.0, %v8924
        %v8926 = vpop.f32.mrb[0].mxu0
        %8927 = vdwg.mxu0
        %v8944 = vunpack.c.l.b16 %v8797
        %v8945 = vunpack.c.l.b16 %v8798
        %v8946 = vunpack.c.l.b16 %v8799
        %v8947 = vunpack.c.l.b16 %v8800
        %v8948 = vunpack.c.l.b16 %v8801
        %v8949 = vunpack.c.l.b16 %v8802
        %v8950 = vunpack.c.l.b16 %v8803
        %v8951 = vunpack.c.l.b16 %v8804
        %v8952 = vunpack.c.l.b16 %v8805
        %v8953 = vunpack.c.l.b16 %v8806
        %v8954 = vunpack.c.l.b16 %v8807
        %v8955 = vunpack.c.l.b16 %v8808
        %v8956 = vunpack.c.l.b16 %v8809
        %v8957 = vunpack.c.l.b16 %v8810
        %v8958 = vunpack.c.l.b16 %v8811
        %v8959 = vunpack.c.l.b16 %v8812
        %v8960 = vpack.c.b16 %v8945, %v8944
        %v8961 = vpack.c.b16 %v8947, %v8946
        %v8962 = vpack.c.b16 %v8949, %v8948
        %v8963 = vpack.c.b16 %v8951, %v8950
        %v8964 = vpack.c.b16 %v8953, %v8952
        %v8965 = vpack.c.b16 %v8955, %v8954
        %v8966 = vpack.c.b16 %v8957, %v8956
        %v8967 = vpack.c.b16 %v8959, %v8958
        %8976 = vmatprep.subr.bf16.mxu0 0
        %8977 = vmatpush1.bf16.msra.mxu0 %v8960
        %8978 = vmatprep.subr.bf16.mxu0 0
        %8979 = vmatpush1.bf16.msra.mxu0 %v8961
        %8980 = vmatprep.subr.bf16.mxu0 0
        %8981 = vmatpush1.bf16.msra.mxu0 %v8962
        %8982 = vmatprep.subr.bf16.mxu0 0
        %8983 = vmatpush1.bf16.msra.mxu0 %v8963
        %8984 = vmatprep.subr.bf16.mxu0 0
        %8985 = vmatpush1.bf16.msra.mxu0 %v8964
        %8986 = vmatprep.subr.bf16.mxu0 0
        %8987 = vmatpush1.bf16.msra.mxu0 %v8965
        %8988 = vmatprep.subr.bf16.mxu0 0
        %8989 = vmatpush1.bf16.msra.mxu0 %v8966
        %8990 = vmatprep.subr.bf16.mxu0 0
        %8991 = vmatpush1.bf16.msra.mxu0 %v8967
        %8992 = vmatprep.subr.bf16.mxu0 0
        %8993 = vmatpush1.bf16.msra.mxu0 0
        %8994 = vmatprep.subr.bf16.mxu0 0
        %8995 = vmatpush1.bf16.msra.mxu0 0
        %8996 = vmatprep.subr.bf16.mxu0 0
        %8997 = vmatpush1.bf16.msra.mxu0 0
        %8998 = vmatprep.subr.bf16.mxu0 0
        %8999 = vmatpush1.bf16.msra.mxu0 0
        %9000 = vmatprep.subr.bf16.mxu0 0
        %9001 = vmatpush1.bf16.msra.mxu0 0
        %9002 = vmatprep.subr.bf16.mxu0 0
        %9003 = vmatpush1.bf16.msra.mxu0 0
        %9004 = vmatprep.subr.bf16.mxu0 0
        %9005 = vmatpush1.bf16.msra.mxu0 0
        %9006 = vmatprep.subr.bf16.mxu0 0
        %9007 = vmatpush1.bf16.msra.mxu0 0
        %9008 = vmatprep.mubr.bf16.mxu0 0
        %9009 = vmatmul.mubr.bf16.gmra.mrb[0].mxu0 %v8796
        %v9010 = vpop.f32.mrb[0].mxu0
        %v9011 = vadd.f32 %v8922, %v9010
        %v9012 = vpop.f32.mrb[0].mxu0
        %v9013 = vpop.f32.mrb[0].mxu0
        %v9014 = vadd.f32 %v8925, %v9013
        %v9015 = vpop.f32.mrb[0].mxu0
        %9016 = vdwg.mxu0
        %s9017 = scalar_lea.vmem [#allocation4], 64
        %v9018 = vld [vmem:[%s9017] sm:$0xff]
        %v9019 = vld [vmem:[%s9017 + $0x8] sm:$0xff]
        %s9020 = scalar_lea.vmem [#allocation4], 80
        %v9021 = vld [vmem:[%s9020] sm:$0xff]
        %v9022 = vld [vmem:[%s9020 + $0x8] sm:$0xff]
        %v9023 = vsel %vm4772, %v9018, %v9021
        %v9024 = vsel %vm4772, %v9019, %v9022
        %v9025 = vpack.c.bf16 %v9024, %v9023
        %s9026 = scalar_lea.vmem %s7, 128
        %v9027 = vld [vmem:[%s9026] sm:$0xf]
        %v9028 = vld [vmem:[%s9026 + $0x4] sm:$0xf]
        %v9029 = vld [vmem:[%s9026 + $0x8] sm:$0xf]
        %v9030 = vld [vmem:[%s9026 + $0xc] sm:$0xf]
        %v9031 = vld [vmem:[%s9026 + $0x10] sm:$0xf]
        %v9032 = vld [vmem:[%s9026 + $0x14] sm:$0xf]
        %v9033 = vld [vmem:[%s9026 + $0x18] sm:$0xf]
        %v9034 = vld [vmem:[%s9026 + $0x1c] sm:$0xf]
        %v9035 = vld [vmem:[%s9026 + $0x20] sm:$0xf]
        %v9036 = vld [vmem:[%s9026 + $0x24] sm:$0xf]
        %v9037 = vld [vmem:[%s9026 + $0x28] sm:$0xf]
        %v9038 = vld [vmem:[%s9026 + $0x2c] sm:$0xf]
        %v9039 = vld [vmem:[%s9026 + $0x30] sm:$0xf]
        %v9040 = vld [vmem:[%s9026 + $0x34] sm:$0xf]
        %v9041 = vld [vmem:[%s9026 + $0x38] sm:$0xf]
        %v9042 = vld [vmem:[%s9026 + $0x3c] sm:$0xf]
        %v9059 = vunpack.c.l.b16 %v9027
        %v9060 = vunpack.c.l.b16 %v9028
        %v9061 = vunpack.c.l.b16 %v9029
        %v9062 = vunpack.c.l.b16 %v9030
        %v9063 = vunpack.c.l.b16 %v9031
        %v9064 = vunpack.c.l.b16 %v9032
        %v9065 = vunpack.c.l.b16 %v9033
        %v9066 = vunpack.c.l.b16 %v9034
        %v9067 = vunpack.c.l.b16 %v9035
        %v9068 = vunpack.c.l.b16 %v9036
        %v9069 = vunpack.c.l.b16 %v9037
        %v9070 = vunpack.c.l.b16 %v9038
        %v9071 = vunpack.c.l.b16 %v9039
        %v9072 = vunpack.c.l.b16 %v9040
        %v9073 = vunpack.c.l.b16 %v9041
        %v9074 = vunpack.c.l.b16 %v9042
        %v9075 = vpack.c.b16 %v9060, %v9059
        %v9076 = vpack.c.b16 %v9062, %v9061
        %v9077 = vpack.c.b16 %v9064, %v9063
        %v9078 = vpack.c.b16 %v9066, %v9065
        %v9079 = vpack.c.b16 %v9068, %v9067
        %v9080 = vpack.c.b16 %v9070, %v9069
        %v9081 = vpack.c.b16 %v9072, %v9071
        %v9082 = vpack.c.b16 %v9074, %v9073
        %9091 = vmatprep.subr.bf16.mxu0 0
        %9092 = vmatpush1.bf16.msra.mxu0 %v9075
        %9093 = vmatprep.subr.bf16.mxu0 0
        %9094 = vmatpush1.bf16.msra.mxu0 %v9076
        %9095 = vmatprep.subr.bf16.mxu0 0
        %9096 = vmatpush1.bf16.msra.mxu0 %v9077
        %9097 = vmatprep.subr.bf16.mxu0 0
        %9098 = vmatpush1.bf16.msra.mxu0 %v9078
        %9099 = vmatprep.subr.bf16.mxu0 0
        %9100 = vmatpush1.bf16.msra.mxu0 %v9079
        %9101 = vmatprep.subr.bf16.mxu0 0
        %9102 = vmatpush1.bf16.msra.mxu0 %v9080
        %9103 = vmatprep.subr.bf16.mxu0 0
        %9104 = vmatpush1.bf16.msra.mxu0 %v9081
        %9105 = vmatprep.subr.bf16.mxu0 0
        %9106 = vmatpush1.bf16.msra.mxu0 %v9082
        %9107 = vmatprep.subr.bf16.mxu0 0
        %9108 = vmatpush1.bf16.msra.mxu0 0
        %9109 = vmatprep.subr.bf16.mxu0 0
        %9110 = vmatpush1.bf16.msra.mxu0 0
        %9111 = vmatprep.subr.bf16.mxu0 0
        %9112 = vmatpush1.bf16.msra.mxu0 0
        %9113 = vmatprep.subr.bf16.mxu0 0
        %9114 = vmatpush1.bf16.msra.mxu0 0
        %9115 = vmatprep.subr.bf16.mxu0 0
        %9116 = vmatpush1.bf16.msra.mxu0 0
        %9117 = vmatprep.subr.bf16.mxu0 0
        %9118 = vmatpush1.bf16.msra.mxu0 0
        %9119 = vmatprep.subr.bf16.mxu0 0
        %9120 = vmatpush1.bf16.msra.mxu0 0
        %9121 = vmatprep.subr.bf16.mxu0 0
        %9122 = vmatpush1.bf16.msra.mxu0 0
        %9123 = vmatprep.mubr.bf16.mxu0 0
        %9124 = vmatmul.mubr.bf16.gmra.mrb[0].mxu0 %v9025
        %v9125 = vpop.f32.mrb[0].mxu0
        %v9126 = vadd.f32 0.0, %v9125
        %v9127 = vpop.f32.mrb[0].mxu0
        %v9128 = vpop.f32.mrb[0].mxu0
        %v9129 = vadd.f32 0.0, %v9128
        %v9130 = vpop.f32.mrb[0].mxu0
        %9131 = vdwg.mxu0
        %v9132 = vadd.f32 %v9011, %v9126
        %v9133 = vadd.f32 %v9014, %v9129
        %s9134 = scalar_lea.vmem [#allocation4], 96
        %v9135 = vld [vmem:[%s9134] sm:$0xff]
        %v9136 = vld [vmem:[%s9134 + $0x8] sm:$0xff]
        %s9137 = scalar_lea.vmem [#allocation4], 112
        %v9138 = vld [vmem:[%s9137] sm:$0xff]
        %v9139 = vld [vmem:[%s9137 + $0x8] sm:$0xff]
        %v9140 = vsel %vm4772, %v9135, %v9138
        %v9141 = vsel %vm4772, %v9136, %v9139
        %v9142 = vpack.c.bf16 %v9141, %v9140
        %s9143 = scalar_lea.vmem %s7, 192
        %v9144 = vld [vmem:[%s9143] sm:$0xf]
        %v9145 = vld [vmem:[%s9143 + $0x4] sm:$0xf]
        %v9146 = vld [vmem:[%s9143 + $0x8] sm:$0xf]
        %v9147 = vld [vmem:[%s9143 + $0xc] sm:$0xf]
        %v9148 = vld [vmem:[%s9143 + $0x10] sm:$0xf]
        %v9149 = vld [vmem:[%s9143 + $0x14] sm:$0xf]
        %v9150 = vld [vmem:[%s9143 + $0x18] sm:$0xf]
        %v9151 = vld [vmem:[%s9143 + $0x1c] sm:$0xf]
        %v9152 = vld [vmem:[%s9143 + $0x20] sm:$0xf]
        %v9153 = vld [vmem:[%s9143 + $0x24] sm:$0xf]
        %v9154 = vld [vmem:[%s9143 + $0x28] sm:$0xf]
        %v9155 = vld [vmem:[%s9143 + $0x2c] sm:$0xf]
        %v9156 = vld [vmem:[%s9143 + $0x30] sm:$0xf]
        %v9157 = vld [vmem:[%s9143 + $0x34] sm:$0xf]
        %v9158 = vld [vmem:[%s9143 + $0x38] sm:$0xf]
        %v9159 = vld [vmem:[%s9143 + $0x3c] sm:$0xf]
        %v9176 = vunpack.c.l.b16 %v9144
        %v9177 = vunpack.c.l.b16 %v9145
        %v9178 = vunpack.c.l.b16 %v9146
        %v9179 = vunpack.c.l.b16 %v9147
        %v9180 = vunpack.c.l.b16 %v9148
        %v9181 = vunpack.c.l.b16 %v9149
        %v9182 = vunpack.c.l.b16 %v9150
        %v9183 = vunpack.c.l.b16 %v9151
        %v9184 = vunpack.c.l.b16 %v9152
        %v9185 = vunpack.c.l.b16 %v9153
        %v9186 = vunpack.c.l.b16 %v9154
        %v9187 = vunpack.c.l.b16 %v9155
        %v9188 = vunpack.c.l.b16 %v9156
        %v9189 = vunpack.c.l.b16 %v9157
        %v9190 = vunpack.c.l.b16 %v9158
        %v9191 = vunpack.c.l.b16 %v9159
        %v9192 = vpack.c.b16 %v9177, %v9176
        %v9193 = vpack.c.b16 %v9179, %v9178
        %v9194 = vpack.c.b16 %v9181, %v9180
        %v9195 = vpack.c.b16 %v9183, %v9182
        %v9196 = vpack.c.b16 %v9185, %v9184
        %v9197 = vpack.c.b16 %v9187, %v9186
        %v9198 = vpack.c.b16 %v9189, %v9188
        %v9199 = vpack.c.b16 %v9191, %v9190
        %9208 = vmatprep.subr.bf16.mxu0 0
        %9209 = vmatpush1.bf16.msra.mxu0 %v9192
        %9210 = vmatprep.subr.bf16.mxu0 0
        %9211 = vmatpush1.bf16.msra.mxu0 %v9193
        %9212 = vmatprep.subr.bf16.mxu0 0
        %9213 = vmatpush1.bf16.msra.mxu0 %v9194
        %9214 = vmatprep.subr.bf16.mxu0 0
        %9215 = vmatpush1.bf16.msra.mxu0 %v9195
        %9216 = vmatprep.subr.bf16.mxu0 0
        %9217 = vmatpush1.bf16.msra.mxu0 %v9196
        %9218 = vmatprep.subr.bf16.mxu0 0
        %9219 = vmatpush1.bf16.msra.mxu0 %v9197
        %9220 = vmatprep.subr.bf16.mxu0 0
        %9221 = vmatpush1.bf16.msra.mxu0 %v9198
        %9222 = vmatprep.subr.bf16.mxu0 0
        %9223 = vmatpush1.bf16.msra.mxu0 %v9199
        %9224 = vmatprep.subr.bf16.mxu0 0
        %9225 = vmatpush1.bf16.msra.mxu0 0
        %9226 = vmatprep.subr.bf16.mxu0 0
        %9227 = vmatpush1.bf16.msra.mxu0 0
        %9228 = vmatprep.subr.bf16.mxu0 0
        %9229 = vmatpush1.bf16.msra.mxu0 0
        %9230 = vmatprep.subr.bf16.mxu0 0
        %9231 = vmatpush1.bf16.msra.mxu0 0
        %9232 = vmatprep.subr.bf16.mxu0 0
        %9233 = vmatpush1.bf16.msra.mxu0 0
        %9234 = vmatprep.subr.bf16.mxu0 0
        %9235 = vmatpush1.bf16.msra.mxu0 0
        %9236 = vmatprep.subr.bf16.mxu0 0
        %9237 = vmatpush1.bf16.msra.mxu0 0
        %9238 = vmatprep.subr.bf16.mxu0 0
        %9239 = vmatpush1.bf16.msra.mxu0 0
        %9240 = vmatprep.mubr.bf16.mxu0 0
        %9241 = vmatmul.mubr.bf16.gmra.mrb[0].mxu0 %v9142
        %v9242 = vpop.f32.mrb[0].mxu0
        %v9243 = vadd.f32 0.0, %v9242
        %v9244 = vpop.f32.mrb[0].mxu0
        %v9245 = vpop.f32.mrb[0].mxu0
        %v9246 = vadd.f32 0.0, %v9245
        %v9247 = vpop.f32.mrb[0].mxu0
        %9248 = vdwg.mxu0
        %v9249 = vadd.f32 %v9132, %v9243
        %v9250 = vadd.f32 %v9133, %v9246
        %s9251 = scalar_lea.vmem [#allocation4], 128
        %v9252 = vld [vmem:[%s9251] sm:$0xff]
        %v9253 = vld [vmem:[%s9251 + $0x8] sm:$0xff]
        %v9254 = vpack.c.bf16 %v9253, %v9252
        %s9255 = scalar_lea.vmem %s7, 256
        %v9256 = vld [vmem:[%s9255] sm:$0xf]
        %v9257 = vld [vmem:[%s9255 + $0x4] sm:$0xf]
        %v9258 = vld [vmem:[%s9255 + $0x8] sm:$0xf]
        %v9259 = vld [vmem:[%s9255 + $0xc] sm:$0xf]
        %v9260 = vld [vmem:[%s9255 + $0x10] sm:$0xf]
        %v9261 = vld [vmem:[%s9255 + $0x14] sm:$0xf]
        %v9262 = vld [vmem:[%s9255 + $0x18] sm:$0xf]
        %v9263 = vld [vmem:[%s9255 + $0x1c] sm:$0xf]
        %v9264 = vld [vmem:[%s9255 + $0x20] sm:$0xf]
        %v9265 = vld [vmem:[%s9255 + $0x24] sm:$0xf]
        %v9266 = vld [vmem:[%s9255 + $0x28] sm:$0xf]
        %v9267 = vld [vmem:[%s9255 + $0x2c] sm:$0xf]
        %v9268 = vld [vmem:[%s9255 + $0x30] sm:$0xf]
        %v9269 = vld [vmem:[%s9255 + $0x34] sm:$0xf]
        %v9270 = vld [vmem:[%s9255 + $0x38] sm:$0xf]
        %v9271 = vld [vmem:[%s9255 + $0x3c] sm:$0xf]
        %v9288 = vunpack.c.l.b16 %v9256
        %v9289 = vunpack.c.l.b16 %v9257
        %v9290 = vunpack.c.l.b16 %v9258
        %v9291 = vunpack.c.l.b16 %v9259
        %v9292 = vunpack.c.l.b16 %v9260
        %v9293 = vunpack.c.l.b16 %v9261
        %v9294 = vunpack.c.l.b16 %v9262
        %v9295 = vunpack.c.l.b16 %v9263
        %v9296 = vunpack.c.l.b16 %v9264
        %v9297 = vunpack.c.l.b16 %v9265
        %v9298 = vunpack.c.l.b16 %v9266
        %v9299 = vunpack.c.l.b16 %v9267
        %v9300 = vunpack.c.l.b16 %v9268
        %v9301 = vunpack.c.l.b16 %v9269
        %v9302 = vunpack.c.l.b16 %v9270
        %v9303 = vunpack.c.l.b16 %v9271
        %v9304 = vpack.c.b16 %v9289, %v9288
        %v9305 = vpack.c.b16 %v9291, %v9290
        %v9306 = vpack.c.b16 %v9293, %v9292
        %v9307 = vpack.c.b16 %v9295, %v9294
        %v9308 = vpack.c.b16 %v9297, %v9296
        %v9309 = vpack.c.b16 %v9299, %v9298
        %v9310 = vpack.c.b16 %v9301, %v9300
        %v9311 = vpack.c.b16 %v9303, %v9302
        %9320 = vmatprep.subr.bf16.mxu0 0
        %9321 = vmatpush1.bf16.msra.mxu0 %v9304
        %9322 = vmatprep.subr.bf16.mxu0 0
        %9323 = vmatpush1.bf16.msra.mxu0 %v9305
        %9324 = vmatprep.subr.bf16.mxu0 0
        %9325 = vmatpush1.bf16.msra.mxu0 %v9306
        %9326 = vmatprep.subr.bf16.mxu0 0
        %9327 = vmatpush1.bf16.msra.mxu0 %v9307
        %9328 = vmatprep.subr.bf16.mxu0 0
        %9329 = vmatpush1.bf16.msra.mxu0 %v9308
        %9330 = vmatprep.subr.bf16.mxu0 0
        %9331 = vmatpush1.bf16.msra.mxu0 %v9309
        %9332 = vmatprep.subr.bf16.mxu0 0
        %9333 = vmatpush1.bf16.msra.mxu0 %v9310
        %9334 = vmatprep.subr.bf16.mxu0 0
        %9335 = vmatpush1.bf16.msra.mxu0 %v9311
        %9336 = vmatprep.subr.bf16.mxu0 0
        %9337 = vmatpush1.bf16.msra.mxu0 0
        %9338 = vmatprep.subr.bf16.mxu0 0
        %9339 = vmatpush1.bf16.msra.mxu0 0
        %9340 = vmatprep.subr.bf16.mxu0 0
        %9341 = vmatpush1.bf16.msra.mxu0 0
        %9342 = vmatprep.subr.bf16.mxu0 0
        %9343 = vmatpush1.bf16.msra.mxu0 0
        %9344 = vmatprep.subr.bf16.mxu0 0
        %9345 = vmatpush1.bf16.msra.mxu0 0
        %9346 = vmatprep.subr.bf16.mxu0 0
        %9347 = vmatpush1.bf16.msra.mxu0 0
        %9348 = vmatprep.subr.bf16.mxu0 0
        %9349 = vmatpush1.bf16.msra.mxu0 0
        %9350 = vmatprep.subr.bf16.mxu0 0
        %9351 = vmatpush1.bf16.msra.mxu0 0
        %9352 = vmatprep.mubr.bf16.mxu0 0
        %9353 = vmatmul.mubr.bf16.gmra.mrb[0].mxu0 %v9254
        %v9354 = vpop.f32.mrb[0].mxu0
        %v9355 = vadd.f32 0.0, %v9354
        %v9356 = vpop.f32.mrb[0].mxu0
        %v9357 = vpop.f32.mrb[0].mxu0
        %v9358 = vadd.f32 0.0, %v9357
        %v9359 = vpop.f32.mrb[0].mxu0
        %9360 = vdwg.mxu0
        %v9361 = vadd.f32 %v9249, %v9355
        %v9362 = vadd.f32 %v9250, %v9358
        %v9363 = vld [vmem:[%s8] sm:$0x1]
        %v9365 = vlaneseq
        %v9366 = vshrl.u32 %v9365, 7
        %v9367 = vsub.s32 0, %v9366
        %v9368 = vrot.slane %v9363, %v9367
        %v9370 = vadd.f32 %v9361, %v9368
        %v9371 = vadd.f32 %v9362, %v9368
        %v9372 = vmax.f32 %v9370, 0.0
        %v9373 = vmax.f32 %v9371, 0.0
        %9374 = vst [vmem:[%s1523] sm:$0xff] %v9372
        %9375 = vst [vmem:[%s1523 + $0x8] sm:$0xff] %v9373
        %s9376 = smul.u32 2, %s20
        %p9377 = scmp.lt.s32.totalorder %s9376, 3
        %s9378 = scalar_select %p9377, %s9376, 3
        %s9379 = smul.addr %s9378, 8
        %s9380 = scalar_lea.vmem %s9, %s9379
        // Predicated region
        $region98: #{conv_body_forward.1} parent=92 // pred_check
          %p9381 = pneg %p232
        $region99: #{conv_body_forward.1} parent=92 // pred_check_branch
          %9383 = sbr.rel (%p9381) target = $region101
        $region100: #{conv_body_forward.1} parent=92 // pred_region
          %s9384 = smul.u32 2, %s20
        $region101: #{conv_body_forward.1} parent=92 // pred_fallthru
          _
      $region93: #{conv_body_forward.1} parent=5 // pred_fallthru
        _
      %p9385 = scmp.le.s32.totalorder 2, %s15
      // Predicated region
      $region102: #{conv_body_forward.1} parent=5 // pred_check
        %p9386 = pneg %p9385
      $region103: #{conv_body_forward.1} parent=5 // pred_check_branch
        %9388 = sbr.rel (%p9386) target = $region105
      $region104: #{conv_body_forward.1} parent=5 // pred_region
        %s9389 = ssub.s32 %s15, 2
        // Predicated region
        $region106: #{conv_body_forward.1} parent=104 // pred_check
          %p9390 = pneg %p238
        $region107: #{conv_body_forward.1} parent=104 // pred_check_branch
          %9392 = sbr.rel (%p9390) target = $region109
        $region108: #{conv_body_forward.1} parent=104 // pred_region
          %s9393 = smul.u32 2, %s21
          %p9394 = scmp.lt.s32.totalorder %s9393, 3
          %s9395 = scalar_select %p9394, %s9393, 3
          %s9396 = smul.addr %s9395, 8
          %s9397 = scalar_lea.vmem %s9, %s9396
        $region109: #{conv_body_forward.1} parent=104 // pred_fallthru
          _
      $region105: #{conv_body_forward.1} parent=5 // pred_fallthru
        _
    $region6: #{conv_body_forward.1} parent=1 // loop_footer
      %s19 = sadd.s32 1, %s15
    $region7: #{conv_body_forward.1} parent=1 // loop_footer_branch
      %14 = sbr.rel target = $region3
    $region8: #{conv_body_forward.1} parent=1 // loop_exit
      _

</llo_original>
